<compile_context>
chip_gen: v6e
topology: v6e:2x2x1
jax: 0.10.0
libtpu: 0.0.40
codegen_flags: <defaults>
</compile_context>

<pallas_src>
import functools

import jax
import jax.numpy as jnp
import numpy as np
from jax.experimental import pallas as pl
from jax.experimental.pallas import tpu as pltpu


# ----------------------------------------------------------------------------
# Glue: window partition / reverse (Swin-style; dilated_size == 1 so the
# dilated re-partition in the PyTorch forward is the identity).
# ----------------------------------------------------------------------------
def window_partition_2d(x, Wh, Ww):
    B, H, W, C = x.shape
    x = x.reshape(B, H // Wh, Wh, W // Ww, Ww, C)
    x = x.transpose(0, 1, 3, 2, 4, 5)
    return x.reshape(-1, Wh * Ww, C)          # (B_, N, C)


def window_reverse_2d(win, Wh, Ww, B, H, W):
    C = win.shape[-1]
    x = win.reshape(B, H // Wh, W // Ww, Wh, Ww, C)
    x = x.transpose(0, 1, 3, 2, 4, 5)
    return x.reshape(B, H, W, C)


# ----------------------------------------------------------------------------
# RoPE tables (axial 2D RoPE, adjacent-pair rotation).
# ----------------------------------------------------------------------------
def rope2_tables(Wh, Ww, head_dim):
    half = head_dim // 2
    freqs = 1.0 / (10000.0 ** (jnp.arange(0, half, 2, dtype=jnp.float32) / half))
    ang_h = jnp.arange(Wh, dtype=jnp.float32)[:, None] * freqs[None, :]
    ang_w = jnp.arange(Ww, dtype=jnp.float32)[:, None] * freqs[None, :]
    ang_h = jnp.repeat(ang_h, 2, axis=-1)                                  # (Wh, half)
    ang_w = jnp.repeat(ang_w, 2, axis=-1)                                  # (Ww, half)
    ang = jnp.concatenate(
        [jnp.broadcast_to(ang_h[:, None, :], (Wh, Ww, half)),
         jnp.broadcast_to(ang_w[None, :, :], (Wh, Ww, half))],
        axis=-1).reshape(Wh * Ww, head_dim)
    return jnp.cos(ang), jnp.sin(ang)          # each (N, head_dim)


def pair_rotation_matrix(dim):
    # (x @ R)[:, 2i] = -x[:, 2i+1]; (x @ R)[:, 2i+1] = x[:, 2i]
    # Block-diagonal in 2x2 pairs, so applying the (C, C) version is identical
    # to applying the (hd, hd) version independently per head (hd even).
    R = np.zeros((dim, dim), np.float32)
    idx = np.arange(0, dim, 2)
    R[idx + 1, idx] = -1.0
    R[idx, idx + 1] = 1.0
    return jnp.asarray(R)


# ----------------------------------------------------------------------------
# Pallas kernel: Bw attention windows per grid step, 3 inputs total.
#   x_ref : (Bw, N, C)        bf16   window activations
#   w_ref : (C, 6C)           bf16   [wq*s, wq*s@R, wk, wk@R, wv, w_proj]
#   t_ref : (4N+8, C)         f32    [cos; sin; q_rope_bias; k_rope_bias; bo; pad]
#   o_ref : (Bw, N, C)        bf16
# ----------------------------------------------------------------------------
def dilated_attn_kernel(x_ref, w_ref, t_ref, o_ref, *, num_heads):
    Bw, N, C = x_ref.shape
    nh = num_heads
    hd = C // nh
    bf16 = jnp.bfloat16

    xb = x_ref[...].reshape(Bw * N, C)                 # bf16 (Bw*N, C)
    w = w_ref[...]                                     # (C, 6C) bf16
    t = t_ref[...]                                     # (4N+8, C) f32

    cos = t[0 * N:1 * N, :][None]                      # (1, N, C)
    sin = t[1 * N:2 * N, :][None]
    qb = t[2 * N:3 * N, :][None]
    kb = t[3 * N:4 * N, :][None]
    bo = t[4 * N:4 * N + 1, :]                         # (1, C)

    # One fused, lane-dense projection: [q, q@R, k, k@R, v] -> (Bw*N, 5C) f32.
    qkvr = jnp.dot(xb, w[:, :5 * C], preferred_element_type=jnp.float32)

    def piece(i):
        return qkvr[:, i * C:(i + 1) * C].reshape(Bw, N, C)

    # RoPE elementwise, heads folded into the channel/lane axis; the attention
    # scale and the post-RoPE biases were folded in on the host.
    q = (piece(0) * cos + piece(1) * sin + qb).astype(bf16)   # (Bw, N, C)
    k = (piece(2) * cos + piece(3) * sin + kb).astype(bf16)
    v = piece(4).astype(bf16)

    # Per-head attention, batched over the Bw windows of this step.
    # nh is small (4) so the Python loop stays unrolled; switch to a fori_loop
    # or a head grid axis if nh grows (TODO(synk)).
    outs = []
    for h in range(nh):
        sl = slice(h * hd, (h + 1) * hd)
        qh, kh, vh = q[:, :, sl], k[:, :, sl], v[:, :, sl]   # (Bw, N, hd) bf16
        s = jnp.einsum("bqd,bkd->bqk", qh, kh,
                       preferred_element_type=jnp.float32)   # (Bw, N, N) f32
        s = s - jnp.max(s, axis=-1, keepdims=True)
        p = jnp.exp(s)
        p = p * pl.reciprocal(jnp.sum(p, axis=-1, keepdims=True), approx=True)
        outs.append(jnp.einsum("bqk,bkd->bqd", p.astype(bf16), vh,
                               preferred_element_type=jnp.float32).astype(bf16))

    # Assemble all heads and run ONE K=C output projection (replaces the
    # per-head K=hd accumulation chain).
    o2 = jnp.concatenate(outs, axis=-1).reshape(Bw * N, C)   # (Bw*N, C) bf16
    y = jnp.dot(o2, w[:, 5 * C:], preferred_element_type=jnp.float32) + bo
    o_ref[...] = y.reshape(Bw, N, C).astype(o_ref.dtype)


# ----------------------------------------------------------------------------
# Host-side heuristics.
# ----------------------------------------------------------------------------
def _tensorcores_per_chip():
    # v7x has 2 TensorCores per chip; v5e/v6e have 1.  Fall back to 1.
    try:
        kind = (jax.devices()[0].device_kind or "").lower()
    except Exception:
        kind = ""
    return 2 if "v7" in kind else 1


def _vmem_bytes_estimate(bw, n, c):
    blk = bw * n * c
    io = 2 * (blk * 2) * 2            # double-buffered bf16 in + out blocks
    proj = blk * 5 * 4                # fused projection result (f32, 5C wide)
    qkv = blk * 2 * 4 + blk * 3 * 2   # rope'd q/k (f32) + bf16 q/k/v
    scores = 2 * bw * n * n * 4       # ~2 live (Bw, N, N) f32 score/prob slabs
    tail = blk * (2 + 4)              # head-concat slab + f32 proj output
    return io + proj + qkv + scores + tail + (1 << 20)


def _pick_windows_per_step(B_, N, C, min_steps, budget_bytes):
    best = 1
    for d in range(B_, 0, -1):
        if B_ % d:
            continue
        if d != 1 and _vmem_bytes_estimate(d, N, C) > budget_bytes:
            continue
        if B_ // d >= min_steps or d == 1:
            best = d
            break
    return best


# ----------------------------------------------------------------------------
# Forward wrapper.
# ----------------------------------------------------------------------------
def dilated_attn_forward(x, params, window_size, num_heads, windows_per_step=None):
    Wh, Ww = window_size
    B, H, W, C = x.shape
    assert H % Wh == 0 and W % Ww == 0
    nh = num_heads
    assert C % nh == 0
    hd = C // nh
    assert hd % 2 == 0, "RoPE pair rotation must not cross head boundaries"
    N = Wh * Ww
    scale = hd ** (-0.5)

    xw = window_partition_2d(x, Wh, Ww)           # (B_, N, C)
    B_ = xw.shape[0]

    if windows_per_step is None:
        # Single-TC chips (v5e/v6e): one grid step with the full window batch.
        # v7x (2 TCs): keep >=2 parallel steps so both cores get work.
        min_steps = 2 if _tensorcores_per_chip() >= 2 else 1
        Bw = _pick_windows_per_step(B_, N, C, min_steps, budget_bytes=20 << 20)
    else:
        Bw = windows_per_step
    assert B_ % Bw == 0
    grid = (B_ // Bw,)

    # --- fold RoPE rotation, attention scale and biases into host-side params.
    w_qkv = params["w_qkv"].astype(jnp.float32)            # (C, 3C)
    b_qkv = jnp.reshape(params["b_qkv"], (3 * C,)).astype(jnp.float32)
    w_proj = params["w_proj"].astype(jnp.float32)          # (C, C)
    b_proj = jnp.reshape(params["b_proj"], (1, C)).astype(jnp.float32)

    cos_t, sin_t = rope2_tables(Wh, Ww, hd)       # (N, hd)
    cos_C = jnp.tile(cos_t, (1, nh))              # (N, C): heads folded into lanes
    sin_C = jnp.tile(sin_t, (1, nh))
    R = pair_rotation_matrix(C)                   # block-diag pair rotation

    wq = w_qkv[:, :C] * scale                     # scale folded into q weights
    wk = w_qkv[:, C:2 * C]
    wv = w_qkv[:, 2 * C:]

    bq = b_qkv[:C] * scale
    bk = b_qkv[C:2 * C]
    bv = b_qkv[2 * C:]

    qb_C = bq[None, :] * cos_C + (bq @ R)[None, :] * sin_C   # (N, C) post-RoPE bias
    kb_C = bk[None, :] * cos_C + (bk @ R)[None, :] * sin_C
    # Softmax rows sum to 1 -> V bias contributes a constant: fold into b_proj.
    bo = b_proj + bv[None, :] @ w_proj                        # (1, C)

    # Two invariant operands for the kernel.
    w_all = jnp.concatenate([wq, wq @ R, wk, wk @ R, wv, w_proj],
                            axis=1).astype(jnp.bfloat16)      # (C, 6C)
    t_all = jnp.concatenate(
        [cos_C, sin_C, qb_C, kb_C, bo, jnp.zeros((7, C), jnp.float32)],
        axis=0)                                               # (4N+8, C) f32

    out = pl.pallas_call(
        functools.partial(dilated_attn_kernel, num_heads=nh),
        out_shape=jax.ShapeDtypeStruct((B_, N, C), jnp.bfloat16),
        grid_spec=pltpu.PrefetchScalarGridSpec(
            num_scalar_prefetch=0,
            grid=grid,
            in_specs=[
                pl.BlockSpec((Bw, N, C), lambda b: (b, 0, 0)),      # x windows
                pl.BlockSpec((C, 6 * C), lambda b: (0, 0)),         # fused weights
                pl.BlockSpec((4 * N + 8, C), lambda b: (0, 0)),     # fused tables
            ],
            out_specs=pl.BlockSpec((Bw, N, C), lambda b: (b, 0, 0)),
        ),
        compiler_params=pltpu.CompilerParams(
            dimension_semantics=("parallel",),
            vmem_limit_bytes=32 * 1024 * 1024),
    )(xw.astype(jnp.bfloat16), w_all, t_all)

    y = window_reverse_2d(out.astype(jnp.float32), Wh, Ww, B, H, W)
    return y.astype(x.dtype)


# ----------------------------------------------------------------------------
# Pure-JAX f32 reference (same math, no Pallas) for a correctness check.
# ----------------------------------------------------------------------------
def reference_forward(x, params, window_size, num_heads):
    Wh, Ww = window_size
    B, H, W, C = x.shape
    hd = C // num_heads
    N = Wh * Ww
    scale = hd ** (-0.5)

    xw = window_partition_2d(x, Wh, Ww)
    B_ = xw.shape[0]
    qkv = xw @ params["w_qkv"] + params["b_qkv"]                      # (B_, N, 3C)
    qkv = qkv.reshape(B_, N, 3, num_heads, hd).transpose(2, 0, 3, 1, 4)
    q, k, v = qkv[0], qkv[1], qkv[2]                                  # (B_, nh, N, hd)

    cos_t, sin_t = rope2_tables(Wh, Ww, hd)
    Rh = pair_rotation_matrix(hd)

    def rope(t):
        return t * cos_t + (t @ Rh) * sin_t

    q = rope(q) * scale
    k = rope(k)
    attn = jnp.einsum("bhnd,bhmd->bhnm", q, k)
    attn = jax.nn.softmax(attn, axis=-1)
    out = jnp.einsum("bhnm,bhmd->bhnd", attn, v)
    out = out.transpose(0, 2, 1, 3).reshape(B_, N, C)
    y = out @ params["w_proj"] + params["b_proj"]
    return window_reverse_2d(y, Wh, Ww, B, H, W)


if __name__ == "__main__":
    B, H, W, C = 2, 16, 16, 32
    num_heads = 4
    window_size = (8, 8)      # dilated_size defaults to [1, 1, 1] -> [1, 1] for 2D

    key = jax.random.PRNGKey(0)
    k1, k2, k3, k4, k5 = jax.random.split(key, 5)
    x = jax.random.normal(k1, (B, H, W, C), jnp.float32)
    params = {
        "w_qkv": 0.05 * jax.random.normal(k2, (C, 3 * C), jnp.float32),
        "b_qkv": 0.02 * jax.random.normal(k3, (1, 3 * C), jnp.float32),
        "w_proj": 0.05 * jax.random.normal(k4, (C, C), jnp.float32),
        "b_proj": 0.02 * jax.random.normal(k5, (1, C), jnp.float32),
    }

    y = dilated_attn_forward(x, params, window_size, num_heads)
    y = jax.block_until_ready(y)

    y_ref = reference_forward(x, params, window_size, num_heads)
    assert y.shape == (B, H, W, C)
    # Kernel runs its MXU matmuls in bf16 (f32 accumulation) and stores bf16;
    # compare against the f32 reference with a correspondingly relaxed tolerance.
    np.testing.assert_allclose(np.asarray(y), np.asarray(y_ref), atol=2e-2, rtol=2e-2)
    print("KERNEL_OK")
</pallas_src>

<mosaic_0001>
module attributes {stable_mosaic.version = 11 : i64} {
  func.func @dilated_attn_kernel(%arg0: i32, %arg1: memref<8x64x32xbf16, #tpu.memory_space<vmem>>, %arg2: memref<32x192xbf16, #tpu.memory_space<vmem>>, %arg3: memref<264x32xf32, #tpu.memory_space<vmem>>, %arg4: memref<8x64x32xbf16, #tpu.memory_space<vmem>>) attributes {dimension_semantics = [#tpu.dimension_semantics<parallel>], iteration_bounds = array<i64: 1>, scalar_prefetch = 0 : i64, scratch_operands = 0 : i64, tpu.core_type = #tpu.core_type<tc>, window_params = [{transform_indices = @transform_0, window_bounds = array<i64: 8, 64, 32>}, {pipeline_mode = #tpu.pipeline_mode<synchronous>, transform_indices = @transform_1, window_bounds = array<i64: 32, 192>}, {pipeline_mode = #tpu.pipeline_mode<synchronous>, transform_indices = @transform_2, window_bounds = array<i64: 264, 32>}, {transform_indices = @transform_3, window_bounds = array<i64: 8, 64, 32>}]} {
    %c0 = arith.constant 0 : index
    %c0_0 = arith.constant 0 : index
    %c0_1 = arith.constant 0 : index
    %0 = vector.load %arg1[%c0, %c0_0, %c0_1] : memref<8x64x32xbf16, #tpu.memory_space<vmem>>, vector<8x64x32xbf16>
    %1 = vector.shape_cast %0 : vector<8x64x32xbf16> to vector<512x32xbf16>
    %c0_2 = arith.constant 0 : index
    %c0_3 = arith.constant 0 : index
    %2 = vector.load %arg2[%c0_2, %c0_3] : memref<32x192xbf16, #tpu.memory_space<vmem>>, vector<32x192xbf16>
    %c0_4 = arith.constant 0 : index
    %c0_5 = arith.constant 0 : index
    %3 = vector.load %arg3[%c0_4, %c0_5] : memref<264x32xf32, #tpu.memory_space<vmem>>, vector<264x32xf32>
    %4 = vector.extract_strided_slice %3 {offsets = [0, 0], sizes = [64, 32], strides = [1, 1]} : vector<264x32xf32> to vector<64x32xf32>
    %5 = vector.shape_cast %4 : vector<64x32xf32> to vector<1x64x32xf32>
    %6 = vector.extract_strided_slice %3 {offsets = [64, 0], sizes = [64, 32], strides = [1, 1]} : vector<264x32xf32> to vector<64x32xf32>
    %7 = vector.shape_cast %6 : vector<64x32xf32> to vector<1x64x32xf32>
    %8 = vector.extract_strided_slice %3 {offsets = [128, 0], sizes = [64, 32], strides = [1, 1]} : vector<264x32xf32> to vector<64x32xf32>
    %9 = vector.shape_cast %8 : vector<64x32xf32> to vector<1x64x32xf32>
    %10 = vector.extract_strided_slice %3 {offsets = [192, 0], sizes = [64, 32], strides = [1, 1]} : vector<264x32xf32> to vector<64x32xf32>
    %11 = vector.shape_cast %10 : vector<64x32xf32> to vector<1x64x32xf32>
    %12 = vector.extract_strided_slice %3 {offsets = [256, 0], sizes = [1, 32], strides = [1, 1]} : vector<264x32xf32> to vector<1x32xf32>
    %13 = vector.extract_strided_slice %2 {offsets = [0, 0], sizes = [32, 160], strides = [1, 1]} : vector<32x192xbf16> to vector<32x160xbf16>
    %cst = arith.constant dense<0.000000e+00> : vector<512x160xf32>
    %14 = tpu.matmul %1, %13, %cst {dimension_numbers = #tpu.dot_dimension_numbers<[1], [0], [0], [1], [0, 0, 1, 1], [], []>} : vector<512x32xbf16>, vector<32x160xbf16>, vector<512x160xf32> -> vector<512x160xf32>
    %15 = vector.extract_strided_slice %14 {offsets = [0, 0], sizes = [512, 32], strides = [1, 1]} : vector<512x160xf32> to vector<512x32xf32>
    %16 = vector.shape_cast %15 : vector<512x32xf32> to vector<8x64x32xf32>
    %17 = vector.broadcast %5 : vector<1x64x32xf32> to vector<8x64x32xf32>
    %18 = arith.mulf %16, %17 : vector<8x64x32xf32>
    %19 = vector.extract_strided_slice %14 {offsets = [0, 32], sizes = [512, 32], strides = [1, 1]} : vector<512x160xf32> to vector<512x32xf32>
    %20 = vector.shape_cast %19 : vector<512x32xf32> to vector<8x64x32xf32>
    %21 = vector.broadcast %7 : vector<1x64x32xf32> to vector<8x64x32xf32>
    %22 = arith.mulf %20, %21 : vector<8x64x32xf32>
    %23 = arith.addf %18, %22 : vector<8x64x32xf32>
    %24 = vector.broadcast %9 : vector<1x64x32xf32> to vector<8x64x32xf32>
    %25 = arith.addf %23, %24 : vector<8x64x32xf32>
    %26 = arith.truncf %25 : vector<8x64x32xf32> to vector<8x64x32xbf16>
    %27 = vector.extract_strided_slice %14 {offsets = [0, 64], sizes = [512, 32], strides = [1, 1]} : vector<512x160xf32> to vector<512x32xf32>
    %28 = vector.shape_cast %27 : vector<512x32xf32> to vector<8x64x32xf32>
    %29 = vector.broadcast %5 : vector<1x64x32xf32> to vector<8x64x32xf32>
    %30 = arith.mulf %28, %29 : vector<8x64x32xf32>
    %31 = vector.extract_strided_slice %14 {offsets = [0, 96], sizes = [512, 32], strides = [1, 1]} : vector<512x160xf32> to vector<512x32xf32>
    %32 = vector.shape_cast %31 : vector<512x32xf32> to vector<8x64x32xf32>
    %33 = vector.broadcast %7 : vector<1x64x32xf32> to vector<8x64x32xf32>
    %34 = arith.mulf %32, %33 : vector<8x64x32xf32>
    %35 = arith.addf %30, %34 : vector<8x64x32xf32>
    %36 = vector.broadcast %11 : vector<1x64x32xf32> to vector<8x64x32xf32>
    %37 = arith.addf %35, %36 : vector<8x64x32xf32>
    %38 = arith.truncf %37 : vector<8x64x32xf32> to vector<8x64x32xbf16>
    %39 = vector.extract_strided_slice %14 {offsets = [0, 128], sizes = [512, 32], strides = [1, 1]} : vector<512x160xf32> to vector<512x32xf32>
    %40 = vector.shape_cast %39 : vector<512x32xf32> to vector<8x64x32xf32>
    %41 = arith.truncf %40 : vector<8x64x32xf32> to vector<8x64x32xbf16>
    %42 = vector.extract_strided_slice %26 {offsets = [0, 0, 0], sizes = [8, 64, 8], strides = [1, 1, 1]} : vector<8x64x32xbf16> to vector<8x64x8xbf16>
    %43 = vector.extract_strided_slice %38 {offsets = [0, 0, 0], sizes = [8, 64, 8], strides = [1, 1, 1]} : vector<8x64x32xbf16> to vector<8x64x8xbf16>
    %44 = vector.extract_strided_slice %41 {offsets = [0, 0, 0], sizes = [8, 64, 8], strides = [1, 1, 1]} : vector<8x64x32xbf16> to vector<8x64x8xbf16>
    "tpu.trace_start"() <{level = 10 : i32, message = "bqd,bkd->bqk"}> : () -> ()
    %cst_6 = arith.constant dense<0.000000e+00> : vector<8x64x64xf32>
    %45 = tpu.matmul %42, %43, %cst_6 {dimension_numbers = #tpu.dot_dimension_numbers<[2], [2], [1], [1], [0, 0, 0, 1, 1, 1], [0], [0]>} : vector<8x64x8xbf16>, vector<8x64x8xbf16>, vector<8x64x64xf32> -> vector<8x64x64xf32>
    "tpu.trace_stop"() : () -> ()
    %cst_7 = arith.constant dense<0xFF800000> : vector<8x64xf32>
    %46 = vector.multi_reduction <maximumf>, %45, %cst_7 [2] : vector<8x64x64xf32> to vector<8x64xf32>
    %47 = vector.shape_cast %46 : vector<8x64xf32> to vector<8x64x1xf32>
    %48 = vector.broadcast %47 : vector<8x64x1xf32> to vector<8x64x64xf32>
    %49 = arith.subf %45, %48 : vector<8x64x64xf32>
    %50 = math.exp %49 : vector<8x64x64xf32>
    %cst_8 = arith.constant dense<0.000000e+00> : vector<8x64xf32>
    %51 = vector.multi_reduction <add>, %50, %cst_8 [2] : vector<8x64x64xf32> to vector<8x64xf32>
    %52 = vector.shape_cast %51 : vector<8x64xf32> to vector<8x64x1xf32>
    %53 = tpu.reciprocal %52 {approx = true} : vector<8x64x1xf32> -> vector<8x64x1xf32>
    %54 = vector.broadcast %53 : vector<8x64x1xf32> to vector<8x64x64xf32>
    %55 = arith.mulf %50, %54 : vector<8x64x64xf32>
    %56 = arith.truncf %55 : vector<8x64x64xf32> to vector<8x64x64xbf16>
    "tpu.trace_start"() <{level = 10 : i32, message = "bqk,bkd->bqd"}> : () -> ()
    %cst_9 = arith.constant dense<0.000000e+00> : vector<8x64x8xf32>
    %57 = tpu.matmul %56, %44, %cst_9 {dimension_numbers = #tpu.dot_dimension_numbers<[2], [1], [1], [2], [0, 0, 0, 1, 1, 2], [0], [0]>} : vector<8x64x64xbf16>, vector<8x64x8xbf16>, vector<8x64x8xf32> -> vector<8x64x8xf32>
    "tpu.trace_stop"() : () -> ()
    %58 = arith.truncf %57 : vector<8x64x8xf32> to vector<8x64x8xbf16>
    %59 = vector.extract_strided_slice %26 {offsets = [0, 0, 8], sizes = [8, 64, 8], strides = [1, 1, 1]} : vector<8x64x32xbf16> to vector<8x64x8xbf16>
    %60 = vector.extract_strided_slice %38 {offsets = [0, 0, 8], sizes = [8, 64, 8], strides = [1, 1, 1]} : vector<8x64x32xbf16> to vector<8x64x8xbf16>
    %61 = vector.extract_strided_slice %41 {offsets = [0, 0, 8], sizes = [8, 64, 8], strides = [1, 1, 1]} : vector<8x64x32xbf16> to vector<8x64x8xbf16>
    "tpu.trace_start"() <{level = 10 : i32, message = "bqd,bkd->bqk"}> : () -> ()
    %cst_10 = arith.constant dense<0.000000e+00> : vector<8x64x64xf32>
    %62 = tpu.matmul %59, %60, %cst_10 {dimension_numbers = #tpu.dot_dimension_numbers<[2], [2], [1], [1], [0, 0, 0, 1, 1, 1], [0], [0]>} : vector<8x64x8xbf16>, vector<8x64x8xbf16>, vector<8x64x64xf32> -> vector<8x64x64xf32>
    "tpu.trace_stop"() : () -> ()
    %cst_11 = arith.constant dense<0xFF800000> : vector<8x64xf32>
    %63 = vector.multi_reduction <maximumf>, %62, %cst_11 [2] : vector<8x64x64xf32> to vector<8x64xf32>
    %64 = vector.shape_cast %63 : vector<8x64xf32> to vector<8x64x1xf32>
    %65 = vector.broadcast %64 : vector<8x64x1xf32> to vector<8x64x64xf32>
    %66 = arith.subf %62, %65 : vector<8x64x64xf32>
    %67 = math.exp %66 : vector<8x64x64xf32>
    %cst_12 = arith.constant dense<0.000000e+00> : vector<8x64xf32>
    %68 = vector.multi_reduction <add>, %67, %cst_12 [2] : vector<8x64x64xf32> to vector<8x64xf32>
    %69 = vector.shape_cast %68 : vector<8x64xf32> to vector<8x64x1xf32>
    %70 = tpu.reciprocal %69 {approx = true} : vector<8x64x1xf32> -> vector<8x64x1xf32>
    %71 = vector.broadcast %70 : vector<8x64x1xf32> to vector<8x64x64xf32>
    %72 = arith.mulf %67, %71 : vector<8x64x64xf32>
    %73 = arith.truncf %72 : vector<8x64x64xf32> to vector<8x64x64xbf16>
    "tpu.trace_start"() <{level = 10 : i32, message = "bqk,bkd->bqd"}> : () -> ()
    %cst_13 = arith.constant dense<0.000000e+00> : vector<8x64x8xf32>
    %74 = tpu.matmul %73, %61, %cst_13 {dimension_numbers = #tpu.dot_dimension_numbers<[2], [1], [1], [2], [0, 0, 0, 1, 1, 2], [0], [0]>} : vector<8x64x64xbf16>, vector<8x64x8xbf16>, vector<8x64x8xf32> -> vector<8x64x8xf32>
    "tpu.trace_stop"() : () -> ()
    %75 = arith.truncf %74 : vector<8x64x8xf32> to vector<8x64x8xbf16>
    %76 = vector.extract_strided_slice %26 {offsets = [0, 0, 16], sizes = [8, 64, 8], strides = [1, 1, 1]} : vector<8x64x32xbf16> to vector<8x64x8xbf16>
    %77 = vector.extract_strided_slice %38 {offsets = [0, 0, 16], sizes = [8, 64, 8], strides = [1, 1, 1]} : vector<8x64x32xbf16> to vector<8x64x8xbf16>
    %78 = vector.extract_strided_slice %41 {offsets = [0, 0, 16], sizes = [8, 64, 8], strides = [1, 1, 1]} : vector<8x64x32xbf16> to vector<8x64x8xbf16>
    "tpu.trace_start"() <{level = 10 : i32, message = "bqd,bkd->bqk"}> : () -> ()
    %cst_14 = arith.constant dense<0.000000e+00> : vector<8x64x64xf32>
    %79 = tpu.matmul %76, %77, %cst_14 {dimension_numbers = #tpu.dot_dimension_numbers<[2], [2], [1], [1], [0, 0, 0, 1, 1, 1], [0], [0]>} : vector<8x64x8xbf16>, vector<8x64x8xbf16>, vector<8x64x64xf32> -> vector<8x64x64xf32>
    "tpu.trace_stop"() : () -> ()
    %cst_15 = arith.constant dense<0xFF800000> : vector<8x64xf32>
    %80 = vector.multi_reduction <maximumf>, %79, %cst_15 [2] : vector<8x64x64xf32> to vector<8x64xf32>
    %81 = vector.shape_cast %80 : vector<8x64xf32> to vector<8x64x1xf32>
    %82 = vector.broadcast %81 : vector<8x64x1xf32> to vector<8x64x64xf32>
    %83 = arith.subf %79, %82 : vector<8x64x64xf32>
    %84 = math.exp %83 : vector<8x64x64xf32>
    %cst_16 = arith.constant dense<0.000000e+00> : vector<8x64xf32>
    %85 = vector.multi_reduction <add>, %84, %cst_16 [2] : vector<8x64x64xf32> to vector<8x64xf32>
    %86 = vector.shape_cast %85 : vector<8x64xf32> to vector<8x64x1xf32>
    %87 = tpu.reciprocal %86 {approx = true} : vector<8x64x1xf32> -> vector<8x64x1xf32>
    %88 = vector.broadcast %87 : vector<8x64x1xf32> to vector<8x64x64xf32>
    %89 = arith.mulf %84, %88 : vector<8x64x64xf32>
    %90 = arith.truncf %89 : vector<8x64x64xf32> to vector<8x64x64xbf16>
    "tpu.trace_start"() <{level = 10 : i32, message = "bqk,bkd->bqd"}> : () -> ()
    %cst_17 = arith.constant dense<0.000000e+00> : vector<8x64x8xf32>
    %91 = tpu.matmul %90, %78, %cst_17 {dimension_numbers = #tpu.dot_dimension_numbers<[2], [1], [1], [2], [0, 0, 0, 1, 1, 2], [0], [0]>} : vector<8x64x64xbf16>, vector<8x64x8xbf16>, vector<8x64x8xf32> -> vector<8x64x8xf32>
    "tpu.trace_stop"() : () -> ()
    %92 = arith.truncf %91 : vector<8x64x8xf32> to vector<8x64x8xbf16>
    %93 = vector.extract_strided_slice %26 {offsets = [0, 0, 24], sizes = [8, 64, 8], strides = [1, 1, 1]} : vector<8x64x32xbf16> to vector<8x64x8xbf16>
    %94 = vector.extract_strided_slice %38 {offsets = [0, 0, 24], sizes = [8, 64, 8], strides = [1, 1, 1]} : vector<8x64x32xbf16> to vector<8x64x8xbf16>
    %95 = vector.extract_strided_slice %41 {offsets = [0, 0, 24], sizes = [8, 64, 8], strides = [1, 1, 1]} : vector<8x64x32xbf16> to vector<8x64x8xbf16>
    "tpu.trace_start"() <{level = 10 : i32, message = "bqd,bkd->bqk"}> : () -> ()
    %cst_18 = arith.constant dense<0.000000e+00> : vector<8x64x64xf32>
    %96 = tpu.matmul %93, %94, %cst_18 {dimension_numbers = #tpu.dot_dimension_numbers<[2], [2], [1], [1], [0, 0, 0, 1, 1, 1], [0], [0]>} : vector<8x64x8xbf16>, vector<8x64x8xbf16>, vector<8x64x64xf32> -> vector<8x64x64xf32>
    "tpu.trace_stop"() : () -> ()
    %cst_19 = arith.constant dense<0xFF800000> : vector<8x64xf32>
    %97 = vector.multi_reduction <maximumf>, %96, %cst_19 [2] : vector<8x64x64xf32> to vector<8x64xf32>
    %98 = vector.shape_cast %97 : vector<8x64xf32> to vector<8x64x1xf32>
    %99 = vector.broadcast %98 : vector<8x64x1xf32> to vector<8x64x64xf32>
    %100 = arith.subf %96, %99 : vector<8x64x64xf32>
    %101 = math.exp %100 : vector<8x64x64xf32>
    %cst_20 = arith.constant dense<0.000000e+00> : vector<8x64xf32>
    %102 = vector.multi_reduction <add>, %101, %cst_20 [2] : vector<8x64x64xf32> to vector<8x64xf32>
    %103 = vector.shape_cast %102 : vector<8x64xf32> to vector<8x64x1xf32>
    %104 = tpu.reciprocal %103 {approx = true} : vector<8x64x1xf32> -> vector<8x64x1xf32>
    %105 = vector.broadcast %104 : vector<8x64x1xf32> to vector<8x64x64xf32>
    %106 = arith.mulf %101, %105 : vector<8x64x64xf32>
    %107 = arith.truncf %106 : vector<8x64x64xf32> to vector<8x64x64xbf16>
    "tpu.trace_start"() <{level = 10 : i32, message = "bqk,bkd->bqd"}> : () -> ()
    %cst_21 = arith.constant dense<0.000000e+00> : vector<8x64x8xf32>
    %108 = tpu.matmul %107, %95, %cst_21 {dimension_numbers = #tpu.dot_dimension_numbers<[2], [1], [1], [2], [0, 0, 0, 1, 1, 2], [0], [0]>} : vector<8x64x64xbf16>, vector<8x64x8xbf16>, vector<8x64x8xf32> -> vector<8x64x8xf32>
    "tpu.trace_stop"() : () -> ()
    %109 = arith.truncf %108 : vector<8x64x8xf32> to vector<8x64x8xbf16>
    %110 = tpu.concatenate %58, %75, %92, %109 in 2 : vector<8x64x8xbf16>, vector<8x64x8xbf16>, vector<8x64x8xbf16>, vector<8x64x8xbf16> -> vector<8x64x32xbf16>
    %111 = vector.shape_cast %110 : vector<8x64x32xbf16> to vector<512x32xbf16>
    %112 = vector.extract_strided_slice %2 {offsets = [0, 160], sizes = [32, 32], strides = [1, 1]} : vector<32x192xbf16> to vector<32x32xbf16>
    %cst_22 = arith.constant dense<0.000000e+00> : vector<512x32xf32>
    %113 = tpu.matmul %111, %112, %cst_22 {dimension_numbers = #tpu.dot_dimension_numbers<[1], [0], [0], [1], [0, 0, 1, 1], [], []>} : vector<512x32xbf16>, vector<32x32xbf16>, vector<512x32xf32> -> vector<512x32xf32>
    %114 = vector.broadcast %12 : vector<1x32xf32> to vector<512x32xf32>
    %115 = arith.addf %113, %114 : vector<512x32xf32>
    %116 = vector.shape_cast %115 : vector<512x32xf32> to vector<8x64x32xf32>
    %117 = arith.truncf %116 : vector<8x64x32xf32> to vector<8x64x32xbf16>
    %c0_23 = arith.constant 0 : index
    %c0_24 = arith.constant 0 : index
    %c0_25 = arith.constant 0 : index
    %118 = vector.load %arg4[%c0_23, %c0_24, %c0_25] : memref<8x64x32xbf16, #tpu.memory_space<vmem>>, vector<8x64x32xbf16>
    tpu.vector_store %arg4[%c0_23, %c0_24, %c0_25], %117 {strides = array<i32>} : memref<8x64x32xbf16, #tpu.memory_space<vmem>>, vector<8x64x32xbf16>,
    return
  }
  func.func @transform_0(%arg0: i32) -> (i32, i32, i32) {
    %c0_i32 = arith.constant 0 : i32
    %c0_i32_0 = arith.constant 0 : i32
    %c0_i32_1 = arith.constant 0 : i32
    return %arg0, %c0_i32, %c0_i32_0 : i32, i32, i32
  }
  func.func @transform_1(%arg0: i32) -> (i32, i32) {
    %c0_i32 = arith.constant 0 : i32
    %c0_i32_0 = arith.constant 0 : i32
    %c0_i32_1 = arith.constant 0 : i32
    return %c0_i32, %c0_i32_0 : i32, i32
  }
  func.func @transform_2(%arg0: i32) -> (i32, i32) {
    %c0_i32 = arith.constant 0 : i32
    %c0_i32_0 = arith.constant 0 : i32
    %c0_i32_1 = arith.constant 0 : i32
    return %c0_i32, %c0_i32_0 : i32, i32
  }
  func.func @transform_3(%arg0: i32) -> (i32, i32, i32) {
    %c0_i32 = arith.constant 0 : i32
    %c0_i32_0 = arith.constant 0 : i32
    %c0_i32_1 = arith.constant 0 : i32
    return %arg0, %c0_i32, %c0_i32_0 : i32, i32, i32
  }
}

</mosaic_0001>

<llo_original>
// kernel: tpu_custom_call.1
$region0: #{tpu_custom_call.1}
  #allocation0 [shape = 'u32[]', space=smem, size = 0x4, offset = 0x4, fixed_abs, tag = 'smem constant byte address 0x4 - core index']
  #allocation1 [shape = 'u32[144,128]{1,0:T(1,128)}', space=vmem, size = 0x12000, scoped, tag = 'internal scratch']
  %s0 = inlined_call_operand.vmem [shape: bf16[8,64,32], index: 0, kind: input, shape index: {}]
  %s1 = inlined_call_operand.vmem [shape: bf16[32,192], index: 1, kind: input, shape index: {}]
  %s2 = inlined_call_operand.vmem [shape: f32[264,32], index: 2, kind: input, shape index: {}]
  %s3 = inlined_call_operand.vmem [shape: bf16[8,64,32], index: 3, kind: output, shape index: {}]
  %s4 = sld [smem:[#allocation0]]
  $region22: #{tpu_custom_call.1} parent=0
    _
  %s6 = ssub.s32 1, %s4
  %s7 = scalar_select 0, %s6, %s4
  // Predicated region
  $region2: #{tpu_custom_call.1} parent=0 // pred_check
    _
  $region3: #{tpu_custom_call.1} parent=0 // pred_check_branch
    %9 = sbr.rel (0) target = $region5
  $region4: #{tpu_custom_call.1} parent=0 // pred_region
    _
  $region5: #{tpu_custom_call.1} parent=0 // pred_fallthru
    _
  // Predicated region
  $region6: #{tpu_custom_call.1} parent=0 // pred_check
    _
  $region7: #{tpu_custom_call.1} parent=0 // pred_check_branch
    %11 = sbr.rel (0) target = $region9
  $region8: #{tpu_custom_call.1} parent=0 // pred_region
    _
  $region9: #{tpu_custom_call.1} parent=0 // pred_fallthru
    _
  // Predicated region
  $region10: #{tpu_custom_call.1} parent=0 // pred_check
    _
  $region11: #{tpu_custom_call.1} parent=0 // pred_check_branch
    %13 = sbr.rel (0) target = $region13
  $region12: #{tpu_custom_call.1} parent=0 // pred_region
    _
  $region13: #{tpu_custom_call.1} parent=0 // pred_fallthru
    _
  %v15 = vld [vmem:[%s0] sm:$0xf]
  %v16 = vld [vmem:[%s0 + $0x4] sm:$0xf]
  %v17 = vld [vmem:[%s0 + $0x8] sm:$0xf]
  %v18 = vld [vmem:[%s0 + $0xc] sm:$0xf]
  %v19 = vld [vmem:[%s0 + $0x10] sm:$0xf]
  %v20 = vld [vmem:[%s0 + $0x14] sm:$0xf]
  %v21 = vld [vmem:[%s0 + $0x18] sm:$0xf]
  %v22 = vld [vmem:[%s0 + $0x1c] sm:$0xf]
  %v23 = vld [vmem:[%s0 + $0x20] sm:$0xf]
  %v24 = vld [vmem:[%s0 + $0x24] sm:$0xf]
  %v25 = vld [vmem:[%s0 + $0x28] sm:$0xf]
  %v26 = vld [vmem:[%s0 + $0x2c] sm:$0xf]
  %v27 = vld [vmem:[%s0 + $0x30] sm:$0xf]
  %v28 = vld [vmem:[%s0 + $0x34] sm:$0xf]
  %v29 = vld [vmem:[%s0 + $0x38] sm:$0xf]
  %v30 = vld [vmem:[%s0 + $0x3c] sm:$0xf]
  %v31 = vld [vmem:[%s0 + $0x40] sm:$0xf]
  %v32 = vld [vmem:[%s0 + $0x44] sm:$0xf]
  %v33 = vld [vmem:[%s0 + $0x48] sm:$0xf]
  %v34 = vld [vmem:[%s0 + $0x4c] sm:$0xf]
  %v35 = vld [vmem:[%s0 + $0x50] sm:$0xf]
  %v36 = vld [vmem:[%s0 + $0x54] sm:$0xf]
  %v37 = vld [vmem:[%s0 + $0x58] sm:$0xf]
  %v38 = vld [vmem:[%s0 + $0x5c] sm:$0xf]
  %v39 = vld [vmem:[%s0 + $0x60] sm:$0xf]
  %v40 = vld [vmem:[%s0 + $0x64] sm:$0xf]
  %v41 = vld [vmem:[%s0 + $0x68] sm:$0xf]
  %v42 = vld [vmem:[%s0 + $0x6c] sm:$0xf]
  %v43 = vld [vmem:[%s0 + $0x70] sm:$0xf]
  %v44 = vld [vmem:[%s0 + $0x74] sm:$0xf]
  %v45 = vld [vmem:[%s0 + $0x78] sm:$0xf]
  %v46 = vld [vmem:[%s0 + $0x7c] sm:$0xf]
  %v47 = vld [vmem:[%s0 + $0x80] sm:$0xf]
  %v48 = vld [vmem:[%s0 + $0x84] sm:$0xf]
  %v49 = vld [vmem:[%s0 + $0x88] sm:$0xf]
  %v50 = vld [vmem:[%s0 + $0x8c] sm:$0xf]
  %v51 = vld [vmem:[%s0 + $0x90] sm:$0xf]
  %v52 = vld [vmem:[%s0 + $0x94] sm:$0xf]
  %v53 = vld [vmem:[%s0 + $0x98] sm:$0xf]
  %v54 = vld [vmem:[%s0 + $0x9c] sm:$0xf]
  %v55 = vld [vmem:[%s0 + $0xa0] sm:$0xf]
  %v56 = vld [vmem:[%s0 + $0xa4] sm:$0xf]
  %v57 = vld [vmem:[%s0 + $0xa8] sm:$0xf]
  %v58 = vld [vmem:[%s0 + $0xac] sm:$0xf]
  %v59 = vld [vmem:[%s0 + $0xb0] sm:$0xf]
  %v60 = vld [vmem:[%s0 + $0xb4] sm:$0xf]
  %v61 = vld [vmem:[%s0 + $0xb8] sm:$0xf]
  %v62 = vld [vmem:[%s0 + $0xbc] sm:$0xf]
  %v63 = vld [vmem:[%s0 + $0xc0] sm:$0xf]
  %v64 = vld [vmem:[%s0 + $0xc4] sm:$0xf]
  %v65 = vld [vmem:[%s0 + $0xc8] sm:$0xf]
  %v66 = vld [vmem:[%s0 + $0xcc] sm:$0xf]
  %v67 = vld [vmem:[%s0 + $0xd0] sm:$0xf]
  %v68 = vld [vmem:[%s0 + $0xd4] sm:$0xf]
  %v69 = vld [vmem:[%s0 + $0xd8] sm:$0xf]
  %v70 = vld [vmem:[%s0 + $0xdc] sm:$0xf]
  %v71 = vld [vmem:[%s0 + $0xe0] sm:$0xf]
  %v72 = vld [vmem:[%s0 + $0xe4] sm:$0xf]
  %v73 = vld [vmem:[%s0 + $0xe8] sm:$0xf]
  %v74 = vld [vmem:[%s0 + $0xec] sm:$0xf]
  %v75 = vld [vmem:[%s0 + $0xf0] sm:$0xf]
  %v76 = vld [vmem:[%s0 + $0xf4] sm:$0xf]
  %v77 = vld [vmem:[%s0 + $0xf8] sm:$0xf]
  %v78 = vld [vmem:[%s0 + $0xfc] sm:$0xf]
  %v79 = vld [vmem:[%s1] sm:$0xff]
  %v80 = vld [vmem:[%s1 + $0x8] sm:$0xff]
  %v81 = vld [vmem:[%s1 + $0x10] sm:$0xff]
  %v82 = vld [vmem:[%s1 + $0x18] sm:$0xff]
  %v83 = vld [vmem:[%s2] sm:$0xff]
  %v84 = vld [vmem:[%s2 + $0x8] sm:$0xff]
  %v85 = vld [vmem:[%s2 + $0x10] sm:$0xff]
  %v86 = vld [vmem:[%s2 + $0x18] sm:$0xff]
  %v87 = vld [vmem:[%s2 + $0x20] sm:$0xff]
  %v88 = vld [vmem:[%s2 + $0x28] sm:$0xff]
  %v89 = vld [vmem:[%s2 + $0x30] sm:$0xff]
  %v90 = vld [vmem:[%s2 + $0x38] sm:$0xff]
  %v91 = vld [vmem:[%s2 + $0x40] sm:$0xff]
  %v92 = vld [vmem:[%s2 + $0x48] sm:$0xff]
  %v93 = vld [vmem:[%s2 + $0x50] sm:$0xff]
  %v94 = vld [vmem:[%s2 + $0x58] sm:$0xff]
  %v95 = vld [vmem:[%s2 + $0x60] sm:$0xff]
  %v96 = vld [vmem:[%s2 + $0x68] sm:$0xff]
  %v97 = vld [vmem:[%s2 + $0x70] sm:$0xff]
  %v98 = vld [vmem:[%s2 + $0x78] sm:$0xff]
  %v99 = vld [vmem:[%s2 + $0x80] sm:$0xff]
  %v100 = vld [vmem:[%s2 + $0x88] sm:$0xff]
  %v101 = vld [vmem:[%s2 + $0x90] sm:$0xff]
  %v102 = vld [vmem:[%s2 + $0x98] sm:$0xff]
  %v103 = vld [vmem:[%s2 + $0xa0] sm:$0xff]
  %v104 = vld [vmem:[%s2 + $0xa8] sm:$0xff]
  %v105 = vld [vmem:[%s2 + $0xb0] sm:$0xff]
  %v106 = vld [vmem:[%s2 + $0xb8] sm:$0xff]
  %v107 = vld [vmem:[%s2 + $0xc0] sm:$0xff]
  %v108 = vld [vmem:[%s2 + $0xc8] sm:$0xff]
  %v109 = vld [vmem:[%s2 + $0xd0] sm:$0xff]
  %v110 = vld [vmem:[%s2 + $0xd8] sm:$0xff]
  %v111 = vld [vmem:[%s2 + $0xe0] sm:$0xff]
  %v112 = vld [vmem:[%s2 + $0xe8] sm:$0xff]
  %v113 = vld [vmem:[%s2 + $0xf0] sm:$0xff]
  %v114 = vld [vmem:[%s2 + $0xf8] sm:$0xff]
  %v115 = vld [vmem:[%s2 + $0x100] sm:$0xff]
  %v180 = vunpack.c.l.b16 %v15
  %v181 = vunpack.c.l.b16 %v16
  %v182 = vunpack.c.l.b16 %v17
  %v183 = vunpack.c.l.b16 %v18
  %v184 = vunpack.c.l.b16 %v19
  %v185 = vunpack.c.l.b16 %v20
  %v186 = vunpack.c.l.b16 %v21
  %v187 = vunpack.c.l.b16 %v22
  %v188 = vunpack.c.l.b16 %v23
  %v189 = vunpack.c.l.b16 %v24
  %v190 = vunpack.c.l.b16 %v25
  %v191 = vunpack.c.l.b16 %v26
  %v192 = vunpack.c.l.b16 %v27
  %v193 = vunpack.c.l.b16 %v28
  %v194 = vunpack.c.l.b16 %v29
  %v195 = vunpack.c.l.b16 %v30
  %v196 = vunpack.c.l.b16 %v31
  %v197 = vunpack.c.l.b16 %v32
  %v198 = vunpack.c.l.b16 %v33
  %v199 = vunpack.c.l.b16 %v34
  %v200 = vunpack.c.l.b16 %v35
  %v201 = vunpack.c.l.b16 %v36
  %v202 = vunpack.c.l.b16 %v37
  %v203 = vunpack.c.l.b16 %v38
  %v204 = vunpack.c.l.b16 %v39
  %v205 = vunpack.c.l.b16 %v40
  %v206 = vunpack.c.l.b16 %v41
  %v207 = vunpack.c.l.b16 %v42
  %v208 = vunpack.c.l.b16 %v43
  %v209 = vunpack.c.l.b16 %v44
  %v210 = vunpack.c.l.b16 %v45
  %v211 = vunpack.c.l.b16 %v46
  %v212 = vunpack.c.l.b16 %v47
  %v213 = vunpack.c.l.b16 %v48
  %v214 = vunpack.c.l.b16 %v49
  %v215 = vunpack.c.l.b16 %v50
  %v216 = vunpack.c.l.b16 %v51
  %v217 = vunpack.c.l.b16 %v52
  %v218 = vunpack.c.l.b16 %v53
  %v219 = vunpack.c.l.b16 %v54
  %v220 = vunpack.c.l.b16 %v55
  %v221 = vunpack.c.l.b16 %v56
  %v222 = vunpack.c.l.b16 %v57
  %v223 = vunpack.c.l.b16 %v58
  %v224 = vunpack.c.l.b16 %v59
  %v225 = vunpack.c.l.b16 %v60
  %v226 = vunpack.c.l.b16 %v61
  %v227 = vunpack.c.l.b16 %v62
  %v228 = vunpack.c.l.b16 %v63
  %v229 = vunpack.c.l.b16 %v64
  %v230 = vunpack.c.l.b16 %v65
  %v231 = vunpack.c.l.b16 %v66
  %v232 = vunpack.c.l.b16 %v67
  %v233 = vunpack.c.l.b16 %v68
  %v234 = vunpack.c.l.b16 %v69
  %v235 = vunpack.c.l.b16 %v70
  %v236 = vunpack.c.l.b16 %v71
  %v237 = vunpack.c.l.b16 %v72
  %v238 = vunpack.c.l.b16 %v73
  %v239 = vunpack.c.l.b16 %v74
  %v240 = vunpack.c.l.b16 %v75
  %v241 = vunpack.c.l.b16 %v76
  %v242 = vunpack.c.l.b16 %v77
  %v243 = vunpack.c.l.b16 %v78
  %v244 = vpack.c.b16 %v181, %v180
  %v245 = vpack.c.b16 %v183, %v182
  %v246 = vpack.c.b16 %v185, %v184
  %v247 = vpack.c.b16 %v187, %v186
  %v248 = vpack.c.b16 %v189, %v188
  %v249 = vpack.c.b16 %v191, %v190
  %v250 = vpack.c.b16 %v193, %v192
  %v251 = vpack.c.b16 %v195, %v194
  %v252 = vpack.c.b16 %v197, %v196
  %v253 = vpack.c.b16 %v199, %v198
  %v254 = vpack.c.b16 %v201, %v200
  %v255 = vpack.c.b16 %v203, %v202
  %v256 = vpack.c.b16 %v205, %v204
  %v257 = vpack.c.b16 %v207, %v206
  %v258 = vpack.c.b16 %v209, %v208
  %v259 = vpack.c.b16 %v211, %v210
  %v260 = vpack.c.b16 %v213, %v212
  %v261 = vpack.c.b16 %v215, %v214
  %v262 = vpack.c.b16 %v217, %v216
  %v263 = vpack.c.b16 %v219, %v218
  %v264 = vpack.c.b16 %v221, %v220
  %v265 = vpack.c.b16 %v223, %v222
  %v266 = vpack.c.b16 %v225, %v224
  %v267 = vpack.c.b16 %v227, %v226
  %v268 = vpack.c.b16 %v229, %v228
  %v269 = vpack.c.b16 %v231, %v230
  %v270 = vpack.c.b16 %v233, %v232
  %v271 = vpack.c.b16 %v235, %v234
  %v272 = vpack.c.b16 %v237, %v236
  %v273 = vpack.c.b16 %v239, %v238
  %v274 = vpack.c.b16 %v241, %v240
  %v275 = vpack.c.b16 %v243, %v242
  %v280 = vunpack.c.l.b16 %v79
  %v281 = vunpack.c.h.b16 %v79
  %v282 = vunpack.c.l.b16 %v80
  %v283 = vunpack.c.h.b16 %v80
  %v284 = vunpack.c.l.b16 %v81
  %v285 = vunpack.c.h.b16 %v81
  %v286 = vunpack.c.l.b16 %v82
  %v287 = vunpack.c.h.b16 %v82
  %v288 = vpack.c.b16 %v282, %v280
  %v289 = vpack.c.b16 %v283, %v281
  %v290 = vpack.c.b16 %v286, %v284
  %v291 = vpack.c.b16 %v287, %v285
  %vm296 = vcmask 261120
  %v298 = vsel %vm296, %v244, 0
  %v301 = vsel %vm296, %v245, 0
  %v304 = vsel %vm296, %v246, 0
  %v307 = vsel %vm296, %v247, 0
  %v310 = vsel %vm296, %v248, 0
  %v313 = vsel %vm296, %v249, 0
  %v316 = vsel %vm296, %v250, 0
  %v319 = vsel %vm296, %v251, 0
  %v322 = vsel %vm296, %v252, 0
  %v325 = vsel %vm296, %v253, 0
  %v328 = vsel %vm296, %v254, 0
  %v331 = vsel %vm296, %v255, 0
  %v334 = vsel %vm296, %v256, 0
  %v337 = vsel %vm296, %v257, 0
  %v340 = vsel %vm296, %v258, 0
  %v343 = vsel %vm296, %v259, 0
  %v346 = vsel %vm296, %v260, 0
  %v349 = vsel %vm296, %v261, 0
  %v352 = vsel %vm296, %v262, 0
  %v355 = vsel %vm296, %v263, 0
  %v358 = vsel %vm296, %v264, 0
  %v361 = vsel %vm296, %v265, 0
  %v364 = vsel %vm296, %v266, 0
  %v367 = vsel %vm296, %v267, 0
  %v370 = vsel %vm296, %v268, 0
  %v373 = vsel %vm296, %v269, 0
  %v376 = vsel %vm296, %v270, 0
  %v379 = vsel %vm296, %v271, 0
  %v382 = vsel %vm296, %v272, 0
  %v385 = vsel %vm296, %v273, 0
  %v388 = vsel %vm296, %v274, 0
  %v391 = vsel %vm296, %v275, 0
  %393 = vmatprep.subr.bf16.mxu0 0
  %394 = vmatpush1.bf16.msra.mxu0 0
  %395 = vmatprep.subr.bf16.mxu0 0
  %396 = vmatpush1.bf16.msra.mxu0 0
  %397 = vmatprep.subr.bf16.mxu0 0
  %398 = vmatpush1.bf16.msra.mxu0 0
  %399 = vmatprep.subr.bf16.mxu0 0
  %400 = vmatpush1.bf16.msra.mxu0 0
  %401 = vmatprep.subr.bf16.mxu0 0
  %402 = vmatpush1.bf16.msra.mxu0 0
  %403 = vmatprep.subr.bf16.mxu0 0
  %404 = vmatpush1.bf16.msra.mxu0 0
  %405 = vmatprep.subr.bf16.mxu0 %v291
  %406 = vmatpush1.bf16.msra.mxu0 %v290
  %407 = vmatprep.subr.bf16.mxu0 %v289
  %408 = vmatpush1.bf16.msra.mxu0 %v288
  %409 = vmatprep.subr.bf16.mxu0 0
  %410 = vmatpush2.bf16.msra.mxu0 0
  %411 = vmatprep.subr.bf16.mxu0 0
  %412 = vmatpush2.bf16.msra.mxu0 0
  %413 = vmatprep.subr.bf16.mxu0 0
  %414 = vmatpush2.bf16.msra.mxu0 0
  %415 = vmatprep.subr.bf16.mxu0 0
  %416 = vmatpush2.bf16.msra.mxu0 0
  %417 = vmatprep.subr.bf16.mxu0 0
  %418 = vmatpush2.bf16.msra.mxu0 0
  %419 = vmatprep.subr.bf16.mxu0 0
  %420 = vmatpush2.bf16.msra.mxu0 0
  %421 = vmatprep.subr.bf16.mxu0 0
  %422 = vmatpush2.bf16.msra.mxu0 0
  %423 = vmatprep.subr.bf16.mxu0 0
  %424 = vmatpush2.bf16.msra.mxu0 0
  %425 = vmatprep.mubr.bf16.mxu0 0
  %426 = vmatmul.mubr.bf16.gmra.mxu0 %v298
  %v427 = vpop.f32.mrf.mxu0
  %v428 = vadd.f32 0.0, %v427
  %v429 = vpop.f32.mrf.mxu0
  %v430 = vadd.f32 0.0, %v429
  %v431 = vpop.f32.mrf.mxu0
  %v432 = vadd.f32 0.0, %v431
  %v433 = vpop.f32.mrf.mxu0
  %v434 = vadd.f32 0.0, %v433
  %435 = vmatprep.mubr.bf16.mxu0 0
  %436 = vmatmul.mubr.bf16.gmra.mxu0 %v301
  %v437 = vpop.f32.mrf.mxu0
  %v438 = vadd.f32 0.0, %v437
  %v439 = vpop.f32.mrf.mxu0
  %v440 = vadd.f32 0.0, %v439
  %v441 = vpop.f32.mrf.mxu0
  %v442 = vadd.f32 0.0, %v441
  %v443 = vpop.f32.mrf.mxu0
  %v444 = vadd.f32 0.0, %v443
  %445 = vmatprep.mubr.bf16.mxu0 0
  %446 = vmatmul.mubr.bf16.gmra.mxu0 %v304
  %v447 = vpop.f32.mrf.mxu0
  %v448 = vadd.f32 0.0, %v447
  %v449 = vpop.f32.mrf.mxu0
  %v450 = vadd.f32 0.0, %v449
  %v451 = vpop.f32.mrf.mxu0
  %v452 = vadd.f32 0.0, %v451
  %v453 = vpop.f32.mrf.mxu0
  %v454 = vadd.f32 0.0, %v453
  %455 = vmatprep.mubr.bf16.mxu0 0
  %456 = vmatmul.mubr.bf16.gmra.mxu0 %v307
  %v457 = vpop.f32.mrf.mxu0
  %v458 = vadd.f32 0.0, %v457
  %v459 = vpop.f32.mrf.mxu0
  %v460 = vadd.f32 0.0, %v459
  %v461 = vpop.f32.mrf.mxu0
  %v462 = vadd.f32 0.0, %v461
  %v463 = vpop.f32.mrf.mxu0
  %v464 = vadd.f32 0.0, %v463
  %465 = vmatprep.mubr.bf16.mxu0 0
  %466 = vmatmul.mubr.bf16.gmra.mxu0 %v310
  %v467 = vpop.f32.mrf.mxu0
  %v468 = vadd.f32 0.0, %v467
  %v469 = vpop.f32.mrf.mxu0
  %v470 = vadd.f32 0.0, %v469
  %v471 = vpop.f32.mrf.mxu0
  %v472 = vadd.f32 0.0, %v471
  %v473 = vpop.f32.mrf.mxu0
  %v474 = vadd.f32 0.0, %v473
  %475 = vmatprep.mubr.bf16.mxu0 0
  %476 = vmatmul.mubr.bf16.gmra.mxu0 %v313
  %v477 = vpop.f32.mrf.mxu0
  %v478 = vadd.f32 0.0, %v477
  %v479 = vpop.f32.mrf.mxu0
  %v480 = vadd.f32 0.0, %v479
  %v481 = vpop.f32.mrf.mxu0
  %v482 = vadd.f32 0.0, %v481
  %v483 = vpop.f32.mrf.mxu0
  %v484 = vadd.f32 0.0, %v483
  %485 = vmatprep.mubr.bf16.mxu0 0
  %486 = vmatmul.mubr.bf16.gmra.mxu0 %v316
  %v487 = vpop.f32.mrf.mxu0
  %v488 = vadd.f32 0.0, %v487
  %v489 = vpop.f32.mrf.mxu0
  %v490 = vadd.f32 0.0, %v489
  %v491 = vpop.f32.mrf.mxu0
  %v492 = vadd.f32 0.0, %v491
  %v493 = vpop.f32.mrf.mxu0
  %v494 = vadd.f32 0.0, %v493
  %495 = vmatprep.mubr.bf16.mxu0 0
  %496 = vmatmul.mubr.bf16.gmra.mxu0 %v319
  %v497 = vpop.f32.mrf.mxu0
  %v498 = vadd.f32 0.0, %v497
  %v499 = vpop.f32.mrf.mxu0
  %v500 = vadd.f32 0.0, %v499
  %v501 = vpop.f32.mrf.mxu0
  %v502 = vadd.f32 0.0, %v501
  %v503 = vpop.f32.mrf.mxu0
  %v504 = vadd.f32 0.0, %v503
  %505 = vmatprep.mubr.bf16.mxu0 0
  %506 = vmatmul.mubr.bf16.gmra.mxu0 %v322
  %v507 = vpop.f32.mrf.mxu0
  %v508 = vadd.f32 0.0, %v507
  %v509 = vpop.f32.mrf.mxu0
  %v510 = vadd.f32 0.0, %v509
  %v511 = vpop.f32.mrf.mxu0
  %v512 = vadd.f32 0.0, %v511
  %v513 = vpop.f32.mrf.mxu0
  %v514 = vadd.f32 0.0, %v513
  %515 = vmatprep.mubr.bf16.mxu0 0
  %516 = vmatmul.mubr.bf16.gmra.mxu0 %v325
  %v517 = vpop.f32.mrf.mxu0
  %v518 = vadd.f32 0.0, %v517
  %v519 = vpop.f32.mrf.mxu0
  %v520 = vadd.f32 0.0, %v519
  %v521 = vpop.f32.mrf.mxu0
  %v522 = vadd.f32 0.0, %v521
  %v523 = vpop.f32.mrf.mxu0
  %v524 = vadd.f32 0.0, %v523
  %525 = vmatprep.mubr.bf16.mxu0 0
  %526 = vmatmul.mubr.bf16.gmra.mxu0 %v328
  %v527 = vpop.f32.mrf.mxu0
  %v528 = vadd.f32 0.0, %v527
  %v529 = vpop.f32.mrf.mxu0
  %v530 = vadd.f32 0.0, %v529
  %v531 = vpop.f32.mrf.mxu0
  %v532 = vadd.f32 0.0, %v531
  %v533 = vpop.f32.mrf.mxu0
  %v534 = vadd.f32 0.0, %v533
  %535 = vmatprep.mubr.bf16.mxu0 0
  %536 = vmatmul.mubr.bf16.gmra.mxu0 %v331
  %v537 = vpop.f32.mrf.mxu0
  %v538 = vadd.f32 0.0, %v537
  %v539 = vpop.f32.mrf.mxu0
  %v540 = vadd.f32 0.0, %v539
  %v541 = vpop.f32.mrf.mxu0
  %v542 = vadd.f32 0.0, %v541
  %v543 = vpop.f32.mrf.mxu0
  %v544 = vadd.f32 0.0, %v543
  %545 = vmatprep.mubr.bf16.mxu0 0
  %546 = vmatmul.mubr.bf16.gmra.mxu0 %v334
  %v547 = vpop.f32.mrf.mxu0
  %v548 = vadd.f32 0.0, %v547
  %v549 = vpop.f32.mrf.mxu0
  %v550 = vadd.f32 0.0, %v549
  %v551 = vpop.f32.mrf.mxu0
  %v552 = vadd.f32 0.0, %v551
  %v553 = vpop.f32.mrf.mxu0
  %v554 = vadd.f32 0.0, %v553
  %555 = vmatprep.mubr.bf16.mxu0 0
  %556 = vmatmul.mubr.bf16.gmra.mxu0 %v337
  %v557 = vpop.f32.mrf.mxu0
  %v558 = vadd.f32 0.0, %v557
  %v559 = vpop.f32.mrf.mxu0
  %v560 = vadd.f32 0.0, %v559
  %v561 = vpop.f32.mrf.mxu0
  %v562 = vadd.f32 0.0, %v561
  %v563 = vpop.f32.mrf.mxu0
  %v564 = vadd.f32 0.0, %v563
  %565 = vmatprep.mubr.bf16.mxu0 0
  %566 = vmatmul.mubr.bf16.gmra.mxu0 %v340
  %v567 = vpop.f32.mrf.mxu0
  %v568 = vadd.f32 0.0, %v567
  %v569 = vpop.f32.mrf.mxu0
  %v570 = vadd.f32 0.0, %v569
  %v571 = vpop.f32.mrf.mxu0
  %v572 = vadd.f32 0.0, %v571
  %v573 = vpop.f32.mrf.mxu0
  %v574 = vadd.f32 0.0, %v573
  %575 = vmatprep.mubr.bf16.mxu0 0
  %576 = vmatmul.mubr.bf16.gmra.mxu0 %v343
  %v577 = vpop.f32.mrf.mxu0
  %v578 = vadd.f32 0.0, %v577
  %v579 = vpop.f32.mrf.mxu0
  %v580 = vadd.f32 0.0, %v579
  %v581 = vpop.f32.mrf.mxu0
  %v582 = vadd.f32 0.0, %v581
  %v583 = vpop.f32.mrf.mxu0
  %v584 = vadd.f32 0.0, %v583
  %585 = vmatprep.mubr.bf16.mxu0 0
  %586 = vmatmul.mubr.bf16.gmra.mxu0 %v346
  %v587 = vpop.f32.mrf.mxu0
  %v588 = vadd.f32 0.0, %v587
  %v589 = vpop.f32.mrf.mxu0
  %v590 = vadd.f32 0.0, %v589
  %v591 = vpop.f32.mrf.mxu0
  %v592 = vadd.f32 0.0, %v591
  %v593 = vpop.f32.mrf.mxu0
  %v594 = vadd.f32 0.0, %v593
  %595 = vmatprep.mubr.bf16.mxu0 0
  %596 = vmatmul.mubr.bf16.gmra.mxu0 %v349
  %v597 = vpop.f32.mrf.mxu0
  %v598 = vadd.f32 0.0, %v597
  %v599 = vpop.f32.mrf.mxu0
  %v600 = vadd.f32 0.0, %v599
  %v601 = vpop.f32.mrf.mxu0
  %v602 = vadd.f32 0.0, %v601
  %v603 = vpop.f32.mrf.mxu0
  %v604 = vadd.f32 0.0, %v603
  %605 = vmatprep.mubr.bf16.mxu0 0
  %606 = vmatmul.mubr.bf16.gmra.mxu0 %v352
  %v607 = vpop.f32.mrf.mxu0
  %v608 = vadd.f32 0.0, %v607
  %v609 = vpop.f32.mrf.mxu0
  %v610 = vadd.f32 0.0, %v609
  %v611 = vpop.f32.mrf.mxu0
  %v612 = vadd.f32 0.0, %v611
  %v613 = vpop.f32.mrf.mxu0
  %v614 = vadd.f32 0.0, %v613
  %615 = vmatprep.mubr.bf16.mxu0 0
  %616 = vmatmul.mubr.bf16.gmra.mxu0 %v355
  %v617 = vpop.f32.mrf.mxu0
  %v618 = vadd.f32 0.0, %v617
  %v619 = vpop.f32.mrf.mxu0
  %v620 = vadd.f32 0.0, %v619
  %v621 = vpop.f32.mrf.mxu0
  %v622 = vadd.f32 0.0, %v621
  %v623 = vpop.f32.mrf.mxu0
  %v624 = vadd.f32 0.0, %v623
  %625 = vmatprep.mubr.bf16.mxu0 0
  %626 = vmatmul.mubr.bf16.gmra.mxu0 %v358
  %v627 = vpop.f32.mrf.mxu0
  %v628 = vadd.f32 0.0, %v627
  %v629 = vpop.f32.mrf.mxu0
  %v630 = vadd.f32 0.0, %v629
  %v631 = vpop.f32.mrf.mxu0
  %v632 = vadd.f32 0.0, %v631
  %v633 = vpop.f32.mrf.mxu0
  %v634 = vadd.f32 0.0, %v633
  %635 = vmatprep.mubr.bf16.mxu0 0
  %636 = vmatmul.mubr.bf16.gmra.mxu0 %v361
  %v637 = vpop.f32.mrf.mxu0
  %v638 = vadd.f32 0.0, %v637
  %v639 = vpop.f32.mrf.mxu0
  %v640 = vadd.f32 0.0, %v639
  %v641 = vpop.f32.mrf.mxu0
  %v642 = vadd.f32 0.0, %v641
  %v643 = vpop.f32.mrf.mxu0
  %v644 = vadd.f32 0.0, %v643
  %645 = vmatprep.mubr.bf16.mxu0 0
  %646 = vmatmul.mubr.bf16.gmra.mxu0 %v364
  %v647 = vpop.f32.mrf.mxu0
  %v648 = vadd.f32 0.0, %v647
  %v649 = vpop.f32.mrf.mxu0
  %v650 = vadd.f32 0.0, %v649
  %v651 = vpop.f32.mrf.mxu0
  %v652 = vadd.f32 0.0, %v651
  %v653 = vpop.f32.mrf.mxu0
  %v654 = vadd.f32 0.0, %v653
  %655 = vmatprep.mubr.bf16.mxu0 0
  %656 = vmatmul.mubr.bf16.gmra.mxu0 %v367
  %v657 = vpop.f32.mrf.mxu0
  %v658 = vadd.f32 0.0, %v657
  %v659 = vpop.f32.mrf.mxu0
  %v660 = vadd.f32 0.0, %v659
  %v661 = vpop.f32.mrf.mxu0
  %v662 = vadd.f32 0.0, %v661
  %v663 = vpop.f32.mrf.mxu0
  %v664 = vadd.f32 0.0, %v663
  %665 = vmatprep.mubr.bf16.mxu0 0
  %666 = vmatmul.mubr.bf16.gmra.mxu0 %v370
  %v667 = vpop.f32.mrf.mxu0
  %v668 = vadd.f32 0.0, %v667
  %v669 = vpop.f32.mrf.mxu0
  %v670 = vadd.f32 0.0, %v669
  %v671 = vpop.f32.mrf.mxu0
  %v672 = vadd.f32 0.0, %v671
  %v673 = vpop.f32.mrf.mxu0
  %v674 = vadd.f32 0.0, %v673
  %675 = vmatprep.mubr.bf16.mxu0 0
  %676 = vmatmul.mubr.bf16.gmra.mxu0 %v373
  %v677 = vpop.f32.mrf.mxu0
  %v678 = vadd.f32 0.0, %v677
  %v679 = vpop.f32.mrf.mxu0
  %v680 = vadd.f32 0.0, %v679
  %v681 = vpop.f32.mrf.mxu0
  %v682 = vadd.f32 0.0, %v681
  %v683 = vpop.f32.mrf.mxu0
  %v684 = vadd.f32 0.0, %v683
  %685 = vmatprep.mubr.bf16.mxu0 0
  %686 = vmatmul.mubr.bf16.gmra.mxu0 %v376
  %v687 = vpop.f32.mrf.mxu0
  %v688 = vadd.f32 0.0, %v687
  %v689 = vpop.f32.mrf.mxu0
  %v690 = vadd.f32 0.0, %v689
  %v691 = vpop.f32.mrf.mxu0
  %v692 = vadd.f32 0.0, %v691
  %v693 = vpop.f32.mrf.mxu0
  %v694 = vadd.f32 0.0, %v693
  %695 = vmatprep.mubr.bf16.mxu0 0
  %696 = vmatmul.mubr.bf16.gmra.mxu0 %v379
  %v697 = vpop.f32.mrf.mxu0
  %v698 = vadd.f32 0.0, %v697
  %v699 = vpop.f32.mrf.mxu0
  %v700 = vadd.f32 0.0, %v699
  %v701 = vpop.f32.mrf.mxu0
  %v702 = vadd.f32 0.0, %v701
  %v703 = vpop.f32.mrf.mxu0
  %v704 = vadd.f32 0.0, %v703
  %705 = vmatprep.mubr.bf16.mxu0 0
  %706 = vmatmul.mubr.bf16.gmra.mxu0 %v382
  %v707 = vpop.f32.mrf.mxu0
  %v708 = vadd.f32 0.0, %v707
  %v709 = vpop.f32.mrf.mxu0
  %v710 = vadd.f32 0.0, %v709
  %v711 = vpop.f32.mrf.mxu0
  %v712 = vadd.f32 0.0, %v711
  %v713 = vpop.f32.mrf.mxu0
  %v714 = vadd.f32 0.0, %v713
  %715 = vmatprep.mubr.bf16.mxu0 0
  %716 = vmatmul.mubr.bf16.gmra.mxu0 %v385
  %v717 = vpop.f32.mrf.mxu0
  %v718 = vadd.f32 0.0, %v717
  %v719 = vpop.f32.mrf.mxu0
  %v720 = vadd.f32 0.0, %v719
  %v721 = vpop.f32.mrf.mxu0
  %v722 = vadd.f32 0.0, %v721
  %v723 = vpop.f32.mrf.mxu0
  %v724 = vadd.f32 0.0, %v723
  %725 = vmatprep.mubr.bf16.mxu0 0
  %726 = vmatmul.mubr.bf16.gmra.mxu0 %v388
  %v727 = vpop.f32.mrf.mxu0
  %v728 = vadd.f32 0.0, %v727
  %v729 = vpop.f32.mrf.mxu0
  %v730 = vadd.f32 0.0, %v729
  %v731 = vpop.f32.mrf.mxu0
  %v732 = vadd.f32 0.0, %v731
  %v733 = vpop.f32.mrf.mxu0
  %v734 = vadd.f32 0.0, %v733
  %735 = vmatprep.mubr.bf16.mxu0 0
  %736 = vmatmul.mubr.bf16.gmra.mxu0 %v391
  %v737 = vpop.f32.mrf.mxu0
  %v738 = vadd.f32 0.0, %v737
  %v739 = vpop.f32.mrf.mxu0
  %v740 = vadd.f32 0.0, %v739
  %v741 = vpop.f32.mrf.mxu0
  %v742 = vadd.f32 0.0, %v741
  %v743 = vpop.f32.mrf.mxu0
  %v744 = vadd.f32 0.0, %v743
  %745 = vdwg.mxu0
  %v746 = vmul.f32 %v428, %v83
  %v747 = vmul.f32 %v432, %v84
  %v748 = vmul.f32 %v438, %v85
  %v749 = vmul.f32 %v442, %v86
  %v750 = vmul.f32 %v448, %v87
  %v751 = vmul.f32 %v452, %v88
  %v752 = vmul.f32 %v458, %v89
  %v753 = vmul.f32 %v462, %v90
  %v754 = vmul.f32 %v468, %v83
  %v755 = vmul.f32 %v472, %v84
  %v756 = vmul.f32 %v478, %v85
  %v757 = vmul.f32 %v482, %v86
  %v758 = vmul.f32 %v488, %v87
  %v759 = vmul.f32 %v492, %v88
  %v760 = vmul.f32 %v498, %v89
  %v761 = vmul.f32 %v502, %v90
  %v762 = vmul.f32 %v508, %v83
  %v763 = vmul.f32 %v512, %v84
  %v764 = vmul.f32 %v518, %v85
  %v765 = vmul.f32 %v522, %v86
  %v766 = vmul.f32 %v528, %v87
  %v767 = vmul.f32 %v532, %v88
  %v768 = vmul.f32 %v538, %v89
  %v769 = vmul.f32 %v542, %v90
  %v770 = vmul.f32 %v548, %v83
  %v771 = vmul.f32 %v552, %v84
  %v772 = vmul.f32 %v558, %v85
  %v773 = vmul.f32 %v562, %v86
  %v774 = vmul.f32 %v568, %v87
  %v775 = vmul.f32 %v572, %v88
  %v776 = vmul.f32 %v578, %v89
  %v777 = vmul.f32 %v582, %v90
  %v778 = vmul.f32 %v588, %v83
  %v779 = vmul.f32 %v592, %v84
  %v780 = vmul.f32 %v598, %v85
  %v781 = vmul.f32 %v602, %v86
  %v782 = vmul.f32 %v608, %v87
  %v783 = vmul.f32 %v612, %v88
  %v784 = vmul.f32 %v618, %v89
  %v785 = vmul.f32 %v622, %v90
  %v786 = vmul.f32 %v628, %v83
  %v787 = vmul.f32 %v632, %v84
  %v788 = vmul.f32 %v638, %v85
  %v789 = vmul.f32 %v642, %v86
  %v790 = vmul.f32 %v648, %v87
  %v791 = vmul.f32 %v652, %v88
  %v792 = vmul.f32 %v658, %v89
  %v793 = vmul.f32 %v662, %v90
  %v794 = vmul.f32 %v668, %v83
  %v795 = vmul.f32 %v672, %v84
  %v796 = vmul.f32 %v678, %v85
  %v797 = vmul.f32 %v682, %v86
  %v798 = vmul.f32 %v688, %v87
  %v799 = vmul.f32 %v692, %v88
  %v800 = vmul.f32 %v698, %v89
  %v801 = vmul.f32 %v702, %v90
  %v802 = vmul.f32 %v708, %v83
  %v803 = vmul.f32 %v712, %v84
  %v804 = vmul.f32 %v718, %v85
  %v805 = vmul.f32 %v722, %v86
  %v806 = vmul.f32 %v728, %v87
  %v807 = vmul.f32 %v732, %v88
  %v808 = vmul.f32 %v738, %v89
  %v809 = vmul.f32 %v742, %v90
  %818 = vrot.lane.b32.xlu0 %v91, 32
  %v819 = vpop.permute.xlu0 %818
  %820 = vrot.lane.b32.xlu0 %v92, 32
  %v821 = vpop.permute.xlu0 %820
  %822 = vrot.lane.b32.xlu0 %v93, 32
  %v823 = vpop.permute.xlu0 %822
  %824 = vrot.lane.b32.xlu0 %v94, 32
  %v825 = vpop.permute.xlu0 %824
  %826 = vrot.lane.b32.xlu0 %v95, 32
  %v827 = vpop.permute.xlu0 %826
  %828 = vrot.lane.b32.xlu0 %v96, 32
  %v829 = vpop.permute.xlu0 %828
  %830 = vrot.lane.b32.xlu0 %v97, 32
  %v831 = vpop.permute.xlu0 %830
  %832 = vrot.lane.b32.xlu0 %v98, 32
  %v833 = vpop.permute.xlu0 %832
  %v842 = vmul.f32 %v428, %v819
  %v843 = vmul.f32 %v432, %v821
  %v844 = vmul.f32 %v438, %v823
  %v845 = vmul.f32 %v442, %v825
  %v846 = vmul.f32 %v448, %v827
  %v847 = vmul.f32 %v452, %v829
  %v848 = vmul.f32 %v458, %v831
  %v849 = vmul.f32 %v462, %v833
  %v850 = vmul.f32 %v468, %v819
  %v851 = vmul.f32 %v472, %v821
  %v852 = vmul.f32 %v478, %v823
  %v853 = vmul.f32 %v482, %v825
  %v854 = vmul.f32 %v488, %v827
  %v855 = vmul.f32 %v492, %v829
  %v856 = vmul.f32 %v498, %v831
  %v857 = vmul.f32 %v502, %v833
  %v858 = vmul.f32 %v508, %v819
  %v859 = vmul.f32 %v512, %v821
  %v860 = vmul.f32 %v518, %v823
  %v861 = vmul.f32 %v522, %v825
  %v862 = vmul.f32 %v528, %v827
  %v863 = vmul.f32 %v532, %v829
  %v864 = vmul.f32 %v538, %v831
  %v865 = vmul.f32 %v542, %v833
  %v866 = vmul.f32 %v548, %v819
  %v867 = vmul.f32 %v552, %v821
  %v868 = vmul.f32 %v558, %v823
  %v869 = vmul.f32 %v562, %v825
  %v870 = vmul.f32 %v568, %v827
  %v871 = vmul.f32 %v572, %v829
  %v872 = vmul.f32 %v578, %v831
  %v873 = vmul.f32 %v582, %v833
  %v874 = vmul.f32 %v588, %v819
  %v875 = vmul.f32 %v592, %v821
  %v876 = vmul.f32 %v598, %v823
  %v877 = vmul.f32 %v602, %v825
  %v878 = vmul.f32 %v608, %v827
  %v879 = vmul.f32 %v612, %v829
  %v880 = vmul.f32 %v618, %v831
  %v881 = vmul.f32 %v622, %v833
  %v882 = vmul.f32 %v628, %v819
  %v883 = vmul.f32 %v632, %v821
  %v884 = vmul.f32 %v638, %v823
  %v885 = vmul.f32 %v642, %v825
  %v886 = vmul.f32 %v648, %v827
  %v887 = vmul.f32 %v652, %v829
  %v888 = vmul.f32 %v658, %v831
  %v889 = vmul.f32 %v662, %v833
  %v890 = vmul.f32 %v668, %v819
  %v891 = vmul.f32 %v672, %v821
  %v892 = vmul.f32 %v678, %v823
  %v893 = vmul.f32 %v682, %v825
  %v894 = vmul.f32 %v688, %v827
  %v895 = vmul.f32 %v692, %v829
  %v896 = vmul.f32 %v698, %v831
  %v897 = vmul.f32 %v702, %v833
  %v898 = vmul.f32 %v708, %v819
  %v899 = vmul.f32 %v712, %v821
  %v900 = vmul.f32 %v718, %v823
  %v901 = vmul.f32 %v722, %v825
  %v902 = vmul.f32 %v728, %v827
  %v903 = vmul.f32 %v732, %v829
  %v904 = vmul.f32 %v738, %v831
  %v905 = vmul.f32 %v742, %v833
  %970 = vrot.lane.b32.xlu0 %v842, 96
  %v971 = vpop.permute.xlu0 %970
  %972 = vrot.lane.b32.xlu0 %v843, 96
  %v973 = vpop.permute.xlu0 %972
  %974 = vrot.lane.b32.xlu0 %v844, 96
  %v975 = vpop.permute.xlu0 %974
  %976 = vrot.lane.b32.xlu0 %v845, 96
  %v977 = vpop.permute.xlu0 %976
  %978 = vrot.lane.b32.xlu0 %v846, 96
  %v979 = vpop.permute.xlu0 %978
  %980 = vrot.lane.b32.xlu0 %v847, 96
  %v981 = vpop.permute.xlu0 %980
  %982 = vrot.lane.b32.xlu0 %v848, 96
  %v983 = vpop.permute.xlu0 %982
  %984 = vrot.lane.b32.xlu0 %v849, 96
  %v985 = vpop.permute.xlu0 %984
  %986 = vrot.lane.b32.xlu0 %v850, 96
  %v987 = vpop.permute.xlu0 %986
  %988 = vrot.lane.b32.xlu0 %v851, 96
  %v989 = vpop.permute.xlu0 %988
  %990 = vrot.lane.b32.xlu0 %v852, 96
  %v991 = vpop.permute.xlu0 %990
  %992 = vrot.lane.b32.xlu0 %v853, 96
  %v993 = vpop.permute.xlu0 %992
  %994 = vrot.lane.b32.xlu0 %v854, 96
  %v995 = vpop.permute.xlu0 %994
  %996 = vrot.lane.b32.xlu0 %v855, 96
  %v997 = vpop.permute.xlu0 %996
  %998 = vrot.lane.b32.xlu0 %v856, 96
  %v999 = vpop.permute.xlu0 %998
  %1000 = vrot.lane.b32.xlu0 %v857, 96
  %v1001 = vpop.permute.xlu0 %1000
  %1002 = vrot.lane.b32.xlu0 %v858, 96
  %v1003 = vpop.permute.xlu0 %1002
  %1004 = vrot.lane.b32.xlu0 %v859, 96
  %v1005 = vpop.permute.xlu0 %1004
  %1006 = vrot.lane.b32.xlu0 %v860, 96
  %v1007 = vpop.permute.xlu0 %1006
  %1008 = vrot.lane.b32.xlu0 %v861, 96
  %v1009 = vpop.permute.xlu0 %1008
  %1010 = vrot.lane.b32.xlu0 %v862, 96
  %v1011 = vpop.permute.xlu0 %1010
  %1012 = vrot.lane.b32.xlu0 %v863, 96
  %v1013 = vpop.permute.xlu0 %1012
  %1014 = vrot.lane.b32.xlu0 %v864, 96
  %v1015 = vpop.permute.xlu0 %1014
  %1016 = vrot.lane.b32.xlu0 %v865, 96
  %v1017 = vpop.permute.xlu0 %1016
  %1018 = vrot.lane.b32.xlu0 %v866, 96
  %v1019 = vpop.permute.xlu0 %1018
  %1020 = vrot.lane.b32.xlu0 %v867, 96
  %v1021 = vpop.permute.xlu0 %1020
  %1022 = vrot.lane.b32.xlu0 %v868, 96
  %v1023 = vpop.permute.xlu0 %1022
  %1024 = vrot.lane.b32.xlu0 %v869, 96
  %v1025 = vpop.permute.xlu0 %1024
  %1026 = vrot.lane.b32.xlu0 %v870, 96
  %v1027 = vpop.permute.xlu0 %1026
  %1028 = vrot.lane.b32.xlu0 %v871, 96
  %v1029 = vpop.permute.xlu0 %1028
  %1030 = vrot.lane.b32.xlu0 %v872, 96
  %v1031 = vpop.permute.xlu0 %1030
  %1032 = vrot.lane.b32.xlu0 %v873, 96
  %v1033 = vpop.permute.xlu0 %1032
  %1034 = vrot.lane.b32.xlu0 %v874, 96
  %v1035 = vpop.permute.xlu0 %1034
  %1036 = vrot.lane.b32.xlu0 %v875, 96
  %v1037 = vpop.permute.xlu0 %1036
  %1038 = vrot.lane.b32.xlu0 %v876, 96
  %v1039 = vpop.permute.xlu0 %1038
  %1040 = vrot.lane.b32.xlu0 %v877, 96
  %v1041 = vpop.permute.xlu0 %1040
  %1042 = vrot.lane.b32.xlu0 %v878, 96
  %v1043 = vpop.permute.xlu0 %1042
  %1044 = vrot.lane.b32.xlu0 %v879, 96
  %v1045 = vpop.permute.xlu0 %1044
  %1046 = vrot.lane.b32.xlu0 %v880, 96
  %v1047 = vpop.permute.xlu0 %1046
  %1048 = vrot.lane.b32.xlu0 %v881, 96
  %v1049 = vpop.permute.xlu0 %1048
  %1050 = vrot.lane.b32.xlu0 %v882, 96
  %v1051 = vpop.permute.xlu0 %1050
  %1052 = vrot.lane.b32.xlu0 %v883, 96
  %v1053 = vpop.permute.xlu0 %1052
  %1054 = vrot.lane.b32.xlu0 %v884, 96
  %v1055 = vpop.permute.xlu0 %1054
  %1056 = vrot.lane.b32.xlu0 %v885, 96
  %v1057 = vpop.permute.xlu0 %1056
  %1058 = vrot.lane.b32.xlu0 %v886, 96
  %v1059 = vpop.permute.xlu0 %1058
  %1060 = vrot.lane.b32.xlu0 %v887, 96
  %v1061 = vpop.permute.xlu0 %1060
  %1062 = vrot.lane.b32.xlu0 %v888, 96
  %v1063 = vpop.permute.xlu0 %1062
  %1064 = vrot.lane.b32.xlu0 %v889, 96
  %v1065 = vpop.permute.xlu0 %1064
  %1066 = vrot.lane.b32.xlu0 %v890, 96
  %v1067 = vpop.permute.xlu0 %1066
  %1068 = vrot.lane.b32.xlu0 %v891, 96
  %v1069 = vpop.permute.xlu0 %1068
  %1070 = vrot.lane.b32.xlu0 %v892, 96
  %v1071 = vpop.permute.xlu0 %1070
  %1072 = vrot.lane.b32.xlu0 %v893, 96
  %v1073 = vpop.permute.xlu0 %1072
  %1074 = vrot.lane.b32.xlu0 %v894, 96
  %v1075 = vpop.permute.xlu0 %1074
  %1076 = vrot.lane.b32.xlu0 %v895, 96
  %v1077 = vpop.permute.xlu0 %1076
  %1078 = vrot.lane.b32.xlu0 %v896, 96
  %v1079 = vpop.permute.xlu0 %1078
  %1080 = vrot.lane.b32.xlu0 %v897, 96
  %v1081 = vpop.permute.xlu0 %1080
  %1082 = vrot.lane.b32.xlu0 %v898, 96
  %v1083 = vpop.permute.xlu0 %1082
  %1084 = vrot.lane.b32.xlu0 %v899, 96
  %v1085 = vpop.permute.xlu0 %1084
  %1086 = vrot.lane.b32.xlu0 %v900, 96
  %v1087 = vpop.permute.xlu0 %1086
  %1088 = vrot.lane.b32.xlu0 %v901, 96
  %v1089 = vpop.permute.xlu0 %1088
  %1090 = vrot.lane.b32.xlu0 %v902, 96
  %v1091 = vpop.permute.xlu0 %1090
  %1092 = vrot.lane.b32.xlu0 %v903, 96
  %v1093 = vpop.permute.xlu0 %1092
  %1094 = vrot.lane.b32.xlu0 %v904, 96
  %v1095 = vpop.permute.xlu0 %1094
  %1096 = vrot.lane.b32.xlu0 %v905, 96
  %v1097 = vpop.permute.xlu0 %1096
  %v1162 = vadd.f32 %v746, %v971
  %v1163 = vadd.f32 %v747, %v973
  %v1164 = vadd.f32 %v748, %v975
  %v1165 = vadd.f32 %v749, %v977
  %v1166 = vadd.f32 %v750, %v979
  %v1167 = vadd.f32 %v751, %v981
  %v1168 = vadd.f32 %v752, %v983
  %v1169 = vadd.f32 %v753, %v985
  %v1170 = vadd.f32 %v754, %v987
  %v1171 = vadd.f32 %v755, %v989
  %v1172 = vadd.f32 %v756, %v991
  %v1173 = vadd.f32 %v757, %v993
  %v1174 = vadd.f32 %v758, %v995
  %v1175 = vadd.f32 %v759, %v997
  %v1176 = vadd.f32 %v760, %v999
  %v1177 = vadd.f32 %v761, %v1001
  %v1178 = vadd.f32 %v762, %v1003
  %v1179 = vadd.f32 %v763, %v1005
  %v1180 = vadd.f32 %v764, %v1007
  %v1181 = vadd.f32 %v765, %v1009
  %v1182 = vadd.f32 %v766, %v1011
  %v1183 = vadd.f32 %v767, %v1013
  %v1184 = vadd.f32 %v768, %v1015
  %v1185 = vadd.f32 %v769, %v1017
  %v1186 = vadd.f32 %v770, %v1019
  %v1187 = vadd.f32 %v771, %v1021
  %v1188 = vadd.f32 %v772, %v1023
  %v1189 = vadd.f32 %v773, %v1025
  %v1190 = vadd.f32 %v774, %v1027
  %v1191 = vadd.f32 %v775, %v1029
  %v1192 = vadd.f32 %v776, %v1031
  %v1193 = vadd.f32 %v777, %v1033
  %v1194 = vadd.f32 %v778, %v1035
  %v1195 = vadd.f32 %v779, %v1037
  %v1196 = vadd.f32 %v780, %v1039
  %v1197 = vadd.f32 %v781, %v1041
  %v1198 = vadd.f32 %v782, %v1043
  %v1199 = vadd.f32 %v783, %v1045
  %v1200 = vadd.f32 %v784, %v1047
  %v1201 = vadd.f32 %v785, %v1049
  %v1202 = vadd.f32 %v786, %v1051
  %v1203 = vadd.f32 %v787, %v1053
  %v1204 = vadd.f32 %v788, %v1055
  %v1205 = vadd.f32 %v789, %v1057
  %v1206 = vadd.f32 %v790, %v1059
  %v1207 = vadd.f32 %v791, %v1061
  %v1208 = vadd.f32 %v792, %v1063
  %v1209 = vadd.f32 %v793, %v1065
  %v1210 = vadd.f32 %v794, %v1067
  %v1211 = vadd.f32 %v795, %v1069
  %v1212 = vadd.f32 %v796, %v1071
  %v1213 = vadd.f32 %v797, %v1073
  %v1214 = vadd.f32 %v798, %v1075
  %v1215 = vadd.f32 %v799, %v1077
  %v1216 = vadd.f32 %v800, %v1079
  %v1217 = vadd.f32 %v801, %v1081
  %v1218 = vadd.f32 %v802, %v1083
  %v1219 = vadd.f32 %v803, %v1085
  %v1220 = vadd.f32 %v804, %v1087
  %v1221 = vadd.f32 %v805, %v1089
  %v1222 = vadd.f32 %v806, %v1091
  %v1223 = vadd.f32 %v807, %v1093
  %v1224 = vadd.f32 %v808, %v1095
  %v1225 = vadd.f32 %v809, %v1097
  %v1226 = vadd.f32 %v1162, %v99
  %v1227 = vadd.f32 %v1163, %v100
  %v1228 = vadd.f32 %v1164, %v101
  %v1229 = vadd.f32 %v1165, %v102
  %v1230 = vadd.f32 %v1166, %v103
  %v1231 = vadd.f32 %v1167, %v104
  %v1232 = vadd.f32 %v1168, %v105
  %v1233 = vadd.f32 %v1169, %v106
  %v1234 = vadd.f32 %v1170, %v99
  %v1235 = vadd.f32 %v1171, %v100
  %v1236 = vadd.f32 %v1172, %v101
  %v1237 = vadd.f32 %v1173, %v102
  %v1238 = vadd.f32 %v1174, %v103
  %v1239 = vadd.f32 %v1175, %v104
  %v1240 = vadd.f32 %v1176, %v105
  %v1241 = vadd.f32 %v1177, %v106
  %v1242 = vadd.f32 %v1178, %v99
  %v1243 = vadd.f32 %v1179, %v100
  %v1244 = vadd.f32 %v1180, %v101
  %v1245 = vadd.f32 %v1181, %v102
  %v1246 = vadd.f32 %v1182, %v103
  %v1247 = vadd.f32 %v1183, %v104
  %v1248 = vadd.f32 %v1184, %v105
  %v1249 = vadd.f32 %v1185, %v106
  %v1250 = vadd.f32 %v1186, %v99
  %v1251 = vadd.f32 %v1187, %v100
  %v1252 = vadd.f32 %v1188, %v101
  %v1253 = vadd.f32 %v1189, %v102
  %v1254 = vadd.f32 %v1190, %v103
  %v1255 = vadd.f32 %v1191, %v104
  %v1256 = vadd.f32 %v1192, %v105
  %v1257 = vadd.f32 %v1193, %v106
  %v1258 = vadd.f32 %v1194, %v99
  %v1259 = vadd.f32 %v1195, %v100
  %v1260 = vadd.f32 %v1196, %v101
  %v1261 = vadd.f32 %v1197, %v102
  %v1262 = vadd.f32 %v1198, %v103
  %v1263 = vadd.f32 %v1199, %v104
  %v1264 = vadd.f32 %v1200, %v105
  %v1265 = vadd.f32 %v1201, %v106
  %v1266 = vadd.f32 %v1202, %v99
  %v1267 = vadd.f32 %v1203, %v100
  %v1268 = vadd.f32 %v1204, %v101
  %v1269 = vadd.f32 %v1205, %v102
  %v1270 = vadd.f32 %v1206, %v103
  %v1271 = vadd.f32 %v1207, %v104
  %v1272 = vadd.f32 %v1208, %v105
  %v1273 = vadd.f32 %v1209, %v106
  %v1274 = vadd.f32 %v1210, %v99
  %v1275 = vadd.f32 %v1211, %v100
  %v1276 = vadd.f32 %v1212, %v101
  %v1277 = vadd.f32 %v1213, %v102
  %v1278 = vadd.f32 %v1214, %v103
  %v1279 = vadd.f32 %v1215, %v104
  %v1280 = vadd.f32 %v1216, %v105
  %v1281 = vadd.f32 %v1217, %v106
  %v1282 = vadd.f32 %v1218, %v99
  %v1283 = vadd.f32 %v1219, %v100
  %v1284 = vadd.f32 %v1220, %v101
  %v1285 = vadd.f32 %v1221, %v102
  %v1286 = vadd.f32 %v1222, %v103
  %v1287 = vadd.f32 %v1223, %v104
  %v1288 = vadd.f32 %v1224, %v105
  %v1289 = vadd.f32 %v1225, %v106
  %v1290 = vpack.c.bf16 %v1227, %v1226
  %v1291 = vpack.c.bf16 %v1229, %v1228
  %v1292 = vpack.c.bf16 %v1231, %v1230
  %v1293 = vpack.c.bf16 %v1233, %v1232
  %v1294 = vpack.c.bf16 %v1235, %v1234
  %v1295 = vpack.c.bf16 %v1237, %v1236
  %v1296 = vpack.c.bf16 %v1239, %v1238
  %v1297 = vpack.c.bf16 %v1241, %v1240
  %v1298 = vpack.c.bf16 %v1243, %v1242
  %v1299 = vpack.c.bf16 %v1245, %v1244
  %v1300 = vpack.c.bf16 %v1247, %v1246
  %v1301 = vpack.c.bf16 %v1249, %v1248
  %v1302 = vpack.c.bf16 %v1251, %v1250
  %v1303 = vpack.c.bf16 %v1253, %v1252
  %v1304 = vpack.c.bf16 %v1255, %v1254
  %v1305 = vpack.c.bf16 %v1257, %v1256
  %v1306 = vpack.c.bf16 %v1259, %v1258
  %v1307 = vpack.c.bf16 %v1261, %v1260
  %v1308 = vpack.c.bf16 %v1263, %v1262
  %v1309 = vpack.c.bf16 %v1265, %v1264
  %v1310 = vpack.c.bf16 %v1267, %v1266
  %v1311 = vpack.c.bf16 %v1269, %v1268
  %v1312 = vpack.c.bf16 %v1271, %v1270
  %v1313 = vpack.c.bf16 %v1273, %v1272
  %v1314 = vpack.c.bf16 %v1275, %v1274
  %v1315 = vpack.c.bf16 %v1277, %v1276
  %v1316 = vpack.c.bf16 %v1279, %v1278
  %v1317 = vpack.c.bf16 %v1281, %v1280
  %v1318 = vpack.c.bf16 %v1283, %v1282
  %v1319 = vpack.c.bf16 %v1285, %v1284
  %v1320 = vpack.c.bf16 %v1287, %v1286
  %v1321 = vpack.c.bf16 %v1289, %v1288
  %1330 = vrot.lane.b32.xlu0 %v83, 64
  %v1331 = vpop.permute.xlu0 %1330
  %1332 = vrot.lane.b32.xlu0 %v84, 64
  %v1333 = vpop.permute.xlu0 %1332
  %1334 = vrot.lane.b32.xlu0 %v85, 64
  %v1335 = vpop.permute.xlu0 %1334
  %1336 = vrot.lane.b32.xlu0 %v86, 64
  %v1337 = vpop.permute.xlu0 %1336
  %1338 = vrot.lane.b32.xlu0 %v87, 64
  %v1339 = vpop.permute.xlu0 %1338
  %1340 = vrot.lane.b32.xlu0 %v88, 64
  %v1341 = vpop.permute.xlu0 %1340
  %1342 = vrot.lane.b32.xlu0 %v89, 64
  %v1343 = vpop.permute.xlu0 %1342
  %1344 = vrot.lane.b32.xlu0 %v90, 64
  %v1345 = vpop.permute.xlu0 %1344
  %v1354 = vmul.f32 %v428, %v1331
  %v1355 = vmul.f32 %v432, %v1333
  %v1356 = vmul.f32 %v438, %v1335
  %v1357 = vmul.f32 %v442, %v1337
  %v1358 = vmul.f32 %v448, %v1339
  %v1359 = vmul.f32 %v452, %v1341
  %v1360 = vmul.f32 %v458, %v1343
  %v1361 = vmul.f32 %v462, %v1345
  %v1362 = vmul.f32 %v468, %v1331
  %v1363 = vmul.f32 %v472, %v1333
  %v1364 = vmul.f32 %v478, %v1335
  %v1365 = vmul.f32 %v482, %v1337
  %v1366 = vmul.f32 %v488, %v1339
  %v1367 = vmul.f32 %v492, %v1341
  %v1368 = vmul.f32 %v498, %v1343
  %v1369 = vmul.f32 %v502, %v1345
  %v1370 = vmul.f32 %v508, %v1331
  %v1371 = vmul.f32 %v512, %v1333
  %v1372 = vmul.f32 %v518, %v1335
  %v1373 = vmul.f32 %v522, %v1337
  %v1374 = vmul.f32 %v528, %v1339
  %v1375 = vmul.f32 %v532, %v1341
  %v1376 = vmul.f32 %v538, %v1343
  %v1377 = vmul.f32 %v542, %v1345
  %v1378 = vmul.f32 %v548, %v1331
  %v1379 = vmul.f32 %v552, %v1333
  %v1380 = vmul.f32 %v558, %v1335
  %v1381 = vmul.f32 %v562, %v1337
  %v1382 = vmul.f32 %v568, %v1339
  %v1383 = vmul.f32 %v572, %v1341
  %v1384 = vmul.f32 %v578, %v1343
  %v1385 = vmul.f32 %v582, %v1345
  %v1386 = vmul.f32 %v588, %v1331
  %v1387 = vmul.f32 %v592, %v1333
  %v1388 = vmul.f32 %v598, %v1335
  %v1389 = vmul.f32 %v602, %v1337
  %v1390 = vmul.f32 %v608, %v1339
  %v1391 = vmul.f32 %v612, %v1341
  %v1392 = vmul.f32 %v618, %v1343
  %v1393 = vmul.f32 %v622, %v1345
  %v1394 = vmul.f32 %v628, %v1331
  %v1395 = vmul.f32 %v632, %v1333
  %v1396 = vmul.f32 %v638, %v1335
  %v1397 = vmul.f32 %v642, %v1337
  %v1398 = vmul.f32 %v648, %v1339
  %v1399 = vmul.f32 %v652, %v1341
  %v1400 = vmul.f32 %v658, %v1343
  %v1401 = vmul.f32 %v662, %v1345
  %v1402 = vmul.f32 %v668, %v1331
  %v1403 = vmul.f32 %v672, %v1333
  %v1404 = vmul.f32 %v678, %v1335
  %v1405 = vmul.f32 %v682, %v1337
  %v1406 = vmul.f32 %v688, %v1339
  %v1407 = vmul.f32 %v692, %v1341
  %v1408 = vmul.f32 %v698, %v1343
  %v1409 = vmul.f32 %v702, %v1345
  %v1410 = vmul.f32 %v708, %v1331
  %v1411 = vmul.f32 %v712, %v1333
  %v1412 = vmul.f32 %v718, %v1335
  %v1413 = vmul.f32 %v722, %v1337
  %v1414 = vmul.f32 %v728, %v1339
  %v1415 = vmul.f32 %v732, %v1341
  %v1416 = vmul.f32 %v738, %v1343
  %v1417 = vmul.f32 %v742, %v1345
  %1418 = vrot.lane.b32.xlu0 %v91, 96
  %v1419 = vpop.permute.xlu0 %1418
  %1420 = vrot.lane.b32.xlu0 %v92, 96
  %v1421 = vpop.permute.xlu0 %1420
  %1422 = vrot.lane.b32.xlu0 %v93, 96
  %v1423 = vpop.permute.xlu0 %1422
  %1424 = vrot.lane.b32.xlu0 %v94, 96
  %v1425 = vpop.permute.xlu0 %1424
  %1426 = vrot.lane.b32.xlu0 %v95, 96
  %v1427 = vpop.permute.xlu0 %1426
  %1428 = vrot.lane.b32.xlu0 %v96, 96
  %v1429 = vpop.permute.xlu0 %1428
  %1430 = vrot.lane.b32.xlu0 %v97, 96
  %v1431 = vpop.permute.xlu0 %1430
  %1432 = vrot.lane.b32.xlu0 %v98, 96
  %v1433 = vpop.permute.xlu0 %1432
  %v1442 = vmul.f32 %v428, %v1419
  %v1443 = vmul.f32 %v432, %v1421
  %v1444 = vmul.f32 %v438, %v1423
  %v1445 = vmul.f32 %v442, %v1425
  %v1446 = vmul.f32 %v448, %v1427
  %v1447 = vmul.f32 %v452, %v1429
  %v1448 = vmul.f32 %v458, %v1431
  %v1449 = vmul.f32 %v462, %v1433
  %v1450 = vmul.f32 %v468, %v1419
  %v1451 = vmul.f32 %v472, %v1421
  %v1452 = vmul.f32 %v478, %v1423
  %v1453 = vmul.f32 %v482, %v1425
  %v1454 = vmul.f32 %v488, %v1427
  %v1455 = vmul.f32 %v492, %v1429
  %v1456 = vmul.f32 %v498, %v1431
  %v1457 = vmul.f32 %v502, %v1433
  %v1458 = vmul.f32 %v508, %v1419
  %v1459 = vmul.f32 %v512, %v1421
  %v1460 = vmul.f32 %v518, %v1423
  %v1461 = vmul.f32 %v522, %v1425
  %v1462 = vmul.f32 %v528, %v1427
  %v1463 = vmul.f32 %v532, %v1429
  %v1464 = vmul.f32 %v538, %v1431
  %v1465 = vmul.f32 %v542, %v1433
  %v1466 = vmul.f32 %v548, %v1419
  %v1467 = vmul.f32 %v552, %v1421
  %v1468 = vmul.f32 %v558, %v1423
  %v1469 = vmul.f32 %v562, %v1425
  %v1470 = vmul.f32 %v568, %v1427
  %v1471 = vmul.f32 %v572, %v1429
  %v1472 = vmul.f32 %v578, %v1431
  %v1473 = vmul.f32 %v582, %v1433
  %v1474 = vmul.f32 %v588, %v1419
  %v1475 = vmul.f32 %v592, %v1421
  %v1476 = vmul.f32 %v598, %v1423
  %v1477 = vmul.f32 %v602, %v1425
  %v1478 = vmul.f32 %v608, %v1427
  %v1479 = vmul.f32 %v612, %v1429
  %v1480 = vmul.f32 %v618, %v1431
  %v1481 = vmul.f32 %v622, %v1433
  %v1482 = vmul.f32 %v628, %v1419
  %v1483 = vmul.f32 %v632, %v1421
  %v1484 = vmul.f32 %v638, %v1423
  %v1485 = vmul.f32 %v642, %v1425
  %v1486 = vmul.f32 %v648, %v1427
  %v1487 = vmul.f32 %v652, %v1429
  %v1488 = vmul.f32 %v658, %v1431
  %v1489 = vmul.f32 %v662, %v1433
  %v1490 = vmul.f32 %v668, %v1419
  %v1491 = vmul.f32 %v672, %v1421
  %v1492 = vmul.f32 %v678, %v1423
  %v1493 = vmul.f32 %v682, %v1425
  %v1494 = vmul.f32 %v688, %v1427
  %v1495 = vmul.f32 %v692, %v1429
  %v1496 = vmul.f32 %v698, %v1431
  %v1497 = vmul.f32 %v702, %v1433
  %v1498 = vmul.f32 %v708, %v1419
  %v1499 = vmul.f32 %v712, %v1421
  %v1500 = vmul.f32 %v718, %v1423
  %v1501 = vmul.f32 %v722, %v1425
  %v1502 = vmul.f32 %v728, %v1427
  %v1503 = vmul.f32 %v732, %v1429
  %v1504 = vmul.f32 %v738, %v1431
  %v1505 = vmul.f32 %v742, %v1433
  %1570 = vrot.lane.b32.xlu0 %v1442, 96
  %v1571 = vpop.permute.xlu0 %1570
  %1572 = vrot.lane.b32.xlu0 %v1443, 96
  %v1573 = vpop.permute.xlu0 %1572
  %1574 = vrot.lane.b32.xlu0 %v1444, 96
  %v1575 = vpop.permute.xlu0 %1574
  %1576 = vrot.lane.b32.xlu0 %v1445, 96
  %v1577 = vpop.permute.xlu0 %1576
  %1578 = vrot.lane.b32.xlu0 %v1446, 96
  %v1579 = vpop.permute.xlu0 %1578
  %1580 = vrot.lane.b32.xlu0 %v1447, 96
  %v1581 = vpop.permute.xlu0 %1580
  %1582 = vrot.lane.b32.xlu0 %v1448, 96
  %v1583 = vpop.permute.xlu0 %1582
  %1584 = vrot.lane.b32.xlu0 %v1449, 96
  %v1585 = vpop.permute.xlu0 %1584
  %1586 = vrot.lane.b32.xlu0 %v1450, 96
  %v1587 = vpop.permute.xlu0 %1586
  %1588 = vrot.lane.b32.xlu0 %v1451, 96
  %v1589 = vpop.permute.xlu0 %1588
  %1590 = vrot.lane.b32.xlu0 %v1452, 96
  %v1591 = vpop.permute.xlu0 %1590
  %1592 = vrot.lane.b32.xlu0 %v1453, 96
  %v1593 = vpop.permute.xlu0 %1592
  %1594 = vrot.lane.b32.xlu0 %v1454, 96
  %v1595 = vpop.permute.xlu0 %1594
  %1596 = vrot.lane.b32.xlu0 %v1455, 96
  %v1597 = vpop.permute.xlu0 %1596
  %1598 = vrot.lane.b32.xlu0 %v1456, 96
  %v1599 = vpop.permute.xlu0 %1598
  %1600 = vrot.lane.b32.xlu0 %v1457, 96
  %v1601 = vpop.permute.xlu0 %1600
  %1602 = vrot.lane.b32.xlu0 %v1458, 96
  %v1603 = vpop.permute.xlu0 %1602
  %1604 = vrot.lane.b32.xlu0 %v1459, 96
  %v1605 = vpop.permute.xlu0 %1604
  %1606 = vrot.lane.b32.xlu0 %v1460, 96
  %v1607 = vpop.permute.xlu0 %1606
  %1608 = vrot.lane.b32.xlu0 %v1461, 96
  %v1609 = vpop.permute.xlu0 %1608
  %1610 = vrot.lane.b32.xlu0 %v1462, 96
  %v1611 = vpop.permute.xlu0 %1610
  %1612 = vrot.lane.b32.xlu0 %v1463, 96
  %v1613 = vpop.permute.xlu0 %1612
  %1614 = vrot.lane.b32.xlu0 %v1464, 96
  %v1615 = vpop.permute.xlu0 %1614
  %1616 = vrot.lane.b32.xlu0 %v1465, 96
  %v1617 = vpop.permute.xlu0 %1616
  %1618 = vrot.lane.b32.xlu0 %v1466, 96
  %v1619 = vpop.permute.xlu0 %1618
  %1620 = vrot.lane.b32.xlu0 %v1467, 96
  %v1621 = vpop.permute.xlu0 %1620
  %1622 = vrot.lane.b32.xlu0 %v1468, 96
  %v1623 = vpop.permute.xlu0 %1622
  %1624 = vrot.lane.b32.xlu0 %v1469, 96
  %v1625 = vpop.permute.xlu0 %1624
  %1626 = vrot.lane.b32.xlu0 %v1470, 96
  %v1627 = vpop.permute.xlu0 %1626
  %1628 = vrot.lane.b32.xlu0 %v1471, 96
  %v1629 = vpop.permute.xlu0 %1628
  %1630 = vrot.lane.b32.xlu0 %v1472, 96
  %v1631 = vpop.permute.xlu0 %1630
  %1632 = vrot.lane.b32.xlu0 %v1473, 96
  %v1633 = vpop.permute.xlu0 %1632
  %1634 = vrot.lane.b32.xlu0 %v1474, 96
  %v1635 = vpop.permute.xlu0 %1634
  %1636 = vrot.lane.b32.xlu0 %v1475, 96
  %v1637 = vpop.permute.xlu0 %1636
  %1638 = vrot.lane.b32.xlu0 %v1476, 96
  %v1639 = vpop.permute.xlu0 %1638
  %1640 = vrot.lane.b32.xlu0 %v1477, 96
  %v1641 = vpop.permute.xlu0 %1640
  %1642 = vrot.lane.b32.xlu0 %v1478, 96
  %v1643 = vpop.permute.xlu0 %1642
  %1644 = vrot.lane.b32.xlu0 %v1479, 96
  %v1645 = vpop.permute.xlu0 %1644
  %1646 = vrot.lane.b32.xlu0 %v1480, 96
  %v1647 = vpop.permute.xlu0 %1646
  %1648 = vrot.lane.b32.xlu0 %v1481, 96
  %v1649 = vpop.permute.xlu0 %1648
  %1650 = vrot.lane.b32.xlu0 %v1482, 96
  %v1651 = vpop.permute.xlu0 %1650
  %1652 = vrot.lane.b32.xlu0 %v1483, 96
  %v1653 = vpop.permute.xlu0 %1652
  %1654 = vrot.lane.b32.xlu0 %v1484, 96
  %v1655 = vpop.permute.xlu0 %1654
  %1656 = vrot.lane.b32.xlu0 %v1485, 96
  %v1657 = vpop.permute.xlu0 %1656
  %1658 = vrot.lane.b32.xlu0 %v1486, 96
  %v1659 = vpop.permute.xlu0 %1658
  %1660 = vrot.lane.b32.xlu0 %v1487, 96
  %v1661 = vpop.permute.xlu0 %1660
  %1662 = vrot.lane.b32.xlu0 %v1488, 96
  %v1663 = vpop.permute.xlu0 %1662
  %1664 = vrot.lane.b32.xlu0 %v1489, 96
  %v1665 = vpop.permute.xlu0 %1664
  %1666 = vrot.lane.b32.xlu0 %v1490, 96
  %v1667 = vpop.permute.xlu0 %1666
  %1668 = vrot.lane.b32.xlu0 %v1491, 96
  %v1669 = vpop.permute.xlu0 %1668
  %1670 = vrot.lane.b32.xlu0 %v1492, 96
  %v1671 = vpop.permute.xlu0 %1670
  %1672 = vrot.lane.b32.xlu0 %v1493, 96
  %v1673 = vpop.permute.xlu0 %1672
  %1674 = vrot.lane.b32.xlu0 %v1494, 96
  %v1675 = vpop.permute.xlu0 %1674
  %1676 = vrot.lane.b32.xlu0 %v1495, 96
  %v1677 = vpop.permute.xlu0 %1676
  %1678 = vrot.lane.b32.xlu0 %v1496, 96
  %v1679 = vpop.permute.xlu0 %1678
  %1680 = vrot.lane.b32.xlu0 %v1497, 96
  %v1681 = vpop.permute.xlu0 %1680
  %1682 = vrot.lane.b32.xlu0 %v1498, 96
  %v1683 = vpop.permute.xlu0 %1682
  %1684 = vrot.lane.b32.xlu0 %v1499, 96
  %v1685 = vpop.permute.xlu0 %1684
  %1686 = vrot.lane.b32.xlu0 %v1500, 96
  %v1687 = vpop.permute.xlu0 %1686
  %1688 = vrot.lane.b32.xlu0 %v1501, 96
  %v1689 = vpop.permute.xlu0 %1688
  %1690 = vrot.lane.b32.xlu0 %v1502, 96
  %v1691 = vpop.permute.xlu0 %1690
  %1692 = vrot.lane.b32.xlu0 %v1503, 96
  %v1693 = vpop.permute.xlu0 %1692
  %1694 = vrot.lane.b32.xlu0 %v1504, 96
  %v1695 = vpop.permute.xlu0 %1694
  %1696 = vrot.lane.b32.xlu0 %v1505, 96
  %v1697 = vpop.permute.xlu0 %1696
  %v1762 = vadd.f32 %v1354, %v1571
  %v1763 = vadd.f32 %v1355, %v1573
  %v1764 = vadd.f32 %v1356, %v1575
  %v1765 = vadd.f32 %v1357, %v1577
  %v1766 = vadd.f32 %v1358, %v1579
  %v1767 = vadd.f32 %v1359, %v1581
  %v1768 = vadd.f32 %v1360, %v1583
  %v1769 = vadd.f32 %v1361, %v1585
  %v1770 = vadd.f32 %v1362, %v1587
  %v1771 = vadd.f32 %v1363, %v1589
  %v1772 = vadd.f32 %v1364, %v1591
  %v1773 = vadd.f32 %v1365, %v1593
  %v1774 = vadd.f32 %v1366, %v1595
  %v1775 = vadd.f32 %v1367, %v1597
  %v1776 = vadd.f32 %v1368, %v1599
  %v1777 = vadd.f32 %v1369, %v1601
  %v1778 = vadd.f32 %v1370, %v1603
  %v1779 = vadd.f32 %v1371, %v1605
  %v1780 = vadd.f32 %v1372, %v1607
  %v1781 = vadd.f32 %v1373, %v1609
  %v1782 = vadd.f32 %v1374, %v1611
  %v1783 = vadd.f32 %v1375, %v1613
  %v1784 = vadd.f32 %v1376, %v1615
  %v1785 = vadd.f32 %v1377, %v1617
  %v1786 = vadd.f32 %v1378, %v1619
  %v1787 = vadd.f32 %v1379, %v1621
  %v1788 = vadd.f32 %v1380, %v1623
  %v1789 = vadd.f32 %v1381, %v1625
  %v1790 = vadd.f32 %v1382, %v1627
  %v1791 = vadd.f32 %v1383, %v1629
  %v1792 = vadd.f32 %v1384, %v1631
  %v1793 = vadd.f32 %v1385, %v1633
  %v1794 = vadd.f32 %v1386, %v1635
  %v1795 = vadd.f32 %v1387, %v1637
  %v1796 = vadd.f32 %v1388, %v1639
  %v1797 = vadd.f32 %v1389, %v1641
  %v1798 = vadd.f32 %v1390, %v1643
  %v1799 = vadd.f32 %v1391, %v1645
  %v1800 = vadd.f32 %v1392, %v1647
  %v1801 = vadd.f32 %v1393, %v1649
  %v1802 = vadd.f32 %v1394, %v1651
  %v1803 = vadd.f32 %v1395, %v1653
  %v1804 = vadd.f32 %v1396, %v1655
  %v1805 = vadd.f32 %v1397, %v1657
  %v1806 = vadd.f32 %v1398, %v1659
  %v1807 = vadd.f32 %v1399, %v1661
  %v1808 = vadd.f32 %v1400, %v1663
  %v1809 = vadd.f32 %v1401, %v1665
  %v1810 = vadd.f32 %v1402, %v1667
  %v1811 = vadd.f32 %v1403, %v1669
  %v1812 = vadd.f32 %v1404, %v1671
  %v1813 = vadd.f32 %v1405, %v1673
  %v1814 = vadd.f32 %v1406, %v1675
  %v1815 = vadd.f32 %v1407, %v1677
  %v1816 = vadd.f32 %v1408, %v1679
  %v1817 = vadd.f32 %v1409, %v1681
  %v1818 = vadd.f32 %v1410, %v1683
  %v1819 = vadd.f32 %v1411, %v1685
  %v1820 = vadd.f32 %v1412, %v1687
  %v1821 = vadd.f32 %v1413, %v1689
  %v1822 = vadd.f32 %v1414, %v1691
  %v1823 = vadd.f32 %v1415, %v1693
  %v1824 = vadd.f32 %v1416, %v1695
  %v1825 = vadd.f32 %v1417, %v1697
  %1834 = vrot.lane.b32.xlu0 %v107, 64
  %v1835 = vpop.permute.xlu0 %1834
  %1836 = vrot.lane.b32.xlu0 %v108, 64
  %v1837 = vpop.permute.xlu0 %1836
  %1838 = vrot.lane.b32.xlu0 %v109, 64
  %v1839 = vpop.permute.xlu0 %1838
  %1840 = vrot.lane.b32.xlu0 %v110, 64
  %v1841 = vpop.permute.xlu0 %1840
  %1842 = vrot.lane.b32.xlu0 %v111, 64
  %v1843 = vpop.permute.xlu0 %1842
  %1844 = vrot.lane.b32.xlu0 %v112, 64
  %v1845 = vpop.permute.xlu0 %1844
  %1846 = vrot.lane.b32.xlu0 %v113, 64
  %v1847 = vpop.permute.xlu0 %1846
  %1848 = vrot.lane.b32.xlu0 %v114, 64
  %v1849 = vpop.permute.xlu0 %1848
  %v1858 = vadd.f32 %v1762, %v1835
  %v1859 = vadd.f32 %v1763, %v1837
  %v1860 = vadd.f32 %v1764, %v1839
  %v1861 = vadd.f32 %v1765, %v1841
  %v1862 = vadd.f32 %v1766, %v1843
  %v1863 = vadd.f32 %v1767, %v1845
  %v1864 = vadd.f32 %v1768, %v1847
  %v1865 = vadd.f32 %v1769, %v1849
  %v1866 = vadd.f32 %v1770, %v1835
  %v1867 = vadd.f32 %v1771, %v1837
  %v1868 = vadd.f32 %v1772, %v1839
  %v1869 = vadd.f32 %v1773, %v1841
  %v1870 = vadd.f32 %v1774, %v1843
  %v1871 = vadd.f32 %v1775, %v1845
  %v1872 = vadd.f32 %v1776, %v1847
  %v1873 = vadd.f32 %v1777, %v1849
  %v1874 = vadd.f32 %v1778, %v1835
  %v1875 = vadd.f32 %v1779, %v1837
  %v1876 = vadd.f32 %v1780, %v1839
  %v1877 = vadd.f32 %v1781, %v1841
  %v1878 = vadd.f32 %v1782, %v1843
  %v1879 = vadd.f32 %v1783, %v1845
  %v1880 = vadd.f32 %v1784, %v1847
  %v1881 = vadd.f32 %v1785, %v1849
  %v1882 = vadd.f32 %v1786, %v1835
  %v1883 = vadd.f32 %v1787, %v1837
  %v1884 = vadd.f32 %v1788, %v1839
  %v1885 = vadd.f32 %v1789, %v1841
  %v1886 = vadd.f32 %v1790, %v1843
  %v1887 = vadd.f32 %v1791, %v1845
  %v1888 = vadd.f32 %v1792, %v1847
  %v1889 = vadd.f32 %v1793, %v1849
  %v1890 = vadd.f32 %v1794, %v1835
  %v1891 = vadd.f32 %v1795, %v1837
  %v1892 = vadd.f32 %v1796, %v1839
  %v1893 = vadd.f32 %v1797, %v1841
  %v1894 = vadd.f32 %v1798, %v1843
  %v1895 = vadd.f32 %v1799, %v1845
  %v1896 = vadd.f32 %v1800, %v1847
  %v1897 = vadd.f32 %v1801, %v1849
  %v1898 = vadd.f32 %v1802, %v1835
  %v1899 = vadd.f32 %v1803, %v1837
  %v1900 = vadd.f32 %v1804, %v1839
  %v1901 = vadd.f32 %v1805, %v1841
  %v1902 = vadd.f32 %v1806, %v1843
  %v1903 = vadd.f32 %v1807, %v1845
  %v1904 = vadd.f32 %v1808, %v1847
  %v1905 = vadd.f32 %v1809, %v1849
  %v1906 = vadd.f32 %v1810, %v1835
  %v1907 = vadd.f32 %v1811, %v1837
  %v1908 = vadd.f32 %v1812, %v1839
  %v1909 = vadd.f32 %v1813, %v1841
  %v1910 = vadd.f32 %v1814, %v1843
  %v1911 = vadd.f32 %v1815, %v1845
  %v1912 = vadd.f32 %v1816, %v1847
  %v1913 = vadd.f32 %v1817, %v1849
  %v1914 = vadd.f32 %v1818, %v1835
  %v1915 = vadd.f32 %v1819, %v1837
  %v1916 = vadd.f32 %v1820, %v1839
  %v1917 = vadd.f32 %v1821, %v1841
  %v1918 = vadd.f32 %v1822, %v1843
  %v1919 = vadd.f32 %v1823, %v1845
  %v1920 = vadd.f32 %v1824, %v1847
  %v1921 = vadd.f32 %v1825, %v1849
  %v1922 = vpack.c.bf16 %v1859, %v1858
  %v1923 = vpack.c.bf16 %v1861, %v1860
  %v1924 = vpack.c.bf16 %v1863, %v1862
  %v1925 = vpack.c.bf16 %v1865, %v1864
  %v1926 = vpack.c.bf16 %v1867, %v1866
  %v1927 = vpack.c.bf16 %v1869, %v1868
  %v1928 = vpack.c.bf16 %v1871, %v1870
  %v1929 = vpack.c.bf16 %v1873, %v1872
  %v1930 = vpack.c.bf16 %v1875, %v1874
  %v1931 = vpack.c.bf16 %v1877, %v1876
  %v1932 = vpack.c.bf16 %v1879, %v1878
  %v1933 = vpack.c.bf16 %v1881, %v1880
  %v1934 = vpack.c.bf16 %v1883, %v1882
  %v1935 = vpack.c.bf16 %v1885, %v1884
  %v1936 = vpack.c.bf16 %v1887, %v1886
  %v1937 = vpack.c.bf16 %v1889, %v1888
  %v1938 = vpack.c.bf16 %v1891, %v1890
  %v1939 = vpack.c.bf16 %v1893, %v1892
  %v1940 = vpack.c.bf16 %v1895, %v1894
  %v1941 = vpack.c.bf16 %v1897, %v1896
  %v1942 = vpack.c.bf16 %v1899, %v1898
  %v1943 = vpack.c.bf16 %v1901, %v1900
  %v1944 = vpack.c.bf16 %v1903, %v1902
  %v1945 = vpack.c.bf16 %v1905, %v1904
  %v1946 = vpack.c.bf16 %v1907, %v1906
  %v1947 = vpack.c.bf16 %v1909, %v1908
  %v1948 = vpack.c.bf16 %v1911, %v1910
  %v1949 = vpack.c.bf16 %v1913, %v1912
  %v1950 = vpack.c.bf16 %v1915, %v1914
  %v1951 = vpack.c.bf16 %v1917, %v1916
  %v1952 = vpack.c.bf16 %v1919, %v1918
  %v1953 = vpack.c.bf16 %v1921, %v1920
  %v1954 = vpack.c.bf16 %v434, %v430
  %v1955 = vpack.c.bf16 %v444, %v440
  %v1956 = vpack.c.bf16 %v454, %v450
  %v1957 = vpack.c.bf16 %v464, %v460
  %v1958 = vpack.c.bf16 %v474, %v470
  %v1959 = vpack.c.bf16 %v484, %v480
  %v1960 = vpack.c.bf16 %v494, %v490
  %v1961 = vpack.c.bf16 %v504, %v500
  %v1962 = vpack.c.bf16 %v514, %v510
  %v1963 = vpack.c.bf16 %v524, %v520
  %v1964 = vpack.c.bf16 %v534, %v530
  %v1965 = vpack.c.bf16 %v544, %v540
  %v1966 = vpack.c.bf16 %v554, %v550
  %v1967 = vpack.c.bf16 %v564, %v560
  %v1968 = vpack.c.bf16 %v574, %v570
  %v1969 = vpack.c.bf16 %v584, %v580
  %v1970 = vpack.c.bf16 %v594, %v590
  %v1971 = vpack.c.bf16 %v604, %v600
  %v1972 = vpack.c.bf16 %v614, %v610
  %v1973 = vpack.c.bf16 %v624, %v620
  %v1974 = vpack.c.bf16 %v634, %v630
  %v1975 = vpack.c.bf16 %v644, %v640
  %v1976 = vpack.c.bf16 %v654, %v650
  %v1977 = vpack.c.bf16 %v664, %v660
  %v1978 = vpack.c.bf16 %v674, %v670
  %v1979 = vpack.c.bf16 %v684, %v680
  %v1980 = vpack.c.bf16 %v694, %v690
  %v1981 = vpack.c.bf16 %v704, %v700
  %v1982 = vpack.c.bf16 %v714, %v710
  %v1983 = vpack.c.bf16 %v724, %v720
  %v1984 = vpack.c.bf16 %v734, %v730
  %v1985 = vpack.c.bf16 %v744, %v740
  %1990 = vrot.lane.b32.xlu0 %v1922, 64
  %v1991 = vpop.permute.xlu0 %1990
  %1992 = vrot.lane.b32.xlu0 %v1923, 64
  %v1993 = vpop.permute.xlu0 %1992
  %1994 = vrot.lane.b32.xlu0 %v1924, 64
  %v1995 = vpop.permute.xlu0 %1994
  %1996 = vrot.lane.b32.xlu0 %v1925, 64
  %v1997 = vpop.permute.xlu0 %1996
  %vm1998 = vcmask 64512
  %v2000 = vsel %vm1998, %v1290, 0
  %v2003 = vsel %vm1998, %v1291, 0
  %v2006 = vsel %vm1998, %v1292, 0
  %v2009 = vsel %vm1998, %v1293, 0
  %v2012 = vsel %vm1998, %v1991, 0
  %v2015 = vsel %vm1998, %v1993, 0
  %v2018 = vsel %vm1998, %v1995, 0
  %v2021 = vsel %vm1998, %v1997, 0
  %2023 = vmatprep.subr.bf16.mxu0 0
  %2024 = vmatpush1.bf16.xpose.msra.mxu0 0
  %2025 = vmatprep.subr.bf16.mxu0 0
  %2026 = vmatpush1.bf16.xpose.msra.mxu0 0
  %2027 = vmatprep.subr.bf16.mxu0 0
  %2028 = vmatpush1.bf16.xpose.msra.mxu0 0
  %2029 = vmatprep.subr.bf16.mxu0 0
  %2030 = vmatpush1.bf16.xpose.msra.mxu0 0
  %2031 = vmatprep.subr.bf16.mxu0 0
  %2032 = vmatpush1.bf16.xpose.msra.mxu0 %v2021
  %2033 = vmatprep.subr.bf16.mxu0 0
  %2034 = vmatpush1.bf16.xpose.msra.mxu0 %v2018
  %2035 = vmatprep.subr.bf16.mxu0 0
  %2036 = vmatpush1.bf16.xpose.msra.mxu0 %v2015
  %2037 = vmatprep.subr.bf16.mxu0 0
  %2038 = vmatpush1.bf16.xpose.msra.mxu0 %v2012
  %2039 = vmatprep.subr.bf16.mxu0 0
  %2040 = vmatpush2.bf16.xpose.msra.mxu0 0
  %2041 = vmatprep.subr.bf16.mxu0 0
  %2042 = vmatpush2.bf16.xpose.msra.mxu0 0
  %2043 = vmatprep.subr.bf16.mxu0 0
  %2044 = vmatpush2.bf16.xpose.msra.mxu0 0
  %2045 = vmatprep.subr.bf16.mxu0 0
  %2046 = vmatpush2.bf16.xpose.msra.mxu0 0
  %2047 = vmatprep.subr.bf16.mxu0 0
  %2048 = vmatpush2.bf16.xpose.msra.mxu0 0
  %2049 = vmatprep.subr.bf16.mxu0 0
  %2050 = vmatpush2.bf16.xpose.msra.mxu0 0
  %2051 = vmatprep.subr.bf16.mxu0 0
  %2052 = vmatpush2.bf16.xpose.msra.mxu0 0
  %2053 = vmatprep.subr.bf16.mxu0 0
  %2054 = vmatpush2.bf16.xpose.msra.mxu0 0
  %2055 = vmatprep.mubr.bf16.mxu0 0
  %2056 = vmatmul.mubr.bf16.gmra.mxu0 %v2000
  %v2057 = vpop.f32.mrf.mxu0
  %v2058 = vadd.f32 0.0, %v2057
  %v2059 = vpop.f32.mrf.mxu0
  %v2060 = vpop.f32.mrf.mxu0
  %v2061 = vadd.f32 0.0, %v2060
  %v2062 = vpop.f32.mrf.mxu0
  %2063 = vmatprep.mubr.bf16.mxu0 0
  %2064 = vmatmul.mubr.bf16.gmra.mxu0 %v2003
  %v2065 = vpop.f32.mrf.mxu0
  %v2066 = vadd.f32 0.0, %v2065
  %v2067 = vpop.f32.mrf.mxu0
  %v2068 = vpop.f32.mrf.mxu0
  %v2069 = vadd.f32 0.0, %v2068
  %v2070 = vpop.f32.mrf.mxu0
  %2071 = vmatprep.mubr.bf16.mxu0 0
  %2072 = vmatmul.mubr.bf16.gmra.mxu0 %v2006
  %v2073 = vpop.f32.mrf.mxu0
  %v2074 = vadd.f32 0.0, %v2073
  %v2075 = vpop.f32.mrf.mxu0
  %v2076 = vpop.f32.mrf.mxu0
  %v2077 = vadd.f32 0.0, %v2076
  %v2078 = vpop.f32.mrf.mxu0
  %2079 = vmatprep.mubr.bf16.mxu0 0
  %2080 = vmatmul.mubr.bf16.gmra.mxu0 %v2009
  %v2081 = vpop.f32.mrf.mxu0
  %v2082 = vadd.f32 0.0, %v2081
  %v2083 = vpop.f32.mrf.mxu0
  %v2084 = vpop.f32.mrf.mxu0
  %v2085 = vadd.f32 0.0, %v2084
  %v2086 = vpop.f32.mrf.mxu0
  %2087 = vdwg.mxu0
  %2092 = vrot.lane.b32.xlu0 %v1926, 64
  %v2093 = vpop.permute.xlu0 %2092
  %2094 = vrot.lane.b32.xlu0 %v1927, 64
  %v2095 = vpop.permute.xlu0 %2094
  %2096 = vrot.lane.b32.xlu0 %v1928, 64
  %v2097 = vpop.permute.xlu0 %2096
  %2098 = vrot.lane.b32.xlu0 %v1929, 64
  %v2099 = vpop.permute.xlu0 %2098
  %v2101 = vsel %vm1998, %v1294, 0
  %v2104 = vsel %vm1998, %v1295, 0
  %v2107 = vsel %vm1998, %v1296, 0
  %v2110 = vsel %vm1998, %v1297, 0
  %v2113 = vsel %vm1998, %v2093, 0
  %v2116 = vsel %vm1998, %v2095, 0
  %v2119 = vsel %vm1998, %v2097, 0
  %v2122 = vsel %vm1998, %v2099, 0
  %2124 = vmatprep.subr.bf16.mxu0 0
  %2125 = vmatpush1.bf16.xpose.msra.mxu0 0
  %2126 = vmatprep.subr.bf16.mxu0 0
  %2127 = vmatpush1.bf16.xpose.msra.mxu0 0
  %2128 = vmatprep.subr.bf16.mxu0 0
  %2129 = vmatpush1.bf16.xpose.msra.mxu0 0
  %2130 = vmatprep.subr.bf16.mxu0 0
  %2131 = vmatpush1.bf16.xpose.msra.mxu0 0
  %2132 = vmatprep.subr.bf16.mxu0 0
  %2133 = vmatpush1.bf16.xpose.msra.mxu0 %v2122
  %2134 = vmatprep.subr.bf16.mxu0 0
  %2135 = vmatpush1.bf16.xpose.msra.mxu0 %v2119
  %2136 = vmatprep.subr.bf16.mxu0 0
  %2137 = vmatpush1.bf16.xpose.msra.mxu0 %v2116
  %2138 = vmatprep.subr.bf16.mxu0 0
  %2139 = vmatpush1.bf16.xpose.msra.mxu0 %v2113
  %2140 = vmatprep.subr.bf16.mxu0 0
  %2141 = vmatpush2.bf16.xpose.msra.mxu0 0
  %2142 = vmatprep.subr.bf16.mxu0 0
  %2143 = vmatpush2.bf16.xpose.msra.mxu0 0
  %2144 = vmatprep.subr.bf16.mxu0 0
  %2145 = vmatpush2.bf16.xpose.msra.mxu0 0
  %2146 = vmatprep.subr.bf16.mxu0 0
  %2147 = vmatpush2.bf16.xpose.msra.mxu0 0
  %2148 = vmatprep.subr.bf16.mxu0 0
  %2149 = vmatpush2.bf16.xpose.msra.mxu0 0
  %2150 = vmatprep.subr.bf16.mxu0 0
  %2151 = vmatpush2.bf16.xpose.msra.mxu0 0
  %2152 = vmatprep.subr.bf16.mxu0 0
  %2153 = vmatpush2.bf16.xpose.msra.mxu0 0
  %2154 = vmatprep.subr.bf16.mxu0 0
  %2155 = vmatpush2.bf16.xpose.msra.mxu0 0
  %2156 = vmatprep.mubr.bf16.mxu0 0
  %2157 = vmatmul.mubr.bf16.gmra.mxu0 %v2101
  %v2158 = vpop.f32.mrf.mxu0
  %v2159 = vadd.f32 0.0, %v2158
  %v2160 = vpop.f32.mrf.mxu0
  %v2161 = vpop.f32.mrf.mxu0
  %v2162 = vadd.f32 0.0, %v2161
  %v2163 = vpop.f32.mrf.mxu0
  %2164 = vmatprep.mubr.bf16.mxu0 0
  %2165 = vmatmul.mubr.bf16.gmra.mxu0 %v2104
  %v2166 = vpop.f32.mrf.mxu0
  %v2167 = vadd.f32 0.0, %v2166
  %v2168 = vpop.f32.mrf.mxu0
  %v2169 = vpop.f32.mrf.mxu0
  %v2170 = vadd.f32 0.0, %v2169
  %v2171 = vpop.f32.mrf.mxu0
  %2172 = vmatprep.mubr.bf16.mxu0 0
  %2173 = vmatmul.mubr.bf16.gmra.mxu0 %v2107
  %v2174 = vpop.f32.mrf.mxu0
  %v2175 = vadd.f32 0.0, %v2174
  %v2176 = vpop.f32.mrf.mxu0
  %v2177 = vpop.f32.mrf.mxu0
  %v2178 = vadd.f32 0.0, %v2177
  %v2179 = vpop.f32.mrf.mxu0
  %2180 = vmatprep.mubr.bf16.mxu0 0
  %2181 = vmatmul.mubr.bf16.gmra.mxu0 %v2110
  %v2182 = vpop.f32.mrf.mxu0
  %v2183 = vadd.f32 0.0, %v2182
  %v2184 = vpop.f32.mrf.mxu0
  %v2185 = vpop.f32.mrf.mxu0
  %v2186 = vadd.f32 0.0, %v2185
  %v2187 = vpop.f32.mrf.mxu0
  %2188 = vdwg.mxu0
  %2193 = vrot.lane.b32.xlu0 %v1930, 64
  %v2194 = vpop.permute.xlu0 %2193
  %2195 = vrot.lane.b32.xlu0 %v1931, 64
  %v2196 = vpop.permute.xlu0 %2195
  %2197 = vrot.lane.b32.xlu0 %v1932, 64
  %v2198 = vpop.permute.xlu0 %2197
  %2199 = vrot.lane.b32.xlu0 %v1933, 64
  %v2200 = vpop.permute.xlu0 %2199
  %v2202 = vsel %vm1998, %v1298, 0
  %v2205 = vsel %vm1998, %v1299, 0
  %v2208 = vsel %vm1998, %v1300, 0
  %v2211 = vsel %vm1998, %v1301, 0
  %v2214 = vsel %vm1998, %v2194, 0
  %v2217 = vsel %vm1998, %v2196, 0
  %v2220 = vsel %vm1998, %v2198, 0
  %v2223 = vsel %vm1998, %v2200, 0
  %2225 = vmatprep.subr.bf16.mxu0 0
  %2226 = vmatpush1.bf16.xpose.msra.mxu0 0
  %2227 = vmatprep.subr.bf16.mxu0 0
  %2228 = vmatpush1.bf16.xpose.msra.mxu0 0
  %2229 = vmatprep.subr.bf16.mxu0 0
  %2230 = vmatpush1.bf16.xpose.msra.mxu0 0
  %2231 = vmatprep.subr.bf16.mxu0 0
  %2232 = vmatpush1.bf16.xpose.msra.mxu0 0
  %2233 = vmatprep.subr.bf16.mxu0 0
  %2234 = vmatpush1.bf16.xpose.msra.mxu0 %v2223
  %2235 = vmatprep.subr.bf16.mxu0 0
  %2236 = vmatpush1.bf16.xpose.msra.mxu0 %v2220
  %2237 = vmatprep.subr.bf16.mxu0 0
  %2238 = vmatpush1.bf16.xpose.msra.mxu0 %v2217
  %2239 = vmatprep.subr.bf16.mxu0 0
  %2240 = vmatpush1.bf16.xpose.msra.mxu0 %v2214
  %2241 = vmatprep.subr.bf16.mxu0 0
  %2242 = vmatpush2.bf16.xpose.msra.mxu0 0
  %2243 = vmatprep.subr.bf16.mxu0 0
  %2244 = vmatpush2.bf16.xpose.msra.mxu0 0
  %2245 = vmatprep.subr.bf16.mxu0 0
  %2246 = vmatpush2.bf16.xpose.msra.mxu0 0
  %2247 = vmatprep.subr.bf16.mxu0 0
  %2248 = vmatpush2.bf16.xpose.msra.mxu0 0
  %2249 = vmatprep.subr.bf16.mxu0 0
  %2250 = vmatpush2.bf16.xpose.msra.mxu0 0
  %2251 = vmatprep.subr.bf16.mxu0 0
  %2252 = vmatpush2.bf16.xpose.msra.mxu0 0
  %2253 = vmatprep.subr.bf16.mxu0 0
  %2254 = vmatpush2.bf16.xpose.msra.mxu0 0
  %2255 = vmatprep.subr.bf16.mxu0 0
  %2256 = vmatpush2.bf16.xpose.msra.mxu0 0
  %2257 = vmatprep.mubr.bf16.mxu0 0
  %2258 = vmatmul.mubr.bf16.gmra.mxu0 %v2202
  %v2259 = vpop.f32.mrf.mxu0
  %v2260 = vadd.f32 0.0, %v2259
  %v2261 = vpop.f32.mrf.mxu0
  %v2262 = vpop.f32.mrf.mxu0
  %v2263 = vadd.f32 0.0, %v2262
  %v2264 = vpop.f32.mrf.mxu0
  %2265 = vmatprep.mubr.bf16.mxu0 0
  %2266 = vmatmul.mubr.bf16.gmra.mxu0 %v2205
  %v2267 = vpop.f32.mrf.mxu0
  %v2268 = vadd.f32 0.0, %v2267
  %v2269 = vpop.f32.mrf.mxu0
  %v2270 = vpop.f32.mrf.mxu0
  %v2271 = vadd.f32 0.0, %v2270
  %v2272 = vpop.f32.mrf.mxu0
  %2273 = vmatprep.mubr.bf16.mxu0 0
  %2274 = vmatmul.mubr.bf16.gmra.mxu0 %v2208
  %v2275 = vpop.f32.mrf.mxu0
  %v2276 = vadd.f32 0.0, %v2275
  %v2277 = vpop.f32.mrf.mxu0
  %v2278 = vpop.f32.mrf.mxu0
  %v2279 = vadd.f32 0.0, %v2278
  %v2280 = vpop.f32.mrf.mxu0
  %2281 = vmatprep.mubr.bf16.mxu0 0
  %2282 = vmatmul.mubr.bf16.gmra.mxu0 %v2211
  %v2283 = vpop.f32.mrf.mxu0
  %v2284 = vadd.f32 0.0, %v2283
  %v2285 = vpop.f32.mrf.mxu0
  %v2286 = vpop.f32.mrf.mxu0
  %v2287 = vadd.f32 0.0, %v2286
  %v2288 = vpop.f32.mrf.mxu0
  %2289 = vdwg.mxu0
  %2294 = vrot.lane.b32.xlu0 %v1934, 64
  %v2295 = vpop.permute.xlu0 %2294
  %2296 = vrot.lane.b32.xlu0 %v1935, 64
  %v2297 = vpop.permute.xlu0 %2296
  %2298 = vrot.lane.b32.xlu0 %v1936, 64
  %v2299 = vpop.permute.xlu0 %2298
  %2300 = vrot.lane.b32.xlu0 %v1937, 64
  %v2301 = vpop.permute.xlu0 %2300
  %v2303 = vsel %vm1998, %v1302, 0
  %v2306 = vsel %vm1998, %v1303, 0
  %v2309 = vsel %vm1998, %v1304, 0
  %v2312 = vsel %vm1998, %v1305, 0
  %v2315 = vsel %vm1998, %v2295, 0
  %v2318 = vsel %vm1998, %v2297, 0
  %v2321 = vsel %vm1998, %v2299, 0
  %v2324 = vsel %vm1998, %v2301, 0
  %2326 = vmatprep.subr.bf16.mxu0 0
  %2327 = vmatpush1.bf16.xpose.msra.mxu0 0
  %2328 = vmatprep.subr.bf16.mxu0 0
  %2329 = vmatpush1.bf16.xpose.msra.mxu0 0
  %2330 = vmatprep.subr.bf16.mxu0 0
  %2331 = vmatpush1.bf16.xpose.msra.mxu0 0
  %2332 = vmatprep.subr.bf16.mxu0 0
  %2333 = vmatpush1.bf16.xpose.msra.mxu0 0
  %2334 = vmatprep.subr.bf16.mxu0 0
  %2335 = vmatpush1.bf16.xpose.msra.mxu0 %v2324
  %2336 = vmatprep.subr.bf16.mxu0 0
  %2337 = vmatpush1.bf16.xpose.msra.mxu0 %v2321
  %2338 = vmatprep.subr.bf16.mxu0 0
  %2339 = vmatpush1.bf16.xpose.msra.mxu0 %v2318
  %2340 = vmatprep.subr.bf16.mxu0 0
  %2341 = vmatpush1.bf16.xpose.msra.mxu0 %v2315
  %2342 = vmatprep.subr.bf16.mxu0 0
  %2343 = vmatpush2.bf16.xpose.msra.mxu0 0
  %2344 = vmatprep.subr.bf16.mxu0 0
  %2345 = vmatpush2.bf16.xpose.msra.mxu0 0
  %2346 = vmatprep.subr.bf16.mxu0 0
  %2347 = vmatpush2.bf16.xpose.msra.mxu0 0
  %2348 = vmatprep.subr.bf16.mxu0 0
  %2349 = vmatpush2.bf16.xpose.msra.mxu0 0
  %2350 = vmatprep.subr.bf16.mxu0 0
  %2351 = vmatpush2.bf16.xpose.msra.mxu0 0
  %2352 = vmatprep.subr.bf16.mxu0 0
  %2353 = vmatpush2.bf16.xpose.msra.mxu0 0
  %2354 = vmatprep.subr.bf16.mxu0 0
  %2355 = vmatpush2.bf16.xpose.msra.mxu0 0
  %2356 = vmatprep.subr.bf16.mxu0 0
  %2357 = vmatpush2.bf16.xpose.msra.mxu0 0
  %2358 = vmatprep.mubr.bf16.mxu0 0
  %2359 = vmatmul.mubr.bf16.gmra.mxu0 %v2303
  %v2360 = vpop.f32.mrf.mxu0
  %v2361 = vadd.f32 0.0, %v2360
  %v2362 = vpop.f32.mrf.mxu0
  %v2363 = vpop.f32.mrf.mxu0
  %v2364 = vadd.f32 0.0, %v2363
  %v2365 = vpop.f32.mrf.mxu0
  %2366 = vmatprep.mubr.bf16.mxu0 0
  %2367 = vmatmul.mubr.bf16.gmra.mxu0 %v2306
  %v2368 = vpop.f32.mrf.mxu0
  %v2369 = vadd.f32 0.0, %v2368
  %v2370 = vpop.f32.mrf.mxu0
  %v2371 = vpop.f32.mrf.mxu0
  %v2372 = vadd.f32 0.0, %v2371
  %v2373 = vpop.f32.mrf.mxu0
  %2374 = vmatprep.mubr.bf16.mxu0 0
  %2375 = vmatmul.mubr.bf16.gmra.mxu0 %v2309
  %v2376 = vpop.f32.mrf.mxu0
  %v2377 = vadd.f32 0.0, %v2376
  %v2378 = vpop.f32.mrf.mxu0
  %v2379 = vpop.f32.mrf.mxu0
  %v2380 = vadd.f32 0.0, %v2379
  %v2381 = vpop.f32.mrf.mxu0
  %2382 = vmatprep.mubr.bf16.mxu0 0
  %2383 = vmatmul.mubr.bf16.gmra.mxu0 %v2312
  %v2384 = vpop.f32.mrf.mxu0
  %v2385 = vadd.f32 0.0, %v2384
  %v2386 = vpop.f32.mrf.mxu0
  %v2387 = vpop.f32.mrf.mxu0
  %v2388 = vadd.f32 0.0, %v2387
  %v2389 = vpop.f32.mrf.mxu0
  %2390 = vdwg.mxu0
  %2395 = vrot.lane.b32.xlu0 %v1938, 64
  %v2396 = vpop.permute.xlu0 %2395
  %2397 = vrot.lane.b32.xlu0 %v1939, 64
  %v2398 = vpop.permute.xlu0 %2397
  %2399 = vrot.lane.b32.xlu0 %v1940, 64
  %v2400 = vpop.permute.xlu0 %2399
  %2401 = vrot.lane.b32.xlu0 %v1941, 64
  %v2402 = vpop.permute.xlu0 %2401
  %v2404 = vsel %vm1998, %v1306, 0
  %v2407 = vsel %vm1998, %v1307, 0
  %v2410 = vsel %vm1998, %v1308, 0
  %v2413 = vsel %vm1998, %v1309, 0
  %v2416 = vsel %vm1998, %v2396, 0
  %v2419 = vsel %vm1998, %v2398, 0
  %v2422 = vsel %vm1998, %v2400, 0
  %v2425 = vsel %vm1998, %v2402, 0
  %2427 = vmatprep.subr.bf16.mxu0 0
  %2428 = vmatpush1.bf16.xpose.msra.mxu0 0
  %2429 = vmatprep.subr.bf16.mxu0 0
  %2430 = vmatpush1.bf16.xpose.msra.mxu0 0
  %2431 = vmatprep.subr.bf16.mxu0 0
  %2432 = vmatpush1.bf16.xpose.msra.mxu0 0
  %2433 = vmatprep.subr.bf16.mxu0 0
  %2434 = vmatpush1.bf16.xpose.msra.mxu0 0
  %2435 = vmatprep.subr.bf16.mxu0 0
  %2436 = vmatpush1.bf16.xpose.msra.mxu0 %v2425
  %2437 = vmatprep.subr.bf16.mxu0 0
  %2438 = vmatpush1.bf16.xpose.msra.mxu0 %v2422
  %2439 = vmatprep.subr.bf16.mxu0 0
  %2440 = vmatpush1.bf16.xpose.msra.mxu0 %v2419
  %2441 = vmatprep.subr.bf16.mxu0 0
  %2442 = vmatpush1.bf16.xpose.msra.mxu0 %v2416
  %2443 = vmatprep.subr.bf16.mxu0 0
  %2444 = vmatpush2.bf16.xpose.msra.mxu0 0
  %2445 = vmatprep.subr.bf16.mxu0 0
  %2446 = vmatpush2.bf16.xpose.msra.mxu0 0
  %2447 = vmatprep.subr.bf16.mxu0 0
  %2448 = vmatpush2.bf16.xpose.msra.mxu0 0
  %2449 = vmatprep.subr.bf16.mxu0 0
  %2450 = vmatpush2.bf16.xpose.msra.mxu0 0
  %2451 = vmatprep.subr.bf16.mxu0 0
  %2452 = vmatpush2.bf16.xpose.msra.mxu0 0
  %2453 = vmatprep.subr.bf16.mxu0 0
  %2454 = vmatpush2.bf16.xpose.msra.mxu0 0
  %2455 = vmatprep.subr.bf16.mxu0 0
  %2456 = vmatpush2.bf16.xpose.msra.mxu0 0
  %2457 = vmatprep.subr.bf16.mxu0 0
  %2458 = vmatpush2.bf16.xpose.msra.mxu0 0
  %2459 = vmatprep.mubr.bf16.mxu0 0
  %2460 = vmatmul.mubr.bf16.gmra.mxu0 %v2404
  %v2461 = vpop.f32.mrf.mxu0
  %v2462 = vadd.f32 0.0, %v2461
  %v2463 = vpop.f32.mrf.mxu0
  %v2464 = vpop.f32.mrf.mxu0
  %v2465 = vadd.f32 0.0, %v2464
  %v2466 = vpop.f32.mrf.mxu0
  %2467 = vmatprep.mubr.bf16.mxu0 0
  %2468 = vmatmul.mubr.bf16.gmra.mxu0 %v2407
  %v2469 = vpop.f32.mrf.mxu0
  %v2470 = vadd.f32 0.0, %v2469
  %v2471 = vpop.f32.mrf.mxu0
  %v2472 = vpop.f32.mrf.mxu0
  %v2473 = vadd.f32 0.0, %v2472
  %v2474 = vpop.f32.mrf.mxu0
  %2475 = vmatprep.mubr.bf16.mxu0 0
  %2476 = vmatmul.mubr.bf16.gmra.mxu0 %v2410
  %v2477 = vpop.f32.mrf.mxu0
  %v2478 = vadd.f32 0.0, %v2477
  %v2479 = vpop.f32.mrf.mxu0
  %v2480 = vpop.f32.mrf.mxu0
  %v2481 = vadd.f32 0.0, %v2480
  %v2482 = vpop.f32.mrf.mxu0
  %2483 = vmatprep.mubr.bf16.mxu0 0
  %2484 = vmatmul.mubr.bf16.gmra.mxu0 %v2413
  %v2485 = vpop.f32.mrf.mxu0
  %v2486 = vadd.f32 0.0, %v2485
  %v2487 = vpop.f32.mrf.mxu0
  %v2488 = vpop.f32.mrf.mxu0
  %v2489 = vadd.f32 0.0, %v2488
  %v2490 = vpop.f32.mrf.mxu0
  %2491 = vdwg.mxu0
  %2496 = vrot.lane.b32.xlu0 %v1942, 64
  %v2497 = vpop.permute.xlu0 %2496
  %2498 = vrot.lane.b32.xlu0 %v1943, 64
  %v2499 = vpop.permute.xlu0 %2498
  %2500 = vrot.lane.b32.xlu0 %v1944, 64
  %v2501 = vpop.permute.xlu0 %2500
  %2502 = vrot.lane.b32.xlu0 %v1945, 64
  %v2503 = vpop.permute.xlu0 %2502
  %v2505 = vsel %vm1998, %v1310, 0
  %v2508 = vsel %vm1998, %v1311, 0
  %v2511 = vsel %vm1998, %v1312, 0
  %v2514 = vsel %vm1998, %v1313, 0
  %v2517 = vsel %vm1998, %v2497, 0
  %v2520 = vsel %vm1998, %v2499, 0
  %v2523 = vsel %vm1998, %v2501, 0
  %v2526 = vsel %vm1998, %v2503, 0
  %2528 = vmatprep.subr.bf16.mxu0 0
  %2529 = vmatpush1.bf16.xpose.msra.mxu0 0
  %2530 = vmatprep.subr.bf16.mxu0 0
  %2531 = vmatpush1.bf16.xpose.msra.mxu0 0
  %2532 = vmatprep.subr.bf16.mxu0 0
  %2533 = vmatpush1.bf16.xpose.msra.mxu0 0
  %2534 = vmatprep.subr.bf16.mxu0 0
  %2535 = vmatpush1.bf16.xpose.msra.mxu0 0
  %2536 = vmatprep.subr.bf16.mxu0 0
  %2537 = vmatpush1.bf16.xpose.msra.mxu0 %v2526
  %2538 = vmatprep.subr.bf16.mxu0 0
  %2539 = vmatpush1.bf16.xpose.msra.mxu0 %v2523
  %2540 = vmatprep.subr.bf16.mxu0 0
  %2541 = vmatpush1.bf16.xpose.msra.mxu0 %v2520
  %2542 = vmatprep.subr.bf16.mxu0 0
  %2543 = vmatpush1.bf16.xpose.msra.mxu0 %v2517
  %2544 = vmatprep.subr.bf16.mxu0 0
  %2545 = vmatpush2.bf16.xpose.msra.mxu0 0
  %2546 = vmatprep.subr.bf16.mxu0 0
  %2547 = vmatpush2.bf16.xpose.msra.mxu0 0
  %2548 = vmatprep.subr.bf16.mxu0 0
  %2549 = vmatpush2.bf16.xpose.msra.mxu0 0
  %2550 = vmatprep.subr.bf16.mxu0 0
  %2551 = vmatpush2.bf16.xpose.msra.mxu0 0
  %2552 = vmatprep.subr.bf16.mxu0 0
  %2553 = vmatpush2.bf16.xpose.msra.mxu0 0
  %2554 = vmatprep.subr.bf16.mxu0 0
  %2555 = vmatpush2.bf16.xpose.msra.mxu0 0
  %2556 = vmatprep.subr.bf16.mxu0 0
  %2557 = vmatpush2.bf16.xpose.msra.mxu0 0
  %2558 = vmatprep.subr.bf16.mxu0 0
  %2559 = vmatpush2.bf16.xpose.msra.mxu0 0
  %2560 = vmatprep.mubr.bf16.mxu0 0
  %2561 = vmatmul.mubr.bf16.gmra.mxu0 %v2505
  %v2562 = vpop.f32.mrf.mxu0
  %v2563 = vadd.f32 0.0, %v2562
  %v2564 = vpop.f32.mrf.mxu0
  %v2565 = vpop.f32.mrf.mxu0
  %v2566 = vadd.f32 0.0, %v2565
  %v2567 = vpop.f32.mrf.mxu0
  %2568 = vmatprep.mubr.bf16.mxu0 0
  %2569 = vmatmul.mubr.bf16.gmra.mxu0 %v2508
  %v2570 = vpop.f32.mrf.mxu0
  %v2571 = vadd.f32 0.0, %v2570
  %v2572 = vpop.f32.mrf.mxu0
  %v2573 = vpop.f32.mrf.mxu0
  %v2574 = vadd.f32 0.0, %v2573
  %v2575 = vpop.f32.mrf.mxu0
  %2576 = vmatprep.mubr.bf16.mxu0 0
  %2577 = vmatmul.mubr.bf16.gmra.mxu0 %v2511
  %v2578 = vpop.f32.mrf.mxu0
  %v2579 = vadd.f32 0.0, %v2578
  %v2580 = vpop.f32.mrf.mxu0
  %v2581 = vpop.f32.mrf.mxu0
  %v2582 = vadd.f32 0.0, %v2581
  %v2583 = vpop.f32.mrf.mxu0
  %2584 = vmatprep.mubr.bf16.mxu0 0
  %2585 = vmatmul.mubr.bf16.gmra.mxu0 %v2514
  %v2586 = vpop.f32.mrf.mxu0
  %v2587 = vadd.f32 0.0, %v2586
  %v2588 = vpop.f32.mrf.mxu0
  %v2589 = vpop.f32.mrf.mxu0
  %v2590 = vadd.f32 0.0, %v2589
  %v2591 = vpop.f32.mrf.mxu0
  %2592 = vdwg.mxu0
  %2597 = vrot.lane.b32.xlu0 %v1946, 64
  %v2598 = vpop.permute.xlu0 %2597
  %2599 = vrot.lane.b32.xlu0 %v1947, 64
  %v2600 = vpop.permute.xlu0 %2599
  %2601 = vrot.lane.b32.xlu0 %v1948, 64
  %v2602 = vpop.permute.xlu0 %2601
  %2603 = vrot.lane.b32.xlu0 %v1949, 64
  %v2604 = vpop.permute.xlu0 %2603
  %v2606 = vsel %vm1998, %v1314, 0
  %v2609 = vsel %vm1998, %v1315, 0
  %v2612 = vsel %vm1998, %v1316, 0
  %v2615 = vsel %vm1998, %v1317, 0
  %v2618 = vsel %vm1998, %v2598, 0
  %v2621 = vsel %vm1998, %v2600, 0
  %v2624 = vsel %vm1998, %v2602, 0
  %v2627 = vsel %vm1998, %v2604, 0
  %2629 = vmatprep.subr.bf16.mxu0 0
  %2630 = vmatpush1.bf16.xpose.msra.mxu0 0
  %2631 = vmatprep.subr.bf16.mxu0 0
  %2632 = vmatpush1.bf16.xpose.msra.mxu0 0
  %2633 = vmatprep.subr.bf16.mxu0 0
  %2634 = vmatpush1.bf16.xpose.msra.mxu0 0
  %2635 = vmatprep.subr.bf16.mxu0 0
  %2636 = vmatpush1.bf16.xpose.msra.mxu0 0
  %2637 = vmatprep.subr.bf16.mxu0 0
  %2638 = vmatpush1.bf16.xpose.msra.mxu0 %v2627
  %2639 = vmatprep.subr.bf16.mxu0 0
  %2640 = vmatpush1.bf16.xpose.msra.mxu0 %v2624
  %2641 = vmatprep.subr.bf16.mxu0 0
  %2642 = vmatpush1.bf16.xpose.msra.mxu0 %v2621
  %2643 = vmatprep.subr.bf16.mxu0 0
  %2644 = vmatpush1.bf16.xpose.msra.mxu0 %v2618
  %2645 = vmatprep.subr.bf16.mxu0 0
  %2646 = vmatpush2.bf16.xpose.msra.mxu0 0
  %2647 = vmatprep.subr.bf16.mxu0 0
  %2648 = vmatpush2.bf16.xpose.msra.mxu0 0
  %2649 = vmatprep.subr.bf16.mxu0 0
  %2650 = vmatpush2.bf16.xpose.msra.mxu0 0
  %2651 = vmatprep.subr.bf16.mxu0 0
  %2652 = vmatpush2.bf16.xpose.msra.mxu0 0
  %2653 = vmatprep.subr.bf16.mxu0 0
  %2654 = vmatpush2.bf16.xpose.msra.mxu0 0
  %2655 = vmatprep.subr.bf16.mxu0 0
  %2656 = vmatpush2.bf16.xpose.msra.mxu0 0
  %2657 = vmatprep.subr.bf16.mxu0 0
  %2658 = vmatpush2.bf16.xpose.msra.mxu0 0
  %2659 = vmatprep.subr.bf16.mxu0 0
  %2660 = vmatpush2.bf16.xpose.msra.mxu0 0
  %2661 = vmatprep.mubr.bf16.mxu0 0
  %2662 = vmatmul.mubr.bf16.gmra.mxu0 %v2606
  %v2663 = vpop.f32.mrf.mxu0
  %v2664 = vadd.f32 0.0, %v2663
  %v2665 = vpop.f32.mrf.mxu0
  %v2666 = vpop.f32.mrf.mxu0
  %v2667 = vadd.f32 0.0, %v2666
  %v2668 = vpop.f32.mrf.mxu0
  %2669 = vmatprep.mubr.bf16.mxu0 0
  %2670 = vmatmul.mubr.bf16.gmra.mxu0 %v2609
  %v2671 = vpop.f32.mrf.mxu0
  %v2672 = vadd.f32 0.0, %v2671
  %v2673 = vpop.f32.mrf.mxu0
  %v2674 = vpop.f32.mrf.mxu0
  %v2675 = vadd.f32 0.0, %v2674
  %v2676 = vpop.f32.mrf.mxu0
  %2677 = vmatprep.mubr.bf16.mxu0 0
  %2678 = vmatmul.mubr.bf16.gmra.mxu0 %v2612
  %v2679 = vpop.f32.mrf.mxu0
  %v2680 = vadd.f32 0.0, %v2679
  %v2681 = vpop.f32.mrf.mxu0
  %v2682 = vpop.f32.mrf.mxu0
  %v2683 = vadd.f32 0.0, %v2682
  %v2684 = vpop.f32.mrf.mxu0
  %2685 = vmatprep.mubr.bf16.mxu0 0
  %2686 = vmatmul.mubr.bf16.gmra.mxu0 %v2615
  %v2687 = vpop.f32.mrf.mxu0
  %v2688 = vadd.f32 0.0, %v2687
  %v2689 = vpop.f32.mrf.mxu0
  %v2690 = vpop.f32.mrf.mxu0
  %v2691 = vadd.f32 0.0, %v2690
  %v2692 = vpop.f32.mrf.mxu0
  %2693 = vdwg.mxu0
  %2698 = vrot.lane.b32.xlu0 %v1950, 64
  %v2699 = vpop.permute.xlu0 %2698
  %2700 = vrot.lane.b32.xlu0 %v1951, 64
  %v2701 = vpop.permute.xlu0 %2700
  %2702 = vrot.lane.b32.xlu0 %v1952, 64
  %v2703 = vpop.permute.xlu0 %2702
  %2704 = vrot.lane.b32.xlu0 %v1953, 64
  %v2705 = vpop.permute.xlu0 %2704
  %v2707 = vsel %vm1998, %v1318, 0
  %v2710 = vsel %vm1998, %v1319, 0
  %v2713 = vsel %vm1998, %v1320, 0
  %v2716 = vsel %vm1998, %v1321, 0
  %v2719 = vsel %vm1998, %v2699, 0
  %v2722 = vsel %vm1998, %v2701, 0
  %v2725 = vsel %vm1998, %v2703, 0
  %v2728 = vsel %vm1998, %v2705, 0
  %2730 = vmatprep.subr.bf16.mxu0 0
  %2731 = vmatpush1.bf16.xpose.msra.mxu0 0
  %2732 = vmatprep.subr.bf16.mxu0 0
  %2733 = vmatpush1.bf16.xpose.msra.mxu0 0
  %2734 = vmatprep.subr.bf16.mxu0 0
  %2735 = vmatpush1.bf16.xpose.msra.mxu0 0
  %2736 = vmatprep.subr.bf16.mxu0 0
  %2737 = vmatpush1.bf16.xpose.msra.mxu0 0
  %2738 = vmatprep.subr.bf16.mxu0 0
  %2739 = vmatpush1.bf16.xpose.msra.mxu0 %v2728
  %2740 = vmatprep.subr.bf16.mxu0 0
  %2741 = vmatpush1.bf16.xpose.msra.mxu0 %v2725
  %2742 = vmatprep.subr.bf16.mxu0 0
  %2743 = vmatpush1.bf16.xpose.msra.mxu0 %v2722
  %2744 = vmatprep.subr.bf16.mxu0 0
  %2745 = vmatpush1.bf16.xpose.msra.mxu0 %v2719
  %2746 = vmatprep.subr.bf16.mxu0 0
  %2747 = vmatpush2.bf16.xpose.msra.mxu0 0
  %2748 = vmatprep.subr.bf16.mxu0 0
  %2749 = vmatpush2.bf16.xpose.msra.mxu0 0
  %2750 = vmatprep.subr.bf16.mxu0 0
  %2751 = vmatpush2.bf16.xpose.msra.mxu0 0
  %2752 = vmatprep.subr.bf16.mxu0 0
  %2753 = vmatpush2.bf16.xpose.msra.mxu0 0
  %2754 = vmatprep.subr.bf16.mxu0 0
  %2755 = vmatpush2.bf16.xpose.msra.mxu0 0
  %2756 = vmatprep.subr.bf16.mxu0 0
  %2757 = vmatpush2.bf16.xpose.msra.mxu0 0
  %2758 = vmatprep.subr.bf16.mxu0 0
  %2759 = vmatpush2.bf16.xpose.msra.mxu0 0
  %2760 = vmatprep.subr.bf16.mxu0 0
  %2761 = vmatpush2.bf16.xpose.msra.mxu0 0
  %2762 = vmatprep.mubr.bf16.mxu0 0
  %2763 = vmatmul.mubr.bf16.gmra.mxu0 %v2707
  %v2764 = vpop.f32.mrf.mxu0
  %v2765 = vadd.f32 0.0, %v2764
  %v2766 = vpop.f32.mrf.mxu0
  %v2767 = vpop.f32.mrf.mxu0
  %v2768 = vadd.f32 0.0, %v2767
  %v2769 = vpop.f32.mrf.mxu0
  %2770 = vmatprep.mubr.bf16.mxu0 0
  %2771 = vmatmul.mubr.bf16.gmra.mxu0 %v2710
  %v2772 = vpop.f32.mrf.mxu0
  %v2773 = vadd.f32 0.0, %v2772
  %v2774 = vpop.f32.mrf.mxu0
  %v2775 = vpop.f32.mrf.mxu0
  %v2776 = vadd.f32 0.0, %v2775
  %v2777 = vpop.f32.mrf.mxu0
  %2778 = vmatprep.mubr.bf16.mxu0 0
  %2779 = vmatmul.mubr.bf16.gmra.mxu0 %v2713
  %v2780 = vpop.f32.mrf.mxu0
  %v2781 = vadd.f32 0.0, %v2780
  %v2782 = vpop.f32.mrf.mxu0
  %v2783 = vpop.f32.mrf.mxu0
  %v2784 = vadd.f32 0.0, %v2783
  %v2785 = vpop.f32.mrf.mxu0
  %2786 = vmatprep.mubr.bf16.mxu0 0
  %2787 = vmatmul.mubr.bf16.gmra.mxu0 %v2716
  %v2788 = vpop.f32.mrf.mxu0
  %v2789 = vadd.f32 0.0, %v2788
  %v2790 = vpop.f32.mrf.mxu0
  %v2791 = vpop.f32.mrf.mxu0
  %v2792 = vadd.f32 0.0, %v2791
  %v2793 = vpop.f32.mrf.mxu0
  %2794 = vdwg.mxu0
  %vm2795 = vcmask 523264
  %v2796 = vsel %vm2795, %v2058, -inf
  %2797 = vmax.xlane.f32.xlu0 %v2796
  %v2798 = vpop.xlane.xlu0 %2797
  %v2799 = vsel %vm2795, %v2061, -inf
  %2800 = vmax.xlane.f32.xlu0 %v2799
  %v2801 = vpop.xlane.xlu0 %2800
  %v2802 = vsel %vm2795, %v2066, -inf
  %2803 = vmax.xlane.f32.xlu0 %v2802
  %v2804 = vpop.xlane.xlu0 %2803
  %v2805 = vsel %vm2795, %v2069, -inf
  %2806 = vmax.xlane.f32.xlu0 %v2805
  %v2807 = vpop.xlane.xlu0 %2806
  %v2808 = vsel %vm2795, %v2074, -inf
  %2809 = vmax.xlane.f32.xlu0 %v2808
  %v2810 = vpop.xlane.xlu0 %2809
  %v2811 = vsel %vm2795, %v2077, -inf
  %2812 = vmax.xlane.f32.xlu0 %v2811
  %v2813 = vpop.xlane.xlu0 %2812
  %v2814 = vsel %vm2795, %v2082, -inf
  %2815 = vmax.xlane.f32.xlu0 %v2814
  %v2816 = vpop.xlane.xlu0 %2815
  %v2817 = vsel %vm2795, %v2085, -inf
  %2818 = vmax.xlane.f32.xlu0 %v2817
  %v2819 = vpop.xlane.xlu0 %2818
  %v2820 = vsel %vm2795, %v2159, -inf
  %2821 = vmax.xlane.f32.xlu0 %v2820
  %v2822 = vpop.xlane.xlu0 %2821
  %v2823 = vsel %vm2795, %v2162, -inf
  %2824 = vmax.xlane.f32.xlu0 %v2823
  %v2825 = vpop.xlane.xlu0 %2824
  %v2826 = vsel %vm2795, %v2167, -inf
  %2827 = vmax.xlane.f32.xlu0 %v2826
  %v2828 = vpop.xlane.xlu0 %2827
  %v2829 = vsel %vm2795, %v2170, -inf
  %2830 = vmax.xlane.f32.xlu0 %v2829
  %v2831 = vpop.xlane.xlu0 %2830
  %v2832 = vsel %vm2795, %v2175, -inf
  %2833 = vmax.xlane.f32.xlu0 %v2832
  %v2834 = vpop.xlane.xlu0 %2833
  %v2835 = vsel %vm2795, %v2178, -inf
  %2836 = vmax.xlane.f32.xlu0 %v2835
  %v2837 = vpop.xlane.xlu0 %2836
  %v2838 = vsel %vm2795, %v2183, -inf
  %2839 = vmax.xlane.f32.xlu0 %v2838
  %v2840 = vpop.xlane.xlu0 %2839
  %v2841 = vsel %vm2795, %v2186, -inf
  %2842 = vmax.xlane.f32.xlu0 %v2841
  %v2843 = vpop.xlane.xlu0 %2842
  %v2844 = vsel %vm2795, %v2260, -inf
  %2845 = vmax.xlane.f32.xlu0 %v2844
  %v2846 = vpop.xlane.xlu0 %2845
  %v2847 = vsel %vm2795, %v2263, -inf
  %2848 = vmax.xlane.f32.xlu0 %v2847
  %v2849 = vpop.xlane.xlu0 %2848
  %v2850 = vsel %vm2795, %v2268, -inf
  %2851 = vmax.xlane.f32.xlu0 %v2850
  %v2852 = vpop.xlane.xlu0 %2851
  %v2853 = vsel %vm2795, %v2271, -inf
  %2854 = vmax.xlane.f32.xlu0 %v2853
  %v2855 = vpop.xlane.xlu0 %2854
  %v2856 = vsel %vm2795, %v2276, -inf
  %2857 = vmax.xlane.f32.xlu0 %v2856
  %v2858 = vpop.xlane.xlu0 %2857
  %v2859 = vsel %vm2795, %v2279, -inf
  %2860 = vmax.xlane.f32.xlu0 %v2859
  %v2861 = vpop.xlane.xlu0 %2860
  %v2862 = vsel %vm2795, %v2284, -inf
  %2863 = vmax.xlane.f32.xlu0 %v2862
  %v2864 = vpop.xlane.xlu0 %2863
  %v2865 = vsel %vm2795, %v2287, -inf
  %2866 = vmax.xlane.f32.xlu0 %v2865
  %v2867 = vpop.xlane.xlu0 %2866
  %v2868 = vsel %vm2795, %v2361, -inf
  %2869 = vmax.xlane.f32.xlu0 %v2868
  %v2870 = vpop.xlane.xlu0 %2869
  %v2871 = vsel %vm2795, %v2364, -inf
  %2872 = vmax.xlane.f32.xlu0 %v2871
  %v2873 = vpop.xlane.xlu0 %2872
  %v2874 = vsel %vm2795, %v2369, -inf
  %2875 = vmax.xlane.f32.xlu0 %v2874
  %v2876 = vpop.xlane.xlu0 %2875
  %v2877 = vsel %vm2795, %v2372, -inf
  %2878 = vmax.xlane.f32.xlu0 %v2877
  %v2879 = vpop.xlane.xlu0 %2878
  %v2880 = vsel %vm2795, %v2377, -inf
  %2881 = vmax.xlane.f32.xlu0 %v2880
  %v2882 = vpop.xlane.xlu0 %2881
  %v2883 = vsel %vm2795, %v2380, -inf
  %2884 = vmax.xlane.f32.xlu0 %v2883
  %v2885 = vpop.xlane.xlu0 %2884
  %v2886 = vsel %vm2795, %v2385, -inf
  %2887 = vmax.xlane.f32.xlu0 %v2886
  %v2888 = vpop.xlane.xlu0 %2887
  %v2889 = vsel %vm2795, %v2388, -inf
  %2890 = vmax.xlane.f32.xlu0 %v2889
  %v2891 = vpop.xlane.xlu0 %2890
  %v2892 = vsel %vm2795, %v2462, -inf
  %2893 = vmax.xlane.f32.xlu0 %v2892
  %v2894 = vpop.xlane.xlu0 %2893
  %v2895 = vsel %vm2795, %v2465, -inf
  %2896 = vmax.xlane.f32.xlu0 %v2895
  %v2897 = vpop.xlane.xlu0 %2896
  %v2898 = vsel %vm2795, %v2470, -inf
  %2899 = vmax.xlane.f32.xlu0 %v2898
  %v2900 = vpop.xlane.xlu0 %2899
  %v2901 = vsel %vm2795, %v2473, -inf
  %2902 = vmax.xlane.f32.xlu0 %v2901
  %v2903 = vpop.xlane.xlu0 %2902
  %v2904 = vsel %vm2795, %v2478, -inf
  %2905 = vmax.xlane.f32.xlu0 %v2904
  %v2906 = vpop.xlane.xlu0 %2905
  %v2907 = vsel %vm2795, %v2481, -inf
  %2908 = vmax.xlane.f32.xlu0 %v2907
  %v2909 = vpop.xlane.xlu0 %2908
  %v2910 = vsel %vm2795, %v2486, -inf
  %2911 = vmax.xlane.f32.xlu0 %v2910
  %v2912 = vpop.xlane.xlu0 %2911
  %v2913 = vsel %vm2795, %v2489, -inf
  %2914 = vmax.xlane.f32.xlu0 %v2913
  %v2915 = vpop.xlane.xlu0 %2914
  %v2916 = vsel %vm2795, %v2563, -inf
  %2917 = vmax.xlane.f32.xlu0 %v2916
  %v2918 = vpop.xlane.xlu0 %2917
  %v2919 = vsel %vm2795, %v2566, -inf
  %2920 = vmax.xlane.f32.xlu0 %v2919
  %v2921 = vpop.xlane.xlu0 %2920
  %v2922 = vsel %vm2795, %v2571, -inf
  %2923 = vmax.xlane.f32.xlu0 %v2922
  %v2924 = vpop.xlane.xlu0 %2923
  %v2925 = vsel %vm2795, %v2574, -inf
  %2926 = vmax.xlane.f32.xlu0 %v2925
  %v2927 = vpop.xlane.xlu0 %2926
  %v2928 = vsel %vm2795, %v2579, -inf
  %2929 = vmax.xlane.f32.xlu0 %v2928
  %v2930 = vpop.xlane.xlu0 %2929
  %v2931 = vsel %vm2795, %v2582, -inf
  %2932 = vmax.xlane.f32.xlu0 %v2931
  %v2933 = vpop.xlane.xlu0 %2932
  %v2934 = vsel %vm2795, %v2587, -inf
  %2935 = vmax.xlane.f32.xlu0 %v2934
  %v2936 = vpop.xlane.xlu0 %2935
  %v2937 = vsel %vm2795, %v2590, -inf
  %2938 = vmax.xlane.f32.xlu0 %v2937
  %v2939 = vpop.xlane.xlu0 %2938
  %v2940 = vsel %vm2795, %v2664, -inf
  %2941 = vmax.xlane.f32.xlu0 %v2940
  %v2942 = vpop.xlane.xlu0 %2941
  %v2943 = vsel %vm2795, %v2667, -inf
  %2944 = vmax.xlane.f32.xlu0 %v2943
  %v2945 = vpop.xlane.xlu0 %2944
  %v2946 = vsel %vm2795, %v2672, -inf
  %2947 = vmax.xlane.f32.xlu0 %v2946
  %v2948 = vpop.xlane.xlu0 %2947
  %v2949 = vsel %vm2795, %v2675, -inf
  %2950 = vmax.xlane.f32.xlu0 %v2949
  %v2951 = vpop.xlane.xlu0 %2950
  %v2952 = vsel %vm2795, %v2680, -inf
  %2953 = vmax.xlane.f32.xlu0 %v2952
  %v2954 = vpop.xlane.xlu0 %2953
  %v2955 = vsel %vm2795, %v2683, -inf
  %2956 = vmax.xlane.f32.xlu0 %v2955
  %v2957 = vpop.xlane.xlu0 %2956
  %v2958 = vsel %vm2795, %v2688, -inf
  %2959 = vmax.xlane.f32.xlu0 %v2958
  %v2960 = vpop.xlane.xlu0 %2959
  %v2961 = vsel %vm2795, %v2691, -inf
  %2962 = vmax.xlane.f32.xlu0 %v2961
  %v2963 = vpop.xlane.xlu0 %2962
  %v2964 = vsel %vm2795, %v2765, -inf
  %2965 = vmax.xlane.f32.xlu0 %v2964
  %v2966 = vpop.xlane.xlu0 %2965
  %v2967 = vsel %vm2795, %v2768, -inf
  %2968 = vmax.xlane.f32.xlu0 %v2967
  %v2969 = vpop.xlane.xlu0 %2968
  %v2970 = vsel %vm2795, %v2773, -inf
  %2971 = vmax.xlane.f32.xlu0 %v2970
  %v2972 = vpop.xlane.xlu0 %2971
  %v2973 = vsel %vm2795, %v2776, -inf
  %2974 = vmax.xlane.f32.xlu0 %v2973
  %v2975 = vpop.xlane.xlu0 %2974
  %v2976 = vsel %vm2795, %v2781, -inf
  %2977 = vmax.xlane.f32.xlu0 %v2976
  %v2978 = vpop.xlane.xlu0 %2977
  %v2979 = vsel %vm2795, %v2784, -inf
  %2980 = vmax.xlane.f32.xlu0 %v2979
  %v2981 = vpop.xlane.xlu0 %2980
  %v2982 = vsel %vm2795, %v2789, -inf
  %2983 = vmax.xlane.f32.xlu0 %v2982
  %v2984 = vpop.xlane.xlu0 %2983
  %v2985 = vsel %vm2795, %v2792, -inf
  %2986 = vmax.xlane.f32.xlu0 %v2985
  %v2987 = vpop.xlane.xlu0 %2986
  %v2988 = vsub.f32 %v2058, %v2798
  %v2989 = vsub.f32 %v2061, %v2801
  %v2990 = vsub.f32 %v2066, %v2804
  %v2991 = vsub.f32 %v2069, %v2807
  %v2992 = vsub.f32 %v2074, %v2810
  %v2993 = vsub.f32 %v2077, %v2813
  %v2994 = vsub.f32 %v2082, %v2816
  %v2995 = vsub.f32 %v2085, %v2819
  %v2996 = vsub.f32 %v2159, %v2822
  %v2997 = vsub.f32 %v2162, %v2825
  %v2998 = vsub.f32 %v2167, %v2828
  %v2999 = vsub.f32 %v2170, %v2831
  %v3000 = vsub.f32 %v2175, %v2834
  %v3001 = vsub.f32 %v2178, %v2837
  %v3002 = vsub.f32 %v2183, %v2840
  %v3003 = vsub.f32 %v2186, %v2843
  %v3004 = vsub.f32 %v2260, %v2846
  %v3005 = vsub.f32 %v2263, %v2849
  %v3006 = vsub.f32 %v2268, %v2852
  %v3007 = vsub.f32 %v2271, %v2855
  %v3008 = vsub.f32 %v2276, %v2858
  %v3009 = vsub.f32 %v2279, %v2861
  %v3010 = vsub.f32 %v2284, %v2864
  %v3011 = vsub.f32 %v2287, %v2867
  %v3012 = vsub.f32 %v2361, %v2870
  %v3013 = vsub.f32 %v2364, %v2873
  %v3014 = vsub.f32 %v2369, %v2876
  %v3015 = vsub.f32 %v2372, %v2879
  %v3016 = vsub.f32 %v2377, %v2882
  %v3017 = vsub.f32 %v2380, %v2885
  %v3018 = vsub.f32 %v2385, %v2888
  %v3019 = vsub.f32 %v2388, %v2891
  %v3020 = vsub.f32 %v2462, %v2894
  %v3021 = vsub.f32 %v2465, %v2897
  %v3022 = vsub.f32 %v2470, %v2900
  %v3023 = vsub.f32 %v2473, %v2903
  %v3024 = vsub.f32 %v2478, %v2906
  %v3025 = vsub.f32 %v2481, %v2909
  %v3026 = vsub.f32 %v2486, %v2912
  %v3027 = vsub.f32 %v2489, %v2915
  %v3028 = vsub.f32 %v2563, %v2918
  %v3029 = vsub.f32 %v2566, %v2921
  %v3030 = vsub.f32 %v2571, %v2924
  %v3031 = vsub.f32 %v2574, %v2927
  %v3032 = vsub.f32 %v2579, %v2930
  %v3033 = vsub.f32 %v2582, %v2933
  %v3034 = vsub.f32 %v2587, %v2936
  %v3035 = vsub.f32 %v2590, %v2939
  %v3036 = vsub.f32 %v2664, %v2942
  %v3037 = vsub.f32 %v2667, %v2945
  %v3038 = vsub.f32 %v2672, %v2948
  %v3039 = vsub.f32 %v2675, %v2951
  %v3040 = vsub.f32 %v2680, %v2954
  %v3041 = vsub.f32 %v2683, %v2957
  %v3042 = vsub.f32 %v2688, %v2960
  %v3043 = vsub.f32 %v2691, %v2963
  %v3044 = vsub.f32 %v2765, %v2966
  %v3045 = vsub.f32 %v2768, %v2969
  %v3046 = vsub.f32 %v2773, %v2972
  %v3047 = vsub.f32 %v2776, %v2975
  %v3048 = vsub.f32 %v2781, %v2978
  %v3049 = vsub.f32 %v2784, %v2981
  %v3050 = vsub.f32 %v2789, %v2984
  %v3051 = vsub.f32 %v2792, %v2987
  %v3052 = vmul.f32 %v2988, 1.442695
  %v3053 = vpow.pop %v3052
  %v3054 = vmul.f32 %v2989, 1.442695
  %v3055 = vpow.pop %v3054
  %v3056 = vmul.f32 %v2990, 1.442695
  %v3057 = vpow.pop %v3056
  %v3058 = vmul.f32 %v2991, 1.442695
  %v3059 = vpow.pop %v3058
  %v3060 = vmul.f32 %v2992, 1.442695
  %v3061 = vpow.pop %v3060
  %v3062 = vmul.f32 %v2993, 1.442695
  %v3063 = vpow.pop %v3062
  %v3064 = vmul.f32 %v2994, 1.442695
  %v3065 = vpow.pop %v3064
  %v3066 = vmul.f32 %v2995, 1.442695
  %v3067 = vpow.pop %v3066
  %v3068 = vmul.f32 %v2996, 1.442695
  %v3069 = vpow.pop %v3068
  %v3070 = vmul.f32 %v2997, 1.442695
  %v3071 = vpow.pop %v3070
  %v3072 = vmul.f32 %v2998, 1.442695
  %v3073 = vpow.pop %v3072
  %v3074 = vmul.f32 %v2999, 1.442695
  %v3075 = vpow.pop %v3074
  %v3076 = vmul.f32 %v3000, 1.442695
  %v3077 = vpow.pop %v3076
  %v3078 = vmul.f32 %v3001, 1.442695
  %v3079 = vpow.pop %v3078
  %v3080 = vmul.f32 %v3002, 1.442695
  %v3081 = vpow.pop %v3080
  %v3082 = vmul.f32 %v3003, 1.442695
  %v3083 = vpow.pop %v3082
  %v3084 = vmul.f32 %v3004, 1.442695
  %v3085 = vpow.pop %v3084
  %v3086 = vmul.f32 %v3005, 1.442695
  %v3087 = vpow.pop %v3086
  %v3088 = vmul.f32 %v3006, 1.442695
  %v3089 = vpow.pop %v3088
  %v3090 = vmul.f32 %v3007, 1.442695
  %v3091 = vpow.pop %v3090
  %v3092 = vmul.f32 %v3008, 1.442695
  %v3093 = vpow.pop %v3092
  %v3094 = vmul.f32 %v3009, 1.442695
  %v3095 = vpow.pop %v3094
  %v3096 = vmul.f32 %v3010, 1.442695
  %v3097 = vpow.pop %v3096
  %v3098 = vmul.f32 %v3011, 1.442695
  %v3099 = vpow.pop %v3098
  %v3100 = vmul.f32 %v3012, 1.442695
  %v3101 = vpow.pop %v3100
  %v3102 = vmul.f32 %v3013, 1.442695
  %v3103 = vpow.pop %v3102
  %v3104 = vmul.f32 %v3014, 1.442695
  %v3105 = vpow.pop %v3104
  %v3106 = vmul.f32 %v3015, 1.442695
  %v3107 = vpow.pop %v3106
  %v3108 = vmul.f32 %v3016, 1.442695
  %v3109 = vpow.pop %v3108
  %v3110 = vmul.f32 %v3017, 1.442695
  %v3111 = vpow.pop %v3110
  %v3112 = vmul.f32 %v3018, 1.442695
  %v3113 = vpow.pop %v3112
  %v3114 = vmul.f32 %v3019, 1.442695
  %v3115 = vpow.pop %v3114
  %v3116 = vmul.f32 %v3020, 1.442695
  %v3117 = vpow.pop %v3116
  %v3118 = vmul.f32 %v3021, 1.442695
  %v3119 = vpow.pop %v3118
  %v3120 = vmul.f32 %v3022, 1.442695
  %v3121 = vpow.pop %v3120
  %v3122 = vmul.f32 %v3023, 1.442695
  %v3123 = vpow.pop %v3122
  %v3124 = vmul.f32 %v3024, 1.442695
  %v3125 = vpow.pop %v3124
  %v3126 = vmul.f32 %v3025, 1.442695
  %v3127 = vpow.pop %v3126
  %v3128 = vmul.f32 %v3026, 1.442695
  %v3129 = vpow.pop %v3128
  %v3130 = vmul.f32 %v3027, 1.442695
  %v3131 = vpow.pop %v3130
  %v3132 = vmul.f32 %v3028, 1.442695
  %v3133 = vpow.pop %v3132
  %v3134 = vmul.f32 %v3029, 1.442695
  %v3135 = vpow.pop %v3134
  %v3136 = vmul.f32 %v3030, 1.442695
  %v3137 = vpow.pop %v3136
  %v3138 = vmul.f32 %v3031, 1.442695
  %v3139 = vpow.pop %v3138
  %v3140 = vmul.f32 %v3032, 1.442695
  %v3141 = vpow.pop %v3140
  %v3142 = vmul.f32 %v3033, 1.442695
  %v3143 = vpow.pop %v3142
  %v3144 = vmul.f32 %v3034, 1.442695
  %v3145 = vpow.pop %v3144
  %v3146 = vmul.f32 %v3035, 1.442695
  %v3147 = vpow.pop %v3146
  %v3148 = vmul.f32 %v3036, 1.442695
  %v3149 = vpow.pop %v3148
  %v3150 = vmul.f32 %v3037, 1.442695
  %v3151 = vpow.pop %v3150
  %v3152 = vmul.f32 %v3038, 1.442695
  %v3153 = vpow.pop %v3152
  %v3154 = vmul.f32 %v3039, 1.442695
  %v3155 = vpow.pop %v3154
  %v3156 = vmul.f32 %v3040, 1.442695
  %v3157 = vpow.pop %v3156
  %v3158 = vmul.f32 %v3041, 1.442695
  %v3159 = vpow.pop %v3158
  %v3160 = vmul.f32 %v3042, 1.442695
  %v3161 = vpow.pop %v3160
  %v3162 = vmul.f32 %v3043, 1.442695
  %v3163 = vpow.pop %v3162
  %v3164 = vmul.f32 %v3044, 1.442695
  %v3165 = vpow.pop %v3164
  %v3166 = vmul.f32 %v3045, 1.442695
  %v3167 = vpow.pop %v3166
  %v3168 = vmul.f32 %v3046, 1.442695
  %v3169 = vpow.pop %v3168
  %v3170 = vmul.f32 %v3047, 1.442695
  %v3171 = vpow.pop %v3170
  %v3172 = vmul.f32 %v3048, 1.442695
  %v3173 = vpow.pop %v3172
  %v3174 = vmul.f32 %v3049, 1.442695
  %v3175 = vpow.pop %v3174
  %v3176 = vmul.f32 %v3050, 1.442695
  %v3177 = vpow.pop %v3176
  %v3178 = vmul.f32 %v3051, 1.442695
  %v3179 = vpow.pop %v3178
  %v3180 = vsel %vm2795, %v3053, 0.0
  %3181 = vadd.xlane.f32.xlu0 %v3180
  %v3182 = vpop.xlane.xlu0 %3181
  %v3183 = vsel %vm2795, %v3055, 0.0
  %3184 = vadd.xlane.f32.xlu0 %v3183
  %v3185 = vpop.xlane.xlu0 %3184
  %v3186 = vsel %vm2795, %v3057, 0.0
  %3187 = vadd.xlane.f32.xlu0 %v3186
  %v3188 = vpop.xlane.xlu0 %3187
  %v3189 = vsel %vm2795, %v3059, 0.0
  %3190 = vadd.xlane.f32.xlu0 %v3189
  %v3191 = vpop.xlane.xlu0 %3190
  %v3192 = vsel %vm2795, %v3061, 0.0
  %3193 = vadd.xlane.f32.xlu0 %v3192
  %v3194 = vpop.xlane.xlu0 %3193
  %v3195 = vsel %vm2795, %v3063, 0.0
  %3196 = vadd.xlane.f32.xlu0 %v3195
  %v3197 = vpop.xlane.xlu0 %3196
  %v3198 = vsel %vm2795, %v3065, 0.0
  %3199 = vadd.xlane.f32.xlu0 %v3198
  %v3200 = vpop.xlane.xlu0 %3199
  %v3201 = vsel %vm2795, %v3067, 0.0
  %3202 = vadd.xlane.f32.xlu0 %v3201
  %v3203 = vpop.xlane.xlu0 %3202
  %v3204 = vsel %vm2795, %v3069, 0.0
  %3205 = vadd.xlane.f32.xlu0 %v3204
  %v3206 = vpop.xlane.xlu0 %3205
  %v3207 = vsel %vm2795, %v3071, 0.0
  %3208 = vadd.xlane.f32.xlu0 %v3207
  %v3209 = vpop.xlane.xlu0 %3208
  %v3210 = vsel %vm2795, %v3073, 0.0
  %3211 = vadd.xlane.f32.xlu0 %v3210
  %v3212 = vpop.xlane.xlu0 %3211
  %v3213 = vsel %vm2795, %v3075, 0.0
  %3214 = vadd.xlane.f32.xlu0 %v3213
  %v3215 = vpop.xlane.xlu0 %3214
  %v3216 = vsel %vm2795, %v3077, 0.0
  %3217 = vadd.xlane.f32.xlu0 %v3216
  %v3218 = vpop.xlane.xlu0 %3217
  %v3219 = vsel %vm2795, %v3079, 0.0
  %3220 = vadd.xlane.f32.xlu0 %v3219
  %v3221 = vpop.xlane.xlu0 %3220
  %v3222 = vsel %vm2795, %v3081, 0.0
  %3223 = vadd.xlane.f32.xlu0 %v3222
  %v3224 = vpop.xlane.xlu0 %3223
  %v3225 = vsel %vm2795, %v3083, 0.0
  %3226 = vadd.xlane.f32.xlu0 %v3225
  %v3227 = vpop.xlane.xlu0 %3226
  %v3228 = vsel %vm2795, %v3085, 0.0
  %3229 = vadd.xlane.f32.xlu0 %v3228
  %v3230 = vpop.xlane.xlu0 %3229
  %v3231 = vsel %vm2795, %v3087, 0.0
  %3232 = vadd.xlane.f32.xlu0 %v3231
  %v3233 = vpop.xlane.xlu0 %3232
  %v3234 = vsel %vm2795, %v3089, 0.0
  %3235 = vadd.xlane.f32.xlu0 %v3234
  %v3236 = vpop.xlane.xlu0 %3235
  %v3237 = vsel %vm2795, %v3091, 0.0
  %3238 = vadd.xlane.f32.xlu0 %v3237
  %v3239 = vpop.xlane.xlu0 %3238
  %v3240 = vsel %vm2795, %v3093, 0.0
  %3241 = vadd.xlane.f32.xlu0 %v3240
  %v3242 = vpop.xlane.xlu0 %3241
  %v3243 = vsel %vm2795, %v3095, 0.0
  %3244 = vadd.xlane.f32.xlu0 %v3243
  %v3245 = vpop.xlane.xlu0 %3244
  %v3246 = vsel %vm2795, %v3097, 0.0
  %3247 = vadd.xlane.f32.xlu0 %v3246
  %v3248 = vpop.xlane.xlu0 %3247
  %v3249 = vsel %vm2795, %v3099, 0.0
  %3250 = vadd.xlane.f32.xlu0 %v3249
  %v3251 = vpop.xlane.xlu0 %3250
  %v3252 = vsel %vm2795, %v3101, 0.0
  %3253 = vadd.xlane.f32.xlu0 %v3252
  %v3254 = vpop.xlane.xlu0 %3253
  %v3255 = vsel %vm2795, %v3103, 0.0
  %3256 = vadd.xlane.f32.xlu0 %v3255
  %v3257 = vpop.xlane.xlu0 %3256
  %v3258 = vsel %vm2795, %v3105, 0.0
  %3259 = vadd.xlane.f32.xlu0 %v3258
  %v3260 = vpop.xlane.xlu0 %3259
  %v3261 = vsel %vm2795, %v3107, 0.0
  %3262 = vadd.xlane.f32.xlu0 %v3261
  %v3263 = vpop.xlane.xlu0 %3262
  %v3264 = vsel %vm2795, %v3109, 0.0
  %3265 = vadd.xlane.f32.xlu0 %v3264
  %v3266 = vpop.xlane.xlu0 %3265
  %v3267 = vsel %vm2795, %v3111, 0.0
  %3268 = vadd.xlane.f32.xlu0 %v3267
  %v3269 = vpop.xlane.xlu0 %3268
  %v3270 = vsel %vm2795, %v3113, 0.0
  %3271 = vadd.xlane.f32.xlu0 %v3270
  %v3272 = vpop.xlane.xlu0 %3271
  %v3273 = vsel %vm2795, %v3115, 0.0
  %3274 = vadd.xlane.f32.xlu0 %v3273
  %v3275 = vpop.xlane.xlu0 %3274
  %v3276 = vsel %vm2795, %v3117, 0.0
  %3277 = vadd.xlane.f32.xlu0 %v3276
  %v3278 = vpop.xlane.xlu0 %3277
  %v3279 = vsel %vm2795, %v3119, 0.0
  %3280 = vadd.xlane.f32.xlu0 %v3279
  %v3281 = vpop.xlane.xlu0 %3280
  %v3282 = vsel %vm2795, %v3121, 0.0
  %3283 = vadd.xlane.f32.xlu0 %v3282
  %v3284 = vpop.xlane.xlu0 %3283
  %v3285 = vsel %vm2795, %v3123, 0.0
  %3286 = vadd.xlane.f32.xlu0 %v3285
  %v3287 = vpop.xlane.xlu0 %3286
  %v3288 = vsel %vm2795, %v3125, 0.0
  %3289 = vadd.xlane.f32.xlu0 %v3288
  %v3290 = vpop.xlane.xlu0 %3289
  %v3291 = vsel %vm2795, %v3127, 0.0
  %3292 = vadd.xlane.f32.xlu0 %v3291
  %v3293 = vpop.xlane.xlu0 %3292
  %v3294 = vsel %vm2795, %v3129, 0.0
  %3295 = vadd.xlane.f32.xlu0 %v3294
  %v3296 = vpop.xlane.xlu0 %3295
  %v3297 = vsel %vm2795, %v3131, 0.0
  %3298 = vadd.xlane.f32.xlu0 %v3297
  %v3299 = vpop.xlane.xlu0 %3298
  %v3300 = vsel %vm2795, %v3133, 0.0
  %3301 = vadd.xlane.f32.xlu0 %v3300
  %v3302 = vpop.xlane.xlu0 %3301
  %v3303 = vsel %vm2795, %v3135, 0.0
  %3304 = vadd.xlane.f32.xlu0 %v3303
  %v3305 = vpop.xlane.xlu0 %3304
  %v3306 = vsel %vm2795, %v3137, 0.0
  %3307 = vadd.xlane.f32.xlu0 %v3306
  %v3308 = vpop.xlane.xlu0 %3307
  %v3309 = vsel %vm2795, %v3139, 0.0
  %3310 = vadd.xlane.f32.xlu0 %v3309
  %v3311 = vpop.xlane.xlu0 %3310
  %v3312 = vsel %vm2795, %v3141, 0.0
  %3313 = vadd.xlane.f32.xlu0 %v3312
  %v3314 = vpop.xlane.xlu0 %3313
  %v3315 = vsel %vm2795, %v3143, 0.0
  %3316 = vadd.xlane.f32.xlu0 %v3315
  %v3317 = vpop.xlane.xlu0 %3316
  %v3318 = vsel %vm2795, %v3145, 0.0
  %3319 = vadd.xlane.f32.xlu0 %v3318
  %v3320 = vpop.xlane.xlu0 %3319
  %v3321 = vsel %vm2795, %v3147, 0.0
  %3322 = vadd.xlane.f32.xlu0 %v3321
  %v3323 = vpop.xlane.xlu0 %3322
  %v3324 = vsel %vm2795, %v3149, 0.0
  %3325 = vadd.xlane.f32.xlu0 %v3324
  %v3326 = vpop.xlane.xlu0 %3325
  %v3327 = vsel %vm2795, %v3151, 0.0
  %3328 = vadd.xlane.f32.xlu0 %v3327
  %v3329 = vpop.xlane.xlu0 %3328
  %v3330 = vsel %vm2795, %v3153, 0.0
  %3331 = vadd.xlane.f32.xlu0 %v3330
  %v3332 = vpop.xlane.xlu0 %3331
  %v3333 = vsel %vm2795, %v3155, 0.0
  %3334 = vadd.xlane.f32.xlu0 %v3333
  %v3335 = vpop.xlane.xlu0 %3334
  %v3336 = vsel %vm2795, %v3157, 0.0
  %3337 = vadd.xlane.f32.xlu0 %v3336
  %v3338 = vpop.xlane.xlu0 %3337
  %v3339 = vsel %vm2795, %v3159, 0.0
  %3340 = vadd.xlane.f32.xlu0 %v3339
  %v3341 = vpop.xlane.xlu0 %3340
  %v3342 = vsel %vm2795, %v3161, 0.0
  %3343 = vadd.xlane.f32.xlu0 %v3342
  %v3344 = vpop.xlane.xlu0 %3343
  %v3345 = vsel %vm2795, %v3163, 0.0
  %3346 = vadd.xlane.f32.xlu0 %v3345
  %v3347 = vpop.xlane.xlu0 %3346
  %v3348 = vsel %vm2795, %v3165, 0.0
  %3349 = vadd.xlane.f32.xlu0 %v3348
  %v3350 = vpop.xlane.xlu0 %3349
  %v3351 = vsel %vm2795, %v3167, 0.0
  %3352 = vadd.xlane.f32.xlu0 %v3351
  %v3353 = vpop.xlane.xlu0 %3352
  %v3354 = vsel %vm2795, %v3169, 0.0
  %3355 = vadd.xlane.f32.xlu0 %v3354
  %v3356 = vpop.xlane.xlu0 %3355
  %v3357 = vsel %vm2795, %v3171, 0.0
  %3358 = vadd.xlane.f32.xlu0 %v3357
  %v3359 = vpop.xlane.xlu0 %3358
  %v3360 = vsel %vm2795, %v3173, 0.0
  %3361 = vadd.xlane.f32.xlu0 %v3360
  %v3362 = vpop.xlane.xlu0 %3361
  %v3363 = vsel %vm2795, %v3175, 0.0
  %3364 = vadd.xlane.f32.xlu0 %v3363
  %v3365 = vpop.xlane.xlu0 %3364
  %v3366 = vsel %vm2795, %v3177, 0.0
  %3367 = vadd.xlane.f32.xlu0 %v3366
  %v3368 = vpop.xlane.xlu0 %3367
  %v3369 = vsel %vm2795, %v3179, 0.0
  %3370 = vadd.xlane.f32.xlu0 %v3369
  %v3371 = vpop.xlane.xlu0 %3370
  %v3372 = vrcp.pop %v3182
  %v3373 = vrcp.pop %v3185
  %v3374 = vrcp.pop %v3188
  %v3375 = vrcp.pop %v3191
  %v3376 = vrcp.pop %v3194
  %v3377 = vrcp.pop %v3197
  %v3378 = vrcp.pop %v3200
  %v3379 = vrcp.pop %v3203
  %v3380 = vrcp.pop %v3206
  %v3381 = vrcp.pop %v3209
  %v3382 = vrcp.pop %v3212
  %v3383 = vrcp.pop %v3215
  %v3384 = vrcp.pop %v3218
  %v3385 = vrcp.pop %v3221
  %v3386 = vrcp.pop %v3224
  %v3387 = vrcp.pop %v3227
  %v3388 = vrcp.pop %v3230
  %v3389 = vrcp.pop %v3233
  %v3390 = vrcp.pop %v3236
  %v3391 = vrcp.pop %v3239
  %v3392 = vrcp.pop %v3242
  %v3393 = vrcp.pop %v3245
  %v3394 = vrcp.pop %v3248
  %v3395 = vrcp.pop %v3251
  %v3396 = vrcp.pop %v3254
  %v3397 = vrcp.pop %v3257
  %v3398 = vrcp.pop %v3260
  %v3399 = vrcp.pop %v3263
  %v3400 = vrcp.pop %v3266
  %v3401 = vrcp.pop %v3269
  %v3402 = vrcp.pop %v3272
  %v3403 = vrcp.pop %v3275
  %v3404 = vrcp.pop %v3278
  %v3405 = vrcp.pop %v3281
  %v3406 = vrcp.pop %v3284
  %v3407 = vrcp.pop %v3287
  %v3408 = vrcp.pop %v3290
  %v3409 = vrcp.pop %v3293
  %v3410 = vrcp.pop %v3296
  %v3411 = vrcp.pop %v3299
  %v3412 = vrcp.pop %v3302
  %v3413 = vrcp.pop %v3305
  %v3414 = vrcp.pop %v3308
  %v3415 = vrcp.pop %v3311
  %v3416 = vrcp.pop %v3314
  %v3417 = vrcp.pop %v3317
  %v3418 = vrcp.pop %v3320
  %v3419 = vrcp.pop %v3323
  %v3420 = vrcp.pop %v3326
  %v3421 = vrcp.pop %v3329
  %v3422 = vrcp.pop %v3332
  %v3423 = vrcp.pop %v3335
  %v3424 = vrcp.pop %v3338
  %v3425 = vrcp.pop %v3341
  %v3426 = vrcp.pop %v3344
  %v3427 = vrcp.pop %v3347
  %v3428 = vrcp.pop %v3350
  %v3429 = vrcp.pop %v3353
  %v3430 = vrcp.pop %v3356
  %v3431 = vrcp.pop %v3359
  %v3432 = vrcp.pop %v3362
  %v3433 = vrcp.pop %v3365
  %v3434 = vrcp.pop %v3368
  %v3435 = vrcp.pop %v3371
  %v3436 = vmul.f32 %v3053, %v3372
  %v3437 = vmul.f32 %v3055, %v3373
  %v3438 = vmul.f32 %v3057, %v3374
  %v3439 = vmul.f32 %v3059, %v3375
  %v3440 = vmul.f32 %v3061, %v3376
  %v3441 = vmul.f32 %v3063, %v3377
  %v3442 = vmul.f32 %v3065, %v3378
  %v3443 = vmul.f32 %v3067, %v3379
  %v3444 = vmul.f32 %v3069, %v3380
  %v3445 = vmul.f32 %v3071, %v3381
  %v3446 = vmul.f32 %v3073, %v3382
  %v3447 = vmul.f32 %v3075, %v3383
  %v3448 = vmul.f32 %v3077, %v3384
  %v3449 = vmul.f32 %v3079, %v3385
  %v3450 = vmul.f32 %v3081, %v3386
  %v3451 = vmul.f32 %v3083, %v3387
  %v3452 = vmul.f32 %v3085, %v3388
  %v3453 = vmul.f32 %v3087, %v3389
  %v3454 = vmul.f32 %v3089, %v3390
  %v3455 = vmul.f32 %v3091, %v3391
  %v3456 = vmul.f32 %v3093, %v3392
  %v3457 = vmul.f32 %v3095, %v3393
  %v3458 = vmul.f32 %v3097, %v3394
  %v3459 = vmul.f32 %v3099, %v3395
  %v3460 = vmul.f32 %v3101, %v3396
  %v3461 = vmul.f32 %v3103, %v3397
  %v3462 = vmul.f32 %v3105, %v3398
  %v3463 = vmul.f32 %v3107, %v3399
  %v3464 = vmul.f32 %v3109, %v3400
  %v3465 = vmul.f32 %v3111, %v3401
  %v3466 = vmul.f32 %v3113, %v3402
  %v3467 = vmul.f32 %v3115, %v3403
  %v3468 = vmul.f32 %v3117, %v3404
  %v3469 = vmul.f32 %v3119, %v3405
  %v3470 = vmul.f32 %v3121, %v3406
  %v3471 = vmul.f32 %v3123, %v3407
  %v3472 = vmul.f32 %v3125, %v3408
  %v3473 = vmul.f32 %v3127, %v3409
  %v3474 = vmul.f32 %v3129, %v3410
  %v3475 = vmul.f32 %v3131, %v3411
  %v3476 = vmul.f32 %v3133, %v3412
  %v3477 = vmul.f32 %v3135, %v3413
  %v3478 = vmul.f32 %v3137, %v3414
  %v3479 = vmul.f32 %v3139, %v3415
  %v3480 = vmul.f32 %v3141, %v3416
  %v3481 = vmul.f32 %v3143, %v3417
  %v3482 = vmul.f32 %v3145, %v3418
  %v3483 = vmul.f32 %v3147, %v3419
  %v3484 = vmul.f32 %v3149, %v3420
  %v3485 = vmul.f32 %v3151, %v3421
  %v3486 = vmul.f32 %v3153, %v3422
  %v3487 = vmul.f32 %v3155, %v3423
  %v3488 = vmul.f32 %v3157, %v3424
  %v3489 = vmul.f32 %v3159, %v3425
  %v3490 = vmul.f32 %v3161, %v3426
  %v3491 = vmul.f32 %v3163, %v3427
  %v3492 = vmul.f32 %v3165, %v3428
  %v3493 = vmul.f32 %v3167, %v3429
  %v3494 = vmul.f32 %v3169, %v3430
  %v3495 = vmul.f32 %v3171, %v3431
  %v3496 = vmul.f32 %v3173, %v3432
  %v3497 = vmul.f32 %v3175, %v3433
  %v3498 = vmul.f32 %v3177, %v3434
  %v3499 = vmul.f32 %v3179, %v3435
  %v3500 = vpack.c.bf16 %v3437, %v3436
  %v3501 = vpack.c.bf16 %v3439, %v3438
  %v3502 = vpack.c.bf16 %v3441, %v3440
  %v3503 = vpack.c.bf16 %v3443, %v3442
  %v3504 = vpack.c.bf16 %v3445, %v3444
  %v3505 = vpack.c.bf16 %v3447, %v3446
  %v3506 = vpack.c.bf16 %v3449, %v3448
  %v3507 = vpack.c.bf16 %v3451, %v3450
  %v3508 = vpack.c.bf16 %v3453, %v3452
  %v3509 = vpack.c.bf16 %v3455, %v3454
  %v3510 = vpack.c.bf16 %v3457, %v3456
  %v3511 = vpack.c.bf16 %v3459, %v3458
  %v3512 = vpack.c.bf16 %v3461, %v3460
  %v3513 = vpack.c.bf16 %v3463, %v3462
  %v3514 = vpack.c.bf16 %v3465, %v3464
  %v3515 = vpack.c.bf16 %v3467, %v3466
  %v3516 = vpack.c.bf16 %v3469, %v3468
  %v3517 = vpack.c.bf16 %v3471, %v3470
  %v3518 = vpack.c.bf16 %v3473, %v3472
  %v3519 = vpack.c.bf16 %v3475, %v3474
  %v3520 = vpack.c.bf16 %v3477, %v3476
  %v3521 = vpack.c.bf16 %v3479, %v3478
  %v3522 = vpack.c.bf16 %v3481, %v3480
  %v3523 = vpack.c.bf16 %v3483, %v3482
  %v3524 = vpack.c.bf16 %v3485, %v3484
  %v3525 = vpack.c.bf16 %v3487, %v3486
  %v3526 = vpack.c.bf16 %v3489, %v3488
  %v3527 = vpack.c.bf16 %v3491, %v3490
  %v3528 = vpack.c.bf16 %v3493, %v3492
  %v3529 = vpack.c.bf16 %v3495, %v3494
  %v3530 = vpack.c.bf16 %v3497, %v3496
  %v3531 = vpack.c.bf16 %v3499, %v3498
  %v3533 = vsel %vm2795, %v3500, 0
  %v3536 = vsel %vm2795, %v3501, 0
  %v3539 = vsel %vm2795, %v3502, 0
  %v3542 = vsel %vm2795, %v3503, 0
  %3544 = vmatprep.subr.bf16.mxu0 0
  %3545 = vmatpush1.bf16.msra.mxu0 0
  %3546 = vmatprep.subr.bf16.mxu0 0
  %3547 = vmatpush1.bf16.msra.mxu0 0
  %3548 = vmatprep.subr.bf16.mxu0 0
  %3549 = vmatpush1.bf16.msra.mxu0 0
  %3550 = vmatprep.subr.bf16.mxu0 0
  %3551 = vmatpush1.bf16.msra.mxu0 0
  %3552 = vmatprep.subr.bf16.mxu0 0
  %3553 = vmatpush1.bf16.msra.mxu0 %v1957
  %3554 = vmatprep.subr.bf16.mxu0 0
  %3555 = vmatpush1.bf16.msra.mxu0 %v1956
  %3556 = vmatprep.subr.bf16.mxu0 0
  %3557 = vmatpush1.bf16.msra.mxu0 %v1955
  %3558 = vmatprep.subr.bf16.mxu0 0
  %3559 = vmatpush1.bf16.msra.mxu0 %v1954
  %3560 = vmatprep.subr.bf16.mxu0 0
  %3561 = vmatpush2.bf16.msra.mxu0 0
  %3562 = vmatprep.subr.bf16.mxu0 0
  %3563 = vmatpush2.bf16.msra.mxu0 0
  %3564 = vmatprep.subr.bf16.mxu0 0
  %3565 = vmatpush2.bf16.msra.mxu0 0
  %3566 = vmatprep.subr.bf16.mxu0 0
  %3567 = vmatpush2.bf16.msra.mxu0 0
  %3568 = vmatprep.subr.bf16.mxu0 0
  %3569 = vmatpush2.bf16.msra.mxu0 0
  %3570 = vmatprep.subr.bf16.mxu0 0
  %3571 = vmatpush2.bf16.msra.mxu0 0
  %3572 = vmatprep.subr.bf16.mxu0 0
  %3573 = vmatpush2.bf16.msra.mxu0 0
  %3574 = vmatprep.subr.bf16.mxu0 0
  %3575 = vmatpush2.bf16.msra.mxu0 0
  %3576 = vmatprep.mubr.bf16.mxu0 0
  %3577 = vmatmul.mubr.bf16.gmra.mxu0 %v3533
  %v3578 = vpop.f32.mrf.mxu0
  %v3579 = vadd.f32 0.0, %v3578
  %v3580 = vpop.f32.mrf.mxu0
  %v3581 = vpop.f32.mrf.mxu0
  %v3582 = vadd.f32 0.0, %v3581
  %v3583 = vpop.f32.mrf.mxu0
  %3584 = vmatprep.mubr.bf16.mxu0 0
  %3585 = vmatmul.mubr.bf16.gmra.mxu0 %v3536
  %v3586 = vpop.f32.mrf.mxu0
  %v3587 = vadd.f32 0.0, %v3586
  %v3588 = vpop.f32.mrf.mxu0
  %v3589 = vpop.f32.mrf.mxu0
  %v3590 = vadd.f32 0.0, %v3589
  %v3591 = vpop.f32.mrf.mxu0
  %3592 = vmatprep.mubr.bf16.mxu0 0
  %3593 = vmatmul.mubr.bf16.gmra.mxu0 %v3539
  %v3594 = vpop.f32.mrf.mxu0
  %v3595 = vadd.f32 0.0, %v3594
  %v3596 = vpop.f32.mrf.mxu0
  %v3597 = vpop.f32.mrf.mxu0
  %v3598 = vadd.f32 0.0, %v3597
  %v3599 = vpop.f32.mrf.mxu0
  %3600 = vmatprep.mubr.bf16.mxu0 0
  %3601 = vmatmul.mubr.bf16.gmra.mxu0 %v3542
  %v3602 = vpop.f32.mrf.mxu0
  %v3603 = vadd.f32 0.0, %v3602
  %v3604 = vpop.f32.mrf.mxu0
  %v3605 = vpop.f32.mrf.mxu0
  %v3606 = vadd.f32 0.0, %v3605
  %v3607 = vpop.f32.mrf.mxu0
  %3608 = vdwg.mxu0
  %v3610 = vsel %vm2795, %v3504, 0
  %v3613 = vsel %vm2795, %v3505, 0
  %v3616 = vsel %vm2795, %v3506, 0
  %v3619 = vsel %vm2795, %v3507, 0
  %3621 = vmatprep.subr.bf16.mxu0 0
  %3622 = vmatpush1.bf16.msra.mxu0 0
  %3623 = vmatprep.subr.bf16.mxu0 0
  %3624 = vmatpush1.bf16.msra.mxu0 0
  %3625 = vmatprep.subr.bf16.mxu0 0
  %3626 = vmatpush1.bf16.msra.mxu0 0
  %3627 = vmatprep.subr.bf16.mxu0 0
  %3628 = vmatpush1.bf16.msra.mxu0 0
  %3629 = vmatprep.subr.bf16.mxu0 0
  %3630 = vmatpush1.bf16.msra.mxu0 %v1961
  %3631 = vmatprep.subr.bf16.mxu0 0
  %3632 = vmatpush1.bf16.msra.mxu0 %v1960
  %3633 = vmatprep.subr.bf16.mxu0 0
  %3634 = vmatpush1.bf16.msra.mxu0 %v1959
  %3635 = vmatprep.subr.bf16.mxu0 0
  %3636 = vmatpush1.bf16.msra.mxu0 %v1958
  %3637 = vmatprep.subr.bf16.mxu0 0
  %3638 = vmatpush2.bf16.msra.mxu0 0
  %3639 = vmatprep.subr.bf16.mxu0 0
  %3640 = vmatpush2.bf16.msra.mxu0 0
  %3641 = vmatprep.subr.bf16.mxu0 0
  %3642 = vmatpush2.bf16.msra.mxu0 0
  %3643 = vmatprep.subr.bf16.mxu0 0
  %3644 = vmatpush2.bf16.msra.mxu0 0
  %3645 = vmatprep.subr.bf16.mxu0 0
  %3646 = vmatpush2.bf16.msra.mxu0 0
  %3647 = vmatprep.subr.bf16.mxu0 0
  %3648 = vmatpush2.bf16.msra.mxu0 0
  %3649 = vmatprep.subr.bf16.mxu0 0
  %3650 = vmatpush2.bf16.msra.mxu0 0
  %3651 = vmatprep.subr.bf16.mxu0 0
  %3652 = vmatpush2.bf16.msra.mxu0 0
  %3653 = vmatprep.mubr.bf16.mxu0 0
  %3654 = vmatmul.mubr.bf16.gmra.mxu0 %v3610
  %v3655 = vpop.f32.mrf.mxu0
  %v3656 = vadd.f32 0.0, %v3655
  %v3657 = vpop.f32.mrf.mxu0
  %v3658 = vpop.f32.mrf.mxu0
  %v3659 = vadd.f32 0.0, %v3658
  %v3660 = vpop.f32.mrf.mxu0
  %3661 = vmatprep.mubr.bf16.mxu0 0
  %3662 = vmatmul.mubr.bf16.gmra.mxu0 %v3613
  %v3663 = vpop.f32.mrf.mxu0
  %v3664 = vadd.f32 0.0, %v3663
  %v3665 = vpop.f32.mrf.mxu0
  %v3666 = vpop.f32.mrf.mxu0
  %v3667 = vadd.f32 0.0, %v3666
  %v3668 = vpop.f32.mrf.mxu0
  %3669 = vmatprep.mubr.bf16.mxu0 0
  %3670 = vmatmul.mubr.bf16.gmra.mxu0 %v3616
  %v3671 = vpop.f32.mrf.mxu0
  %v3672 = vadd.f32 0.0, %v3671
  %v3673 = vpop.f32.mrf.mxu0
  %v3674 = vpop.f32.mrf.mxu0
  %v3675 = vadd.f32 0.0, %v3674
  %v3676 = vpop.f32.mrf.mxu0
  %3677 = vmatprep.mubr.bf16.mxu0 0
  %3678 = vmatmul.mubr.bf16.gmra.mxu0 %v3619
  %v3679 = vpop.f32.mrf.mxu0
  %v3680 = vadd.f32 0.0, %v3679
  %v3681 = vpop.f32.mrf.mxu0
  %v3682 = vpop.f32.mrf.mxu0
  %v3683 = vadd.f32 0.0, %v3682
  %v3684 = vpop.f32.mrf.mxu0
  %3685 = vdwg.mxu0
  %v3687 = vsel %vm2795, %v3508, 0
  %v3690 = vsel %vm2795, %v3509, 0
  %v3693 = vsel %vm2795, %v3510, 0
  %v3696 = vsel %vm2795, %v3511, 0
  %3698 = vmatprep.subr.bf16.mxu0 0
  %3699 = vmatpush1.bf16.msra.mxu0 0
  %3700 = vmatprep.subr.bf16.mxu0 0
  %3701 = vmatpush1.bf16.msra.mxu0 0
  %3702 = vmatprep.subr.bf16.mxu0 0
  %3703 = vmatpush1.bf16.msra.mxu0 0
  %3704 = vmatprep.subr.bf16.mxu0 0
  %3705 = vmatpush1.bf16.msra.mxu0 0
  %3706 = vmatprep.subr.bf16.mxu0 0
  %3707 = vmatpush1.bf16.msra.mxu0 %v1965
  %3708 = vmatprep.subr.bf16.mxu0 0
  %3709 = vmatpush1.bf16.msra.mxu0 %v1964
  %3710 = vmatprep.subr.bf16.mxu0 0
  %3711 = vmatpush1.bf16.msra.mxu0 %v1963
  %3712 = vmatprep.subr.bf16.mxu0 0
  %3713 = vmatpush1.bf16.msra.mxu0 %v1962
  %3714 = vmatprep.subr.bf16.mxu0 0
  %3715 = vmatpush2.bf16.msra.mxu0 0
  %3716 = vmatprep.subr.bf16.mxu0 0
  %3717 = vmatpush2.bf16.msra.mxu0 0
  %3718 = vmatprep.subr.bf16.mxu0 0
  %3719 = vmatpush2.bf16.msra.mxu0 0
  %3720 = vmatprep.subr.bf16.mxu0 0
  %3721 = vmatpush2.bf16.msra.mxu0 0
  %3722 = vmatprep.subr.bf16.mxu0 0
  %3723 = vmatpush2.bf16.msra.mxu0 0
  %3724 = vmatprep.subr.bf16.mxu0 0
  %3725 = vmatpush2.bf16.msra.mxu0 0
  %3726 = vmatprep.subr.bf16.mxu0 0
  %3727 = vmatpush2.bf16.msra.mxu0 0
  %3728 = vmatprep.subr.bf16.mxu0 0
  %3729 = vmatpush2.bf16.msra.mxu0 0
  %3730 = vmatprep.mubr.bf16.mxu0 0
  %3731 = vmatmul.mubr.bf16.gmra.mxu0 %v3687
  %v3732 = vpop.f32.mrf.mxu0
  %v3733 = vadd.f32 0.0, %v3732
  %v3734 = vpop.f32.mrf.mxu0
  %v3735 = vpop.f32.mrf.mxu0
  %v3736 = vadd.f32 0.0, %v3735
  %v3737 = vpop.f32.mrf.mxu0
  %3738 = vmatprep.mubr.bf16.mxu0 0
  %3739 = vmatmul.mubr.bf16.gmra.mxu0 %v3690
  %v3740 = vpop.f32.mrf.mxu0
  %v3741 = vadd.f32 0.0, %v3740
  %v3742 = vpop.f32.mrf.mxu0
  %v3743 = vpop.f32.mrf.mxu0
  %v3744 = vadd.f32 0.0, %v3743
  %v3745 = vpop.f32.mrf.mxu0
  %3746 = vmatprep.mubr.bf16.mxu0 0
  %3747 = vmatmul.mubr.bf16.gmra.mxu0 %v3693
  %v3748 = vpop.f32.mrf.mxu0
  %v3749 = vadd.f32 0.0, %v3748
  %v3750 = vpop.f32.mrf.mxu0
  %v3751 = vpop.f32.mrf.mxu0
  %v3752 = vadd.f32 0.0, %v3751
  %v3753 = vpop.f32.mrf.mxu0
  %3754 = vmatprep.mubr.bf16.mxu0 0
  %3755 = vmatmul.mubr.bf16.gmra.mxu0 %v3696
  %v3756 = vpop.f32.mrf.mxu0
  %v3757 = vadd.f32 0.0, %v3756
  %v3758 = vpop.f32.mrf.mxu0
  %v3759 = vpop.f32.mrf.mxu0
  %v3760 = vadd.f32 0.0, %v3759
  %v3761 = vpop.f32.mrf.mxu0
  %3762 = vdwg.mxu0
  %v3764 = vsel %vm2795, %v3512, 0
  %v3767 = vsel %vm2795, %v3513, 0
  %v3770 = vsel %vm2795, %v3514, 0
  %v3773 = vsel %vm2795, %v3515, 0
  %3775 = vmatprep.subr.bf16.mxu0 0
  %3776 = vmatpush1.bf16.msra.mxu0 0
  %3777 = vmatprep.subr.bf16.mxu0 0
  %3778 = vmatpush1.bf16.msra.mxu0 0
  %3779 = vmatprep.subr.bf16.mxu0 0
  %3780 = vmatpush1.bf16.msra.mxu0 0
  %3781 = vmatprep.subr.bf16.mxu0 0
  %3782 = vmatpush1.bf16.msra.mxu0 0
  %3783 = vmatprep.subr.bf16.mxu0 0
  %3784 = vmatpush1.bf16.msra.mxu0 %v1969
  %3785 = vmatprep.subr.bf16.mxu0 0
  %3786 = vmatpush1.bf16.msra.mxu0 %v1968
  %3787 = vmatprep.subr.bf16.mxu0 0
  %3788 = vmatpush1.bf16.msra.mxu0 %v1967
  %3789 = vmatprep.subr.bf16.mxu0 0
  %3790 = vmatpush1.bf16.msra.mxu0 %v1966
  %3791 = vmatprep.subr.bf16.mxu0 0
  %3792 = vmatpush2.bf16.msra.mxu0 0
  %3793 = vmatprep.subr.bf16.mxu0 0
  %3794 = vmatpush2.bf16.msra.mxu0 0
  %3795 = vmatprep.subr.bf16.mxu0 0
  %3796 = vmatpush2.bf16.msra.mxu0 0
  %3797 = vmatprep.subr.bf16.mxu0 0
  %3798 = vmatpush2.bf16.msra.mxu0 0
  %3799 = vmatprep.subr.bf16.mxu0 0
  %3800 = vmatpush2.bf16.msra.mxu0 0
  %3801 = vmatprep.subr.bf16.mxu0 0
  %3802 = vmatpush2.bf16.msra.mxu0 0
  %3803 = vmatprep.subr.bf16.mxu0 0
  %3804 = vmatpush2.bf16.msra.mxu0 0
  %3805 = vmatprep.subr.bf16.mxu0 0
  %3806 = vmatpush2.bf16.msra.mxu0 0
  %3807 = vmatprep.mubr.bf16.mxu0 0
  %3808 = vmatmul.mubr.bf16.gmra.mxu0 %v3764
  %v3809 = vpop.f32.mrf.mxu0
  %v3810 = vadd.f32 0.0, %v3809
  %v3811 = vpop.f32.mrf.mxu0
  %v3812 = vpop.f32.mrf.mxu0
  %v3813 = vadd.f32 0.0, %v3812
  %v3814 = vpop.f32.mrf.mxu0
  %3815 = vmatprep.mubr.bf16.mxu0 0
  %3816 = vmatmul.mubr.bf16.gmra.mxu0 %v3767
  %v3817 = vpop.f32.mrf.mxu0
  %v3818 = vadd.f32 0.0, %v3817
  %v3819 = vpop.f32.mrf.mxu0
  %v3820 = vpop.f32.mrf.mxu0
  %v3821 = vadd.f32 0.0, %v3820
  %v3822 = vpop.f32.mrf.mxu0
  %3823 = vmatprep.mubr.bf16.mxu0 0
  %3824 = vmatmul.mubr.bf16.gmra.mxu0 %v3770
  %v3825 = vpop.f32.mrf.mxu0
  %v3826 = vadd.f32 0.0, %v3825
  %v3827 = vpop.f32.mrf.mxu0
  %v3828 = vpop.f32.mrf.mxu0
  %v3829 = vadd.f32 0.0, %v3828
  %v3830 = vpop.f32.mrf.mxu0
  %3831 = vmatprep.mubr.bf16.mxu0 0
  %3832 = vmatmul.mubr.bf16.gmra.mxu0 %v3773
  %v3833 = vpop.f32.mrf.mxu0
  %v3834 = vadd.f32 0.0, %v3833
  %v3835 = vpop.f32.mrf.mxu0
  %v3836 = vpop.f32.mrf.mxu0
  %v3837 = vadd.f32 0.0, %v3836
  %v3838 = vpop.f32.mrf.mxu0
  %3839 = vdwg.mxu0
  %v3841 = vsel %vm2795, %v3516, 0
  %v3844 = vsel %vm2795, %v3517, 0
  %v3847 = vsel %vm2795, %v3518, 0
  %v3850 = vsel %vm2795, %v3519, 0
  %3852 = vmatprep.subr.bf16.mxu0 0
  %3853 = vmatpush1.bf16.msra.mxu0 0
  %3854 = vmatprep.subr.bf16.mxu0 0
  %3855 = vmatpush1.bf16.msra.mxu0 0
  %3856 = vmatprep.subr.bf16.mxu0 0
  %3857 = vmatpush1.bf16.msra.mxu0 0
  %3858 = vmatprep.subr.bf16.mxu0 0
  %3859 = vmatpush1.bf16.msra.mxu0 0
  %3860 = vmatprep.subr.bf16.mxu0 0
  %3861 = vmatpush1.bf16.msra.mxu0 %v1973
  %3862 = vmatprep.subr.bf16.mxu0 0
  %3863 = vmatpush1.bf16.msra.mxu0 %v1972
  %3864 = vmatprep.subr.bf16.mxu0 0
  %3865 = vmatpush1.bf16.msra.mxu0 %v1971
  %3866 = vmatprep.subr.bf16.mxu0 0
  %3867 = vmatpush1.bf16.msra.mxu0 %v1970
  %3868 = vmatprep.subr.bf16.mxu0 0
  %3869 = vmatpush2.bf16.msra.mxu0 0
  %3870 = vmatprep.subr.bf16.mxu0 0
  %3871 = vmatpush2.bf16.msra.mxu0 0
  %3872 = vmatprep.subr.bf16.mxu0 0
  %3873 = vmatpush2.bf16.msra.mxu0 0
  %3874 = vmatprep.subr.bf16.mxu0 0
  %3875 = vmatpush2.bf16.msra.mxu0 0
  %3876 = vmatprep.subr.bf16.mxu0 0
  %3877 = vmatpush2.bf16.msra.mxu0 0
  %3878 = vmatprep.subr.bf16.mxu0 0
  %3879 = vmatpush2.bf16.msra.mxu0 0
  %3880 = vmatprep.subr.bf16.mxu0 0
  %3881 = vmatpush2.bf16.msra.mxu0 0
  %3882 = vmatprep.subr.bf16.mxu0 0
  %3883 = vmatpush2.bf16.msra.mxu0 0
  %3884 = vmatprep.mubr.bf16.mxu0 0
  %3885 = vmatmul.mubr.bf16.gmra.mxu0 %v3841
  %v3886 = vpop.f32.mrf.mxu0
  %v3887 = vadd.f32 0.0, %v3886
  %v3888 = vpop.f32.mrf.mxu0
  %v3889 = vpop.f32.mrf.mxu0
  %v3890 = vadd.f32 0.0, %v3889
  %v3891 = vpop.f32.mrf.mxu0
  %3892 = vmatprep.mubr.bf16.mxu0 0
  %3893 = vmatmul.mubr.bf16.gmra.mxu0 %v3844
  %v3894 = vpop.f32.mrf.mxu0
  %v3895 = vadd.f32 0.0, %v3894
  %v3896 = vpop.f32.mrf.mxu0
  %v3897 = vpop.f32.mrf.mxu0
  %v3898 = vadd.f32 0.0, %v3897
  %v3899 = vpop.f32.mrf.mxu0
  %3900 = vmatprep.mubr.bf16.mxu0 0
  %3901 = vmatmul.mubr.bf16.gmra.mxu0 %v3847
  %v3902 = vpop.f32.mrf.mxu0
  %v3903 = vadd.f32 0.0, %v3902
  %v3904 = vpop.f32.mrf.mxu0
  %v3905 = vpop.f32.mrf.mxu0
  %v3906 = vadd.f32 0.0, %v3905
  %v3907 = vpop.f32.mrf.mxu0
  %3908 = vmatprep.mubr.bf16.mxu0 0
  %3909 = vmatmul.mubr.bf16.gmra.mxu0 %v3850
  %v3910 = vpop.f32.mrf.mxu0
  %v3911 = vadd.f32 0.0, %v3910
  %v3912 = vpop.f32.mrf.mxu0
  %v3913 = vpop.f32.mrf.mxu0
  %v3914 = vadd.f32 0.0, %v3913
  %v3915 = vpop.f32.mrf.mxu0
  %3916 = vdwg.mxu0
  %v3918 = vsel %vm2795, %v3520, 0
  %v3921 = vsel %vm2795, %v3521, 0
  %v3924 = vsel %vm2795, %v3522, 0
  %v3927 = vsel %vm2795, %v3523, 0
  %3929 = vmatprep.subr.bf16.mxu0 0
  %3930 = vmatpush1.bf16.msra.mxu0 0
  %3931 = vmatprep.subr.bf16.mxu0 0
  %3932 = vmatpush1.bf16.msra.mxu0 0
  %3933 = vmatprep.subr.bf16.mxu0 0
  %3934 = vmatpush1.bf16.msra.mxu0 0
  %3935 = vmatprep.subr.bf16.mxu0 0
  %3936 = vmatpush1.bf16.msra.mxu0 0
  %3937 = vmatprep.subr.bf16.mxu0 0
  %3938 = vmatpush1.bf16.msra.mxu0 %v1977
  %3939 = vmatprep.subr.bf16.mxu0 0
  %3940 = vmatpush1.bf16.msra.mxu0 %v1976
  %3941 = vmatprep.subr.bf16.mxu0 0
  %3942 = vmatpush1.bf16.msra.mxu0 %v1975
  %3943 = vmatprep.subr.bf16.mxu0 0
  %3944 = vmatpush1.bf16.msra.mxu0 %v1974
  %3945 = vmatprep.subr.bf16.mxu0 0
  %3946 = vmatpush2.bf16.msra.mxu0 0
  %3947 = vmatprep.subr.bf16.mxu0 0
  %3948 = vmatpush2.bf16.msra.mxu0 0
  %3949 = vmatprep.subr.bf16.mxu0 0
  %3950 = vmatpush2.bf16.msra.mxu0 0
  %3951 = vmatprep.subr.bf16.mxu0 0
  %3952 = vmatpush2.bf16.msra.mxu0 0
  %3953 = vmatprep.subr.bf16.mxu0 0
  %3954 = vmatpush2.bf16.msra.mxu0 0
  %3955 = vmatprep.subr.bf16.mxu0 0
  %3956 = vmatpush2.bf16.msra.mxu0 0
  %3957 = vmatprep.subr.bf16.mxu0 0
  %3958 = vmatpush2.bf16.msra.mxu0 0
  %3959 = vmatprep.subr.bf16.mxu0 0
  %3960 = vmatpush2.bf16.msra.mxu0 0
  %3961 = vmatprep.mubr.bf16.mxu0 0
  %3962 = vmatmul.mubr.bf16.gmra.mxu0 %v3918
  %v3963 = vpop.f32.mrf.mxu0
  %v3964 = vadd.f32 0.0, %v3963
  %v3965 = vpop.f32.mrf.mxu0
  %v3966 = vpop.f32.mrf.mxu0
  %v3967 = vadd.f32 0.0, %v3966
  %v3968 = vpop.f32.mrf.mxu0
  %3969 = vmatprep.mubr.bf16.mxu0 0
  %3970 = vmatmul.mubr.bf16.gmra.mxu0 %v3921
  %v3971 = vpop.f32.mrf.mxu0
  %v3972 = vadd.f32 0.0, %v3971
  %v3973 = vpop.f32.mrf.mxu0
  %v3974 = vpop.f32.mrf.mxu0
  %v3975 = vadd.f32 0.0, %v3974
  %v3976 = vpop.f32.mrf.mxu0
  %3977 = vmatprep.mubr.bf16.mxu0 0
  %3978 = vmatmul.mubr.bf16.gmra.mxu0 %v3924
  %v3979 = vpop.f32.mrf.mxu0
  %v3980 = vadd.f32 0.0, %v3979
  %v3981 = vpop.f32.mrf.mxu0
  %v3982 = vpop.f32.mrf.mxu0
  %v3983 = vadd.f32 0.0, %v3982
  %v3984 = vpop.f32.mrf.mxu0
  %3985 = vmatprep.mubr.bf16.mxu0 0
  %3986 = vmatmul.mubr.bf16.gmra.mxu0 %v3927
  %v3987 = vpop.f32.mrf.mxu0
  %v3988 = vadd.f32 0.0, %v3987
  %v3989 = vpop.f32.mrf.mxu0
  %v3990 = vpop.f32.mrf.mxu0
  %v3991 = vadd.f32 0.0, %v3990
  %v3992 = vpop.f32.mrf.mxu0
  %3993 = vdwg.mxu0
  %v3995 = vsel %vm2795, %v3524, 0
  %v3998 = vsel %vm2795, %v3525, 0
  %v4001 = vsel %vm2795, %v3526, 0
  %v4004 = vsel %vm2795, %v3527, 0
  %4006 = vmatprep.subr.bf16.mxu0 0
  %4007 = vmatpush1.bf16.msra.mxu0 0
  %4008 = vmatprep.subr.bf16.mxu0 0
  %4009 = vmatpush1.bf16.msra.mxu0 0
  %4010 = vmatprep.subr.bf16.mxu0 0
  %4011 = vmatpush1.bf16.msra.mxu0 0
  %4012 = vmatprep.subr.bf16.mxu0 0
  %4013 = vmatpush1.bf16.msra.mxu0 0
  %4014 = vmatprep.subr.bf16.mxu0 0
  %4015 = vmatpush1.bf16.msra.mxu0 %v1981
  %4016 = vmatprep.subr.bf16.mxu0 0
  %4017 = vmatpush1.bf16.msra.mxu0 %v1980
  %4018 = vmatprep.subr.bf16.mxu0 0
  %4019 = vmatpush1.bf16.msra.mxu0 %v1979
  %4020 = vmatprep.subr.bf16.mxu0 0
  %4021 = vmatpush1.bf16.msra.mxu0 %v1978
  %4022 = vmatprep.subr.bf16.mxu0 0
  %4023 = vmatpush2.bf16.msra.mxu0 0
  %4024 = vmatprep.subr.bf16.mxu0 0
  %4025 = vmatpush2.bf16.msra.mxu0 0
  %4026 = vmatprep.subr.bf16.mxu0 0
  %4027 = vmatpush2.bf16.msra.mxu0 0
  %4028 = vmatprep.subr.bf16.mxu0 0
  %4029 = vmatpush2.bf16.msra.mxu0 0
  %4030 = vmatprep.subr.bf16.mxu0 0
  %4031 = vmatpush2.bf16.msra.mxu0 0
  %4032 = vmatprep.subr.bf16.mxu0 0
  %4033 = vmatpush2.bf16.msra.mxu0 0
  %4034 = vmatprep.subr.bf16.mxu0 0
  %4035 = vmatpush2.bf16.msra.mxu0 0
  %4036 = vmatprep.subr.bf16.mxu0 0
  %4037 = vmatpush2.bf16.msra.mxu0 0
  %4038 = vmatprep.mubr.bf16.mxu0 0
  %4039 = vmatmul.mubr.bf16.gmra.mxu0 %v3995
  %v4040 = vpop.f32.mrf.mxu0
  %v4041 = vadd.f32 0.0, %v4040
  %v4042 = vpop.f32.mrf.mxu0
  %v4043 = vpop.f32.mrf.mxu0
  %v4044 = vadd.f32 0.0, %v4043
  %v4045 = vpop.f32.mrf.mxu0
  %4046 = vmatprep.mubr.bf16.mxu0 0
  %4047 = vmatmul.mubr.bf16.gmra.mxu0 %v3998
  %v4048 = vpop.f32.mrf.mxu0
  %v4049 = vadd.f32 0.0, %v4048
  %v4050 = vpop.f32.mrf.mxu0
  %v4051 = vpop.f32.mrf.mxu0
  %v4052 = vadd.f32 0.0, %v4051
  %v4053 = vpop.f32.mrf.mxu0
  %4054 = vmatprep.mubr.bf16.mxu0 0
  %4055 = vmatmul.mubr.bf16.gmra.mxu0 %v4001
  %v4056 = vpop.f32.mrf.mxu0
  %v4057 = vadd.f32 0.0, %v4056
  %v4058 = vpop.f32.mrf.mxu0
  %v4059 = vpop.f32.mrf.mxu0
  %v4060 = vadd.f32 0.0, %v4059
  %v4061 = vpop.f32.mrf.mxu0
  %4062 = vmatprep.mubr.bf16.mxu0 0
  %4063 = vmatmul.mubr.bf16.gmra.mxu0 %v4004
  %v4064 = vpop.f32.mrf.mxu0
  %v4065 = vadd.f32 0.0, %v4064
  %v4066 = vpop.f32.mrf.mxu0
  %v4067 = vpop.f32.mrf.mxu0
  %v4068 = vadd.f32 0.0, %v4067
  %v4069 = vpop.f32.mrf.mxu0
  %4070 = vdwg.mxu0
  %v4072 = vsel %vm2795, %v3528, 0
  %v4075 = vsel %vm2795, %v3529, 0
  %v4078 = vsel %vm2795, %v3530, 0
  %v4081 = vsel %vm2795, %v3531, 0
  %4083 = vmatprep.subr.bf16.mxu0 0
  %4084 = vmatpush1.bf16.msra.mxu0 0
  %4085 = vmatprep.subr.bf16.mxu0 0
  %4086 = vmatpush1.bf16.msra.mxu0 0
  %4087 = vmatprep.subr.bf16.mxu0 0
  %4088 = vmatpush1.bf16.msra.mxu0 0
  %4089 = vmatprep.subr.bf16.mxu0 0
  %4090 = vmatpush1.bf16.msra.mxu0 0
  %4091 = vmatprep.subr.bf16.mxu0 0
  %4092 = vmatpush1.bf16.msra.mxu0 %v1985
  %4093 = vmatprep.subr.bf16.mxu0 0
  %4094 = vmatpush1.bf16.msra.mxu0 %v1984
  %4095 = vmatprep.subr.bf16.mxu0 0
  %4096 = vmatpush1.bf16.msra.mxu0 %v1983
  %4097 = vmatprep.subr.bf16.mxu0 0
  %4098 = vmatpush1.bf16.msra.mxu0 %v1982
  %4099 = vmatprep.subr.bf16.mxu0 0
  %4100 = vmatpush2.bf16.msra.mxu0 0
  %4101 = vmatprep.subr.bf16.mxu0 0
  %4102 = vmatpush2.bf16.msra.mxu0 0
  %4103 = vmatprep.subr.bf16.mxu0 0
  %4104 = vmatpush2.bf16.msra.mxu0 0
  %4105 = vmatprep.subr.bf16.mxu0 0
  %4106 = vmatpush2.bf16.msra.mxu0 0
  %4107 = vmatprep.subr.bf16.mxu0 0
  %4108 = vmatpush2.bf16.msra.mxu0 0
  %4109 = vmatprep.subr.bf16.mxu0 0
  %4110 = vmatpush2.bf16.msra.mxu0 0
  %4111 = vmatprep.subr.bf16.mxu0 0
  %4112 = vmatpush2.bf16.msra.mxu0 0
  %4113 = vmatprep.subr.bf16.mxu0 0
  %4114 = vmatpush2.bf16.msra.mxu0 0
  %4115 = vmatprep.mubr.bf16.mxu0 0
  %4116 = vmatmul.mubr.bf16.gmra.mxu0 %v4072
  %v4117 = vpop.f32.mrf.mxu0
  %v4118 = vadd.f32 0.0, %v4117
  %v4119 = vpop.f32.mrf.mxu0
  %v4120 = vpop.f32.mrf.mxu0
  %v4121 = vadd.f32 0.0, %v4120
  %v4122 = vpop.f32.mrf.mxu0
  %4123 = vmatprep.mubr.bf16.mxu0 0
  %4124 = vmatmul.mubr.bf16.gmra.mxu0 %v4075
  %v4125 = vpop.f32.mrf.mxu0
  %v4126 = vadd.f32 0.0, %v4125
  %v4127 = vpop.f32.mrf.mxu0
  %v4128 = vpop.f32.mrf.mxu0
  %v4129 = vadd.f32 0.0, %v4128
  %v4130 = vpop.f32.mrf.mxu0
  %4131 = vmatprep.mubr.bf16.mxu0 0
  %4132 = vmatmul.mubr.bf16.gmra.mxu0 %v4078
  %v4133 = vpop.f32.mrf.mxu0
  %v4134 = vadd.f32 0.0, %v4133
  %v4135 = vpop.f32.mrf.mxu0
  %v4136 = vpop.f32.mrf.mxu0
  %v4137 = vadd.f32 0.0, %v4136
  %v4138 = vpop.f32.mrf.mxu0
  %4139 = vmatprep.mubr.bf16.mxu0 0
  %4140 = vmatmul.mubr.bf16.gmra.mxu0 %v4081
  %v4141 = vpop.f32.mrf.mxu0
  %v4142 = vadd.f32 0.0, %v4141
  %v4143 = vpop.f32.mrf.mxu0
  %v4144 = vpop.f32.mrf.mxu0
  %v4145 = vadd.f32 0.0, %v4144
  %v4146 = vpop.f32.mrf.mxu0
  %4147 = vdwg.mxu0
  %v4148 = vpack.c.bf16 %v3582, %v3579
  %v4149 = vpack.c.bf16 %v3590, %v3587
  %v4150 = vpack.c.bf16 %v3598, %v3595
  %v4151 = vpack.c.bf16 %v3606, %v3603
  %v4152 = vpack.c.bf16 %v3659, %v3656
  %v4153 = vpack.c.bf16 %v3667, %v3664
  %v4154 = vpack.c.bf16 %v3675, %v3672
  %v4155 = vpack.c.bf16 %v3683, %v3680
  %v4156 = vpack.c.bf16 %v3736, %v3733
  %v4157 = vpack.c.bf16 %v3744, %v3741
  %v4158 = vpack.c.bf16 %v3752, %v3749
  %v4159 = vpack.c.bf16 %v3760, %v3757
  %v4160 = vpack.c.bf16 %v3813, %v3810
  %v4161 = vpack.c.bf16 %v3821, %v3818
  %v4162 = vpack.c.bf16 %v3829, %v3826
  %v4163 = vpack.c.bf16 %v3837, %v3834
  %v4164 = vpack.c.bf16 %v3890, %v3887
  %v4165 = vpack.c.bf16 %v3898, %v3895
  %v4166 = vpack.c.bf16 %v3906, %v3903
  %v4167 = vpack.c.bf16 %v3914, %v3911
  %v4168 = vpack.c.bf16 %v3967, %v3964
  %v4169 = vpack.c.bf16 %v3975, %v3972
  %v4170 = vpack.c.bf16 %v3983, %v3980
  %v4171 = vpack.c.bf16 %v3991, %v3988
  %v4172 = vpack.c.bf16 %v4044, %v4041
  %v4173 = vpack.c.bf16 %v4052, %v4049
  %v4174 = vpack.c.bf16 %v4060, %v4057
  %v4175 = vpack.c.bf16 %v4068, %v4065
  %v4176 = vpack.c.bf16 %v4121, %v4118
  %v4177 = vpack.c.bf16 %v4129, %v4126
  %v4178 = vpack.c.bf16 %v4137, %v4134
  %v4179 = vpack.c.bf16 %v4145, %v4142
  %4184 = vrot.lane.b32.xlu0 %v1290, 120
  %v4185 = vpop.permute.xlu0 %4184
  %4186 = vrot.lane.b32.xlu0 %v1291, 120
  %v4187 = vpop.permute.xlu0 %4186
  %4188 = vrot.lane.b32.xlu0 %v1292, 120
  %v4189 = vpop.permute.xlu0 %4188
  %4190 = vrot.lane.b32.xlu0 %v1293, 120
  %v4191 = vpop.permute.xlu0 %4190
  %4192 = vrot.lane.b32.xlu0 %v1922, 56
  %v4193 = vpop.permute.xlu0 %4192
  %4194 = vrot.lane.b32.xlu0 %v1923, 56
  %v4195 = vpop.permute.xlu0 %4194
  %4196 = vrot.lane.b32.xlu0 %v1924, 56
  %v4197 = vpop.permute.xlu0 %4196
  %4198 = vrot.lane.b32.xlu0 %v1925, 56
  %v4199 = vpop.permute.xlu0 %4198
  %v4201 = vsel %vm1998, %v4185, 0
  %v4204 = vsel %vm1998, %v4187, 0
  %v4207 = vsel %vm1998, %v4189, 0
  %v4210 = vsel %vm1998, %v4191, 0
  %v4213 = vsel %vm1998, %v4193, 0
  %v4216 = vsel %vm1998, %v4195, 0
  %v4219 = vsel %vm1998, %v4197, 0
  %v4222 = vsel %vm1998, %v4199, 0
  %4224 = vmatprep.subr.bf16.mxu0 0
  %4225 = vmatpush1.bf16.xpose.msra.mxu0 0
  %4226 = vmatprep.subr.bf16.mxu0 0
  %4227 = vmatpush1.bf16.xpose.msra.mxu0 0
  %4228 = vmatprep.subr.bf16.mxu0 0
  %4229 = vmatpush1.bf16.xpose.msra.mxu0 0
  %4230 = vmatprep.subr.bf16.mxu0 0
  %4231 = vmatpush1.bf16.xpose.msra.mxu0 0
  %4232 = vmatprep.subr.bf16.mxu0 0
  %4233 = vmatpush1.bf16.xpose.msra.mxu0 %v4222
  %4234 = vmatprep.subr.bf16.mxu0 0
  %4235 = vmatpush1.bf16.xpose.msra.mxu0 %v4219
  %4236 = vmatprep.subr.bf16.mxu0 0
  %4237 = vmatpush1.bf16.xpose.msra.mxu0 %v4216
  %4238 = vmatprep.subr.bf16.mxu0 0
  %4239 = vmatpush1.bf16.xpose.msra.mxu0 %v4213
  %4240 = vmatprep.subr.bf16.mxu0 0
  %4241 = vmatpush2.bf16.xpose.msra.mxu0 0
  %4242 = vmatprep.subr.bf16.mxu0 0
  %4243 = vmatpush2.bf16.xpose.msra.mxu0 0
  %4244 = vmatprep.subr.bf16.mxu0 0
  %4245 = vmatpush2.bf16.xpose.msra.mxu0 0
  %4246 = vmatprep.subr.bf16.mxu0 0
  %4247 = vmatpush2.bf16.xpose.msra.mxu0 0
  %4248 = vmatprep.subr.bf16.mxu0 0
  %4249 = vmatpush2.bf16.xpose.msra.mxu0 0
  %4250 = vmatprep.subr.bf16.mxu0 0
  %4251 = vmatpush2.bf16.xpose.msra.mxu0 0
  %4252 = vmatprep.subr.bf16.mxu0 0
  %4253 = vmatpush2.bf16.xpose.msra.mxu0 0
  %4254 = vmatprep.subr.bf16.mxu0 0
  %4255 = vmatpush2.bf16.xpose.msra.mxu0 0
  %4256 = vmatprep.mubr.bf16.mxu0 0
  %4257 = vmatmul.mubr.bf16.gmra.mxu0 %v4201
  %v4258 = vpop.f32.mrf.mxu0
  %v4259 = vadd.f32 0.0, %v4258
  %v4260 = vpop.f32.mrf.mxu0
  %v4261 = vpop.f32.mrf.mxu0
  %v4262 = vadd.f32 0.0, %v4261
  %v4263 = vpop.f32.mrf.mxu0
  %4264 = vmatprep.mubr.bf16.mxu0 0
  %4265 = vmatmul.mubr.bf16.gmra.mxu0 %v4204
  %v4266 = vpop.f32.mrf.mxu0
  %v4267 = vadd.f32 0.0, %v4266
  %v4268 = vpop.f32.mrf.mxu0
  %v4269 = vpop.f32.mrf.mxu0
  %v4270 = vadd.f32 0.0, %v4269
  %v4271 = vpop.f32.mrf.mxu0
  %4272 = vmatprep.mubr.bf16.mxu0 0
  %4273 = vmatmul.mubr.bf16.gmra.mxu0 %v4207
  %v4274 = vpop.f32.mrf.mxu0
  %v4275 = vadd.f32 0.0, %v4274
  %v4276 = vpop.f32.mrf.mxu0
  %v4277 = vpop.f32.mrf.mxu0
  %v4278 = vadd.f32 0.0, %v4277
  %v4279 = vpop.f32.mrf.mxu0
  %4280 = vmatprep.mubr.bf16.mxu0 0
  %4281 = vmatmul.mubr.bf16.gmra.mxu0 %v4210
  %v4282 = vpop.f32.mrf.mxu0
  %v4283 = vadd.f32 0.0, %v4282
  %v4284 = vpop.f32.mrf.mxu0
  %v4285 = vpop.f32.mrf.mxu0
  %v4286 = vadd.f32 0.0, %v4285
  %v4287 = vpop.f32.mrf.mxu0
  %4288 = vdwg.mxu0
  %4293 = vrot.lane.b32.xlu0 %v1294, 120
  %v4294 = vpop.permute.xlu0 %4293
  %4295 = vrot.lane.b32.xlu0 %v1295, 120
  %v4296 = vpop.permute.xlu0 %4295
  %4297 = vrot.lane.b32.xlu0 %v1296, 120
  %v4298 = vpop.permute.xlu0 %4297
  %4299 = vrot.lane.b32.xlu0 %v1297, 120
  %v4300 = vpop.permute.xlu0 %4299
  %4301 = vrot.lane.b32.xlu0 %v1926, 56
  %v4302 = vpop.permute.xlu0 %4301
  %4303 = vrot.lane.b32.xlu0 %v1927, 56
  %v4304 = vpop.permute.xlu0 %4303
  %4305 = vrot.lane.b32.xlu0 %v1928, 56
  %v4306 = vpop.permute.xlu0 %4305
  %4307 = vrot.lane.b32.xlu0 %v1929, 56
  %v4308 = vpop.permute.xlu0 %4307
  %v4310 = vsel %vm1998, %v4294, 0
  %v4313 = vsel %vm1998, %v4296, 0
  %v4316 = vsel %vm1998, %v4298, 0
  %v4319 = vsel %vm1998, %v4300, 0
  %v4322 = vsel %vm1998, %v4302, 0
  %v4325 = vsel %vm1998, %v4304, 0
  %v4328 = vsel %vm1998, %v4306, 0
  %v4331 = vsel %vm1998, %v4308, 0
  %4333 = vmatprep.subr.bf16.mxu0 0
  %4334 = vmatpush1.bf16.xpose.msra.mxu0 0
  %4335 = vmatprep.subr.bf16.mxu0 0
  %4336 = vmatpush1.bf16.xpose.msra.mxu0 0
  %4337 = vmatprep.subr.bf16.mxu0 0
  %4338 = vmatpush1.bf16.xpose.msra.mxu0 0
  %4339 = vmatprep.subr.bf16.mxu0 0
  %4340 = vmatpush1.bf16.xpose.msra.mxu0 0
  %4341 = vmatprep.subr.bf16.mxu0 0
  %4342 = vmatpush1.bf16.xpose.msra.mxu0 %v4331
  %4343 = vmatprep.subr.bf16.mxu0 0
  %4344 = vmatpush1.bf16.xpose.msra.mxu0 %v4328
  %4345 = vmatprep.subr.bf16.mxu0 0
  %4346 = vmatpush1.bf16.xpose.msra.mxu0 %v4325
  %4347 = vmatprep.subr.bf16.mxu0 0
  %4348 = vmatpush1.bf16.xpose.msra.mxu0 %v4322
  %4349 = vmatprep.subr.bf16.mxu0 0
  %4350 = vmatpush2.bf16.xpose.msra.mxu0 0
  %4351 = vmatprep.subr.bf16.mxu0 0
  %4352 = vmatpush2.bf16.xpose.msra.mxu0 0
  %4353 = vmatprep.subr.bf16.mxu0 0
  %4354 = vmatpush2.bf16.xpose.msra.mxu0 0
  %4355 = vmatprep.subr.bf16.mxu0 0
  %4356 = vmatpush2.bf16.xpose.msra.mxu0 0
  %4357 = vmatprep.subr.bf16.mxu0 0
  %4358 = vmatpush2.bf16.xpose.msra.mxu0 0
  %4359 = vmatprep.subr.bf16.mxu0 0
  %4360 = vmatpush2.bf16.xpose.msra.mxu0 0
  %4361 = vmatprep.subr.bf16.mxu0 0
  %4362 = vmatpush2.bf16.xpose.msra.mxu0 0
  %4363 = vmatprep.subr.bf16.mxu0 0
  %4364 = vmatpush2.bf16.xpose.msra.mxu0 0
  %4365 = vmatprep.mubr.bf16.mxu0 0
  %4366 = vmatmul.mubr.bf16.gmra.mxu0 %v4310
  %v4367 = vpop.f32.mrf.mxu0
  %v4368 = vadd.f32 0.0, %v4367
  %v4369 = vpop.f32.mrf.mxu0
  %v4370 = vpop.f32.mrf.mxu0
  %v4371 = vadd.f32 0.0, %v4370
  %v4372 = vpop.f32.mrf.mxu0
  %4373 = vmatprep.mubr.bf16.mxu0 0
  %4374 = vmatmul.mubr.bf16.gmra.mxu0 %v4313
  %v4375 = vpop.f32.mrf.mxu0
  %v4376 = vadd.f32 0.0, %v4375
  %v4377 = vpop.f32.mrf.mxu0
  %v4378 = vpop.f32.mrf.mxu0
  %v4379 = vadd.f32 0.0, %v4378
  %v4380 = vpop.f32.mrf.mxu0
  %4381 = vmatprep.mubr.bf16.mxu0 0
  %4382 = vmatmul.mubr.bf16.gmra.mxu0 %v4316
  %v4383 = vpop.f32.mrf.mxu0
  %v4384 = vadd.f32 0.0, %v4383
  %v4385 = vpop.f32.mrf.mxu0
  %v4386 = vpop.f32.mrf.mxu0
  %v4387 = vadd.f32 0.0, %v4386
  %v4388 = vpop.f32.mrf.mxu0
  %4389 = vmatprep.mubr.bf16.mxu0 0
  %4390 = vmatmul.mubr.bf16.gmra.mxu0 %v4319
  %v4391 = vpop.f32.mrf.mxu0
  %v4392 = vadd.f32 0.0, %v4391
  %v4393 = vpop.f32.mrf.mxu0
  %v4394 = vpop.f32.mrf.mxu0
  %v4395 = vadd.f32 0.0, %v4394
  %v4396 = vpop.f32.mrf.mxu0
  %4397 = vdwg.mxu0
  %4402 = vrot.lane.b32.xlu0 %v1298, 120
  %v4403 = vpop.permute.xlu0 %4402
  %4404 = vrot.lane.b32.xlu0 %v1299, 120
  %v4405 = vpop.permute.xlu0 %4404
  %4406 = vrot.lane.b32.xlu0 %v1300, 120
  %v4407 = vpop.permute.xlu0 %4406
  %4408 = vrot.lane.b32.xlu0 %v1301, 120
  %v4409 = vpop.permute.xlu0 %4408
  %4410 = vrot.lane.b32.xlu0 %v1930, 56
  %v4411 = vpop.permute.xlu0 %4410
  %4412 = vrot.lane.b32.xlu0 %v1931, 56
  %v4413 = vpop.permute.xlu0 %4412
  %4414 = vrot.lane.b32.xlu0 %v1932, 56
  %v4415 = vpop.permute.xlu0 %4414
  %4416 = vrot.lane.b32.xlu0 %v1933, 56
  %v4417 = vpop.permute.xlu0 %4416
  %v4419 = vsel %vm1998, %v4403, 0
  %v4422 = vsel %vm1998, %v4405, 0
  %v4425 = vsel %vm1998, %v4407, 0
  %v4428 = vsel %vm1998, %v4409, 0
  %v4431 = vsel %vm1998, %v4411, 0
  %v4434 = vsel %vm1998, %v4413, 0
  %v4437 = vsel %vm1998, %v4415, 0
  %v4440 = vsel %vm1998, %v4417, 0
  %4442 = vmatprep.subr.bf16.mxu0 0
  %4443 = vmatpush1.bf16.xpose.msra.mxu0 0
  %4444 = vmatprep.subr.bf16.mxu0 0
  %4445 = vmatpush1.bf16.xpose.msra.mxu0 0
  %4446 = vmatprep.subr.bf16.mxu0 0
  %4447 = vmatpush1.bf16.xpose.msra.mxu0 0
  %4448 = vmatprep.subr.bf16.mxu0 0
  %4449 = vmatpush1.bf16.xpose.msra.mxu0 0
  %4450 = vmatprep.subr.bf16.mxu0 0
  %4451 = vmatpush1.bf16.xpose.msra.mxu0 %v4440
  %4452 = vmatprep.subr.bf16.mxu0 0
  %4453 = vmatpush1.bf16.xpose.msra.mxu0 %v4437
  %4454 = vmatprep.subr.bf16.mxu0 0
  %4455 = vmatpush1.bf16.xpose.msra.mxu0 %v4434
  %4456 = vmatprep.subr.bf16.mxu0 0
  %4457 = vmatpush1.bf16.xpose.msra.mxu0 %v4431
  %4458 = vmatprep.subr.bf16.mxu0 0
  %4459 = vmatpush2.bf16.xpose.msra.mxu0 0
  %4460 = vmatprep.subr.bf16.mxu0 0
  %4461 = vmatpush2.bf16.xpose.msra.mxu0 0
  %4462 = vmatprep.subr.bf16.mxu0 0
  %4463 = vmatpush2.bf16.xpose.msra.mxu0 0
  %4464 = vmatprep.subr.bf16.mxu0 0
  %4465 = vmatpush2.bf16.xpose.msra.mxu0 0
  %4466 = vmatprep.subr.bf16.mxu0 0
  %4467 = vmatpush2.bf16.xpose.msra.mxu0 0
  %4468 = vmatprep.subr.bf16.mxu0 0
  %4469 = vmatpush2.bf16.xpose.msra.mxu0 0
  %4470 = vmatprep.subr.bf16.mxu0 0
  %4471 = vmatpush2.bf16.xpose.msra.mxu0 0
  %4472 = vmatprep.subr.bf16.mxu0 0
  %4473 = vmatpush2.bf16.xpose.msra.mxu0 0
  %4474 = vmatprep.mubr.bf16.mxu0 0
  %4475 = vmatmul.mubr.bf16.gmra.mxu0 %v4419
  %v4476 = vpop.f32.mrf.mxu0
  %v4477 = vadd.f32 0.0, %v4476
  %v4478 = vpop.f32.mrf.mxu0
  %v4479 = vpop.f32.mrf.mxu0
  %v4480 = vadd.f32 0.0, %v4479
  %v4481 = vpop.f32.mrf.mxu0
  %4482 = vmatprep.mubr.bf16.mxu0 0
  %4483 = vmatmul.mubr.bf16.gmra.mxu0 %v4422
  %v4484 = vpop.f32.mrf.mxu0
  %v4485 = vadd.f32 0.0, %v4484
  %v4486 = vpop.f32.mrf.mxu0
  %v4487 = vpop.f32.mrf.mxu0
  %v4488 = vadd.f32 0.0, %v4487
  %v4489 = vpop.f32.mrf.mxu0
  %4490 = vmatprep.mubr.bf16.mxu0 0
  %4491 = vmatmul.mubr.bf16.gmra.mxu0 %v4425
  %v4492 = vpop.f32.mrf.mxu0
  %v4493 = vadd.f32 0.0, %v4492
  %v4494 = vpop.f32.mrf.mxu0
  %v4495 = vpop.f32.mrf.mxu0
  %v4496 = vadd.f32 0.0, %v4495
  %v4497 = vpop.f32.mrf.mxu0
  %4498 = vmatprep.mubr.bf16.mxu0 0
  %4499 = vmatmul.mubr.bf16.gmra.mxu0 %v4428
  %v4500 = vpop.f32.mrf.mxu0
  %v4501 = vadd.f32 0.0, %v4500
  %v4502 = vpop.f32.mrf.mxu0
  %v4503 = vpop.f32.mrf.mxu0
  %v4504 = vadd.f32 0.0, %v4503
  %v4505 = vpop.f32.mrf.mxu0
  %4506 = vdwg.mxu0
  %4511 = vrot.lane.b32.xlu0 %v1302, 120
  %v4512 = vpop.permute.xlu0 %4511
  %4513 = vrot.lane.b32.xlu0 %v1303, 120
  %v4514 = vpop.permute.xlu0 %4513
  %4515 = vrot.lane.b32.xlu0 %v1304, 120
  %v4516 = vpop.permute.xlu0 %4515
  %4517 = vrot.lane.b32.xlu0 %v1305, 120
  %v4518 = vpop.permute.xlu0 %4517
  %4519 = vrot.lane.b32.xlu0 %v1934, 56
  %v4520 = vpop.permute.xlu0 %4519
  %4521 = vrot.lane.b32.xlu0 %v1935, 56
  %v4522 = vpop.permute.xlu0 %4521
  %4523 = vrot.lane.b32.xlu0 %v1936, 56
  %v4524 = vpop.permute.xlu0 %4523
  %4525 = vrot.lane.b32.xlu0 %v1937, 56
  %v4526 = vpop.permute.xlu0 %4525
  %v4528 = vsel %vm1998, %v4512, 0
  %v4531 = vsel %vm1998, %v4514, 0
  %v4534 = vsel %vm1998, %v4516, 0
  %v4537 = vsel %vm1998, %v4518, 0
  %v4540 = vsel %vm1998, %v4520, 0
  %v4543 = vsel %vm1998, %v4522, 0
  %v4546 = vsel %vm1998, %v4524, 0
  %v4549 = vsel %vm1998, %v4526, 0
  %4551 = vmatprep.subr.bf16.mxu0 0
  %4552 = vmatpush1.bf16.xpose.msra.mxu0 0
  %4553 = vmatprep.subr.bf16.mxu0 0
  %4554 = vmatpush1.bf16.xpose.msra.mxu0 0
  %4555 = vmatprep.subr.bf16.mxu0 0
  %4556 = vmatpush1.bf16.xpose.msra.mxu0 0
  %4557 = vmatprep.subr.bf16.mxu0 0
  %4558 = vmatpush1.bf16.xpose.msra.mxu0 0
  %4559 = vmatprep.subr.bf16.mxu0 0
  %4560 = vmatpush1.bf16.xpose.msra.mxu0 %v4549
  %4561 = vmatprep.subr.bf16.mxu0 0
  %4562 = vmatpush1.bf16.xpose.msra.mxu0 %v4546
  %4563 = vmatprep.subr.bf16.mxu0 0
  %4564 = vmatpush1.bf16.xpose.msra.mxu0 %v4543
  %4565 = vmatprep.subr.bf16.mxu0 0
  %4566 = vmatpush1.bf16.xpose.msra.mxu0 %v4540
  %4567 = vmatprep.subr.bf16.mxu0 0
  %4568 = vmatpush2.bf16.xpose.msra.mxu0 0
  %4569 = vmatprep.subr.bf16.mxu0 0
  %4570 = vmatpush2.bf16.xpose.msra.mxu0 0
  %4571 = vmatprep.subr.bf16.mxu0 0
  %4572 = vmatpush2.bf16.xpose.msra.mxu0 0
  %4573 = vmatprep.subr.bf16.mxu0 0
  %4574 = vmatpush2.bf16.xpose.msra.mxu0 0
  %4575 = vmatprep.subr.bf16.mxu0 0
  %4576 = vmatpush2.bf16.xpose.msra.mxu0 0
  %4577 = vmatprep.subr.bf16.mxu0 0
  %4578 = vmatpush2.bf16.xpose.msra.mxu0 0
  %4579 = vmatprep.subr.bf16.mxu0 0
  %4580 = vmatpush2.bf16.xpose.msra.mxu0 0
  %4581 = vmatprep.subr.bf16.mxu0 0
  %4582 = vmatpush2.bf16.xpose.msra.mxu0 0
  %4583 = vmatprep.mubr.bf16.mxu0 0
  %4584 = vmatmul.mubr.bf16.gmra.mxu0 %v4528
  %v4585 = vpop.f32.mrf.mxu0
  %v4586 = vadd.f32 0.0, %v4585
  %v4587 = vpop.f32.mrf.mxu0
  %v4588 = vpop.f32.mrf.mxu0
  %v4589 = vadd.f32 0.0, %v4588
  %v4590 = vpop.f32.mrf.mxu0
  %4591 = vmatprep.mubr.bf16.mxu0 0
  %4592 = vmatmul.mubr.bf16.gmra.mxu0 %v4531
  %v4593 = vpop.f32.mrf.mxu0
  %v4594 = vadd.f32 0.0, %v4593
  %v4595 = vpop.f32.mrf.mxu0
  %v4596 = vpop.f32.mrf.mxu0
  %v4597 = vadd.f32 0.0, %v4596
  %v4598 = vpop.f32.mrf.mxu0
  %4599 = vmatprep.mubr.bf16.mxu0 0
  %4600 = vmatmul.mubr.bf16.gmra.mxu0 %v4534
  %v4601 = vpop.f32.mrf.mxu0
  %v4602 = vadd.f32 0.0, %v4601
  %v4603 = vpop.f32.mrf.mxu0
  %v4604 = vpop.f32.mrf.mxu0
  %v4605 = vadd.f32 0.0, %v4604
  %v4606 = vpop.f32.mrf.mxu0
  %4607 = vmatprep.mubr.bf16.mxu0 0
  %4608 = vmatmul.mubr.bf16.gmra.mxu0 %v4537
  %v4609 = vpop.f32.mrf.mxu0
  %v4610 = vadd.f32 0.0, %v4609
  %v4611 = vpop.f32.mrf.mxu0
  %v4612 = vpop.f32.mrf.mxu0
  %v4613 = vadd.f32 0.0, %v4612
  %v4614 = vpop.f32.mrf.mxu0
  %4615 = vdwg.mxu0
  %4620 = vrot.lane.b32.xlu0 %v1306, 120
  %v4621 = vpop.permute.xlu0 %4620
  %4622 = vrot.lane.b32.xlu0 %v1307, 120
  %v4623 = vpop.permute.xlu0 %4622
  %4624 = vrot.lane.b32.xlu0 %v1308, 120
  %v4625 = vpop.permute.xlu0 %4624
  %4626 = vrot.lane.b32.xlu0 %v1309, 120
  %v4627 = vpop.permute.xlu0 %4626
  %4628 = vrot.lane.b32.xlu0 %v1938, 56
  %v4629 = vpop.permute.xlu0 %4628
  %4630 = vrot.lane.b32.xlu0 %v1939, 56
  %v4631 = vpop.permute.xlu0 %4630
  %4632 = vrot.lane.b32.xlu0 %v1940, 56
  %v4633 = vpop.permute.xlu0 %4632
  %4634 = vrot.lane.b32.xlu0 %v1941, 56
  %v4635 = vpop.permute.xlu0 %4634
  %v4637 = vsel %vm1998, %v4621, 0
  %v4640 = vsel %vm1998, %v4623, 0
  %v4643 = vsel %vm1998, %v4625, 0
  %v4646 = vsel %vm1998, %v4627, 0
  %v4649 = vsel %vm1998, %v4629, 0
  %v4652 = vsel %vm1998, %v4631, 0
  %v4655 = vsel %vm1998, %v4633, 0
  %v4658 = vsel %vm1998, %v4635, 0
  %4660 = vmatprep.subr.bf16.mxu0 0
  %4661 = vmatpush1.bf16.xpose.msra.mxu0 0
  %4662 = vmatprep.subr.bf16.mxu0 0
  %4663 = vmatpush1.bf16.xpose.msra.mxu0 0
  %4664 = vmatprep.subr.bf16.mxu0 0
  %4665 = vmatpush1.bf16.xpose.msra.mxu0 0
  %4666 = vmatprep.subr.bf16.mxu0 0
  %4667 = vmatpush1.bf16.xpose.msra.mxu0 0
  %4668 = vmatprep.subr.bf16.mxu0 0
  %4669 = vmatpush1.bf16.xpose.msra.mxu0 %v4658
  %4670 = vmatprep.subr.bf16.mxu0 0
  %4671 = vmatpush1.bf16.xpose.msra.mxu0 %v4655
  %4672 = vmatprep.subr.bf16.mxu0 0
  %4673 = vmatpush1.bf16.xpose.msra.mxu0 %v4652
  %4674 = vmatprep.subr.bf16.mxu0 0
  %4675 = vmatpush1.bf16.xpose.msra.mxu0 %v4649
  %4676 = vmatprep.subr.bf16.mxu0 0
  %4677 = vmatpush2.bf16.xpose.msra.mxu0 0
  %4678 = vmatprep.subr.bf16.mxu0 0
  %4679 = vmatpush2.bf16.xpose.msra.mxu0 0
  %4680 = vmatprep.subr.bf16.mxu0 0
  %4681 = vmatpush2.bf16.xpose.msra.mxu0 0
  %4682 = vmatprep.subr.bf16.mxu0 0
  %4683 = vmatpush2.bf16.xpose.msra.mxu0 0
  %4684 = vmatprep.subr.bf16.mxu0 0
  %4685 = vmatpush2.bf16.xpose.msra.mxu0 0
  %4686 = vmatprep.subr.bf16.mxu0 0
  %4687 = vmatpush2.bf16.xpose.msra.mxu0 0
  %4688 = vmatprep.subr.bf16.mxu0 0
  %4689 = vmatpush2.bf16.xpose.msra.mxu0 0
  %4690 = vmatprep.subr.bf16.mxu0 0
  %4691 = vmatpush2.bf16.xpose.msra.mxu0 0
  %4692 = vmatprep.mubr.bf16.mxu0 0
  %4693 = vmatmul.mubr.bf16.gmra.mxu0 %v4637
  %v4694 = vpop.f32.mrf.mxu0
  %v4695 = vadd.f32 0.0, %v4694
  %v4696 = vpop.f32.mrf.mxu0
  %v4697 = vpop.f32.mrf.mxu0
  %v4698 = vadd.f32 0.0, %v4697
  %v4699 = vpop.f32.mrf.mxu0
  %4700 = vmatprep.mubr.bf16.mxu0 0
  %4701 = vmatmul.mubr.bf16.gmra.mxu0 %v4640
  %v4702 = vpop.f32.mrf.mxu0
  %v4703 = vadd.f32 0.0, %v4702
  %v4704 = vpop.f32.mrf.mxu0
  %v4705 = vpop.f32.mrf.mxu0
  %v4706 = vadd.f32 0.0, %v4705
  %v4707 = vpop.f32.mrf.mxu0
  %4708 = vmatprep.mubr.bf16.mxu0 0
  %4709 = vmatmul.mubr.bf16.gmra.mxu0 %v4643
  %v4710 = vpop.f32.mrf.mxu0
  %v4711 = vadd.f32 0.0, %v4710
  %v4712 = vpop.f32.mrf.mxu0
  %v4713 = vpop.f32.mrf.mxu0
  %v4714 = vadd.f32 0.0, %v4713
  %v4715 = vpop.f32.mrf.mxu0
  %4716 = vmatprep.mubr.bf16.mxu0 0
  %4717 = vmatmul.mubr.bf16.gmra.mxu0 %v4646
  %v4718 = vpop.f32.mrf.mxu0
  %v4719 = vadd.f32 0.0, %v4718
  %v4720 = vpop.f32.mrf.mxu0
  %v4721 = vpop.f32.mrf.mxu0
  %v4722 = vadd.f32 0.0, %v4721
  %v4723 = vpop.f32.mrf.mxu0
  %4724 = vdwg.mxu0
  %4729 = vrot.lane.b32.xlu0 %v1310, 120
  %v4730 = vpop.permute.xlu0 %4729
  %4731 = vrot.lane.b32.xlu0 %v1311, 120
  %v4732 = vpop.permute.xlu0 %4731
  %4733 = vrot.lane.b32.xlu0 %v1312, 120
  %v4734 = vpop.permute.xlu0 %4733
  %4735 = vrot.lane.b32.xlu0 %v1313, 120
  %v4736 = vpop.permute.xlu0 %4735
  %4737 = vrot.lane.b32.xlu0 %v1942, 56
  %v4738 = vpop.permute.xlu0 %4737
  %4739 = vrot.lane.b32.xlu0 %v1943, 56
  %v4740 = vpop.permute.xlu0 %4739
  %4741 = vrot.lane.b32.xlu0 %v1944, 56
  %v4742 = vpop.permute.xlu0 %4741
  %4743 = vrot.lane.b32.xlu0 %v1945, 56
  %v4744 = vpop.permute.xlu0 %4743
  %v4746 = vsel %vm1998, %v4730, 0
  %v4749 = vsel %vm1998, %v4732, 0
  %v4752 = vsel %vm1998, %v4734, 0
  %v4755 = vsel %vm1998, %v4736, 0
  %v4758 = vsel %vm1998, %v4738, 0
  %v4761 = vsel %vm1998, %v4740, 0
  %v4764 = vsel %vm1998, %v4742, 0
  %v4767 = vsel %vm1998, %v4744, 0
  %4769 = vmatprep.subr.bf16.mxu0 0
  %4770 = vmatpush1.bf16.xpose.msra.mxu0 0
  %4771 = vmatprep.subr.bf16.mxu0 0
  %4772 = vmatpush1.bf16.xpose.msra.mxu0 0
  %4773 = vmatprep.subr.bf16.mxu0 0
  %4774 = vmatpush1.bf16.xpose.msra.mxu0 0
  %4775 = vmatprep.subr.bf16.mxu0 0
  %4776 = vmatpush1.bf16.xpose.msra.mxu0 0
  %4777 = vmatprep.subr.bf16.mxu0 0
  %4778 = vmatpush1.bf16.xpose.msra.mxu0 %v4767
  %4779 = vmatprep.subr.bf16.mxu0 0
  %4780 = vmatpush1.bf16.xpose.msra.mxu0 %v4764
  %4781 = vmatprep.subr.bf16.mxu0 0
  %4782 = vmatpush1.bf16.xpose.msra.mxu0 %v4761
  %4783 = vmatprep.subr.bf16.mxu0 0
  %4784 = vmatpush1.bf16.xpose.msra.mxu0 %v4758
  %4785 = vmatprep.subr.bf16.mxu0 0
  %4786 = vmatpush2.bf16.xpose.msra.mxu0 0
  %4787 = vmatprep.subr.bf16.mxu0 0
  %4788 = vmatpush2.bf16.xpose.msra.mxu0 0
  %4789 = vmatprep.subr.bf16.mxu0 0
  %4790 = vmatpush2.bf16.xpose.msra.mxu0 0
  %4791 = vmatprep.subr.bf16.mxu0 0
  %4792 = vmatpush2.bf16.xpose.msra.mxu0 0
  %4793 = vmatprep.subr.bf16.mxu0 0
  %4794 = vmatpush2.bf16.xpose.msra.mxu0 0
  %4795 = vmatprep.subr.bf16.mxu0 0
  %4796 = vmatpush2.bf16.xpose.msra.mxu0 0
  %4797 = vmatprep.subr.bf16.mxu0 0
  %4798 = vmatpush2.bf16.xpose.msra.mxu0 0
  %4799 = vmatprep.subr.bf16.mxu0 0
  %4800 = vmatpush2.bf16.xpose.msra.mxu0 0
  %4801 = vmatprep.mubr.bf16.mxu0 0
  %4802 = vmatmul.mubr.bf16.gmra.mxu0 %v4746
  %v4803 = vpop.f32.mrf.mxu0
  %v4804 = vadd.f32 0.0, %v4803
  %v4805 = vpop.f32.mrf.mxu0
  %v4806 = vpop.f32.mrf.mxu0
  %v4807 = vadd.f32 0.0, %v4806
  %v4808 = vpop.f32.mrf.mxu0
  %4809 = vmatprep.mubr.bf16.mxu0 0
  %4810 = vmatmul.mubr.bf16.gmra.mxu0 %v4749
  %v4811 = vpop.f32.mrf.mxu0
  %v4812 = vadd.f32 0.0, %v4811
  %v4813 = vpop.f32.mrf.mxu0
  %v4814 = vpop.f32.mrf.mxu0
  %v4815 = vadd.f32 0.0, %v4814
  %v4816 = vpop.f32.mrf.mxu0
  %4817 = vmatprep.mubr.bf16.mxu0 0
  %4818 = vmatmul.mubr.bf16.gmra.mxu0 %v4752
  %v4819 = vpop.f32.mrf.mxu0
  %v4820 = vadd.f32 0.0, %v4819
  %v4821 = vpop.f32.mrf.mxu0
  %v4822 = vpop.f32.mrf.mxu0
  %v4823 = vadd.f32 0.0, %v4822
  %v4824 = vpop.f32.mrf.mxu0
  %4825 = vmatprep.mubr.bf16.mxu0 0
  %4826 = vmatmul.mubr.bf16.gmra.mxu0 %v4755
  %v4827 = vpop.f32.mrf.mxu0
  %v4828 = vadd.f32 0.0, %v4827
  %v4829 = vpop.f32.mrf.mxu0
  %v4830 = vpop.f32.mrf.mxu0
  %v4831 = vadd.f32 0.0, %v4830
  %v4832 = vpop.f32.mrf.mxu0
  %4833 = vdwg.mxu0
  %4838 = vrot.lane.b32.xlu0 %v1314, 120
  %v4839 = vpop.permute.xlu0 %4838
  %4840 = vrot.lane.b32.xlu0 %v1315, 120
  %v4841 = vpop.permute.xlu0 %4840
  %4842 = vrot.lane.b32.xlu0 %v1316, 120
  %v4843 = vpop.permute.xlu0 %4842
  %4844 = vrot.lane.b32.xlu0 %v1317, 120
  %v4845 = vpop.permute.xlu0 %4844
  %4846 = vrot.lane.b32.xlu0 %v1946, 56
  %v4847 = vpop.permute.xlu0 %4846
  %4848 = vrot.lane.b32.xlu0 %v1947, 56
  %v4849 = vpop.permute.xlu0 %4848
  %4850 = vrot.lane.b32.xlu0 %v1948, 56
  %v4851 = vpop.permute.xlu0 %4850
  %4852 = vrot.lane.b32.xlu0 %v1949, 56
  %v4853 = vpop.permute.xlu0 %4852
  %v4855 = vsel %vm1998, %v4839, 0
  %v4858 = vsel %vm1998, %v4841, 0
  %v4861 = vsel %vm1998, %v4843, 0
  %v4864 = vsel %vm1998, %v4845, 0
  %v4867 = vsel %vm1998, %v4847, 0
  %v4870 = vsel %vm1998, %v4849, 0
  %v4873 = vsel %vm1998, %v4851, 0
  %v4876 = vsel %vm1998, %v4853, 0
  %4878 = vmatprep.subr.bf16.mxu0 0
  %4879 = vmatpush1.bf16.xpose.msra.mxu0 0
  %4880 = vmatprep.subr.bf16.mxu0 0
  %4881 = vmatpush1.bf16.xpose.msra.mxu0 0
  %4882 = vmatprep.subr.bf16.mxu0 0
  %4883 = vmatpush1.bf16.xpose.msra.mxu0 0
  %4884 = vmatprep.subr.bf16.mxu0 0
  %4885 = vmatpush1.bf16.xpose.msra.mxu0 0
  %4886 = vmatprep.subr.bf16.mxu0 0
  %4887 = vmatpush1.bf16.xpose.msra.mxu0 %v4876
  %4888 = vmatprep.subr.bf16.mxu0 0
  %4889 = vmatpush1.bf16.xpose.msra.mxu0 %v4873
  %4890 = vmatprep.subr.bf16.mxu0 0
  %4891 = vmatpush1.bf16.xpose.msra.mxu0 %v4870
  %4892 = vmatprep.subr.bf16.mxu0 0
  %4893 = vmatpush1.bf16.xpose.msra.mxu0 %v4867
  %4894 = vmatprep.subr.bf16.mxu0 0
  %4895 = vmatpush2.bf16.xpose.msra.mxu0 0
  %4896 = vmatprep.subr.bf16.mxu0 0
  %4897 = vmatpush2.bf16.xpose.msra.mxu0 0
  %4898 = vmatprep.subr.bf16.mxu0 0
  %4899 = vmatpush2.bf16.xpose.msra.mxu0 0
  %4900 = vmatprep.subr.bf16.mxu0 0
  %4901 = vmatpush2.bf16.xpose.msra.mxu0 0
  %4902 = vmatprep.subr.bf16.mxu0 0
  %4903 = vmatpush2.bf16.xpose.msra.mxu0 0
  %4904 = vmatprep.subr.bf16.mxu0 0
  %4905 = vmatpush2.bf16.xpose.msra.mxu0 0
  %4906 = vmatprep.subr.bf16.mxu0 0
  %4907 = vmatpush2.bf16.xpose.msra.mxu0 0
  %4908 = vmatprep.subr.bf16.mxu0 0
  %4909 = vmatpush2.bf16.xpose.msra.mxu0 0
  %4910 = vmatprep.mubr.bf16.mxu0 0
  %4911 = vmatmul.mubr.bf16.gmra.mxu0 %v4855
  %v4912 = vpop.f32.mrf.mxu0
  %v4913 = vadd.f32 0.0, %v4912
  %v4914 = vpop.f32.mrf.mxu0
  %v4915 = vpop.f32.mrf.mxu0
  %v4916 = vadd.f32 0.0, %v4915
  %v4917 = vpop.f32.mrf.mxu0
  %4918 = vmatprep.mubr.bf16.mxu0 0
  %4919 = vmatmul.mubr.bf16.gmra.mxu0 %v4858
  %v4920 = vpop.f32.mrf.mxu0
  %v4921 = vadd.f32 0.0, %v4920
  %v4922 = vpop.f32.mrf.mxu0
  %v4923 = vpop.f32.mrf.mxu0
  %v4924 = vadd.f32 0.0, %v4923
  %v4925 = vpop.f32.mrf.mxu0
  %4926 = vmatprep.mubr.bf16.mxu0 0
  %4927 = vmatmul.mubr.bf16.gmra.mxu0 %v4861
  %v4928 = vpop.f32.mrf.mxu0
  %v4929 = vadd.f32 0.0, %v4928
  %v4930 = vpop.f32.mrf.mxu0
  %v4931 = vpop.f32.mrf.mxu0
  %v4932 = vadd.f32 0.0, %v4931
  %v4933 = vpop.f32.mrf.mxu0
  %4934 = vmatprep.mubr.bf16.mxu0 0
  %4935 = vmatmul.mubr.bf16.gmra.mxu0 %v4864
  %v4936 = vpop.f32.mrf.mxu0
  %v4937 = vadd.f32 0.0, %v4936
  %v4938 = vpop.f32.mrf.mxu0
  %v4939 = vpop.f32.mrf.mxu0
  %v4940 = vadd.f32 0.0, %v4939
  %v4941 = vpop.f32.mrf.mxu0
  %4942 = vdwg.mxu0
  %4947 = vrot.lane.b32.xlu0 %v1318, 120
  %v4948 = vpop.permute.xlu0 %4947
  %4949 = vrot.lane.b32.xlu0 %v1319, 120
  %v4950 = vpop.permute.xlu0 %4949
  %4951 = vrot.lane.b32.xlu0 %v1320, 120
  %v4952 = vpop.permute.xlu0 %4951
  %4953 = vrot.lane.b32.xlu0 %v1321, 120
  %v4954 = vpop.permute.xlu0 %4953
  %4955 = vrot.lane.b32.xlu0 %v1950, 56
  %v4956 = vpop.permute.xlu0 %4955
  %4957 = vrot.lane.b32.xlu0 %v1951, 56
  %v4958 = vpop.permute.xlu0 %4957
  %4959 = vrot.lane.b32.xlu0 %v1952, 56
  %v4960 = vpop.permute.xlu0 %4959
  %4961 = vrot.lane.b32.xlu0 %v1953, 56
  %v4962 = vpop.permute.xlu0 %4961
  %v4964 = vsel %vm1998, %v4948, 0
  %v4967 = vsel %vm1998, %v4950, 0
  %v4970 = vsel %vm1998, %v4952, 0
  %v4973 = vsel %vm1998, %v4954, 0
  %v4976 = vsel %vm1998, %v4956, 0
  %v4979 = vsel %vm1998, %v4958, 0
  %v4982 = vsel %vm1998, %v4960, 0
  %v4985 = vsel %vm1998, %v4962, 0
  %4987 = vmatprep.subr.bf16.mxu0 0
  %4988 = vmatpush1.bf16.xpose.msra.mxu0 0
  %4989 = vmatprep.subr.bf16.mxu0 0
  %4990 = vmatpush1.bf16.xpose.msra.mxu0 0
  %4991 = vmatprep.subr.bf16.mxu0 0
  %4992 = vmatpush1.bf16.xpose.msra.mxu0 0
  %4993 = vmatprep.subr.bf16.mxu0 0
  %4994 = vmatpush1.bf16.xpose.msra.mxu0 0
  %4995 = vmatprep.subr.bf16.mxu0 0
  %4996 = vmatpush1.bf16.xpose.msra.mxu0 %v4985
  %4997 = vmatprep.subr.bf16.mxu0 0
  %4998 = vmatpush1.bf16.xpose.msra.mxu0 %v4982
  %4999 = vmatprep.subr.bf16.mxu0 0
  %5000 = vmatpush1.bf16.xpose.msra.mxu0 %v4979
  %5001 = vmatprep.subr.bf16.mxu0 0
  %5002 = vmatpush1.bf16.xpose.msra.mxu0 %v4976
  %5003 = vmatprep.subr.bf16.mxu0 0
  %5004 = vmatpush2.bf16.xpose.msra.mxu0 0
  %5005 = vmatprep.subr.bf16.mxu0 0
  %5006 = vmatpush2.bf16.xpose.msra.mxu0 0
  %5007 = vmatprep.subr.bf16.mxu0 0
  %5008 = vmatpush2.bf16.xpose.msra.mxu0 0
  %5009 = vmatprep.subr.bf16.mxu0 0
  %5010 = vmatpush2.bf16.xpose.msra.mxu0 0
  %5011 = vmatprep.subr.bf16.mxu0 0
  %5012 = vmatpush2.bf16.xpose.msra.mxu0 0
  %5013 = vmatprep.subr.bf16.mxu0 0
  %5014 = vmatpush2.bf16.xpose.msra.mxu0 0
  %5015 = vmatprep.subr.bf16.mxu0 0
  %5016 = vmatpush2.bf16.xpose.msra.mxu0 0
  %5017 = vmatprep.subr.bf16.mxu0 0
  %5018 = vmatpush2.bf16.xpose.msra.mxu0 0
  %5019 = vmatprep.mubr.bf16.mxu0 0
  %5020 = vmatmul.mubr.bf16.gmra.mxu0 %v4964
  %v5021 = vpop.f32.mrf.mxu0
  %v5022 = vadd.f32 0.0, %v5021
  %v5023 = vpop.f32.mrf.mxu0
  %v5024 = vpop.f32.mrf.mxu0
  %v5025 = vadd.f32 0.0, %v5024
  %v5026 = vpop.f32.mrf.mxu0
  %5027 = vmatprep.mubr.bf16.mxu0 0
  %5028 = vmatmul.mubr.bf16.gmra.mxu0 %v4967
  %v5029 = vpop.f32.mrf.mxu0
  %v5030 = vadd.f32 0.0, %v5029
  %v5031 = vpop.f32.mrf.mxu0
  %v5032 = vpop.f32.mrf.mxu0
  %v5033 = vadd.f32 0.0, %v5032
  %v5034 = vpop.f32.mrf.mxu0
  %5035 = vmatprep.mubr.bf16.mxu0 0
  %5036 = vmatmul.mubr.bf16.gmra.mxu0 %v4970
  %v5037 = vpop.f32.mrf.mxu0
  %v5038 = vadd.f32 0.0, %v5037
  %v5039 = vpop.f32.mrf.mxu0
  %v5040 = vpop.f32.mrf.mxu0
  %v5041 = vadd.f32 0.0, %v5040
  %v5042 = vpop.f32.mrf.mxu0
  %5043 = vmatprep.mubr.bf16.mxu0 0
  %5044 = vmatmul.mubr.bf16.gmra.mxu0 %v4973
  %v5045 = vpop.f32.mrf.mxu0
  %v5046 = vadd.f32 0.0, %v5045
  %v5047 = vpop.f32.mrf.mxu0
  %v5048 = vpop.f32.mrf.mxu0
  %v5049 = vadd.f32 0.0, %v5048
  %v5050 = vpop.f32.mrf.mxu0
  %5051 = vdwg.mxu0
  %v5052 = vsel %vm2795, %v4259, -inf
  %5053 = vmax.xlane.f32.xlu0 %v5052
  %v5054 = vpop.xlane.xlu0 %5053
  %v5055 = vsel %vm2795, %v4262, -inf
  %5056 = vmax.xlane.f32.xlu0 %v5055
  %v5057 = vpop.xlane.xlu0 %5056
  %v5058 = vsel %vm2795, %v4267, -inf
  %5059 = vmax.xlane.f32.xlu0 %v5058
  %v5060 = vpop.xlane.xlu0 %5059
  %v5061 = vsel %vm2795, %v4270, -inf
  %5062 = vmax.xlane.f32.xlu0 %v5061
  %v5063 = vpop.xlane.xlu0 %5062
  %v5064 = vsel %vm2795, %v4275, -inf
  %5065 = vmax.xlane.f32.xlu0 %v5064
  %v5066 = vpop.xlane.xlu0 %5065
  %v5067 = vsel %vm2795, %v4278, -inf
  %5068 = vmax.xlane.f32.xlu0 %v5067
  %v5069 = vpop.xlane.xlu0 %5068
  %v5070 = vsel %vm2795, %v4283, -inf
  %5071 = vmax.xlane.f32.xlu0 %v5070
  %v5072 = vpop.xlane.xlu0 %5071
  %v5073 = vsel %vm2795, %v4286, -inf
  %5074 = vmax.xlane.f32.xlu0 %v5073
  %v5075 = vpop.xlane.xlu0 %5074
  %v5076 = vsel %vm2795, %v4368, -inf
  %5077 = vmax.xlane.f32.xlu0 %v5076
  %v5078 = vpop.xlane.xlu0 %5077
  %v5079 = vsel %vm2795, %v4371, -inf
  %5080 = vmax.xlane.f32.xlu0 %v5079
  %v5081 = vpop.xlane.xlu0 %5080
  %v5082 = vsel %vm2795, %v4376, -inf
  %5083 = vmax.xlane.f32.xlu0 %v5082
  %v5084 = vpop.xlane.xlu0 %5083
  %v5085 = vsel %vm2795, %v4379, -inf
  %5086 = vmax.xlane.f32.xlu0 %v5085
  %v5087 = vpop.xlane.xlu0 %5086
  %v5088 = vsel %vm2795, %v4384, -inf
  %5089 = vmax.xlane.f32.xlu0 %v5088
  %v5090 = vpop.xlane.xlu0 %5089
  %v5091 = vsel %vm2795, %v4387, -inf
  %5092 = vmax.xlane.f32.xlu0 %v5091
  %v5093 = vpop.xlane.xlu0 %5092
  %v5094 = vsel %vm2795, %v4392, -inf
  %5095 = vmax.xlane.f32.xlu0 %v5094
  %v5096 = vpop.xlane.xlu0 %5095
  %v5097 = vsel %vm2795, %v4395, -inf
  %5098 = vmax.xlane.f32.xlu0 %v5097
  %v5099 = vpop.xlane.xlu0 %5098
  %v5100 = vsel %vm2795, %v4477, -inf
  %5101 = vmax.xlane.f32.xlu0 %v5100
  %v5102 = vpop.xlane.xlu0 %5101
  %v5103 = vsel %vm2795, %v4480, -inf
  %5104 = vmax.xlane.f32.xlu0 %v5103
  %v5105 = vpop.xlane.xlu0 %5104
  %v5106 = vsel %vm2795, %v4485, -inf
  %5107 = vmax.xlane.f32.xlu0 %v5106
  %v5108 = vpop.xlane.xlu0 %5107
  %v5109 = vsel %vm2795, %v4488, -inf
  %5110 = vmax.xlane.f32.xlu0 %v5109
  %v5111 = vpop.xlane.xlu0 %5110
  %v5112 = vsel %vm2795, %v4493, -inf
  %5113 = vmax.xlane.f32.xlu0 %v5112
  %v5114 = vpop.xlane.xlu0 %5113
  %v5115 = vsel %vm2795, %v4496, -inf
  %5116 = vmax.xlane.f32.xlu0 %v5115
  %v5117 = vpop.xlane.xlu0 %5116
  %v5118 = vsel %vm2795, %v4501, -inf
  %5119 = vmax.xlane.f32.xlu0 %v5118
  %v5120 = vpop.xlane.xlu0 %5119
  %v5121 = vsel %vm2795, %v4504, -inf
  %5122 = vmax.xlane.f32.xlu0 %v5121
  %v5123 = vpop.xlane.xlu0 %5122
  %v5124 = vsel %vm2795, %v4586, -inf
  %5125 = vmax.xlane.f32.xlu0 %v5124
  %v5126 = vpop.xlane.xlu0 %5125
  %v5127 = vsel %vm2795, %v4589, -inf
  %5128 = vmax.xlane.f32.xlu0 %v5127
  %v5129 = vpop.xlane.xlu0 %5128
  %v5130 = vsel %vm2795, %v4594, -inf
  %5131 = vmax.xlane.f32.xlu0 %v5130
  %v5132 = vpop.xlane.xlu0 %5131
  %v5133 = vsel %vm2795, %v4597, -inf
  %5134 = vmax.xlane.f32.xlu0 %v5133
  %v5135 = vpop.xlane.xlu0 %5134
  %v5136 = vsel %vm2795, %v4602, -inf
  %5137 = vmax.xlane.f32.xlu0 %v5136
  %v5138 = vpop.xlane.xlu0 %5137
  %v5139 = vsel %vm2795, %v4605, -inf
  %5140 = vmax.xlane.f32.xlu0 %v5139
  %v5141 = vpop.xlane.xlu0 %5140
  %v5142 = vsel %vm2795, %v4610, -inf
  %5143 = vmax.xlane.f32.xlu0 %v5142
  %v5144 = vpop.xlane.xlu0 %5143
  %v5145 = vsel %vm2795, %v4613, -inf
  %5146 = vmax.xlane.f32.xlu0 %v5145
  %v5147 = vpop.xlane.xlu0 %5146
  %v5148 = vsel %vm2795, %v4695, -inf
  %5149 = vmax.xlane.f32.xlu0 %v5148
  %v5150 = vpop.xlane.xlu0 %5149
  %v5151 = vsel %vm2795, %v4698, -inf
  %5152 = vmax.xlane.f32.xlu0 %v5151
  %v5153 = vpop.xlane.xlu0 %5152
  %v5154 = vsel %vm2795, %v4703, -inf
  %5155 = vmax.xlane.f32.xlu0 %v5154
  %v5156 = vpop.xlane.xlu0 %5155
  %v5157 = vsel %vm2795, %v4706, -inf
  %5158 = vmax.xlane.f32.xlu0 %v5157
  %v5159 = vpop.xlane.xlu0 %5158
  %v5160 = vsel %vm2795, %v4711, -inf
  %5161 = vmax.xlane.f32.xlu0 %v5160
  %v5162 = vpop.xlane.xlu0 %5161
  %v5163 = vsel %vm2795, %v4714, -inf
  %5164 = vmax.xlane.f32.xlu0 %v5163
  %v5165 = vpop.xlane.xlu0 %5164
  %v5166 = vsel %vm2795, %v4719, -inf
  %5167 = vmax.xlane.f32.xlu0 %v5166
  %v5168 = vpop.xlane.xlu0 %5167
  %v5169 = vsel %vm2795, %v4722, -inf
  %5170 = vmax.xlane.f32.xlu0 %v5169
  %v5171 = vpop.xlane.xlu0 %5170
  %v5172 = vsel %vm2795, %v4804, -inf
  %5173 = vmax.xlane.f32.xlu0 %v5172
  %v5174 = vpop.xlane.xlu0 %5173
  %v5175 = vsel %vm2795, %v4807, -inf
  %5176 = vmax.xlane.f32.xlu0 %v5175
  %v5177 = vpop.xlane.xlu0 %5176
  %v5178 = vsel %vm2795, %v4812, -inf
  %5179 = vmax.xlane.f32.xlu0 %v5178
  %v5180 = vpop.xlane.xlu0 %5179
  %v5181 = vsel %vm2795, %v4815, -inf
  %5182 = vmax.xlane.f32.xlu0 %v5181
  %v5183 = vpop.xlane.xlu0 %5182
  %v5184 = vsel %vm2795, %v4820, -inf
  %5185 = vmax.xlane.f32.xlu0 %v5184
  %v5186 = vpop.xlane.xlu0 %5185
  %v5187 = vsel %vm2795, %v4823, -inf
  %5188 = vmax.xlane.f32.xlu0 %v5187
  %v5189 = vpop.xlane.xlu0 %5188
  %v5190 = vsel %vm2795, %v4828, -inf
  %5191 = vmax.xlane.f32.xlu0 %v5190
  %v5192 = vpop.xlane.xlu0 %5191
  %v5193 = vsel %vm2795, %v4831, -inf
  %5194 = vmax.xlane.f32.xlu0 %v5193
  %v5195 = vpop.xlane.xlu0 %5194
  %v5196 = vsel %vm2795, %v4913, -inf
  %5197 = vmax.xlane.f32.xlu0 %v5196
  %v5198 = vpop.xlane.xlu0 %5197
  %v5199 = vsel %vm2795, %v4916, -inf
  %5200 = vmax.xlane.f32.xlu0 %v5199
  %v5201 = vpop.xlane.xlu0 %5200
  %v5202 = vsel %vm2795, %v4921, -inf
  %5203 = vmax.xlane.f32.xlu0 %v5202
  %v5204 = vpop.xlane.xlu0 %5203
  %v5205 = vsel %vm2795, %v4924, -inf
  %5206 = vmax.xlane.f32.xlu0 %v5205
  %v5207 = vpop.xlane.xlu0 %5206
  %v5208 = vsel %vm2795, %v4929, -inf
  %5209 = vmax.xlane.f32.xlu0 %v5208
  %v5210 = vpop.xlane.xlu0 %5209
  %v5211 = vsel %vm2795, %v4932, -inf
  %5212 = vmax.xlane.f32.xlu0 %v5211
  %v5213 = vpop.xlane.xlu0 %5212
  %v5214 = vsel %vm2795, %v4937, -inf
  %5215 = vmax.xlane.f32.xlu0 %v5214
  %v5216 = vpop.xlane.xlu0 %5215
  %v5217 = vsel %vm2795, %v4940, -inf
  %5218 = vmax.xlane.f32.xlu0 %v5217
  %v5219 = vpop.xlane.xlu0 %5218
  %v5220 = vsel %vm2795, %v5022, -inf
  %5221 = vmax.xlane.f32.xlu0 %v5220
  %v5222 = vpop.xlane.xlu0 %5221
  %v5223 = vsel %vm2795, %v5025, -inf
  %5224 = vmax.xlane.f32.xlu0 %v5223
  %v5225 = vpop.xlane.xlu0 %5224
  %v5226 = vsel %vm2795, %v5030, -inf
  %5227 = vmax.xlane.f32.xlu0 %v5226
  %v5228 = vpop.xlane.xlu0 %5227
  %v5229 = vsel %vm2795, %v5033, -inf
  %5230 = vmax.xlane.f32.xlu0 %v5229
  %v5231 = vpop.xlane.xlu0 %5230
  %v5232 = vsel %vm2795, %v5038, -inf
  %5233 = vmax.xlane.f32.xlu0 %v5232
  %v5234 = vpop.xlane.xlu0 %5233
  %v5235 = vsel %vm2795, %v5041, -inf
  %5236 = vmax.xlane.f32.xlu0 %v5235
  %v5237 = vpop.xlane.xlu0 %5236
  %v5238 = vsel %vm2795, %v5046, -inf
  %5239 = vmax.xlane.f32.xlu0 %v5238
  %v5240 = vpop.xlane.xlu0 %5239
  %v5241 = vsel %vm2795, %v5049, -inf
  %5242 = vmax.xlane.f32.xlu0 %v5241
  %v5243 = vpop.xlane.xlu0 %5242
  %v5244 = vsub.f32 %v4259, %v5054
  %v5245 = vsub.f32 %v4262, %v5057
  %v5246 = vsub.f32 %v4267, %v5060
  %v5247 = vsub.f32 %v4270, %v5063
  %v5248 = vsub.f32 %v4275, %v5066
  %v5249 = vsub.f32 %v4278, %v5069
  %v5250 = vsub.f32 %v4283, %v5072
  %v5251 = vsub.f32 %v4286, %v5075
  %v5252 = vsub.f32 %v4368, %v5078
  %v5253 = vsub.f32 %v4371, %v5081
  %v5254 = vsub.f32 %v4376, %v5084
  %v5255 = vsub.f32 %v4379, %v5087
  %v5256 = vsub.f32 %v4384, %v5090
  %v5257 = vsub.f32 %v4387, %v5093
  %v5258 = vsub.f32 %v4392, %v5096
  %v5259 = vsub.f32 %v4395, %v5099
  %v5260 = vsub.f32 %v4477, %v5102
  %v5261 = vsub.f32 %v4480, %v5105
  %v5262 = vsub.f32 %v4485, %v5108
  %v5263 = vsub.f32 %v4488, %v5111
  %v5264 = vsub.f32 %v4493, %v5114
  %v5265 = vsub.f32 %v4496, %v5117
  %v5266 = vsub.f32 %v4501, %v5120
  %v5267 = vsub.f32 %v4504, %v5123
  %v5268 = vsub.f32 %v4586, %v5126
  %v5269 = vsub.f32 %v4589, %v5129
  %v5270 = vsub.f32 %v4594, %v5132
  %v5271 = vsub.f32 %v4597, %v5135
  %v5272 = vsub.f32 %v4602, %v5138
  %v5273 = vsub.f32 %v4605, %v5141
  %v5274 = vsub.f32 %v4610, %v5144
  %v5275 = vsub.f32 %v4613, %v5147
  %v5276 = vsub.f32 %v4695, %v5150
  %v5277 = vsub.f32 %v4698, %v5153
  %v5278 = vsub.f32 %v4703, %v5156
  %v5279 = vsub.f32 %v4706, %v5159
  %v5280 = vsub.f32 %v4711, %v5162
  %v5281 = vsub.f32 %v4714, %v5165
  %v5282 = vsub.f32 %v4719, %v5168
  %v5283 = vsub.f32 %v4722, %v5171
  %v5284 = vsub.f32 %v4804, %v5174
  %v5285 = vsub.f32 %v4807, %v5177
  %v5286 = vsub.f32 %v4812, %v5180
  %v5287 = vsub.f32 %v4815, %v5183
  %v5288 = vsub.f32 %v4820, %v5186
  %v5289 = vsub.f32 %v4823, %v5189
  %v5290 = vsub.f32 %v4828, %v5192
  %v5291 = vsub.f32 %v4831, %v5195
  %v5292 = vsub.f32 %v4913, %v5198
  %v5293 = vsub.f32 %v4916, %v5201
  %v5294 = vsub.f32 %v4921, %v5204
  %v5295 = vsub.f32 %v4924, %v5207
  %v5296 = vsub.f32 %v4929, %v5210
  %v5297 = vsub.f32 %v4932, %v5213
  %v5298 = vsub.f32 %v4937, %v5216
  %v5299 = vsub.f32 %v4940, %v5219
  %v5300 = vsub.f32 %v5022, %v5222
  %v5301 = vsub.f32 %v5025, %v5225
  %v5302 = vsub.f32 %v5030, %v5228
  %v5303 = vsub.f32 %v5033, %v5231
  %v5304 = vsub.f32 %v5038, %v5234
  %v5305 = vsub.f32 %v5041, %v5237
  %v5306 = vsub.f32 %v5046, %v5240
  %v5307 = vsub.f32 %v5049, %v5243
  %v5308 = vmul.f32 %v5244, 1.442695
  %v5309 = vpow.pop %v5308
  %v5310 = vmul.f32 %v5245, 1.442695
  %v5311 = vpow.pop %v5310
  %v5312 = vmul.f32 %v5246, 1.442695
  %v5313 = vpow.pop %v5312
  %v5314 = vmul.f32 %v5247, 1.442695
  %v5315 = vpow.pop %v5314
  %v5316 = vmul.f32 %v5248, 1.442695
  %v5317 = vpow.pop %v5316
  %v5318 = vmul.f32 %v5249, 1.442695
  %v5319 = vpow.pop %v5318
  %v5320 = vmul.f32 %v5250, 1.442695
  %v5321 = vpow.pop %v5320
  %v5322 = vmul.f32 %v5251, 1.442695
  %v5323 = vpow.pop %v5322
  %v5324 = vmul.f32 %v5252, 1.442695
  %v5325 = vpow.pop %v5324
  %v5326 = vmul.f32 %v5253, 1.442695
  %v5327 = vpow.pop %v5326
  %v5328 = vmul.f32 %v5254, 1.442695
  %v5329 = vpow.pop %v5328
  %v5330 = vmul.f32 %v5255, 1.442695
  %v5331 = vpow.pop %v5330
  %v5332 = vmul.f32 %v5256, 1.442695
  %v5333 = vpow.pop %v5332
  %v5334 = vmul.f32 %v5257, 1.442695
  %v5335 = vpow.pop %v5334
  %v5336 = vmul.f32 %v5258, 1.442695
  %v5337 = vpow.pop %v5336
  %v5338 = vmul.f32 %v5259, 1.442695
  %v5339 = vpow.pop %v5338
  %v5340 = vmul.f32 %v5260, 1.442695
  %v5341 = vpow.pop %v5340
  %v5342 = vmul.f32 %v5261, 1.442695
  %v5343 = vpow.pop %v5342
  %v5344 = vmul.f32 %v5262, 1.442695
  %v5345 = vpow.pop %v5344
  %v5346 = vmul.f32 %v5263, 1.442695
  %v5347 = vpow.pop %v5346
  %v5348 = vmul.f32 %v5264, 1.442695
  %v5349 = vpow.pop %v5348
  %v5350 = vmul.f32 %v5265, 1.442695
  %v5351 = vpow.pop %v5350
  %v5352 = vmul.f32 %v5266, 1.442695
  %v5353 = vpow.pop %v5352
  %v5354 = vmul.f32 %v5267, 1.442695
  %v5355 = vpow.pop %v5354
  %v5356 = vmul.f32 %v5268, 1.442695
  %v5357 = vpow.pop %v5356
  %v5358 = vmul.f32 %v5269, 1.442695
  %v5359 = vpow.pop %v5358
  %v5360 = vmul.f32 %v5270, 1.442695
  %v5361 = vpow.pop %v5360
  %v5362 = vmul.f32 %v5271, 1.442695
  %v5363 = vpow.pop %v5362
  %v5364 = vmul.f32 %v5272, 1.442695
  %v5365 = vpow.pop %v5364
  %v5366 = vmul.f32 %v5273, 1.442695
  %v5367 = vpow.pop %v5366
  %v5368 = vmul.f32 %v5274, 1.442695
  %v5369 = vpow.pop %v5368
  %v5370 = vmul.f32 %v5275, 1.442695
  %v5371 = vpow.pop %v5370
  %v5372 = vmul.f32 %v5276, 1.442695
  %v5373 = vpow.pop %v5372
  %v5374 = vmul.f32 %v5277, 1.442695
  %v5375 = vpow.pop %v5374
  %v5376 = vmul.f32 %v5278, 1.442695
  %v5377 = vpow.pop %v5376
  %v5378 = vmul.f32 %v5279, 1.442695
  %v5379 = vpow.pop %v5378
  %v5380 = vmul.f32 %v5280, 1.442695
  %v5381 = vpow.pop %v5380
  %v5382 = vmul.f32 %v5281, 1.442695
  %v5383 = vpow.pop %v5382
  %v5384 = vmul.f32 %v5282, 1.442695
  %v5385 = vpow.pop %v5384
  %v5386 = vmul.f32 %v5283, 1.442695
  %v5387 = vpow.pop %v5386
  %v5388 = vmul.f32 %v5284, 1.442695
  %v5389 = vpow.pop %v5388
  %v5390 = vmul.f32 %v5285, 1.442695
  %v5391 = vpow.pop %v5390
  %v5392 = vmul.f32 %v5286, 1.442695
  %v5393 = vpow.pop %v5392
  %v5394 = vmul.f32 %v5287, 1.442695
  %v5395 = vpow.pop %v5394
  %v5396 = vmul.f32 %v5288, 1.442695
  %v5397 = vpow.pop %v5396
  %v5398 = vmul.f32 %v5289, 1.442695
  %v5399 = vpow.pop %v5398
  %v5400 = vmul.f32 %v5290, 1.442695
  %v5401 = vpow.pop %v5400
  %v5402 = vmul.f32 %v5291, 1.442695
  %v5403 = vpow.pop %v5402
  %v5404 = vmul.f32 %v5292, 1.442695
  %v5405 = vpow.pop %v5404
  %v5406 = vmul.f32 %v5293, 1.442695
  %v5407 = vpow.pop %v5406
  %v5408 = vmul.f32 %v5294, 1.442695
  %v5409 = vpow.pop %v5408
  %v5410 = vmul.f32 %v5295, 1.442695
  %v5411 = vpow.pop %v5410
  %v5412 = vmul.f32 %v5296, 1.442695
  %v5413 = vpow.pop %v5412
  %v5414 = vmul.f32 %v5297, 1.442695
  %v5415 = vpow.pop %v5414
  %v5416 = vmul.f32 %v5298, 1.442695
  %v5417 = vpow.pop %v5416
  %v5418 = vmul.f32 %v5299, 1.442695
  %v5419 = vpow.pop %v5418
  %v5420 = vmul.f32 %v5300, 1.442695
  %v5421 = vpow.pop %v5420
  %v5422 = vmul.f32 %v5301, 1.442695
  %v5423 = vpow.pop %v5422
  %v5424 = vmul.f32 %v5302, 1.442695
  %v5425 = vpow.pop %v5424
  %v5426 = vmul.f32 %v5303, 1.442695
  %v5427 = vpow.pop %v5426
  %v5428 = vmul.f32 %v5304, 1.442695
  %v5429 = vpow.pop %v5428
  %v5430 = vmul.f32 %v5305, 1.442695
  %v5431 = vpow.pop %v5430
  %v5432 = vmul.f32 %v5306, 1.442695
  %v5433 = vpow.pop %v5432
  %v5434 = vmul.f32 %v5307, 1.442695
  %v5435 = vpow.pop %v5434
  %v5436 = vsel %vm2795, %v5309, 0.0
  %5437 = vadd.xlane.f32.xlu0 %v5436
  %v5438 = vpop.xlane.xlu0 %5437
  %v5439 = vsel %vm2795, %v5311, 0.0
  %5440 = vadd.xlane.f32.xlu0 %v5439
  %v5441 = vpop.xlane.xlu0 %5440
  %v5442 = vsel %vm2795, %v5313, 0.0
  %5443 = vadd.xlane.f32.xlu0 %v5442
  %v5444 = vpop.xlane.xlu0 %5443
  %v5445 = vsel %vm2795, %v5315, 0.0
  %5446 = vadd.xlane.f32.xlu0 %v5445
  %v5447 = vpop.xlane.xlu0 %5446
  %v5448 = vsel %vm2795, %v5317, 0.0
  %5449 = vadd.xlane.f32.xlu0 %v5448
  %v5450 = vpop.xlane.xlu0 %5449
  %v5451 = vsel %vm2795, %v5319, 0.0
  %5452 = vadd.xlane.f32.xlu0 %v5451
  %v5453 = vpop.xlane.xlu0 %5452
  %v5454 = vsel %vm2795, %v5321, 0.0
  %5455 = vadd.xlane.f32.xlu0 %v5454
  %v5456 = vpop.xlane.xlu0 %5455
  %v5457 = vsel %vm2795, %v5323, 0.0
  %5458 = vadd.xlane.f32.xlu0 %v5457
  %v5459 = vpop.xlane.xlu0 %5458
  %v5460 = vsel %vm2795, %v5325, 0.0
  %5461 = vadd.xlane.f32.xlu0 %v5460
  %v5462 = vpop.xlane.xlu0 %5461
  %v5463 = vsel %vm2795, %v5327, 0.0
  %5464 = vadd.xlane.f32.xlu0 %v5463
  %v5465 = vpop.xlane.xlu0 %5464
  %v5466 = vsel %vm2795, %v5329, 0.0
  %5467 = vadd.xlane.f32.xlu0 %v5466
  %v5468 = vpop.xlane.xlu0 %5467
  %v5469 = vsel %vm2795, %v5331, 0.0
  %5470 = vadd.xlane.f32.xlu0 %v5469
  %v5471 = vpop.xlane.xlu0 %5470
  %v5472 = vsel %vm2795, %v5333, 0.0
  %5473 = vadd.xlane.f32.xlu0 %v5472
  %v5474 = vpop.xlane.xlu0 %5473
  %v5475 = vsel %vm2795, %v5335, 0.0
  %5476 = vadd.xlane.f32.xlu0 %v5475
  %v5477 = vpop.xlane.xlu0 %5476
  %v5478 = vsel %vm2795, %v5337, 0.0
  %5479 = vadd.xlane.f32.xlu0 %v5478
  %v5480 = vpop.xlane.xlu0 %5479
  %v5481 = vsel %vm2795, %v5339, 0.0
  %5482 = vadd.xlane.f32.xlu0 %v5481
  %v5483 = vpop.xlane.xlu0 %5482
  %v5484 = vsel %vm2795, %v5341, 0.0
  %5485 = vadd.xlane.f32.xlu0 %v5484
  %v5486 = vpop.xlane.xlu0 %5485
  %v5487 = vsel %vm2795, %v5343, 0.0
  %5488 = vadd.xlane.f32.xlu0 %v5487
  %v5489 = vpop.xlane.xlu0 %5488
  %v5490 = vsel %vm2795, %v5345, 0.0
  %5491 = vadd.xlane.f32.xlu0 %v5490
  %v5492 = vpop.xlane.xlu0 %5491
  %v5493 = vsel %vm2795, %v5347, 0.0
  %5494 = vadd.xlane.f32.xlu0 %v5493
  %v5495 = vpop.xlane.xlu0 %5494
  %v5496 = vsel %vm2795, %v5349, 0.0
  %5497 = vadd.xlane.f32.xlu0 %v5496
  %v5498 = vpop.xlane.xlu0 %5497
  %v5499 = vsel %vm2795, %v5351, 0.0
  %5500 = vadd.xlane.f32.xlu0 %v5499
  %v5501 = vpop.xlane.xlu0 %5500
  %v5502 = vsel %vm2795, %v5353, 0.0
  %5503 = vadd.xlane.f32.xlu0 %v5502
  %v5504 = vpop.xlane.xlu0 %5503
  %v5505 = vsel %vm2795, %v5355, 0.0
  %5506 = vadd.xlane.f32.xlu0 %v5505
  %v5507 = vpop.xlane.xlu0 %5506
  %v5508 = vsel %vm2795, %v5357, 0.0
  %5509 = vadd.xlane.f32.xlu0 %v5508
  %v5510 = vpop.xlane.xlu0 %5509
  %v5511 = vsel %vm2795, %v5359, 0.0
  %5512 = vadd.xlane.f32.xlu0 %v5511
  %v5513 = vpop.xlane.xlu0 %5512
  %v5514 = vsel %vm2795, %v5361, 0.0
  %5515 = vadd.xlane.f32.xlu0 %v5514
  %v5516 = vpop.xlane.xlu0 %5515
  %v5517 = vsel %vm2795, %v5363, 0.0
  %5518 = vadd.xlane.f32.xlu0 %v5517
  %v5519 = vpop.xlane.xlu0 %5518
  %v5520 = vsel %vm2795, %v5365, 0.0
  %5521 = vadd.xlane.f32.xlu0 %v5520
  %v5522 = vpop.xlane.xlu0 %5521
  %v5523 = vsel %vm2795, %v5367, 0.0
  %5524 = vadd.xlane.f32.xlu0 %v5523
  %v5525 = vpop.xlane.xlu0 %5524
  %v5526 = vsel %vm2795, %v5369, 0.0
  %5527 = vadd.xlane.f32.xlu0 %v5526
  %v5528 = vpop.xlane.xlu0 %5527
  %v5529 = vsel %vm2795, %v5371, 0.0
  %5530 = vadd.xlane.f32.xlu0 %v5529
  %v5531 = vpop.xlane.xlu0 %5530
  %v5532 = vsel %vm2795, %v5373, 0.0
  %5533 = vadd.xlane.f32.xlu0 %v5532
  %v5534 = vpop.xlane.xlu0 %5533
  %v5535 = vsel %vm2795, %v5375, 0.0
  %5536 = vadd.xlane.f32.xlu0 %v5535
  %v5537 = vpop.xlane.xlu0 %5536
  %v5538 = vsel %vm2795, %v5377, 0.0
  %5539 = vadd.xlane.f32.xlu0 %v5538
  %v5540 = vpop.xlane.xlu0 %5539
  %v5541 = vsel %vm2795, %v5379, 0.0
  %5542 = vadd.xlane.f32.xlu0 %v5541
  %v5543 = vpop.xlane.xlu0 %5542
  %v5544 = vsel %vm2795, %v5381, 0.0
  %5545 = vadd.xlane.f32.xlu0 %v5544
  %v5546 = vpop.xlane.xlu0 %5545
  %v5547 = vsel %vm2795, %v5383, 0.0
  %5548 = vadd.xlane.f32.xlu0 %v5547
  %v5549 = vpop.xlane.xlu0 %5548
  %v5550 = vsel %vm2795, %v5385, 0.0
  %5551 = vadd.xlane.f32.xlu0 %v5550
  %v5552 = vpop.xlane.xlu0 %5551
  %v5553 = vsel %vm2795, %v5387, 0.0
  %5554 = vadd.xlane.f32.xlu0 %v5553
  %v5555 = vpop.xlane.xlu0 %5554
  %v5556 = vsel %vm2795, %v5389, 0.0
  %5557 = vadd.xlane.f32.xlu0 %v5556
  %v5558 = vpop.xlane.xlu0 %5557
  %v5559 = vsel %vm2795, %v5391, 0.0
  %5560 = vadd.xlane.f32.xlu0 %v5559
  %v5561 = vpop.xlane.xlu0 %5560
  %v5562 = vsel %vm2795, %v5393, 0.0
  %5563 = vadd.xlane.f32.xlu0 %v5562
  %v5564 = vpop.xlane.xlu0 %5563
  %v5565 = vsel %vm2795, %v5395, 0.0
  %5566 = vadd.xlane.f32.xlu0 %v5565
  %v5567 = vpop.xlane.xlu0 %5566
  %v5568 = vsel %vm2795, %v5397, 0.0
  %5569 = vadd.xlane.f32.xlu0 %v5568
  %v5570 = vpop.xlane.xlu0 %5569
  %v5571 = vsel %vm2795, %v5399, 0.0
  %5572 = vadd.xlane.f32.xlu0 %v5571
  %v5573 = vpop.xlane.xlu0 %5572
  %v5574 = vsel %vm2795, %v5401, 0.0
  %5575 = vadd.xlane.f32.xlu0 %v5574
  %v5576 = vpop.xlane.xlu0 %5575
  %v5577 = vsel %vm2795, %v5403, 0.0
  %5578 = vadd.xlane.f32.xlu0 %v5577
  %v5579 = vpop.xlane.xlu0 %5578
  %v5580 = vsel %vm2795, %v5405, 0.0
  %5581 = vadd.xlane.f32.xlu0 %v5580
  %v5582 = vpop.xlane.xlu0 %5581
  %v5583 = vsel %vm2795, %v5407, 0.0
  %5584 = vadd.xlane.f32.xlu0 %v5583
  %v5585 = vpop.xlane.xlu0 %5584
  %v5586 = vsel %vm2795, %v5409, 0.0
  %5587 = vadd.xlane.f32.xlu0 %v5586
  %v5588 = vpop.xlane.xlu0 %5587
  %v5589 = vsel %vm2795, %v5411, 0.0
  %5590 = vadd.xlane.f32.xlu0 %v5589
  %v5591 = vpop.xlane.xlu0 %5590
  %v5592 = vsel %vm2795, %v5413, 0.0
  %5593 = vadd.xlane.f32.xlu0 %v5592
  %v5594 = vpop.xlane.xlu0 %5593
  %v5595 = vsel %vm2795, %v5415, 0.0
  %5596 = vadd.xlane.f32.xlu0 %v5595
  %v5597 = vpop.xlane.xlu0 %5596
  %v5598 = vsel %vm2795, %v5417, 0.0
  %5599 = vadd.xlane.f32.xlu0 %v5598
  %v5600 = vpop.xlane.xlu0 %5599
  %v5601 = vsel %vm2795, %v5419, 0.0
  %5602 = vadd.xlane.f32.xlu0 %v5601
  %v5603 = vpop.xlane.xlu0 %5602
  %v5604 = vsel %vm2795, %v5421, 0.0
  %5605 = vadd.xlane.f32.xlu0 %v5604
  %v5606 = vpop.xlane.xlu0 %5605
  %v5607 = vsel %vm2795, %v5423, 0.0
  %5608 = vadd.xlane.f32.xlu0 %v5607
  %v5609 = vpop.xlane.xlu0 %5608
  %v5610 = vsel %vm2795, %v5425, 0.0
  %5611 = vadd.xlane.f32.xlu0 %v5610
  %v5612 = vpop.xlane.xlu0 %5611
  %v5613 = vsel %vm2795, %v5427, 0.0
  %5614 = vadd.xlane.f32.xlu0 %v5613
  %v5615 = vpop.xlane.xlu0 %5614
  %v5616 = vsel %vm2795, %v5429, 0.0
  %5617 = vadd.xlane.f32.xlu0 %v5616
  %v5618 = vpop.xlane.xlu0 %5617
  %v5619 = vsel %vm2795, %v5431, 0.0
  %5620 = vadd.xlane.f32.xlu0 %v5619
  %v5621 = vpop.xlane.xlu0 %5620
  %v5622 = vsel %vm2795, %v5433, 0.0
  %5623 = vadd.xlane.f32.xlu0 %v5622
  %v5624 = vpop.xlane.xlu0 %5623
  %v5625 = vsel %vm2795, %v5435, 0.0
  %5626 = vadd.xlane.f32.xlu0 %v5625
  %v5627 = vpop.xlane.xlu0 %5626
  %v5628 = vrcp.pop %v5438
  %v5629 = vrcp.pop %v5441
  %v5630 = vrcp.pop %v5444
  %v5631 = vrcp.pop %v5447
  %v5632 = vrcp.pop %v5450
  %v5633 = vrcp.pop %v5453
  %v5634 = vrcp.pop %v5456
  %v5635 = vrcp.pop %v5459
  %v5636 = vrcp.pop %v5462
  %v5637 = vrcp.pop %v5465
  %v5638 = vrcp.pop %v5468
  %v5639 = vrcp.pop %v5471
  %v5640 = vrcp.pop %v5474
  %v5641 = vrcp.pop %v5477
  %v5642 = vrcp.pop %v5480
  %v5643 = vrcp.pop %v5483
  %v5644 = vrcp.pop %v5486
  %v5645 = vrcp.pop %v5489
  %v5646 = vrcp.pop %v5492
  %v5647 = vrcp.pop %v5495
  %v5648 = vrcp.pop %v5498
  %v5649 = vrcp.pop %v5501
  %v5650 = vrcp.pop %v5504
  %v5651 = vrcp.pop %v5507
  %v5652 = vrcp.pop %v5510
  %v5653 = vrcp.pop %v5513
  %v5654 = vrcp.pop %v5516
  %v5655 = vrcp.pop %v5519
  %v5656 = vrcp.pop %v5522
  %v5657 = vrcp.pop %v5525
  %v5658 = vrcp.pop %v5528
  %v5659 = vrcp.pop %v5531
  %v5660 = vrcp.pop %v5534
  %v5661 = vrcp.pop %v5537
  %v5662 = vrcp.pop %v5540
  %v5663 = vrcp.pop %v5543
  %v5664 = vrcp.pop %v5546
  %v5665 = vrcp.pop %v5549
  %v5666 = vrcp.pop %v5552
  %v5667 = vrcp.pop %v5555
  %v5668 = vrcp.pop %v5558
  %v5669 = vrcp.pop %v5561
  %v5670 = vrcp.pop %v5564
  %v5671 = vrcp.pop %v5567
  %v5672 = vrcp.pop %v5570
  %v5673 = vrcp.pop %v5573
  %v5674 = vrcp.pop %v5576
  %v5675 = vrcp.pop %v5579
  %v5676 = vrcp.pop %v5582
  %v5677 = vrcp.pop %v5585
  %v5678 = vrcp.pop %v5588
  %v5679 = vrcp.pop %v5591
  %v5680 = vrcp.pop %v5594
  %v5681 = vrcp.pop %v5597
  %v5682 = vrcp.pop %v5600
  %v5683 = vrcp.pop %v5603
  %v5684 = vrcp.pop %v5606
  %v5685 = vrcp.pop %v5609
  %v5686 = vrcp.pop %v5612
  %v5687 = vrcp.pop %v5615
  %v5688 = vrcp.pop %v5618
  %v5689 = vrcp.pop %v5621
  %v5690 = vrcp.pop %v5624
  %v5691 = vrcp.pop %v5627
  %v5692 = vmul.f32 %v5309, %v5628
  %v5693 = vmul.f32 %v5311, %v5629
  %v5694 = vmul.f32 %v5313, %v5630
  %v5695 = vmul.f32 %v5315, %v5631
  %v5696 = vmul.f32 %v5317, %v5632
  %v5697 = vmul.f32 %v5319, %v5633
  %v5698 = vmul.f32 %v5321, %v5634
  %v5699 = vmul.f32 %v5323, %v5635
  %v5700 = vmul.f32 %v5325, %v5636
  %v5701 = vmul.f32 %v5327, %v5637
  %v5702 = vmul.f32 %v5329, %v5638
  %v5703 = vmul.f32 %v5331, %v5639
  %v5704 = vmul.f32 %v5333, %v5640
  %v5705 = vmul.f32 %v5335, %v5641
  %v5706 = vmul.f32 %v5337, %v5642
  %v5707 = vmul.f32 %v5339, %v5643
  %v5708 = vmul.f32 %v5341, %v5644
  %v5709 = vmul.f32 %v5343, %v5645
  %v5710 = vmul.f32 %v5345, %v5646
  %v5711 = vmul.f32 %v5347, %v5647
  %v5712 = vmul.f32 %v5349, %v5648
  %v5713 = vmul.f32 %v5351, %v5649
  %v5714 = vmul.f32 %v5353, %v5650
  %v5715 = vmul.f32 %v5355, %v5651
  %v5716 = vmul.f32 %v5357, %v5652
  %v5717 = vmul.f32 %v5359, %v5653
  %v5718 = vmul.f32 %v5361, %v5654
  %v5719 = vmul.f32 %v5363, %v5655
  %v5720 = vmul.f32 %v5365, %v5656
  %v5721 = vmul.f32 %v5367, %v5657
  %v5722 = vmul.f32 %v5369, %v5658
  %v5723 = vmul.f32 %v5371, %v5659
  %v5724 = vmul.f32 %v5373, %v5660
  %v5725 = vmul.f32 %v5375, %v5661
  %v5726 = vmul.f32 %v5377, %v5662
  %v5727 = vmul.f32 %v5379, %v5663
  %v5728 = vmul.f32 %v5381, %v5664
  %v5729 = vmul.f32 %v5383, %v5665
  %v5730 = vmul.f32 %v5385, %v5666
  %v5731 = vmul.f32 %v5387, %v5667
  %v5732 = vmul.f32 %v5389, %v5668
  %v5733 = vmul.f32 %v5391, %v5669
  %v5734 = vmul.f32 %v5393, %v5670
  %v5735 = vmul.f32 %v5395, %v5671
  %v5736 = vmul.f32 %v5397, %v5672
  %v5737 = vmul.f32 %v5399, %v5673
  %v5738 = vmul.f32 %v5401, %v5674
  %v5739 = vmul.f32 %v5403, %v5675
  %v5740 = vmul.f32 %v5405, %v5676
  %v5741 = vmul.f32 %v5407, %v5677
  %v5742 = vmul.f32 %v5409, %v5678
  %v5743 = vmul.f32 %v5411, %v5679
  %v5744 = vmul.f32 %v5413, %v5680
  %v5745 = vmul.f32 %v5415, %v5681
  %v5746 = vmul.f32 %v5417, %v5682
  %v5747 = vmul.f32 %v5419, %v5683
  %v5748 = vmul.f32 %v5421, %v5684
  %v5749 = vmul.f32 %v5423, %v5685
  %v5750 = vmul.f32 %v5425, %v5686
  %v5751 = vmul.f32 %v5427, %v5687
  %v5752 = vmul.f32 %v5429, %v5688
  %v5753 = vmul.f32 %v5431, %v5689
  %v5754 = vmul.f32 %v5433, %v5690
  %v5755 = vmul.f32 %v5435, %v5691
  %v5756 = vpack.c.bf16 %v5693, %v5692
  %v5757 = vpack.c.bf16 %v5695, %v5694
  %v5758 = vpack.c.bf16 %v5697, %v5696
  %v5759 = vpack.c.bf16 %v5699, %v5698
  %v5760 = vpack.c.bf16 %v5701, %v5700
  %v5761 = vpack.c.bf16 %v5703, %v5702
  %v5762 = vpack.c.bf16 %v5705, %v5704
  %v5763 = vpack.c.bf16 %v5707, %v5706
  %v5764 = vpack.c.bf16 %v5709, %v5708
  %v5765 = vpack.c.bf16 %v5711, %v5710
  %v5766 = vpack.c.bf16 %v5713, %v5712
  %v5767 = vpack.c.bf16 %v5715, %v5714
  %v5768 = vpack.c.bf16 %v5717, %v5716
  %v5769 = vpack.c.bf16 %v5719, %v5718
  %v5770 = vpack.c.bf16 %v5721, %v5720
  %v5771 = vpack.c.bf16 %v5723, %v5722
  %v5772 = vpack.c.bf16 %v5725, %v5724
  %v5773 = vpack.c.bf16 %v5727, %v5726
  %v5774 = vpack.c.bf16 %v5729, %v5728
  %v5775 = vpack.c.bf16 %v5731, %v5730
  %v5776 = vpack.c.bf16 %v5733, %v5732
  %v5777 = vpack.c.bf16 %v5735, %v5734
  %v5778 = vpack.c.bf16 %v5737, %v5736
  %v5779 = vpack.c.bf16 %v5739, %v5738
  %v5780 = vpack.c.bf16 %v5741, %v5740
  %v5781 = vpack.c.bf16 %v5743, %v5742
  %v5782 = vpack.c.bf16 %v5745, %v5744
  %v5783 = vpack.c.bf16 %v5747, %v5746
  %v5784 = vpack.c.bf16 %v5749, %v5748
  %v5785 = vpack.c.bf16 %v5751, %v5750
  %v5786 = vpack.c.bf16 %v5753, %v5752
  %v5787 = vpack.c.bf16 %v5755, %v5754
  %5792 = vrot.lane.b32.xlu0 %v1954, 120
  %v5793 = vpop.permute.xlu0 %5792
  %5794 = vrot.lane.b32.xlu0 %v1955, 120
  %v5795 = vpop.permute.xlu0 %5794
  %5796 = vrot.lane.b32.xlu0 %v1956, 120
  %v5797 = vpop.permute.xlu0 %5796
  %5798 = vrot.lane.b32.xlu0 %v1957, 120
  %v5799 = vpop.permute.xlu0 %5798
  %v5805 = vsel %vm2795, %v5756, 0
  %v5808 = vsel %vm2795, %v5757, 0
  %v5811 = vsel %vm2795, %v5758, 0
  %v5814 = vsel %vm2795, %v5759, 0
  %5816 = vmatprep.subr.bf16.mxu0 0
  %5817 = vmatpush1.bf16.msra.mxu0 0
  %5818 = vmatprep.subr.bf16.mxu0 0
  %5819 = vmatpush1.bf16.msra.mxu0 0
  %5820 = vmatprep.subr.bf16.mxu0 0
  %5821 = vmatpush1.bf16.msra.mxu0 0
  %5822 = vmatprep.subr.bf16.mxu0 0
  %5823 = vmatpush1.bf16.msra.mxu0 0
  %5824 = vmatprep.subr.bf16.mxu0 0
  %5825 = vmatpush1.bf16.msra.mxu0 %v5799
  %5826 = vmatprep.subr.bf16.mxu0 0
  %5827 = vmatpush1.bf16.msra.mxu0 %v5797
  %5828 = vmatprep.subr.bf16.mxu0 0
  %5829 = vmatpush1.bf16.msra.mxu0 %v5795
  %5830 = vmatprep.subr.bf16.mxu0 0
  %5831 = vmatpush1.bf16.msra.mxu0 %v5793
  %5832 = vmatprep.subr.bf16.mxu0 0
  %5833 = vmatpush2.bf16.msra.mxu0 0
  %5834 = vmatprep.subr.bf16.mxu0 0
  %5835 = vmatpush2.bf16.msra.mxu0 0
  %5836 = vmatprep.subr.bf16.mxu0 0
  %5837 = vmatpush2.bf16.msra.mxu0 0
  %5838 = vmatprep.subr.bf16.mxu0 0
  %5839 = vmatpush2.bf16.msra.mxu0 0
  %5840 = vmatprep.subr.bf16.mxu0 0
  %5841 = vmatpush2.bf16.msra.mxu0 0
  %5842 = vmatprep.subr.bf16.mxu0 0
  %5843 = vmatpush2.bf16.msra.mxu0 0
  %5844 = vmatprep.subr.bf16.mxu0 0
  %5845 = vmatpush2.bf16.msra.mxu0 0
  %5846 = vmatprep.subr.bf16.mxu0 0
  %5847 = vmatpush2.bf16.msra.mxu0 0
  %5848 = vmatprep.mubr.bf16.mxu0 0
  %5849 = vmatmul.mubr.bf16.gmra.mxu0 %v5805
  %v5850 = vpop.f32.mrf.mxu0
  %v5851 = vadd.f32 0.0, %v5850
  %v5852 = vpop.f32.mrf.mxu0
  %v5853 = vpop.f32.mrf.mxu0
  %v5854 = vadd.f32 0.0, %v5853
  %v5855 = vpop.f32.mrf.mxu0
  %5856 = vmatprep.mubr.bf16.mxu0 0
  %5857 = vmatmul.mubr.bf16.gmra.mxu0 %v5808
  %v5858 = vpop.f32.mrf.mxu0
  %v5859 = vadd.f32 0.0, %v5858
  %v5860 = vpop.f32.mrf.mxu0
  %v5861 = vpop.f32.mrf.mxu0
  %v5862 = vadd.f32 0.0, %v5861
  %v5863 = vpop.f32.mrf.mxu0
  %5864 = vmatprep.mubr.bf16.mxu0 0
  %5865 = vmatmul.mubr.bf16.gmra.mxu0 %v5811
  %v5866 = vpop.f32.mrf.mxu0
  %v5867 = vadd.f32 0.0, %v5866
  %v5868 = vpop.f32.mrf.mxu0
  %v5869 = vpop.f32.mrf.mxu0
  %v5870 = vadd.f32 0.0, %v5869
  %v5871 = vpop.f32.mrf.mxu0
  %5872 = vmatprep.mubr.bf16.mxu0 0
  %5873 = vmatmul.mubr.bf16.gmra.mxu0 %v5814
  %v5874 = vpop.f32.mrf.mxu0
  %v5875 = vadd.f32 0.0, %v5874
  %v5876 = vpop.f32.mrf.mxu0
  %v5877 = vpop.f32.mrf.mxu0
  %v5878 = vadd.f32 0.0, %v5877
  %v5879 = vpop.f32.mrf.mxu0
  %5880 = vdwg.mxu0
  %5885 = vrot.lane.b32.xlu0 %v1958, 120
  %v5886 = vpop.permute.xlu0 %5885
  %5887 = vrot.lane.b32.xlu0 %v1959, 120
  %v5888 = vpop.permute.xlu0 %5887
  %5889 = vrot.lane.b32.xlu0 %v1960, 120
  %v5890 = vpop.permute.xlu0 %5889
  %5891 = vrot.lane.b32.xlu0 %v1961, 120
  %v5892 = vpop.permute.xlu0 %5891
  %v5898 = vsel %vm2795, %v5760, 0
  %v5901 = vsel %vm2795, %v5761, 0
  %v5904 = vsel %vm2795, %v5762, 0
  %v5907 = vsel %vm2795, %v5763, 0
  %5909 = vmatprep.subr.bf16.mxu0 0
  %5910 = vmatpush1.bf16.msra.mxu0 0
  %5911 = vmatprep.subr.bf16.mxu0 0
  %5912 = vmatpush1.bf16.msra.mxu0 0
  %5913 = vmatprep.subr.bf16.mxu0 0
  %5914 = vmatpush1.bf16.msra.mxu0 0
  %5915 = vmatprep.subr.bf16.mxu0 0
  %5916 = vmatpush1.bf16.msra.mxu0 0
  %5917 = vmatprep.subr.bf16.mxu0 0
  %5918 = vmatpush1.bf16.msra.mxu0 %v5892
  %5919 = vmatprep.subr.bf16.mxu0 0
  %5920 = vmatpush1.bf16.msra.mxu0 %v5890
  %5921 = vmatprep.subr.bf16.mxu0 0
  %5922 = vmatpush1.bf16.msra.mxu0 %v5888
  %5923 = vmatprep.subr.bf16.mxu0 0
  %5924 = vmatpush1.bf16.msra.mxu0 %v5886
  %5925 = vmatprep.subr.bf16.mxu0 0
  %5926 = vmatpush2.bf16.msra.mxu0 0
  %5927 = vmatprep.subr.bf16.mxu0 0
  %5928 = vmatpush2.bf16.msra.mxu0 0
  %5929 = vmatprep.subr.bf16.mxu0 0
  %5930 = vmatpush2.bf16.msra.mxu0 0
  %5931 = vmatprep.subr.bf16.mxu0 0
  %5932 = vmatpush2.bf16.msra.mxu0 0
  %5933 = vmatprep.subr.bf16.mxu0 0
  %5934 = vmatpush2.bf16.msra.mxu0 0
  %5935 = vmatprep.subr.bf16.mxu0 0
  %5936 = vmatpush2.bf16.msra.mxu0 0
  %5937 = vmatprep.subr.bf16.mxu0 0
  %5938 = vmatpush2.bf16.msra.mxu0 0
  %5939 = vmatprep.subr.bf16.mxu0 0
  %5940 = vmatpush2.bf16.msra.mxu0 0
  %5941 = vmatprep.mubr.bf16.mxu0 0
  %5942 = vmatmul.mubr.bf16.gmra.mxu0 %v5898
  %v5943 = vpop.f32.mrf.mxu0
  %v5944 = vadd.f32 0.0, %v5943
  %v5945 = vpop.f32.mrf.mxu0
  %v5946 = vpop.f32.mrf.mxu0
  %v5947 = vadd.f32 0.0, %v5946
  %v5948 = vpop.f32.mrf.mxu0
  %5949 = vmatprep.mubr.bf16.mxu0 0
  %5950 = vmatmul.mubr.bf16.gmra.mxu0 %v5901
  %v5951 = vpop.f32.mrf.mxu0
  %v5952 = vadd.f32 0.0, %v5951
  %v5953 = vpop.f32.mrf.mxu0
  %v5954 = vpop.f32.mrf.mxu0
  %v5955 = vadd.f32 0.0, %v5954
  %v5956 = vpop.f32.mrf.mxu0
  %5957 = vmatprep.mubr.bf16.mxu0 0
  %5958 = vmatmul.mubr.bf16.gmra.mxu0 %v5904
  %v5959 = vpop.f32.mrf.mxu0
  %v5960 = vadd.f32 0.0, %v5959
  %v5961 = vpop.f32.mrf.mxu0
  %v5962 = vpop.f32.mrf.mxu0
  %v5963 = vadd.f32 0.0, %v5962
  %v5964 = vpop.f32.mrf.mxu0
  %5965 = vmatprep.mubr.bf16.mxu0 0
  %5966 = vmatmul.mubr.bf16.gmra.mxu0 %v5907
  %v5967 = vpop.f32.mrf.mxu0
  %v5968 = vadd.f32 0.0, %v5967
  %v5969 = vpop.f32.mrf.mxu0
  %v5970 = vpop.f32.mrf.mxu0
  %v5971 = vadd.f32 0.0, %v5970
  %v5972 = vpop.f32.mrf.mxu0
  %5973 = vdwg.mxu0
  %5978 = vrot.lane.b32.xlu0 %v1962, 120
  %v5979 = vpop.permute.xlu0 %5978
  %5980 = vrot.lane.b32.xlu0 %v1963, 120
  %v5981 = vpop.permute.xlu0 %5980
  %5982 = vrot.lane.b32.xlu0 %v1964, 120
  %v5983 = vpop.permute.xlu0 %5982
  %5984 = vrot.lane.b32.xlu0 %v1965, 120
  %v5985 = vpop.permute.xlu0 %5984
  %v5991 = vsel %vm2795, %v5764, 0
  %v5994 = vsel %vm2795, %v5765, 0
  %v5997 = vsel %vm2795, %v5766, 0
  %v6000 = vsel %vm2795, %v5767, 0
  %6002 = vmatprep.subr.bf16.mxu0 0
  %6003 = vmatpush1.bf16.msra.mxu0 0
  %6004 = vmatprep.subr.bf16.mxu0 0
  %6005 = vmatpush1.bf16.msra.mxu0 0
  %6006 = vmatprep.subr.bf16.mxu0 0
  %6007 = vmatpush1.bf16.msra.mxu0 0
  %6008 = vmatprep.subr.bf16.mxu0 0
  %6009 = vmatpush1.bf16.msra.mxu0 0
  %6010 = vmatprep.subr.bf16.mxu0 0
  %6011 = vmatpush1.bf16.msra.mxu0 %v5985
  %6012 = vmatprep.subr.bf16.mxu0 0
  %6013 = vmatpush1.bf16.msra.mxu0 %v5983
  %6014 = vmatprep.subr.bf16.mxu0 0
  %6015 = vmatpush1.bf16.msra.mxu0 %v5981
  %6016 = vmatprep.subr.bf16.mxu0 0
  %6017 = vmatpush1.bf16.msra.mxu0 %v5979
  %6018 = vmatprep.subr.bf16.mxu0 0
  %6019 = vmatpush2.bf16.msra.mxu0 0
  %6020 = vmatprep.subr.bf16.mxu0 0
  %6021 = vmatpush2.bf16.msra.mxu0 0
  %6022 = vmatprep.subr.bf16.mxu0 0
  %6023 = vmatpush2.bf16.msra.mxu0 0
  %6024 = vmatprep.subr.bf16.mxu0 0
  %6025 = vmatpush2.bf16.msra.mxu0 0
  %6026 = vmatprep.subr.bf16.mxu0 0
  %6027 = vmatpush2.bf16.msra.mxu0 0
  %6028 = vmatprep.subr.bf16.mxu0 0
  %6029 = vmatpush2.bf16.msra.mxu0 0
  %6030 = vmatprep.subr.bf16.mxu0 0
  %6031 = vmatpush2.bf16.msra.mxu0 0
  %6032 = vmatprep.subr.bf16.mxu0 0
  %6033 = vmatpush2.bf16.msra.mxu0 0
  %6034 = vmatprep.mubr.bf16.mxu0 0
  %6035 = vmatmul.mubr.bf16.gmra.mxu0 %v5991
  %v6036 = vpop.f32.mrf.mxu0
  %v6037 = vadd.f32 0.0, %v6036
  %v6038 = vpop.f32.mrf.mxu0
  %v6039 = vpop.f32.mrf.mxu0
  %v6040 = vadd.f32 0.0, %v6039
  %v6041 = vpop.f32.mrf.mxu0
  %6042 = vmatprep.mubr.bf16.mxu0 0
  %6043 = vmatmul.mubr.bf16.gmra.mxu0 %v5994
  %v6044 = vpop.f32.mrf.mxu0
  %v6045 = vadd.f32 0.0, %v6044
  %v6046 = vpop.f32.mrf.mxu0
  %v6047 = vpop.f32.mrf.mxu0
  %v6048 = vadd.f32 0.0, %v6047
  %v6049 = vpop.f32.mrf.mxu0
  %6050 = vmatprep.mubr.bf16.mxu0 0
  %6051 = vmatmul.mubr.bf16.gmra.mxu0 %v5997
  %v6052 = vpop.f32.mrf.mxu0
  %v6053 = vadd.f32 0.0, %v6052
  %v6054 = vpop.f32.mrf.mxu0
  %v6055 = vpop.f32.mrf.mxu0
  %v6056 = vadd.f32 0.0, %v6055
  %v6057 = vpop.f32.mrf.mxu0
  %6058 = vmatprep.mubr.bf16.mxu0 0
  %6059 = vmatmul.mubr.bf16.gmra.mxu0 %v6000
  %v6060 = vpop.f32.mrf.mxu0
  %v6061 = vadd.f32 0.0, %v6060
  %v6062 = vpop.f32.mrf.mxu0
  %v6063 = vpop.f32.mrf.mxu0
  %v6064 = vadd.f32 0.0, %v6063
  %v6065 = vpop.f32.mrf.mxu0
  %6066 = vdwg.mxu0
  %6071 = vrot.lane.b32.xlu0 %v1966, 120
  %v6072 = vpop.permute.xlu0 %6071
  %6073 = vrot.lane.b32.xlu0 %v1967, 120
  %v6074 = vpop.permute.xlu0 %6073
  %6075 = vrot.lane.b32.xlu0 %v1968, 120
  %v6076 = vpop.permute.xlu0 %6075
  %6077 = vrot.lane.b32.xlu0 %v1969, 120
  %v6078 = vpop.permute.xlu0 %6077
  %v6084 = vsel %vm2795, %v5768, 0
  %v6087 = vsel %vm2795, %v5769, 0
  %v6090 = vsel %vm2795, %v5770, 0
  %v6093 = vsel %vm2795, %v5771, 0
  %6095 = vmatprep.subr.bf16.mxu0 0
  %6096 = vmatpush1.bf16.msra.mxu0 0
  %6097 = vmatprep.subr.bf16.mxu0 0
  %6098 = vmatpush1.bf16.msra.mxu0 0
  %6099 = vmatprep.subr.bf16.mxu0 0
  %6100 = vmatpush1.bf16.msra.mxu0 0
  %6101 = vmatprep.subr.bf16.mxu0 0
  %6102 = vmatpush1.bf16.msra.mxu0 0
  %6103 = vmatprep.subr.bf16.mxu0 0
  %6104 = vmatpush1.bf16.msra.mxu0 %v6078
  %6105 = vmatprep.subr.bf16.mxu0 0
  %6106 = vmatpush1.bf16.msra.mxu0 %v6076
  %6107 = vmatprep.subr.bf16.mxu0 0
  %6108 = vmatpush1.bf16.msra.mxu0 %v6074
  %6109 = vmatprep.subr.bf16.mxu0 0
  %6110 = vmatpush1.bf16.msra.mxu0 %v6072
  %6111 = vmatprep.subr.bf16.mxu0 0
  %6112 = vmatpush2.bf16.msra.mxu0 0
  %6113 = vmatprep.subr.bf16.mxu0 0
  %6114 = vmatpush2.bf16.msra.mxu0 0
  %6115 = vmatprep.subr.bf16.mxu0 0
  %6116 = vmatpush2.bf16.msra.mxu0 0
  %6117 = vmatprep.subr.bf16.mxu0 0
  %6118 = vmatpush2.bf16.msra.mxu0 0
  %6119 = vmatprep.subr.bf16.mxu0 0
  %6120 = vmatpush2.bf16.msra.mxu0 0
  %6121 = vmatprep.subr.bf16.mxu0 0
  %6122 = vmatpush2.bf16.msra.mxu0 0
  %6123 = vmatprep.subr.bf16.mxu0 0
  %6124 = vmatpush2.bf16.msra.mxu0 0
  %6125 = vmatprep.subr.bf16.mxu0 0
  %6126 = vmatpush2.bf16.msra.mxu0 0
  %6127 = vmatprep.mubr.bf16.mxu0 0
  %6128 = vmatmul.mubr.bf16.gmra.mxu0 %v6084
  %v6129 = vpop.f32.mrf.mxu0
  %v6130 = vadd.f32 0.0, %v6129
  %v6131 = vpop.f32.mrf.mxu0
  %v6132 = vpop.f32.mrf.mxu0
  %v6133 = vadd.f32 0.0, %v6132
  %v6134 = vpop.f32.mrf.mxu0
  %6135 = vmatprep.mubr.bf16.mxu0 0
  %6136 = vmatmul.mubr.bf16.gmra.mxu0 %v6087
  %v6137 = vpop.f32.mrf.mxu0
  %v6138 = vadd.f32 0.0, %v6137
  %v6139 = vpop.f32.mrf.mxu0
  %v6140 = vpop.f32.mrf.mxu0
  %v6141 = vadd.f32 0.0, %v6140
  %v6142 = vpop.f32.mrf.mxu0
  %6143 = vmatprep.mubr.bf16.mxu0 0
  %6144 = vmatmul.mubr.bf16.gmra.mxu0 %v6090
  %v6145 = vpop.f32.mrf.mxu0
  %v6146 = vadd.f32 0.0, %v6145
  %v6147 = vpop.f32.mrf.mxu0
  %v6148 = vpop.f32.mrf.mxu0
  %v6149 = vadd.f32 0.0, %v6148
  %v6150 = vpop.f32.mrf.mxu0
  %6151 = vmatprep.mubr.bf16.mxu0 0
  %6152 = vmatmul.mubr.bf16.gmra.mxu0 %v6093
  %v6153 = vpop.f32.mrf.mxu0
  %v6154 = vadd.f32 0.0, %v6153
  %v6155 = vpop.f32.mrf.mxu0
  %v6156 = vpop.f32.mrf.mxu0
  %v6157 = vadd.f32 0.0, %v6156
  %v6158 = vpop.f32.mrf.mxu0
  %6159 = vdwg.mxu0
  %6164 = vrot.lane.b32.xlu0 %v1970, 120
  %v6165 = vpop.permute.xlu0 %6164
  %6166 = vrot.lane.b32.xlu0 %v1971, 120
  %v6167 = vpop.permute.xlu0 %6166
  %6168 = vrot.lane.b32.xlu0 %v1972, 120
  %v6169 = vpop.permute.xlu0 %6168
  %6170 = vrot.lane.b32.xlu0 %v1973, 120
  %v6171 = vpop.permute.xlu0 %6170
  %v6177 = vsel %vm2795, %v5772, 0
  %v6180 = vsel %vm2795, %v5773, 0
  %v6183 = vsel %vm2795, %v5774, 0
  %v6186 = vsel %vm2795, %v5775, 0
  %6188 = vmatprep.subr.bf16.mxu0 0
  %6189 = vmatpush1.bf16.msra.mxu0 0
  %6190 = vmatprep.subr.bf16.mxu0 0
  %6191 = vmatpush1.bf16.msra.mxu0 0
  %6192 = vmatprep.subr.bf16.mxu0 0
  %6193 = vmatpush1.bf16.msra.mxu0 0
  %6194 = vmatprep.subr.bf16.mxu0 0
  %6195 = vmatpush1.bf16.msra.mxu0 0
  %6196 = vmatprep.subr.bf16.mxu0 0
  %6197 = vmatpush1.bf16.msra.mxu0 %v6171
  %6198 = vmatprep.subr.bf16.mxu0 0
  %6199 = vmatpush1.bf16.msra.mxu0 %v6169
  %6200 = vmatprep.subr.bf16.mxu0 0
  %6201 = vmatpush1.bf16.msra.mxu0 %v6167
  %6202 = vmatprep.subr.bf16.mxu0 0
  %6203 = vmatpush1.bf16.msra.mxu0 %v6165
  %6204 = vmatprep.subr.bf16.mxu0 0
  %6205 = vmatpush2.bf16.msra.mxu0 0
  %6206 = vmatprep.subr.bf16.mxu0 0
  %6207 = vmatpush2.bf16.msra.mxu0 0
  %6208 = vmatprep.subr.bf16.mxu0 0
  %6209 = vmatpush2.bf16.msra.mxu0 0
  %6210 = vmatprep.subr.bf16.mxu0 0
  %6211 = vmatpush2.bf16.msra.mxu0 0
  %6212 = vmatprep.subr.bf16.mxu0 0
  %6213 = vmatpush2.bf16.msra.mxu0 0
  %6214 = vmatprep.subr.bf16.mxu0 0
  %6215 = vmatpush2.bf16.msra.mxu0 0
  %6216 = vmatprep.subr.bf16.mxu0 0
  %6217 = vmatpush2.bf16.msra.mxu0 0
  %6218 = vmatprep.subr.bf16.mxu0 0
  %6219 = vmatpush2.bf16.msra.mxu0 0
  %6220 = vmatprep.mubr.bf16.mxu0 0
  %6221 = vmatmul.mubr.bf16.gmra.mxu0 %v6177
  %v6222 = vpop.f32.mrf.mxu0
  %v6223 = vadd.f32 0.0, %v6222
  %v6224 = vpop.f32.mrf.mxu0
  %v6225 = vpop.f32.mrf.mxu0
  %v6226 = vadd.f32 0.0, %v6225
  %v6227 = vpop.f32.mrf.mxu0
  %6228 = vmatprep.mubr.bf16.mxu0 0
  %6229 = vmatmul.mubr.bf16.gmra.mxu0 %v6180
  %v6230 = vpop.f32.mrf.mxu0
  %v6231 = vadd.f32 0.0, %v6230
  %v6232 = vpop.f32.mrf.mxu0
  %v6233 = vpop.f32.mrf.mxu0
  %v6234 = vadd.f32 0.0, %v6233
  %v6235 = vpop.f32.mrf.mxu0
  %6236 = vmatprep.mubr.bf16.mxu0 0
  %6237 = vmatmul.mubr.bf16.gmra.mxu0 %v6183
  %v6238 = vpop.f32.mrf.mxu0
  %v6239 = vadd.f32 0.0, %v6238
  %v6240 = vpop.f32.mrf.mxu0
  %v6241 = vpop.f32.mrf.mxu0
  %v6242 = vadd.f32 0.0, %v6241
  %v6243 = vpop.f32.mrf.mxu0
  %6244 = vmatprep.mubr.bf16.mxu0 0
  %6245 = vmatmul.mubr.bf16.gmra.mxu0 %v6186
  %v6246 = vpop.f32.mrf.mxu0
  %v6247 = vadd.f32 0.0, %v6246
  %v6248 = vpop.f32.mrf.mxu0
  %v6249 = vpop.f32.mrf.mxu0
  %v6250 = vadd.f32 0.0, %v6249
  %v6251 = vpop.f32.mrf.mxu0
  %6252 = vdwg.mxu0
  %6257 = vrot.lane.b32.xlu0 %v1974, 120
  %v6258 = vpop.permute.xlu0 %6257
  %6259 = vrot.lane.b32.xlu0 %v1975, 120
  %v6260 = vpop.permute.xlu0 %6259
  %6261 = vrot.lane.b32.xlu0 %v1976, 120
  %v6262 = vpop.permute.xlu0 %6261
  %6263 = vrot.lane.b32.xlu0 %v1977, 120
  %v6264 = vpop.permute.xlu0 %6263
  %v6270 = vsel %vm2795, %v5776, 0
  %v6273 = vsel %vm2795, %v5777, 0
  %v6276 = vsel %vm2795, %v5778, 0
  %v6279 = vsel %vm2795, %v5779, 0
  %6281 = vmatprep.subr.bf16.mxu0 0
  %6282 = vmatpush1.bf16.msra.mxu0 0
  %6283 = vmatprep.subr.bf16.mxu0 0
  %6284 = vmatpush1.bf16.msra.mxu0 0
  %6285 = vmatprep.subr.bf16.mxu0 0
  %6286 = vmatpush1.bf16.msra.mxu0 0
  %6287 = vmatprep.subr.bf16.mxu0 0
  %6288 = vmatpush1.bf16.msra.mxu0 0
  %6289 = vmatprep.subr.bf16.mxu0 0
  %6290 = vmatpush1.bf16.msra.mxu0 %v6264
  %6291 = vmatprep.subr.bf16.mxu0 0
  %6292 = vmatpush1.bf16.msra.mxu0 %v6262
  %6293 = vmatprep.subr.bf16.mxu0 0
  %6294 = vmatpush1.bf16.msra.mxu0 %v6260
  %6295 = vmatprep.subr.bf16.mxu0 0
  %6296 = vmatpush1.bf16.msra.mxu0 %v6258
  %6297 = vmatprep.subr.bf16.mxu0 0
  %6298 = vmatpush2.bf16.msra.mxu0 0
  %6299 = vmatprep.subr.bf16.mxu0 0
  %6300 = vmatpush2.bf16.msra.mxu0 0
  %6301 = vmatprep.subr.bf16.mxu0 0
  %6302 = vmatpush2.bf16.msra.mxu0 0
  %6303 = vmatprep.subr.bf16.mxu0 0
  %6304 = vmatpush2.bf16.msra.mxu0 0
  %6305 = vmatprep.subr.bf16.mxu0 0
  %6306 = vmatpush2.bf16.msra.mxu0 0
  %6307 = vmatprep.subr.bf16.mxu0 0
  %6308 = vmatpush2.bf16.msra.mxu0 0
  %6309 = vmatprep.subr.bf16.mxu0 0
  %6310 = vmatpush2.bf16.msra.mxu0 0
  %6311 = vmatprep.subr.bf16.mxu0 0
  %6312 = vmatpush2.bf16.msra.mxu0 0
  %6313 = vmatprep.mubr.bf16.mxu0 0
  %6314 = vmatmul.mubr.bf16.gmra.mxu0 %v6270
  %v6315 = vpop.f32.mrf.mxu0
  %v6316 = vadd.f32 0.0, %v6315
  %v6317 = vpop.f32.mrf.mxu0
  %v6318 = vpop.f32.mrf.mxu0
  %v6319 = vadd.f32 0.0, %v6318
  %v6320 = vpop.f32.mrf.mxu0
  %6321 = vmatprep.mubr.bf16.mxu0 0
  %6322 = vmatmul.mubr.bf16.gmra.mxu0 %v6273
  %v6323 = vpop.f32.mrf.mxu0
  %v6324 = vadd.f32 0.0, %v6323
  %v6325 = vpop.f32.mrf.mxu0
  %v6326 = vpop.f32.mrf.mxu0
  %v6327 = vadd.f32 0.0, %v6326
  %v6328 = vpop.f32.mrf.mxu0
  %6329 = vmatprep.mubr.bf16.mxu0 0
  %6330 = vmatmul.mubr.bf16.gmra.mxu0 %v6276
  %v6331 = vpop.f32.mrf.mxu0
  %v6332 = vadd.f32 0.0, %v6331
  %v6333 = vpop.f32.mrf.mxu0
  %v6334 = vpop.f32.mrf.mxu0
  %v6335 = vadd.f32 0.0, %v6334
  %v6336 = vpop.f32.mrf.mxu0
  %6337 = vmatprep.mubr.bf16.mxu0 0
  %6338 = vmatmul.mubr.bf16.gmra.mxu0 %v6279
  %v6339 = vpop.f32.mrf.mxu0
  %v6340 = vadd.f32 0.0, %v6339
  %v6341 = vpop.f32.mrf.mxu0
  %v6342 = vpop.f32.mrf.mxu0
  %v6343 = vadd.f32 0.0, %v6342
  %v6344 = vpop.f32.mrf.mxu0
  %6345 = vdwg.mxu0
  %6350 = vrot.lane.b32.xlu0 %v1978, 120
  %v6351 = vpop.permute.xlu0 %6350
  %6352 = vrot.lane.b32.xlu0 %v1979, 120
  %v6353 = vpop.permute.xlu0 %6352
  %6354 = vrot.lane.b32.xlu0 %v1980, 120
  %v6355 = vpop.permute.xlu0 %6354
  %6356 = vrot.lane.b32.xlu0 %v1981, 120
  %v6357 = vpop.permute.xlu0 %6356
  %v6363 = vsel %vm2795, %v5780, 0
  %v6366 = vsel %vm2795, %v5781, 0
  %v6369 = vsel %vm2795, %v5782, 0
  %v6372 = vsel %vm2795, %v5783, 0
  %6374 = vmatprep.subr.bf16.mxu0 0
  %6375 = vmatpush1.bf16.msra.mxu0 0
  %6376 = vmatprep.subr.bf16.mxu0 0
  %6377 = vmatpush1.bf16.msra.mxu0 0
  %6378 = vmatprep.subr.bf16.mxu0 0
  %6379 = vmatpush1.bf16.msra.mxu0 0
  %6380 = vmatprep.subr.bf16.mxu0 0
  %6381 = vmatpush1.bf16.msra.mxu0 0
  %6382 = vmatprep.subr.bf16.mxu0 0
  %6383 = vmatpush1.bf16.msra.mxu0 %v6357
  %6384 = vmatprep.subr.bf16.mxu0 0
  %6385 = vmatpush1.bf16.msra.mxu0 %v6355
  %6386 = vmatprep.subr.bf16.mxu0 0
  %6387 = vmatpush1.bf16.msra.mxu0 %v6353
  %6388 = vmatprep.subr.bf16.mxu0 0
  %6389 = vmatpush1.bf16.msra.mxu0 %v6351
  %6390 = vmatprep.subr.bf16.mxu0 0
  %6391 = vmatpush2.bf16.msra.mxu0 0
  %6392 = vmatprep.subr.bf16.mxu0 0
  %6393 = vmatpush2.bf16.msra.mxu0 0
  %6394 = vmatprep.subr.bf16.mxu0 0
  %6395 = vmatpush2.bf16.msra.mxu0 0
  %6396 = vmatprep.subr.bf16.mxu0 0
  %6397 = vmatpush2.bf16.msra.mxu0 0
  %6398 = vmatprep.subr.bf16.mxu0 0
  %6399 = vmatpush2.bf16.msra.mxu0 0
  %6400 = vmatprep.subr.bf16.mxu0 0
  %6401 = vmatpush2.bf16.msra.mxu0 0
  %6402 = vmatprep.subr.bf16.mxu0 0
  %6403 = vmatpush2.bf16.msra.mxu0 0
  %6404 = vmatprep.subr.bf16.mxu0 0
  %6405 = vmatpush2.bf16.msra.mxu0 0
  %6406 = vmatprep.mubr.bf16.mxu0 0
  %6407 = vmatmul.mubr.bf16.gmra.mxu0 %v6363
  %v6408 = vpop.f32.mrf.mxu0
  %v6409 = vadd.f32 0.0, %v6408
  %v6410 = vpop.f32.mrf.mxu0
  %v6411 = vpop.f32.mrf.mxu0
  %v6412 = vadd.f32 0.0, %v6411
  %v6413 = vpop.f32.mrf.mxu0
  %6414 = vmatprep.mubr.bf16.mxu0 0
  %6415 = vmatmul.mubr.bf16.gmra.mxu0 %v6366
  %v6416 = vpop.f32.mrf.mxu0
  %v6417 = vadd.f32 0.0, %v6416
  %v6418 = vpop.f32.mrf.mxu0
  %v6419 = vpop.f32.mrf.mxu0
  %v6420 = vadd.f32 0.0, %v6419
  %v6421 = vpop.f32.mrf.mxu0
  %6422 = vmatprep.mubr.bf16.mxu0 0
  %6423 = vmatmul.mubr.bf16.gmra.mxu0 %v6369
  %v6424 = vpop.f32.mrf.mxu0
  %v6425 = vadd.f32 0.0, %v6424
  %v6426 = vpop.f32.mrf.mxu0
  %v6427 = vpop.f32.mrf.mxu0
  %v6428 = vadd.f32 0.0, %v6427
  %v6429 = vpop.f32.mrf.mxu0
  %6430 = vmatprep.mubr.bf16.mxu0 0
  %6431 = vmatmul.mubr.bf16.gmra.mxu0 %v6372
  %v6432 = vpop.f32.mrf.mxu0
  %v6433 = vadd.f32 0.0, %v6432
  %v6434 = vpop.f32.mrf.mxu0
  %v6435 = vpop.f32.mrf.mxu0
  %v6436 = vadd.f32 0.0, %v6435
  %v6437 = vpop.f32.mrf.mxu0
  %6438 = vdwg.mxu0
  %6443 = vrot.lane.b32.xlu0 %v1982, 120
  %v6444 = vpop.permute.xlu0 %6443
  %6445 = vrot.lane.b32.xlu0 %v1983, 120
  %v6446 = vpop.permute.xlu0 %6445
  %6447 = vrot.lane.b32.xlu0 %v1984, 120
  %v6448 = vpop.permute.xlu0 %6447
  %6449 = vrot.lane.b32.xlu0 %v1985, 120
  %v6450 = vpop.permute.xlu0 %6449
  %v6456 = vsel %vm2795, %v5784, 0
  %v6459 = vsel %vm2795, %v5785, 0
  %v6462 = vsel %vm2795, %v5786, 0
  %v6465 = vsel %vm2795, %v5787, 0
  %6467 = vmatprep.subr.bf16.mxu0 0
  %6468 = vmatpush1.bf16.msra.mxu0 0
  %6469 = vmatprep.subr.bf16.mxu0 0
  %6470 = vmatpush1.bf16.msra.mxu0 0
  %6471 = vmatprep.subr.bf16.mxu0 0
  %6472 = vmatpush1.bf16.msra.mxu0 0
  %6473 = vmatprep.subr.bf16.mxu0 0
  %6474 = vmatpush1.bf16.msra.mxu0 0
  %6475 = vmatprep.subr.bf16.mxu0 0
  %6476 = vmatpush1.bf16.msra.mxu0 %v6450
  %6477 = vmatprep.subr.bf16.mxu0 0
  %6478 = vmatpush1.bf16.msra.mxu0 %v6448
  %6479 = vmatprep.subr.bf16.mxu0 0
  %6480 = vmatpush1.bf16.msra.mxu0 %v6446
  %6481 = vmatprep.subr.bf16.mxu0 0
  %6482 = vmatpush1.bf16.msra.mxu0 %v6444
  %6483 = vmatprep.subr.bf16.mxu0 0
  %6484 = vmatpush2.bf16.msra.mxu0 0
  %6485 = vmatprep.subr.bf16.mxu0 0
  %6486 = vmatpush2.bf16.msra.mxu0 0
  %6487 = vmatprep.subr.bf16.mxu0 0
  %6488 = vmatpush2.bf16.msra.mxu0 0
  %6489 = vmatprep.subr.bf16.mxu0 0
  %6490 = vmatpush2.bf16.msra.mxu0 0
  %6491 = vmatprep.subr.bf16.mxu0 0
  %6492 = vmatpush2.bf16.msra.mxu0 0
  %6493 = vmatprep.subr.bf16.mxu0 0
  %6494 = vmatpush2.bf16.msra.mxu0 0
  %6495 = vmatprep.subr.bf16.mxu0 0
  %6496 = vmatpush2.bf16.msra.mxu0 0
  %6497 = vmatprep.subr.bf16.mxu0 0
  %6498 = vmatpush2.bf16.msra.mxu0 0
  %6499 = vmatprep.mubr.bf16.mxu0 0
  %6500 = vmatmul.mubr.bf16.gmra.mxu0 %v6456
  %v6501 = vpop.f32.mrf.mxu0
  %v6502 = vadd.f32 0.0, %v6501
  %v6503 = vpop.f32.mrf.mxu0
  %v6504 = vpop.f32.mrf.mxu0
  %v6505 = vadd.f32 0.0, %v6504
  %v6506 = vpop.f32.mrf.mxu0
  %6507 = vmatprep.mubr.bf16.mxu0 0
  %6508 = vmatmul.mubr.bf16.gmra.mxu0 %v6459
  %v6509 = vpop.f32.mrf.mxu0
  %v6510 = vadd.f32 0.0, %v6509
  %v6511 = vpop.f32.mrf.mxu0
  %v6512 = vpop.f32.mrf.mxu0
  %v6513 = vadd.f32 0.0, %v6512
  %v6514 = vpop.f32.mrf.mxu0
  %6515 = vmatprep.mubr.bf16.mxu0 0
  %6516 = vmatmul.mubr.bf16.gmra.mxu0 %v6462
  %v6517 = vpop.f32.mrf.mxu0
  %v6518 = vadd.f32 0.0, %v6517
  %v6519 = vpop.f32.mrf.mxu0
  %v6520 = vpop.f32.mrf.mxu0
  %v6521 = vadd.f32 0.0, %v6520
  %v6522 = vpop.f32.mrf.mxu0
  %6523 = vmatprep.mubr.bf16.mxu0 0
  %6524 = vmatmul.mubr.bf16.gmra.mxu0 %v6465
  %v6525 = vpop.f32.mrf.mxu0
  %v6526 = vadd.f32 0.0, %v6525
  %v6527 = vpop.f32.mrf.mxu0
  %v6528 = vpop.f32.mrf.mxu0
  %v6529 = vadd.f32 0.0, %v6528
  %v6530 = vpop.f32.mrf.mxu0
  %6531 = vdwg.mxu0
  %v6532 = vpack.c.bf16 %v5854, %v5851
  %v6533 = vpack.c.bf16 %v5862, %v5859
  %v6534 = vpack.c.bf16 %v5870, %v5867
  %v6535 = vpack.c.bf16 %v5878, %v5875
  %v6536 = vpack.c.bf16 %v5947, %v5944
  %v6537 = vpack.c.bf16 %v5955, %v5952
  %v6538 = vpack.c.bf16 %v5963, %v5960
  %v6539 = vpack.c.bf16 %v5971, %v5968
  %v6540 = vpack.c.bf16 %v6040, %v6037
  %v6541 = vpack.c.bf16 %v6048, %v6045
  %v6542 = vpack.c.bf16 %v6056, %v6053
  %v6543 = vpack.c.bf16 %v6064, %v6061
  %v6544 = vpack.c.bf16 %v6133, %v6130
  %v6545 = vpack.c.bf16 %v6141, %v6138
  %v6546 = vpack.c.bf16 %v6149, %v6146
  %v6547 = vpack.c.bf16 %v6157, %v6154
  %v6548 = vpack.c.bf16 %v6226, %v6223
  %v6549 = vpack.c.bf16 %v6234, %v6231
  %v6550 = vpack.c.bf16 %v6242, %v6239
  %v6551 = vpack.c.bf16 %v6250, %v6247
  %v6552 = vpack.c.bf16 %v6319, %v6316
  %v6553 = vpack.c.bf16 %v6327, %v6324
  %v6554 = vpack.c.bf16 %v6335, %v6332
  %v6555 = vpack.c.bf16 %v6343, %v6340
  %v6556 = vpack.c.bf16 %v6412, %v6409
  %v6557 = vpack.c.bf16 %v6420, %v6417
  %v6558 = vpack.c.bf16 %v6428, %v6425
  %v6559 = vpack.c.bf16 %v6436, %v6433
  %v6560 = vpack.c.bf16 %v6505, %v6502
  %v6561 = vpack.c.bf16 %v6513, %v6510
  %v6562 = vpack.c.bf16 %v6521, %v6518
  %v6563 = vpack.c.bf16 %v6529, %v6526
  %6564 = vrot.lane.b32.xlu0 %v1290, 112
  %v6565 = vpop.permute.xlu0 %6564
  %6566 = vrot.lane.b32.xlu0 %v1291, 112
  %v6567 = vpop.permute.xlu0 %6566
  %6568 = vrot.lane.b32.xlu0 %v1292, 112
  %v6569 = vpop.permute.xlu0 %6568
  %6570 = vrot.lane.b32.xlu0 %v1293, 112
  %v6571 = vpop.permute.xlu0 %6570
  %6572 = vrot.lane.b32.xlu0 %v1922, 48
  %v6573 = vpop.permute.xlu0 %6572
  %6574 = vrot.lane.b32.xlu0 %v1923, 48
  %v6575 = vpop.permute.xlu0 %6574
  %6576 = vrot.lane.b32.xlu0 %v1924, 48
  %v6577 = vpop.permute.xlu0 %6576
  %6578 = vrot.lane.b32.xlu0 %v1925, 48
  %v6579 = vpop.permute.xlu0 %6578
  %v6581 = vsel %vm1998, %v6565, 0
  %v6584 = vsel %vm1998, %v6567, 0
  %v6587 = vsel %vm1998, %v6569, 0
  %v6590 = vsel %vm1998, %v6571, 0
  %v6593 = vsel %vm1998, %v6573, 0
  %v6596 = vsel %vm1998, %v6575, 0
  %v6599 = vsel %vm1998, %v6577, 0
  %v6602 = vsel %vm1998, %v6579, 0
  %6604 = vmatprep.subr.bf16.mxu0 0
  %6605 = vmatpush1.bf16.xpose.msra.mxu0 0
  %6606 = vmatprep.subr.bf16.mxu0 0
  %6607 = vmatpush1.bf16.xpose.msra.mxu0 0
  %6608 = vmatprep.subr.bf16.mxu0 0
  %6609 = vmatpush1.bf16.xpose.msra.mxu0 0
  %6610 = vmatprep.subr.bf16.mxu0 0
  %6611 = vmatpush1.bf16.xpose.msra.mxu0 0
  %6612 = vmatprep.subr.bf16.mxu0 0
  %6613 = vmatpush1.bf16.xpose.msra.mxu0 %v6602
  %6614 = vmatprep.subr.bf16.mxu0 0
  %6615 = vmatpush1.bf16.xpose.msra.mxu0 %v6599
  %6616 = vmatprep.subr.bf16.mxu0 0
  %6617 = vmatpush1.bf16.xpose.msra.mxu0 %v6596
  %6618 = vmatprep.subr.bf16.mxu0 0
  %6619 = vmatpush1.bf16.xpose.msra.mxu0 %v6593
  %6620 = vmatprep.subr.bf16.mxu0 0
  %6621 = vmatpush2.bf16.xpose.msra.mxu0 0
  %6622 = vmatprep.subr.bf16.mxu0 0
  %6623 = vmatpush2.bf16.xpose.msra.mxu0 0
  %6624 = vmatprep.subr.bf16.mxu0 0
  %6625 = vmatpush2.bf16.xpose.msra.mxu0 0
  %6626 = vmatprep.subr.bf16.mxu0 0
  %6627 = vmatpush2.bf16.xpose.msra.mxu0 0
  %6628 = vmatprep.subr.bf16.mxu0 0
  %6629 = vmatpush2.bf16.xpose.msra.mxu0 0
  %6630 = vmatprep.subr.bf16.mxu0 0
  %6631 = vmatpush2.bf16.xpose.msra.mxu0 0
  %6632 = vmatprep.subr.bf16.mxu0 0
  %6633 = vmatpush2.bf16.xpose.msra.mxu0 0
  %6634 = vmatprep.subr.bf16.mxu0 0
  %6635 = vmatpush2.bf16.xpose.msra.mxu0 0
  %6636 = vmatprep.mubr.bf16.mxu0 0
  %6637 = vmatmul.mubr.bf16.gmra.mxu0 %v6581
  %v6638 = vpop.f32.mrf.mxu0
  %v6639 = vadd.f32 0.0, %v6638
  %v6640 = vpop.f32.mrf.mxu0
  %v6641 = vpop.f32.mrf.mxu0
  %v6642 = vadd.f32 0.0, %v6641
  %v6643 = vpop.f32.mrf.mxu0
  %6644 = vmatprep.mubr.bf16.mxu0 0
  %6645 = vmatmul.mubr.bf16.gmra.mxu0 %v6584
  %v6646 = vpop.f32.mrf.mxu0
  %v6647 = vadd.f32 0.0, %v6646
  %v6648 = vpop.f32.mrf.mxu0
  %v6649 = vpop.f32.mrf.mxu0
  %v6650 = vadd.f32 0.0, %v6649
  %v6651 = vpop.f32.mrf.mxu0
  %6652 = vmatprep.mubr.bf16.mxu0 0
  %6653 = vmatmul.mubr.bf16.gmra.mxu0 %v6587
  %v6654 = vpop.f32.mrf.mxu0
  %v6655 = vadd.f32 0.0, %v6654
  %v6656 = vpop.f32.mrf.mxu0
  %v6657 = vpop.f32.mrf.mxu0
  %v6658 = vadd.f32 0.0, %v6657
  %v6659 = vpop.f32.mrf.mxu0
  %6660 = vmatprep.mubr.bf16.mxu0 0
  %6661 = vmatmul.mubr.bf16.gmra.mxu0 %v6590
  %v6662 = vpop.f32.mrf.mxu0
  %v6663 = vadd.f32 0.0, %v6662
  %v6664 = vpop.f32.mrf.mxu0
  %v6665 = vpop.f32.mrf.mxu0
  %v6666 = vadd.f32 0.0, %v6665
  %v6667 = vpop.f32.mrf.mxu0
  %6668 = vdwg.mxu0
  %6669 = vrot.lane.b32.xlu0 %v1294, 112
  %v6670 = vpop.permute.xlu0 %6669
  %6671 = vrot.lane.b32.xlu0 %v1295, 112
  %v6672 = vpop.permute.xlu0 %6671
  %6673 = vrot.lane.b32.xlu0 %v1296, 112
  %v6674 = vpop.permute.xlu0 %6673
  %6675 = vrot.lane.b32.xlu0 %v1297, 112
  %v6676 = vpop.permute.xlu0 %6675
  %6677 = vrot.lane.b32.xlu0 %v1926, 48
  %v6678 = vpop.permute.xlu0 %6677
  %6679 = vrot.lane.b32.xlu0 %v1927, 48
  %v6680 = vpop.permute.xlu0 %6679
  %6681 = vrot.lane.b32.xlu0 %v1928, 48
  %v6682 = vpop.permute.xlu0 %6681
  %6683 = vrot.lane.b32.xlu0 %v1929, 48
  %v6684 = vpop.permute.xlu0 %6683
  %v6686 = vsel %vm1998, %v6670, 0
  %v6689 = vsel %vm1998, %v6672, 0
  %v6692 = vsel %vm1998, %v6674, 0
  %v6695 = vsel %vm1998, %v6676, 0
  %v6698 = vsel %vm1998, %v6678, 0
  %v6701 = vsel %vm1998, %v6680, 0
  %v6704 = vsel %vm1998, %v6682, 0
  %v6707 = vsel %vm1998, %v6684, 0
  %6709 = vmatprep.subr.bf16.mxu0 0
  %6710 = vmatpush1.bf16.xpose.msra.mxu0 0
  %6711 = vmatprep.subr.bf16.mxu0 0
  %6712 = vmatpush1.bf16.xpose.msra.mxu0 0
  %6713 = vmatprep.subr.bf16.mxu0 0
  %6714 = vmatpush1.bf16.xpose.msra.mxu0 0
  %6715 = vmatprep.subr.bf16.mxu0 0
  %6716 = vmatpush1.bf16.xpose.msra.mxu0 0
  %6717 = vmatprep.subr.bf16.mxu0 0
  %6718 = vmatpush1.bf16.xpose.msra.mxu0 %v6707
  %6719 = vmatprep.subr.bf16.mxu0 0
  %6720 = vmatpush1.bf16.xpose.msra.mxu0 %v6704
  %6721 = vmatprep.subr.bf16.mxu0 0
  %6722 = vmatpush1.bf16.xpose.msra.mxu0 %v6701
  %6723 = vmatprep.subr.bf16.mxu0 0
  %6724 = vmatpush1.bf16.xpose.msra.mxu0 %v6698
  %6725 = vmatprep.subr.bf16.mxu0 0
  %6726 = vmatpush2.bf16.xpose.msra.mxu0 0
  %6727 = vmatprep.subr.bf16.mxu0 0
  %6728 = vmatpush2.bf16.xpose.msra.mxu0 0
  %6729 = vmatprep.subr.bf16.mxu0 0
  %6730 = vmatpush2.bf16.xpose.msra.mxu0 0
  %6731 = vmatprep.subr.bf16.mxu0 0
  %6732 = vmatpush2.bf16.xpose.msra.mxu0 0
  %6733 = vmatprep.subr.bf16.mxu0 0
  %6734 = vmatpush2.bf16.xpose.msra.mxu0 0
  %6735 = vmatprep.subr.bf16.mxu0 0
  %6736 = vmatpush2.bf16.xpose.msra.mxu0 0
  %6737 = vmatprep.subr.bf16.mxu0 0
  %6738 = vmatpush2.bf16.xpose.msra.mxu0 0
  %6739 = vmatprep.subr.bf16.mxu0 0
  %6740 = vmatpush2.bf16.xpose.msra.mxu0 0
  %6741 = vmatprep.mubr.bf16.mxu0 0
  %6742 = vmatmul.mubr.bf16.gmra.mxu0 %v6686
  %v6743 = vpop.f32.mrf.mxu0
  %v6744 = vadd.f32 0.0, %v6743
  %v6745 = vpop.f32.mrf.mxu0
  %v6746 = vpop.f32.mrf.mxu0
  %v6747 = vadd.f32 0.0, %v6746
  %v6748 = vpop.f32.mrf.mxu0
  %6749 = vmatprep.mubr.bf16.mxu0 0
  %6750 = vmatmul.mubr.bf16.gmra.mxu0 %v6689
  %v6751 = vpop.f32.mrf.mxu0
  %v6752 = vadd.f32 0.0, %v6751
  %v6753 = vpop.f32.mrf.mxu0
  %v6754 = vpop.f32.mrf.mxu0
  %v6755 = vadd.f32 0.0, %v6754
  %v6756 = vpop.f32.mrf.mxu0
  %6757 = vmatprep.mubr.bf16.mxu0 0
  %6758 = vmatmul.mubr.bf16.gmra.mxu0 %v6692
  %v6759 = vpop.f32.mrf.mxu0
  %v6760 = vadd.f32 0.0, %v6759
  %v6761 = vpop.f32.mrf.mxu0
  %v6762 = vpop.f32.mrf.mxu0
  %v6763 = vadd.f32 0.0, %v6762
  %v6764 = vpop.f32.mrf.mxu0
  %6765 = vmatprep.mubr.bf16.mxu0 0
  %6766 = vmatmul.mubr.bf16.gmra.mxu0 %v6695
  %v6767 = vpop.f32.mrf.mxu0
  %v6768 = vadd.f32 0.0, %v6767
  %v6769 = vpop.f32.mrf.mxu0
  %v6770 = vpop.f32.mrf.mxu0
  %v6771 = vadd.f32 0.0, %v6770
  %v6772 = vpop.f32.mrf.mxu0
  %6773 = vdwg.mxu0
  %6774 = vrot.lane.b32.xlu0 %v1298, 112
  %v6775 = vpop.permute.xlu0 %6774
  %6776 = vrot.lane.b32.xlu0 %v1299, 112
  %v6777 = vpop.permute.xlu0 %6776
  %6778 = vrot.lane.b32.xlu0 %v1300, 112
  %v6779 = vpop.permute.xlu0 %6778
  %6780 = vrot.lane.b32.xlu0 %v1301, 112
  %v6781 = vpop.permute.xlu0 %6780
  %6782 = vrot.lane.b32.xlu0 %v1930, 48
  %v6783 = vpop.permute.xlu0 %6782
  %6784 = vrot.lane.b32.xlu0 %v1931, 48
  %v6785 = vpop.permute.xlu0 %6784
  %6786 = vrot.lane.b32.xlu0 %v1932, 48
  %v6787 = vpop.permute.xlu0 %6786
  %6788 = vrot.lane.b32.xlu0 %v1933, 48
  %v6789 = vpop.permute.xlu0 %6788
  %v6791 = vsel %vm1998, %v6775, 0
  %v6794 = vsel %vm1998, %v6777, 0
  %v6797 = vsel %vm1998, %v6779, 0
  %v6800 = vsel %vm1998, %v6781, 0
  %v6803 = vsel %vm1998, %v6783, 0
  %v6806 = vsel %vm1998, %v6785, 0
  %v6809 = vsel %vm1998, %v6787, 0
  %v6812 = vsel %vm1998, %v6789, 0
  %6814 = vmatprep.subr.bf16.mxu0 0
  %6815 = vmatpush1.bf16.xpose.msra.mxu0 0
  %6816 = vmatprep.subr.bf16.mxu0 0
  %6817 = vmatpush1.bf16.xpose.msra.mxu0 0
  %6818 = vmatprep.subr.bf16.mxu0 0
  %6819 = vmatpush1.bf16.xpose.msra.mxu0 0
  %6820 = vmatprep.subr.bf16.mxu0 0
  %6821 = vmatpush1.bf16.xpose.msra.mxu0 0
  %6822 = vmatprep.subr.bf16.mxu0 0
  %6823 = vmatpush1.bf16.xpose.msra.mxu0 %v6812
  %6824 = vmatprep.subr.bf16.mxu0 0
  %6825 = vmatpush1.bf16.xpose.msra.mxu0 %v6809
  %6826 = vmatprep.subr.bf16.mxu0 0
  %6827 = vmatpush1.bf16.xpose.msra.mxu0 %v6806
  %6828 = vmatprep.subr.bf16.mxu0 0
  %6829 = vmatpush1.bf16.xpose.msra.mxu0 %v6803
  %6830 = vmatprep.subr.bf16.mxu0 0
  %6831 = vmatpush2.bf16.xpose.msra.mxu0 0
  %6832 = vmatprep.subr.bf16.mxu0 0
  %6833 = vmatpush2.bf16.xpose.msra.mxu0 0
  %6834 = vmatprep.subr.bf16.mxu0 0
  %6835 = vmatpush2.bf16.xpose.msra.mxu0 0
  %6836 = vmatprep.subr.bf16.mxu0 0
  %6837 = vmatpush2.bf16.xpose.msra.mxu0 0
  %6838 = vmatprep.subr.bf16.mxu0 0
  %6839 = vmatpush2.bf16.xpose.msra.mxu0 0
  %6840 = vmatprep.subr.bf16.mxu0 0
  %6841 = vmatpush2.bf16.xpose.msra.mxu0 0
  %6842 = vmatprep.subr.bf16.mxu0 0
  %6843 = vmatpush2.bf16.xpose.msra.mxu0 0
  %6844 = vmatprep.subr.bf16.mxu0 0
  %6845 = vmatpush2.bf16.xpose.msra.mxu0 0
  %6846 = vmatprep.mubr.bf16.mxu0 0
  %6847 = vmatmul.mubr.bf16.gmra.mxu0 %v6791
  %v6848 = vpop.f32.mrf.mxu0
  %v6849 = vadd.f32 0.0, %v6848
  %v6850 = vpop.f32.mrf.mxu0
  %v6851 = vpop.f32.mrf.mxu0
  %v6852 = vadd.f32 0.0, %v6851
  %v6853 = vpop.f32.mrf.mxu0
  %6854 = vmatprep.mubr.bf16.mxu0 0
  %6855 = vmatmul.mubr.bf16.gmra.mxu0 %v6794
  %v6856 = vpop.f32.mrf.mxu0
  %v6857 = vadd.f32 0.0, %v6856
  %v6858 = vpop.f32.mrf.mxu0
  %v6859 = vpop.f32.mrf.mxu0
  %v6860 = vadd.f32 0.0, %v6859
  %v6861 = vpop.f32.mrf.mxu0
  %6862 = vmatprep.mubr.bf16.mxu0 0
  %6863 = vmatmul.mubr.bf16.gmra.mxu0 %v6797
  %v6864 = vpop.f32.mrf.mxu0
  %v6865 = vadd.f32 0.0, %v6864
  %v6866 = vpop.f32.mrf.mxu0
  %v6867 = vpop.f32.mrf.mxu0
  %v6868 = vadd.f32 0.0, %v6867
  %v6869 = vpop.f32.mrf.mxu0
  %6870 = vmatprep.mubr.bf16.mxu0 0
  %6871 = vmatmul.mubr.bf16.gmra.mxu0 %v6800
  %v6872 = vpop.f32.mrf.mxu0
  %v6873 = vadd.f32 0.0, %v6872
  %v6874 = vpop.f32.mrf.mxu0
  %v6875 = vpop.f32.mrf.mxu0
  %v6876 = vadd.f32 0.0, %v6875
  %v6877 = vpop.f32.mrf.mxu0
  %6878 = vdwg.mxu0
  %6879 = vrot.lane.b32.xlu0 %v1302, 112
  %v6880 = vpop.permute.xlu0 %6879
  %6881 = vrot.lane.b32.xlu0 %v1303, 112
  %v6882 = vpop.permute.xlu0 %6881
  %6883 = vrot.lane.b32.xlu0 %v1304, 112
  %v6884 = vpop.permute.xlu0 %6883
  %6885 = vrot.lane.b32.xlu0 %v1305, 112
  %v6886 = vpop.permute.xlu0 %6885
  %6887 = vrot.lane.b32.xlu0 %v1934, 48
  %v6888 = vpop.permute.xlu0 %6887
  %6889 = vrot.lane.b32.xlu0 %v1935, 48
  %v6890 = vpop.permute.xlu0 %6889
  %6891 = vrot.lane.b32.xlu0 %v1936, 48
  %v6892 = vpop.permute.xlu0 %6891
  %6893 = vrot.lane.b32.xlu0 %v1937, 48
  %v6894 = vpop.permute.xlu0 %6893
  %v6896 = vsel %vm1998, %v6880, 0
  %v6899 = vsel %vm1998, %v6882, 0
  %v6902 = vsel %vm1998, %v6884, 0
  %v6905 = vsel %vm1998, %v6886, 0
  %v6908 = vsel %vm1998, %v6888, 0
  %v6911 = vsel %vm1998, %v6890, 0
  %v6914 = vsel %vm1998, %v6892, 0
  %v6917 = vsel %vm1998, %v6894, 0
  %6919 = vmatprep.subr.bf16.mxu0 0
  %6920 = vmatpush1.bf16.xpose.msra.mxu0 0
  %6921 = vmatprep.subr.bf16.mxu0 0
  %6922 = vmatpush1.bf16.xpose.msra.mxu0 0
  %6923 = vmatprep.subr.bf16.mxu0 0
  %6924 = vmatpush1.bf16.xpose.msra.mxu0 0
  %6925 = vmatprep.subr.bf16.mxu0 0
  %6926 = vmatpush1.bf16.xpose.msra.mxu0 0
  %6927 = vmatprep.subr.bf16.mxu0 0
  %6928 = vmatpush1.bf16.xpose.msra.mxu0 %v6917
  %6929 = vmatprep.subr.bf16.mxu0 0
  %6930 = vmatpush1.bf16.xpose.msra.mxu0 %v6914
  %6931 = vmatprep.subr.bf16.mxu0 0
  %6932 = vmatpush1.bf16.xpose.msra.mxu0 %v6911
  %6933 = vmatprep.subr.bf16.mxu0 0
  %6934 = vmatpush1.bf16.xpose.msra.mxu0 %v6908
  %6935 = vmatprep.subr.bf16.mxu0 0
  %6936 = vmatpush2.bf16.xpose.msra.mxu0 0
  %6937 = vmatprep.subr.bf16.mxu0 0
  %6938 = vmatpush2.bf16.xpose.msra.mxu0 0
  %6939 = vmatprep.subr.bf16.mxu0 0
  %6940 = vmatpush2.bf16.xpose.msra.mxu0 0
  %6941 = vmatprep.subr.bf16.mxu0 0
  %6942 = vmatpush2.bf16.xpose.msra.mxu0 0
  %6943 = vmatprep.subr.bf16.mxu0 0
  %6944 = vmatpush2.bf16.xpose.msra.mxu0 0
  %6945 = vmatprep.subr.bf16.mxu0 0
  %6946 = vmatpush2.bf16.xpose.msra.mxu0 0
  %6947 = vmatprep.subr.bf16.mxu0 0
  %6948 = vmatpush2.bf16.xpose.msra.mxu0 0
  %6949 = vmatprep.subr.bf16.mxu0 0
  %6950 = vmatpush2.bf16.xpose.msra.mxu0 0
  %6951 = vmatprep.mubr.bf16.mxu0 0
  %6952 = vmatmul.mubr.bf16.gmra.mxu0 %v6896
  %v6953 = vpop.f32.mrf.mxu0
  %v6954 = vadd.f32 0.0, %v6953
  %v6955 = vpop.f32.mrf.mxu0
  %v6956 = vpop.f32.mrf.mxu0
  %v6957 = vadd.f32 0.0, %v6956
  %v6958 = vpop.f32.mrf.mxu0
  %6959 = vmatprep.mubr.bf16.mxu0 0
  %6960 = vmatmul.mubr.bf16.gmra.mxu0 %v6899
  %v6961 = vpop.f32.mrf.mxu0
  %v6962 = vadd.f32 0.0, %v6961
  %v6963 = vpop.f32.mrf.mxu0
  %v6964 = vpop.f32.mrf.mxu0
  %v6965 = vadd.f32 0.0, %v6964
  %v6966 = vpop.f32.mrf.mxu0
  %6967 = vmatprep.mubr.bf16.mxu0 0
  %6968 = vmatmul.mubr.bf16.gmra.mxu0 %v6902
  %v6969 = vpop.f32.mrf.mxu0
  %v6970 = vadd.f32 0.0, %v6969
  %v6971 = vpop.f32.mrf.mxu0
  %v6972 = vpop.f32.mrf.mxu0
  %v6973 = vadd.f32 0.0, %v6972
  %v6974 = vpop.f32.mrf.mxu0
  %6975 = vmatprep.mubr.bf16.mxu0 0
  %6976 = vmatmul.mubr.bf16.gmra.mxu0 %v6905
  %v6977 = vpop.f32.mrf.mxu0
  %v6978 = vadd.f32 0.0, %v6977
  %v6979 = vpop.f32.mrf.mxu0
  %v6980 = vpop.f32.mrf.mxu0
  %v6981 = vadd.f32 0.0, %v6980
  %v6982 = vpop.f32.mrf.mxu0
  %6983 = vdwg.mxu0
  %6984 = vrot.lane.b32.xlu0 %v1306, 112
  %v6985 = vpop.permute.xlu0 %6984
  %6986 = vrot.lane.b32.xlu0 %v1307, 112
  %v6987 = vpop.permute.xlu0 %6986
  %6988 = vrot.lane.b32.xlu0 %v1308, 112
  %v6989 = vpop.permute.xlu0 %6988
  %6990 = vrot.lane.b32.xlu0 %v1309, 112
  %v6991 = vpop.permute.xlu0 %6990
  %6992 = vrot.lane.b32.xlu0 %v1938, 48
  %v6993 = vpop.permute.xlu0 %6992
  %6994 = vrot.lane.b32.xlu0 %v1939, 48
  %v6995 = vpop.permute.xlu0 %6994
  %6996 = vrot.lane.b32.xlu0 %v1940, 48
  %v6997 = vpop.permute.xlu0 %6996
  %6998 = vrot.lane.b32.xlu0 %v1941, 48
  %v6999 = vpop.permute.xlu0 %6998
  %v7001 = vsel %vm1998, %v6985, 0
  %v7004 = vsel %vm1998, %v6987, 0
  %v7007 = vsel %vm1998, %v6989, 0
  %v7010 = vsel %vm1998, %v6991, 0
  %v7013 = vsel %vm1998, %v6993, 0
  %v7016 = vsel %vm1998, %v6995, 0
  %v7019 = vsel %vm1998, %v6997, 0
  %v7022 = vsel %vm1998, %v6999, 0
  %7024 = vmatprep.subr.bf16.mxu0 0
  %7025 = vmatpush1.bf16.xpose.msra.mxu0 0
  %7026 = vmatprep.subr.bf16.mxu0 0
  %7027 = vmatpush1.bf16.xpose.msra.mxu0 0
  %7028 = vmatprep.subr.bf16.mxu0 0
  %7029 = vmatpush1.bf16.xpose.msra.mxu0 0
  %7030 = vmatprep.subr.bf16.mxu0 0
  %7031 = vmatpush1.bf16.xpose.msra.mxu0 0
  %7032 = vmatprep.subr.bf16.mxu0 0
  %7033 = vmatpush1.bf16.xpose.msra.mxu0 %v7022
  %7034 = vmatprep.subr.bf16.mxu0 0
  %7035 = vmatpush1.bf16.xpose.msra.mxu0 %v7019
  %7036 = vmatprep.subr.bf16.mxu0 0
  %7037 = vmatpush1.bf16.xpose.msra.mxu0 %v7016
  %7038 = vmatprep.subr.bf16.mxu0 0
  %7039 = vmatpush1.bf16.xpose.msra.mxu0 %v7013
  %7040 = vmatprep.subr.bf16.mxu0 0
  %7041 = vmatpush2.bf16.xpose.msra.mxu0 0
  %7042 = vmatprep.subr.bf16.mxu0 0
  %7043 = vmatpush2.bf16.xpose.msra.mxu0 0
  %7044 = vmatprep.subr.bf16.mxu0 0
  %7045 = vmatpush2.bf16.xpose.msra.mxu0 0
  %7046 = vmatprep.subr.bf16.mxu0 0
  %7047 = vmatpush2.bf16.xpose.msra.mxu0 0
  %7048 = vmatprep.subr.bf16.mxu0 0
  %7049 = vmatpush2.bf16.xpose.msra.mxu0 0
  %7050 = vmatprep.subr.bf16.mxu0 0
  %7051 = vmatpush2.bf16.xpose.msra.mxu0 0
  %7052 = vmatprep.subr.bf16.mxu0 0
  %7053 = vmatpush2.bf16.xpose.msra.mxu0 0
  %7054 = vmatprep.subr.bf16.mxu0 0
  %7055 = vmatpush2.bf16.xpose.msra.mxu0 0
  %7056 = vmatprep.mubr.bf16.mxu0 0
  %7057 = vmatmul.mubr.bf16.gmra.mxu0 %v7001
  %v7058 = vpop.f32.mrf.mxu0
  %v7059 = vadd.f32 0.0, %v7058
  %v7060 = vpop.f32.mrf.mxu0
  %v7061 = vpop.f32.mrf.mxu0
  %v7062 = vadd.f32 0.0, %v7061
  %v7063 = vpop.f32.mrf.mxu0
  %7064 = vmatprep.mubr.bf16.mxu0 0
  %7065 = vmatmul.mubr.bf16.gmra.mxu0 %v7004
  %v7066 = vpop.f32.mrf.mxu0
  %v7067 = vadd.f32 0.0, %v7066
  %v7068 = vpop.f32.mrf.mxu0
  %v7069 = vpop.f32.mrf.mxu0
  %v7070 = vadd.f32 0.0, %v7069
  %v7071 = vpop.f32.mrf.mxu0
  %7072 = vmatprep.mubr.bf16.mxu0 0
  %7073 = vmatmul.mubr.bf16.gmra.mxu0 %v7007
  %v7074 = vpop.f32.mrf.mxu0
  %v7075 = vadd.f32 0.0, %v7074
  %v7076 = vpop.f32.mrf.mxu0
  %v7077 = vpop.f32.mrf.mxu0
  %v7078 = vadd.f32 0.0, %v7077
  %v7079 = vpop.f32.mrf.mxu0
  %7080 = vmatprep.mubr.bf16.mxu0 0
  %7081 = vmatmul.mubr.bf16.gmra.mxu0 %v7010
  %v7082 = vpop.f32.mrf.mxu0
  %v7083 = vadd.f32 0.0, %v7082
  %v7084 = vpop.f32.mrf.mxu0
  %v7085 = vpop.f32.mrf.mxu0
  %v7086 = vadd.f32 0.0, %v7085
  %v7087 = vpop.f32.mrf.mxu0
  %7088 = vdwg.mxu0
  %7089 = vrot.lane.b32.xlu0 %v1310, 112
  %v7090 = vpop.permute.xlu0 %7089
  %7091 = vrot.lane.b32.xlu0 %v1311, 112
  %v7092 = vpop.permute.xlu0 %7091
  %7093 = vrot.lane.b32.xlu0 %v1312, 112
  %v7094 = vpop.permute.xlu0 %7093
  %7095 = vrot.lane.b32.xlu0 %v1313, 112
  %v7096 = vpop.permute.xlu0 %7095
  %7097 = vrot.lane.b32.xlu0 %v1942, 48
  %v7098 = vpop.permute.xlu0 %7097
  %7099 = vrot.lane.b32.xlu0 %v1943, 48
  %v7100 = vpop.permute.xlu0 %7099
  %7101 = vrot.lane.b32.xlu0 %v1944, 48
  %v7102 = vpop.permute.xlu0 %7101
  %7103 = vrot.lane.b32.xlu0 %v1945, 48
  %v7104 = vpop.permute.xlu0 %7103
  %v7106 = vsel %vm1998, %v7090, 0
  %v7109 = vsel %vm1998, %v7092, 0
  %v7112 = vsel %vm1998, %v7094, 0
  %v7115 = vsel %vm1998, %v7096, 0
  %v7118 = vsel %vm1998, %v7098, 0
  %v7121 = vsel %vm1998, %v7100, 0
  %v7124 = vsel %vm1998, %v7102, 0
  %v7127 = vsel %vm1998, %v7104, 0
  %7129 = vmatprep.subr.bf16.mxu0 0
  %7130 = vmatpush1.bf16.xpose.msra.mxu0 0
  %7131 = vmatprep.subr.bf16.mxu0 0
  %7132 = vmatpush1.bf16.xpose.msra.mxu0 0
  %7133 = vmatprep.subr.bf16.mxu0 0
  %7134 = vmatpush1.bf16.xpose.msra.mxu0 0
  %7135 = vmatprep.subr.bf16.mxu0 0
  %7136 = vmatpush1.bf16.xpose.msra.mxu0 0
  %7137 = vmatprep.subr.bf16.mxu0 0
  %7138 = vmatpush1.bf16.xpose.msra.mxu0 %v7127
  %7139 = vmatprep.subr.bf16.mxu0 0
  %7140 = vmatpush1.bf16.xpose.msra.mxu0 %v7124
  %7141 = vmatprep.subr.bf16.mxu0 0
  %7142 = vmatpush1.bf16.xpose.msra.mxu0 %v7121
  %7143 = vmatprep.subr.bf16.mxu0 0
  %7144 = vmatpush1.bf16.xpose.msra.mxu0 %v7118
  %7145 = vmatprep.subr.bf16.mxu0 0
  %7146 = vmatpush2.bf16.xpose.msra.mxu0 0
  %7147 = vmatprep.subr.bf16.mxu0 0
  %7148 = vmatpush2.bf16.xpose.msra.mxu0 0
  %7149 = vmatprep.subr.bf16.mxu0 0
  %7150 = vmatpush2.bf16.xpose.msra.mxu0 0
  %7151 = vmatprep.subr.bf16.mxu0 0
  %7152 = vmatpush2.bf16.xpose.msra.mxu0 0
  %7153 = vmatprep.subr.bf16.mxu0 0
  %7154 = vmatpush2.bf16.xpose.msra.mxu0 0
  %7155 = vmatprep.subr.bf16.mxu0 0
  %7156 = vmatpush2.bf16.xpose.msra.mxu0 0
  %7157 = vmatprep.subr.bf16.mxu0 0
  %7158 = vmatpush2.bf16.xpose.msra.mxu0 0
  %7159 = vmatprep.subr.bf16.mxu0 0
  %7160 = vmatpush2.bf16.xpose.msra.mxu0 0
  %7161 = vmatprep.mubr.bf16.mxu0 0
  %7162 = vmatmul.mubr.bf16.gmra.mxu0 %v7106
  %v7163 = vpop.f32.mrf.mxu0
  %v7164 = vadd.f32 0.0, %v7163
  %v7165 = vpop.f32.mrf.mxu0
  %v7166 = vpop.f32.mrf.mxu0
  %v7167 = vadd.f32 0.0, %v7166
  %v7168 = vpop.f32.mrf.mxu0
  %7169 = vmatprep.mubr.bf16.mxu0 0
  %7170 = vmatmul.mubr.bf16.gmra.mxu0 %v7109
  %v7171 = vpop.f32.mrf.mxu0
  %v7172 = vadd.f32 0.0, %v7171
  %v7173 = vpop.f32.mrf.mxu0
  %v7174 = vpop.f32.mrf.mxu0
  %v7175 = vadd.f32 0.0, %v7174
  %v7176 = vpop.f32.mrf.mxu0
  %7177 = vmatprep.mubr.bf16.mxu0 0
  %7178 = vmatmul.mubr.bf16.gmra.mxu0 %v7112
  %v7179 = vpop.f32.mrf.mxu0
  %v7180 = vadd.f32 0.0, %v7179
  %v7181 = vpop.f32.mrf.mxu0
  %v7182 = vpop.f32.mrf.mxu0
  %v7183 = vadd.f32 0.0, %v7182
  %v7184 = vpop.f32.mrf.mxu0
  %7185 = vmatprep.mubr.bf16.mxu0 0
  %7186 = vmatmul.mubr.bf16.gmra.mxu0 %v7115
  %v7187 = vpop.f32.mrf.mxu0
  %v7188 = vadd.f32 0.0, %v7187
  %v7189 = vpop.f32.mrf.mxu0
  %v7190 = vpop.f32.mrf.mxu0
  %v7191 = vadd.f32 0.0, %v7190
  %v7192 = vpop.f32.mrf.mxu0
  %7193 = vdwg.mxu0
  %7194 = vrot.lane.b32.xlu0 %v1314, 112
  %v7195 = vpop.permute.xlu0 %7194
  %7196 = vrot.lane.b32.xlu0 %v1315, 112
  %v7197 = vpop.permute.xlu0 %7196
  %7198 = vrot.lane.b32.xlu0 %v1316, 112
  %v7199 = vpop.permute.xlu0 %7198
  %7200 = vrot.lane.b32.xlu0 %v1317, 112
  %v7201 = vpop.permute.xlu0 %7200
  %7202 = vrot.lane.b32.xlu0 %v1946, 48
  %v7203 = vpop.permute.xlu0 %7202
  %7204 = vrot.lane.b32.xlu0 %v1947, 48
  %v7205 = vpop.permute.xlu0 %7204
  %7206 = vrot.lane.b32.xlu0 %v1948, 48
  %v7207 = vpop.permute.xlu0 %7206
  %7208 = vrot.lane.b32.xlu0 %v1949, 48
  %v7209 = vpop.permute.xlu0 %7208
  %v7211 = vsel %vm1998, %v7195, 0
  %v7214 = vsel %vm1998, %v7197, 0
  %v7217 = vsel %vm1998, %v7199, 0
  %v7220 = vsel %vm1998, %v7201, 0
  %v7223 = vsel %vm1998, %v7203, 0
  %v7226 = vsel %vm1998, %v7205, 0
  %v7229 = vsel %vm1998, %v7207, 0
  %v7232 = vsel %vm1998, %v7209, 0
  %7234 = vmatprep.subr.bf16.mxu0 0
  %7235 = vmatpush1.bf16.xpose.msra.mxu0 0
  %7236 = vmatprep.subr.bf16.mxu0 0
  %7237 = vmatpush1.bf16.xpose.msra.mxu0 0
  %7238 = vmatprep.subr.bf16.mxu0 0
  %7239 = vmatpush1.bf16.xpose.msra.mxu0 0
  %7240 = vmatprep.subr.bf16.mxu0 0
  %7241 = vmatpush1.bf16.xpose.msra.mxu0 0
  %7242 = vmatprep.subr.bf16.mxu0 0
  %7243 = vmatpush1.bf16.xpose.msra.mxu0 %v7232
  %7244 = vmatprep.subr.bf16.mxu0 0
  %7245 = vmatpush1.bf16.xpose.msra.mxu0 %v7229
  %7246 = vmatprep.subr.bf16.mxu0 0
  %7247 = vmatpush1.bf16.xpose.msra.mxu0 %v7226
  %7248 = vmatprep.subr.bf16.mxu0 0
  %7249 = vmatpush1.bf16.xpose.msra.mxu0 %v7223
  %7250 = vmatprep.subr.bf16.mxu0 0
  %7251 = vmatpush2.bf16.xpose.msra.mxu0 0
  %7252 = vmatprep.subr.bf16.mxu0 0
  %7253 = vmatpush2.bf16.xpose.msra.mxu0 0
  %7254 = vmatprep.subr.bf16.mxu0 0
  %7255 = vmatpush2.bf16.xpose.msra.mxu0 0
  %7256 = vmatprep.subr.bf16.mxu0 0
  %7257 = vmatpush2.bf16.xpose.msra.mxu0 0
  %7258 = vmatprep.subr.bf16.mxu0 0
  %7259 = vmatpush2.bf16.xpose.msra.mxu0 0
  %7260 = vmatprep.subr.bf16.mxu0 0
  %7261 = vmatpush2.bf16.xpose.msra.mxu0 0
  %7262 = vmatprep.subr.bf16.mxu0 0
  %7263 = vmatpush2.bf16.xpose.msra.mxu0 0
  %7264 = vmatprep.subr.bf16.mxu0 0
  %7265 = vmatpush2.bf16.xpose.msra.mxu0 0
  %7266 = vmatprep.mubr.bf16.mxu0 0
  %7267 = vmatmul.mubr.bf16.gmra.mxu0 %v7211
  %v7268 = vpop.f32.mrf.mxu0
  %v7269 = vadd.f32 0.0, %v7268
  %v7270 = vpop.f32.mrf.mxu0
  %v7271 = vpop.f32.mrf.mxu0
  %v7272 = vadd.f32 0.0, %v7271
  %v7273 = vpop.f32.mrf.mxu0
  %7274 = vmatprep.mubr.bf16.mxu0 0
  %7275 = vmatmul.mubr.bf16.gmra.mxu0 %v7214
  %v7276 = vpop.f32.mrf.mxu0
  %v7277 = vadd.f32 0.0, %v7276
  %v7278 = vpop.f32.mrf.mxu0
  %v7279 = vpop.f32.mrf.mxu0
  %v7280 = vadd.f32 0.0, %v7279
  %v7281 = vpop.f32.mrf.mxu0
  %7282 = vmatprep.mubr.bf16.mxu0 0
  %7283 = vmatmul.mubr.bf16.gmra.mxu0 %v7217
  %v7284 = vpop.f32.mrf.mxu0
  %v7285 = vadd.f32 0.0, %v7284
  %v7286 = vpop.f32.mrf.mxu0
  %v7287 = vpop.f32.mrf.mxu0
  %v7288 = vadd.f32 0.0, %v7287
  %v7289 = vpop.f32.mrf.mxu0
  %7290 = vmatprep.mubr.bf16.mxu0 0
  %7291 = vmatmul.mubr.bf16.gmra.mxu0 %v7220
  %v7292 = vpop.f32.mrf.mxu0
  %v7293 = vadd.f32 0.0, %v7292
  %v7294 = vpop.f32.mrf.mxu0
  %v7295 = vpop.f32.mrf.mxu0
  %v7296 = vadd.f32 0.0, %v7295
  %v7297 = vpop.f32.mrf.mxu0
  %7298 = vdwg.mxu0
  %7299 = vrot.lane.b32.xlu0 %v1318, 112
  %v7300 = vpop.permute.xlu0 %7299
  %7301 = vrot.lane.b32.xlu0 %v1319, 112
  %v7302 = vpop.permute.xlu0 %7301
  %7303 = vrot.lane.b32.xlu0 %v1320, 112
  %v7304 = vpop.permute.xlu0 %7303
  %7305 = vrot.lane.b32.xlu0 %v1321, 112
  %v7306 = vpop.permute.xlu0 %7305
  %7307 = vrot.lane.b32.xlu0 %v1950, 48
  %v7308 = vpop.permute.xlu0 %7307
  %7309 = vrot.lane.b32.xlu0 %v1951, 48
  %v7310 = vpop.permute.xlu0 %7309
  %7311 = vrot.lane.b32.xlu0 %v1952, 48
  %v7312 = vpop.permute.xlu0 %7311
  %7313 = vrot.lane.b32.xlu0 %v1953, 48
  %v7314 = vpop.permute.xlu0 %7313
  %v7316 = vsel %vm1998, %v7300, 0
  %v7319 = vsel %vm1998, %v7302, 0
  %v7322 = vsel %vm1998, %v7304, 0
  %v7325 = vsel %vm1998, %v7306, 0
  %v7328 = vsel %vm1998, %v7308, 0
  %v7331 = vsel %vm1998, %v7310, 0
  %v7334 = vsel %vm1998, %v7312, 0
  %v7337 = vsel %vm1998, %v7314, 0
  %7339 = vmatprep.subr.bf16.mxu0 0
  %7340 = vmatpush1.bf16.xpose.msra.mxu0 0
  %7341 = vmatprep.subr.bf16.mxu0 0
  %7342 = vmatpush1.bf16.xpose.msra.mxu0 0
  %7343 = vmatprep.subr.bf16.mxu0 0
  %7344 = vmatpush1.bf16.xpose.msra.mxu0 0
  %7345 = vmatprep.subr.bf16.mxu0 0
  %7346 = vmatpush1.bf16.xpose.msra.mxu0 0
  %7347 = vmatprep.subr.bf16.mxu0 0
  %7348 = vmatpush1.bf16.xpose.msra.mxu0 %v7337
  %7349 = vmatprep.subr.bf16.mxu0 0
  %7350 = vmatpush1.bf16.xpose.msra.mxu0 %v7334
  %7351 = vmatprep.subr.bf16.mxu0 0
  %7352 = vmatpush1.bf16.xpose.msra.mxu0 %v7331
  %7353 = vmatprep.subr.bf16.mxu0 0
  %7354 = vmatpush1.bf16.xpose.msra.mxu0 %v7328
  %7355 = vmatprep.subr.bf16.mxu0 0
  %7356 = vmatpush2.bf16.xpose.msra.mxu0 0
  %7357 = vmatprep.subr.bf16.mxu0 0
  %7358 = vmatpush2.bf16.xpose.msra.mxu0 0
  %7359 = vmatprep.subr.bf16.mxu0 0
  %7360 = vmatpush2.bf16.xpose.msra.mxu0 0
  %7361 = vmatprep.subr.bf16.mxu0 0
  %7362 = vmatpush2.bf16.xpose.msra.mxu0 0
  %7363 = vmatprep.subr.bf16.mxu0 0
  %7364 = vmatpush2.bf16.xpose.msra.mxu0 0
  %7365 = vmatprep.subr.bf16.mxu0 0
  %7366 = vmatpush2.bf16.xpose.msra.mxu0 0
  %7367 = vmatprep.subr.bf16.mxu0 0
  %7368 = vmatpush2.bf16.xpose.msra.mxu0 0
  %7369 = vmatprep.subr.bf16.mxu0 0
  %7370 = vmatpush2.bf16.xpose.msra.mxu0 0
  %7371 = vmatprep.mubr.bf16.mxu0 0
  %7372 = vmatmul.mubr.bf16.gmra.mxu0 %v7316
  %v7373 = vpop.f32.mrf.mxu0
  %v7374 = vadd.f32 0.0, %v7373
  %v7375 = vpop.f32.mrf.mxu0
  %v7376 = vpop.f32.mrf.mxu0
  %v7377 = vadd.f32 0.0, %v7376
  %v7378 = vpop.f32.mrf.mxu0
  %7379 = vmatprep.mubr.bf16.mxu0 0
  %7380 = vmatmul.mubr.bf16.gmra.mxu0 %v7319
  %v7381 = vpop.f32.mrf.mxu0
  %v7382 = vadd.f32 0.0, %v7381
  %v7383 = vpop.f32.mrf.mxu0
  %v7384 = vpop.f32.mrf.mxu0
  %v7385 = vadd.f32 0.0, %v7384
  %v7386 = vpop.f32.mrf.mxu0
  %7387 = vmatprep.mubr.bf16.mxu0 0
  %7388 = vmatmul.mubr.bf16.gmra.mxu0 %v7322
  %v7389 = vpop.f32.mrf.mxu0
  %v7390 = vadd.f32 0.0, %v7389
  %v7391 = vpop.f32.mrf.mxu0
  %v7392 = vpop.f32.mrf.mxu0
  %v7393 = vadd.f32 0.0, %v7392
  %v7394 = vpop.f32.mrf.mxu0
  %7395 = vmatprep.mubr.bf16.mxu0 0
  %7396 = vmatmul.mubr.bf16.gmra.mxu0 %v7325
  %v7397 = vpop.f32.mrf.mxu0
  %v7398 = vadd.f32 0.0, %v7397
  %v7399 = vpop.f32.mrf.mxu0
  %v7400 = vpop.f32.mrf.mxu0
  %v7401 = vadd.f32 0.0, %v7400
  %v7402 = vpop.f32.mrf.mxu0
  %7403 = vdwg.mxu0
  %v7404 = vsel %vm2795, %v6639, -inf
  %7405 = vmax.xlane.f32.xlu0 %v7404
  %v7406 = vpop.xlane.xlu0 %7405
  %v7407 = vsel %vm2795, %v6642, -inf
  %7408 = vmax.xlane.f32.xlu0 %v7407
  %v7409 = vpop.xlane.xlu0 %7408
  %v7410 = vsel %vm2795, %v6647, -inf
  %7411 = vmax.xlane.f32.xlu0 %v7410
  %v7412 = vpop.xlane.xlu0 %7411
  %v7413 = vsel %vm2795, %v6650, -inf
  %7414 = vmax.xlane.f32.xlu0 %v7413
  %v7415 = vpop.xlane.xlu0 %7414
  %v7416 = vsel %vm2795, %v6655, -inf
  %7417 = vmax.xlane.f32.xlu0 %v7416
  %v7418 = vpop.xlane.xlu0 %7417
  %v7419 = vsel %vm2795, %v6658, -inf
  %7420 = vmax.xlane.f32.xlu0 %v7419
  %v7421 = vpop.xlane.xlu0 %7420
  %v7422 = vsel %vm2795, %v6663, -inf
  %7423 = vmax.xlane.f32.xlu0 %v7422
  %v7424 = vpop.xlane.xlu0 %7423
  %v7425 = vsel %vm2795, %v6666, -inf
  %7426 = vmax.xlane.f32.xlu0 %v7425
  %v7427 = vpop.xlane.xlu0 %7426
  %v7428 = vsel %vm2795, %v6744, -inf
  %7429 = vmax.xlane.f32.xlu0 %v7428
  %v7430 = vpop.xlane.xlu0 %7429
  %v7431 = vsel %vm2795, %v6747, -inf
  %7432 = vmax.xlane.f32.xlu0 %v7431
  %v7433 = vpop.xlane.xlu0 %7432
  %v7434 = vsel %vm2795, %v6752, -inf
  %7435 = vmax.xlane.f32.xlu0 %v7434
  %v7436 = vpop.xlane.xlu0 %7435
  %v7437 = vsel %vm2795, %v6755, -inf
  %7438 = vmax.xlane.f32.xlu0 %v7437
  %v7439 = vpop.xlane.xlu0 %7438
  %v7440 = vsel %vm2795, %v6760, -inf
  %7441 = vmax.xlane.f32.xlu0 %v7440
  %v7442 = vpop.xlane.xlu0 %7441
  %v7443 = vsel %vm2795, %v6763, -inf
  %7444 = vmax.xlane.f32.xlu0 %v7443
  %v7445 = vpop.xlane.xlu0 %7444
  %v7446 = vsel %vm2795, %v6768, -inf
  %7447 = vmax.xlane.f32.xlu0 %v7446
  %v7448 = vpop.xlane.xlu0 %7447
  %v7449 = vsel %vm2795, %v6771, -inf
  %7450 = vmax.xlane.f32.xlu0 %v7449
  %v7451 = vpop.xlane.xlu0 %7450
  %v7452 = vsel %vm2795, %v6849, -inf
  %7453 = vmax.xlane.f32.xlu0 %v7452
  %v7454 = vpop.xlane.xlu0 %7453
  %v7455 = vsel %vm2795, %v6852, -inf
  %7456 = vmax.xlane.f32.xlu0 %v7455
  %v7457 = vpop.xlane.xlu0 %7456
  %v7458 = vsel %vm2795, %v6857, -inf
  %7459 = vmax.xlane.f32.xlu0 %v7458
  %v7460 = vpop.xlane.xlu0 %7459
  %v7461 = vsel %vm2795, %v6860, -inf
  %7462 = vmax.xlane.f32.xlu0 %v7461
  %v7463 = vpop.xlane.xlu0 %7462
  %v7464 = vsel %vm2795, %v6865, -inf
  %7465 = vmax.xlane.f32.xlu0 %v7464
  %v7466 = vpop.xlane.xlu0 %7465
  %v7467 = vsel %vm2795, %v6868, -inf
  %7468 = vmax.xlane.f32.xlu0 %v7467
  %v7469 = vpop.xlane.xlu0 %7468
  %v7470 = vsel %vm2795, %v6873, -inf
  %7471 = vmax.xlane.f32.xlu0 %v7470
  %v7472 = vpop.xlane.xlu0 %7471
  %v7473 = vsel %vm2795, %v6876, -inf
  %7474 = vmax.xlane.f32.xlu0 %v7473
  %v7475 = vpop.xlane.xlu0 %7474
  %v7476 = vsel %vm2795, %v6954, -inf
  %7477 = vmax.xlane.f32.xlu0 %v7476
  %v7478 = vpop.xlane.xlu0 %7477
  %v7479 = vsel %vm2795, %v6957, -inf
  %7480 = vmax.xlane.f32.xlu0 %v7479
  %v7481 = vpop.xlane.xlu0 %7480
  %v7482 = vsel %vm2795, %v6962, -inf
  %7483 = vmax.xlane.f32.xlu0 %v7482
  %v7484 = vpop.xlane.xlu0 %7483
  %v7485 = vsel %vm2795, %v6965, -inf
  %7486 = vmax.xlane.f32.xlu0 %v7485
  %v7487 = vpop.xlane.xlu0 %7486
  %v7488 = vsel %vm2795, %v6970, -inf
  %7489 = vmax.xlane.f32.xlu0 %v7488
  %v7490 = vpop.xlane.xlu0 %7489
  %v7491 = vsel %vm2795, %v6973, -inf
  %7492 = vmax.xlane.f32.xlu0 %v7491
  %v7493 = vpop.xlane.xlu0 %7492
  %v7494 = vsel %vm2795, %v6978, -inf
  %7495 = vmax.xlane.f32.xlu0 %v7494
  %v7496 = vpop.xlane.xlu0 %7495
  %v7497 = vsel %vm2795, %v6981, -inf
  %7498 = vmax.xlane.f32.xlu0 %v7497
  %v7499 = vpop.xlane.xlu0 %7498
  %v7500 = vsel %vm2795, %v7059, -inf
  %7501 = vmax.xlane.f32.xlu0 %v7500
  %v7502 = vpop.xlane.xlu0 %7501
  %v7503 = vsel %vm2795, %v7062, -inf
  %7504 = vmax.xlane.f32.xlu0 %v7503
  %v7505 = vpop.xlane.xlu0 %7504
  %v7506 = vsel %vm2795, %v7067, -inf
  %7507 = vmax.xlane.f32.xlu0 %v7506
  %v7508 = vpop.xlane.xlu0 %7507
  %v7509 = vsel %vm2795, %v7070, -inf
  %7510 = vmax.xlane.f32.xlu0 %v7509
  %v7511 = vpop.xlane.xlu0 %7510
  %v7512 = vsel %vm2795, %v7075, -inf
  %7513 = vmax.xlane.f32.xlu0 %v7512
  %v7514 = vpop.xlane.xlu0 %7513
  %v7515 = vsel %vm2795, %v7078, -inf
  %7516 = vmax.xlane.f32.xlu0 %v7515
  %v7517 = vpop.xlane.xlu0 %7516
  %v7518 = vsel %vm2795, %v7083, -inf
  %7519 = vmax.xlane.f32.xlu0 %v7518
  %v7520 = vpop.xlane.xlu0 %7519
  %v7521 = vsel %vm2795, %v7086, -inf
  %7522 = vmax.xlane.f32.xlu0 %v7521
  %v7523 = vpop.xlane.xlu0 %7522
  %v7524 = vsel %vm2795, %v7164, -inf
  %7525 = vmax.xlane.f32.xlu0 %v7524
  %v7526 = vpop.xlane.xlu0 %7525
  %v7527 = vsel %vm2795, %v7167, -inf
  %7528 = vmax.xlane.f32.xlu0 %v7527
  %v7529 = vpop.xlane.xlu0 %7528
  %v7530 = vsel %vm2795, %v7172, -inf
  %7531 = vmax.xlane.f32.xlu0 %v7530
  %v7532 = vpop.xlane.xlu0 %7531
  %v7533 = vsel %vm2795, %v7175, -inf
  %7534 = vmax.xlane.f32.xlu0 %v7533
  %v7535 = vpop.xlane.xlu0 %7534
  %v7536 = vsel %vm2795, %v7180, -inf
  %7537 = vmax.xlane.f32.xlu0 %v7536
  %v7538 = vpop.xlane.xlu0 %7537
  %v7539 = vsel %vm2795, %v7183, -inf
  %7540 = vmax.xlane.f32.xlu0 %v7539
  %v7541 = vpop.xlane.xlu0 %7540
  %v7542 = vsel %vm2795, %v7188, -inf
  %7543 = vmax.xlane.f32.xlu0 %v7542
  %v7544 = vpop.xlane.xlu0 %7543
  %v7545 = vsel %vm2795, %v7191, -inf
  %7546 = vmax.xlane.f32.xlu0 %v7545
  %v7547 = vpop.xlane.xlu0 %7546
  %v7548 = vsel %vm2795, %v7269, -inf
  %7549 = vmax.xlane.f32.xlu0 %v7548
  %v7550 = vpop.xlane.xlu0 %7549
  %v7551 = vsel %vm2795, %v7272, -inf
  %7552 = vmax.xlane.f32.xlu0 %v7551
  %v7553 = vpop.xlane.xlu0 %7552
  %v7554 = vsel %vm2795, %v7277, -inf
  %7555 = vmax.xlane.f32.xlu0 %v7554
  %v7556 = vpop.xlane.xlu0 %7555
  %v7557 = vsel %vm2795, %v7280, -inf
  %7558 = vmax.xlane.f32.xlu0 %v7557
  %v7559 = vpop.xlane.xlu0 %7558
  %v7560 = vsel %vm2795, %v7285, -inf
  %7561 = vmax.xlane.f32.xlu0 %v7560
  %v7562 = vpop.xlane.xlu0 %7561
  %v7563 = vsel %vm2795, %v7288, -inf
  %7564 = vmax.xlane.f32.xlu0 %v7563
  %v7565 = vpop.xlane.xlu0 %7564
  %v7566 = vsel %vm2795, %v7293, -inf
  %7567 = vmax.xlane.f32.xlu0 %v7566
  %v7568 = vpop.xlane.xlu0 %7567
  %v7569 = vsel %vm2795, %v7296, -inf
  %7570 = vmax.xlane.f32.xlu0 %v7569
  %v7571 = vpop.xlane.xlu0 %7570
  %v7572 = vsel %vm2795, %v7374, -inf
  %7573 = vmax.xlane.f32.xlu0 %v7572
  %v7574 = vpop.xlane.xlu0 %7573
  %v7575 = vsel %vm2795, %v7377, -inf
  %7576 = vmax.xlane.f32.xlu0 %v7575
  %v7577 = vpop.xlane.xlu0 %7576
  %v7578 = vsel %vm2795, %v7382, -inf
  %7579 = vmax.xlane.f32.xlu0 %v7578
  %v7580 = vpop.xlane.xlu0 %7579
  %v7581 = vsel %vm2795, %v7385, -inf
  %7582 = vmax.xlane.f32.xlu0 %v7581
  %v7583 = vpop.xlane.xlu0 %7582
  %v7584 = vsel %vm2795, %v7390, -inf
  %7585 = vmax.xlane.f32.xlu0 %v7584
  %v7586 = vpop.xlane.xlu0 %7585
  %v7587 = vsel %vm2795, %v7393, -inf
  %7588 = vmax.xlane.f32.xlu0 %v7587
  %v7589 = vpop.xlane.xlu0 %7588
  %v7590 = vsel %vm2795, %v7398, -inf
  %7591 = vmax.xlane.f32.xlu0 %v7590
  %v7592 = vpop.xlane.xlu0 %7591
  %v7593 = vsel %vm2795, %v7401, -inf
  %7594 = vmax.xlane.f32.xlu0 %v7593
  %v7595 = vpop.xlane.xlu0 %7594
  %v7596 = vsub.f32 %v6639, %v7406
  %v7597 = vsub.f32 %v6642, %v7409
  %v7598 = vsub.f32 %v6647, %v7412
  %v7599 = vsub.f32 %v6650, %v7415
  %v7600 = vsub.f32 %v6655, %v7418
  %v7601 = vsub.f32 %v6658, %v7421
  %v7602 = vsub.f32 %v6663, %v7424
  %v7603 = vsub.f32 %v6666, %v7427
  %v7604 = vsub.f32 %v6744, %v7430
  %v7605 = vsub.f32 %v6747, %v7433
  %v7606 = vsub.f32 %v6752, %v7436
  %v7607 = vsub.f32 %v6755, %v7439
  %v7608 = vsub.f32 %v6760, %v7442
  %v7609 = vsub.f32 %v6763, %v7445
  %v7610 = vsub.f32 %v6768, %v7448
  %v7611 = vsub.f32 %v6771, %v7451
  %v7612 = vsub.f32 %v6849, %v7454
  %v7613 = vsub.f32 %v6852, %v7457
  %v7614 = vsub.f32 %v6857, %v7460
  %v7615 = vsub.f32 %v6860, %v7463
  %v7616 = vsub.f32 %v6865, %v7466
  %v7617 = vsub.f32 %v6868, %v7469
  %v7618 = vsub.f32 %v6873, %v7472
  %v7619 = vsub.f32 %v6876, %v7475
  %v7620 = vsub.f32 %v6954, %v7478
  %v7621 = vsub.f32 %v6957, %v7481
  %v7622 = vsub.f32 %v6962, %v7484
  %v7623 = vsub.f32 %v6965, %v7487
  %v7624 = vsub.f32 %v6970, %v7490
  %v7625 = vsub.f32 %v6973, %v7493
  %v7626 = vsub.f32 %v6978, %v7496
  %v7627 = vsub.f32 %v6981, %v7499
  %v7628 = vsub.f32 %v7059, %v7502
  %v7629 = vsub.f32 %v7062, %v7505
  %v7630 = vsub.f32 %v7067, %v7508
  %v7631 = vsub.f32 %v7070, %v7511
  %v7632 = vsub.f32 %v7075, %v7514
  %v7633 = vsub.f32 %v7078, %v7517
  %v7634 = vsub.f32 %v7083, %v7520
  %v7635 = vsub.f32 %v7086, %v7523
  %v7636 = vsub.f32 %v7164, %v7526
  %v7637 = vsub.f32 %v7167, %v7529
  %v7638 = vsub.f32 %v7172, %v7532
  %v7639 = vsub.f32 %v7175, %v7535
  %v7640 = vsub.f32 %v7180, %v7538
  %v7641 = vsub.f32 %v7183, %v7541
  %v7642 = vsub.f32 %v7188, %v7544
  %v7643 = vsub.f32 %v7191, %v7547
  %v7644 = vsub.f32 %v7269, %v7550
  %v7645 = vsub.f32 %v7272, %v7553
  %v7646 = vsub.f32 %v7277, %v7556
  %v7647 = vsub.f32 %v7280, %v7559
  %v7648 = vsub.f32 %v7285, %v7562
  %v7649 = vsub.f32 %v7288, %v7565
  %v7650 = vsub.f32 %v7293, %v7568
  %v7651 = vsub.f32 %v7296, %v7571
  %v7652 = vsub.f32 %v7374, %v7574
  %v7653 = vsub.f32 %v7377, %v7577
  %v7654 = vsub.f32 %v7382, %v7580
  %v7655 = vsub.f32 %v7385, %v7583
  %v7656 = vsub.f32 %v7390, %v7586
  %v7657 = vsub.f32 %v7393, %v7589
  %v7658 = vsub.f32 %v7398, %v7592
  %v7659 = vsub.f32 %v7401, %v7595
  %v7660 = vmul.f32 %v7596, 1.442695
  %v7661 = vpow.pop %v7660
  %v7662 = vmul.f32 %v7597, 1.442695
  %v7663 = vpow.pop %v7662
  %v7664 = vmul.f32 %v7598, 1.442695
  %v7665 = vpow.pop %v7664
  %v7666 = vmul.f32 %v7599, 1.442695
  %v7667 = vpow.pop %v7666
  %v7668 = vmul.f32 %v7600, 1.442695
  %v7669 = vpow.pop %v7668
  %v7670 = vmul.f32 %v7601, 1.442695
  %v7671 = vpow.pop %v7670
  %v7672 = vmul.f32 %v7602, 1.442695
  %v7673 = vpow.pop %v7672
  %v7674 = vmul.f32 %v7603, 1.442695
  %v7675 = vpow.pop %v7674
  %v7676 = vmul.f32 %v7604, 1.442695
  %v7677 = vpow.pop %v7676
  %v7678 = vmul.f32 %v7605, 1.442695
  %v7679 = vpow.pop %v7678
  %v7680 = vmul.f32 %v7606, 1.442695
  %v7681 = vpow.pop %v7680
  %v7682 = vmul.f32 %v7607, 1.442695
  %v7683 = vpow.pop %v7682
  %v7684 = vmul.f32 %v7608, 1.442695
  %v7685 = vpow.pop %v7684
  %v7686 = vmul.f32 %v7609, 1.442695
  %v7687 = vpow.pop %v7686
  %v7688 = vmul.f32 %v7610, 1.442695
  %v7689 = vpow.pop %v7688
  %v7690 = vmul.f32 %v7611, 1.442695
  %v7691 = vpow.pop %v7690
  %v7692 = vmul.f32 %v7612, 1.442695
  %v7693 = vpow.pop %v7692
  %v7694 = vmul.f32 %v7613, 1.442695
  %v7695 = vpow.pop %v7694
  %v7696 = vmul.f32 %v7614, 1.442695
  %v7697 = vpow.pop %v7696
  %v7698 = vmul.f32 %v7615, 1.442695
  %v7699 = vpow.pop %v7698
  %v7700 = vmul.f32 %v7616, 1.442695
  %v7701 = vpow.pop %v7700
  %v7702 = vmul.f32 %v7617, 1.442695
  %v7703 = vpow.pop %v7702
  %v7704 = vmul.f32 %v7618, 1.442695
  %v7705 = vpow.pop %v7704
  %v7706 = vmul.f32 %v7619, 1.442695
  %v7707 = vpow.pop %v7706
  %v7708 = vmul.f32 %v7620, 1.442695
  %v7709 = vpow.pop %v7708
  %v7710 = vmul.f32 %v7621, 1.442695
  %v7711 = vpow.pop %v7710
  %v7712 = vmul.f32 %v7622, 1.442695
  %v7713 = vpow.pop %v7712
  %v7714 = vmul.f32 %v7623, 1.442695
  %v7715 = vpow.pop %v7714
  %v7716 = vmul.f32 %v7624, 1.442695
  %v7717 = vpow.pop %v7716
  %v7718 = vmul.f32 %v7625, 1.442695
  %v7719 = vpow.pop %v7718
  %v7720 = vmul.f32 %v7626, 1.442695
  %v7721 = vpow.pop %v7720
  %v7722 = vmul.f32 %v7627, 1.442695
  %v7723 = vpow.pop %v7722
  %v7724 = vmul.f32 %v7628, 1.442695
  %v7725 = vpow.pop %v7724
  %v7726 = vmul.f32 %v7629, 1.442695
  %v7727 = vpow.pop %v7726
  %v7728 = vmul.f32 %v7630, 1.442695
  %v7729 = vpow.pop %v7728
  %v7730 = vmul.f32 %v7631, 1.442695
  %v7731 = vpow.pop %v7730
  %v7732 = vmul.f32 %v7632, 1.442695
  %v7733 = vpow.pop %v7732
  %v7734 = vmul.f32 %v7633, 1.442695
  %v7735 = vpow.pop %v7734
  %v7736 = vmul.f32 %v7634, 1.442695
  %v7737 = vpow.pop %v7736
  %v7738 = vmul.f32 %v7635, 1.442695
  %v7739 = vpow.pop %v7738
  %v7740 = vmul.f32 %v7636, 1.442695
  %v7741 = vpow.pop %v7740
  %v7742 = vmul.f32 %v7637, 1.442695
  %v7743 = vpow.pop %v7742
  %v7744 = vmul.f32 %v7638, 1.442695
  %v7745 = vpow.pop %v7744
  %v7746 = vmul.f32 %v7639, 1.442695
  %v7747 = vpow.pop %v7746
  %v7748 = vmul.f32 %v7640, 1.442695
  %v7749 = vpow.pop %v7748
  %v7750 = vmul.f32 %v7641, 1.442695
  %v7751 = vpow.pop %v7750
  %v7752 = vmul.f32 %v7642, 1.442695
  %v7753 = vpow.pop %v7752
  %v7754 = vmul.f32 %v7643, 1.442695
  %v7755 = vpow.pop %v7754
  %v7756 = vmul.f32 %v7644, 1.442695
  %v7757 = vpow.pop %v7756
  %v7758 = vmul.f32 %v7645, 1.442695
  %v7759 = vpow.pop %v7758
  %v7760 = vmul.f32 %v7646, 1.442695
  %v7761 = vpow.pop %v7760
  %v7762 = vmul.f32 %v7647, 1.442695
  %v7763 = vpow.pop %v7762
  %v7764 = vmul.f32 %v7648, 1.442695
  %v7765 = vpow.pop %v7764
  %v7766 = vmul.f32 %v7649, 1.442695
  %v7767 = vpow.pop %v7766
  %v7768 = vmul.f32 %v7650, 1.442695
  %v7769 = vpow.pop %v7768
  %v7770 = vmul.f32 %v7651, 1.442695
  %v7771 = vpow.pop %v7770
  %v7772 = vmul.f32 %v7652, 1.442695
  %v7773 = vpow.pop %v7772
  %v7774 = vmul.f32 %v7653, 1.442695
  %v7775 = vpow.pop %v7774
  %v7776 = vmul.f32 %v7654, 1.442695
  %v7777 = vpow.pop %v7776
  %v7778 = vmul.f32 %v7655, 1.442695
  %v7779 = vpow.pop %v7778
  %v7780 = vmul.f32 %v7656, 1.442695
  %v7781 = vpow.pop %v7780
  %v7782 = vmul.f32 %v7657, 1.442695
  %v7783 = vpow.pop %v7782
  %v7784 = vmul.f32 %v7658, 1.442695
  %v7785 = vpow.pop %v7784
  %v7786 = vmul.f32 %v7659, 1.442695
  %v7787 = vpow.pop %v7786
  %v7788 = vsel %vm2795, %v7661, 0.0
  %7789 = vadd.xlane.f32.xlu0 %v7788
  %v7790 = vpop.xlane.xlu0 %7789
  %v7791 = vsel %vm2795, %v7663, 0.0
  %7792 = vadd.xlane.f32.xlu0 %v7791
  %v7793 = vpop.xlane.xlu0 %7792
  %v7794 = vsel %vm2795, %v7665, 0.0
  %7795 = vadd.xlane.f32.xlu0 %v7794
  %v7796 = vpop.xlane.xlu0 %7795
  %v7797 = vsel %vm2795, %v7667, 0.0
  %7798 = vadd.xlane.f32.xlu0 %v7797
  %v7799 = vpop.xlane.xlu0 %7798
  %v7800 = vsel %vm2795, %v7669, 0.0
  %7801 = vadd.xlane.f32.xlu0 %v7800
  %v7802 = vpop.xlane.xlu0 %7801
  %v7803 = vsel %vm2795, %v7671, 0.0
  %7804 = vadd.xlane.f32.xlu0 %v7803
  %v7805 = vpop.xlane.xlu0 %7804
  %v7806 = vsel %vm2795, %v7673, 0.0
  %7807 = vadd.xlane.f32.xlu0 %v7806
  %v7808 = vpop.xlane.xlu0 %7807
  %v7809 = vsel %vm2795, %v7675, 0.0
  %7810 = vadd.xlane.f32.xlu0 %v7809
  %v7811 = vpop.xlane.xlu0 %7810
  %v7812 = vsel %vm2795, %v7677, 0.0
  %7813 = vadd.xlane.f32.xlu0 %v7812
  %v7814 = vpop.xlane.xlu0 %7813
  %v7815 = vsel %vm2795, %v7679, 0.0
  %7816 = vadd.xlane.f32.xlu0 %v7815
  %v7817 = vpop.xlane.xlu0 %7816
  %v7818 = vsel %vm2795, %v7681, 0.0
  %7819 = vadd.xlane.f32.xlu0 %v7818
  %v7820 = vpop.xlane.xlu0 %7819
  %v7821 = vsel %vm2795, %v7683, 0.0
  %7822 = vadd.xlane.f32.xlu0 %v7821
  %v7823 = vpop.xlane.xlu0 %7822
  %v7824 = vsel %vm2795, %v7685, 0.0
  %7825 = vadd.xlane.f32.xlu0 %v7824
  %v7826 = vpop.xlane.xlu0 %7825
  %v7827 = vsel %vm2795, %v7687, 0.0
  %7828 = vadd.xlane.f32.xlu0 %v7827
  %v7829 = vpop.xlane.xlu0 %7828
  %v7830 = vsel %vm2795, %v7689, 0.0
  %7831 = vadd.xlane.f32.xlu0 %v7830
  %v7832 = vpop.xlane.xlu0 %7831
  %v7833 = vsel %vm2795, %v7691, 0.0
  %7834 = vadd.xlane.f32.xlu0 %v7833
  %v7835 = vpop.xlane.xlu0 %7834
  %v7836 = vsel %vm2795, %v7693, 0.0
  %7837 = vadd.xlane.f32.xlu0 %v7836
  %v7838 = vpop.xlane.xlu0 %7837
  %v7839 = vsel %vm2795, %v7695, 0.0
  %7840 = vadd.xlane.f32.xlu0 %v7839
  %v7841 = vpop.xlane.xlu0 %7840
  %v7842 = vsel %vm2795, %v7697, 0.0
  %7843 = vadd.xlane.f32.xlu0 %v7842
  %v7844 = vpop.xlane.xlu0 %7843
  %v7845 = vsel %vm2795, %v7699, 0.0
  %7846 = vadd.xlane.f32.xlu0 %v7845
  %v7847 = vpop.xlane.xlu0 %7846
  %v7848 = vsel %vm2795, %v7701, 0.0
  %7849 = vadd.xlane.f32.xlu0 %v7848
  %v7850 = vpop.xlane.xlu0 %7849
  %v7851 = vsel %vm2795, %v7703, 0.0
  %7852 = vadd.xlane.f32.xlu0 %v7851
  %v7853 = vpop.xlane.xlu0 %7852
  %v7854 = vsel %vm2795, %v7705, 0.0
  %7855 = vadd.xlane.f32.xlu0 %v7854
  %v7856 = vpop.xlane.xlu0 %7855
  %v7857 = vsel %vm2795, %v7707, 0.0
  %7858 = vadd.xlane.f32.xlu0 %v7857
  %v7859 = vpop.xlane.xlu0 %7858
  %v7860 = vsel %vm2795, %v7709, 0.0
  %7861 = vadd.xlane.f32.xlu0 %v7860
  %v7862 = vpop.xlane.xlu0 %7861
  %v7863 = vsel %vm2795, %v7711, 0.0
  %7864 = vadd.xlane.f32.xlu0 %v7863
  %v7865 = vpop.xlane.xlu0 %7864
  %v7866 = vsel %vm2795, %v7713, 0.0
  %7867 = vadd.xlane.f32.xlu0 %v7866
  %v7868 = vpop.xlane.xlu0 %7867
  %v7869 = vsel %vm2795, %v7715, 0.0
  %7870 = vadd.xlane.f32.xlu0 %v7869
  %v7871 = vpop.xlane.xlu0 %7870
  %v7872 = vsel %vm2795, %v7717, 0.0
  %7873 = vadd.xlane.f32.xlu0 %v7872
  %v7874 = vpop.xlane.xlu0 %7873
  %v7875 = vsel %vm2795, %v7719, 0.0
  %7876 = vadd.xlane.f32.xlu0 %v7875
  %v7877 = vpop.xlane.xlu0 %7876
  %v7878 = vsel %vm2795, %v7721, 0.0
  %7879 = vadd.xlane.f32.xlu0 %v7878
  %v7880 = vpop.xlane.xlu0 %7879
  %v7881 = vsel %vm2795, %v7723, 0.0
  %7882 = vadd.xlane.f32.xlu0 %v7881
  %v7883 = vpop.xlane.xlu0 %7882
  %v7884 = vsel %vm2795, %v7725, 0.0
  %7885 = vadd.xlane.f32.xlu0 %v7884
  %v7886 = vpop.xlane.xlu0 %7885
  %v7887 = vsel %vm2795, %v7727, 0.0
  %7888 = vadd.xlane.f32.xlu0 %v7887
  %v7889 = vpop.xlane.xlu0 %7888
  %v7890 = vsel %vm2795, %v7729, 0.0
  %7891 = vadd.xlane.f32.xlu0 %v7890
  %v7892 = vpop.xlane.xlu0 %7891
  %v7893 = vsel %vm2795, %v7731, 0.0
  %7894 = vadd.xlane.f32.xlu0 %v7893
  %v7895 = vpop.xlane.xlu0 %7894
  %v7896 = vsel %vm2795, %v7733, 0.0
  %7897 = vadd.xlane.f32.xlu0 %v7896
  %v7898 = vpop.xlane.xlu0 %7897
  %v7899 = vsel %vm2795, %v7735, 0.0
  %7900 = vadd.xlane.f32.xlu0 %v7899
  %v7901 = vpop.xlane.xlu0 %7900
  %v7902 = vsel %vm2795, %v7737, 0.0
  %7903 = vadd.xlane.f32.xlu0 %v7902
  %v7904 = vpop.xlane.xlu0 %7903
  %v7905 = vsel %vm2795, %v7739, 0.0
  %7906 = vadd.xlane.f32.xlu0 %v7905
  %v7907 = vpop.xlane.xlu0 %7906
  %v7908 = vsel %vm2795, %v7741, 0.0
  %7909 = vadd.xlane.f32.xlu0 %v7908
  %v7910 = vpop.xlane.xlu0 %7909
  %v7911 = vsel %vm2795, %v7743, 0.0
  %7912 = vadd.xlane.f32.xlu0 %v7911
  %v7913 = vpop.xlane.xlu0 %7912
  %v7914 = vsel %vm2795, %v7745, 0.0
  %7915 = vadd.xlane.f32.xlu0 %v7914
  %v7916 = vpop.xlane.xlu0 %7915
  %v7917 = vsel %vm2795, %v7747, 0.0
  %7918 = vadd.xlane.f32.xlu0 %v7917
  %v7919 = vpop.xlane.xlu0 %7918
  %v7920 = vsel %vm2795, %v7749, 0.0
  %7921 = vadd.xlane.f32.xlu0 %v7920
  %v7922 = vpop.xlane.xlu0 %7921
  %v7923 = vsel %vm2795, %v7751, 0.0
  %7924 = vadd.xlane.f32.xlu0 %v7923
  %v7925 = vpop.xlane.xlu0 %7924
  %v7926 = vsel %vm2795, %v7753, 0.0
  %7927 = vadd.xlane.f32.xlu0 %v7926
  %v7928 = vpop.xlane.xlu0 %7927
  %v7929 = vsel %vm2795, %v7755, 0.0
  %7930 = vadd.xlane.f32.xlu0 %v7929
  %v7931 = vpop.xlane.xlu0 %7930
  %v7932 = vsel %vm2795, %v7757, 0.0
  %7933 = vadd.xlane.f32.xlu0 %v7932
  %v7934 = vpop.xlane.xlu0 %7933
  %v7935 = vsel %vm2795, %v7759, 0.0
  %7936 = vadd.xlane.f32.xlu0 %v7935
  %v7937 = vpop.xlane.xlu0 %7936
  %v7938 = vsel %vm2795, %v7761, 0.0
  %7939 = vadd.xlane.f32.xlu0 %v7938
  %v7940 = vpop.xlane.xlu0 %7939
  %v7941 = vsel %vm2795, %v7763, 0.0
  %7942 = vadd.xlane.f32.xlu0 %v7941
  %v7943 = vpop.xlane.xlu0 %7942
  %v7944 = vsel %vm2795, %v7765, 0.0
  %7945 = vadd.xlane.f32.xlu0 %v7944
  %v7946 = vpop.xlane.xlu0 %7945
  %v7947 = vsel %vm2795, %v7767, 0.0
  %7948 = vadd.xlane.f32.xlu0 %v7947
  %v7949 = vpop.xlane.xlu0 %7948
  %v7950 = vsel %vm2795, %v7769, 0.0
  %7951 = vadd.xlane.f32.xlu0 %v7950
  %v7952 = vpop.xlane.xlu0 %7951
  %v7953 = vsel %vm2795, %v7771, 0.0
  %7954 = vadd.xlane.f32.xlu0 %v7953
  %v7955 = vpop.xlane.xlu0 %7954
  %v7956 = vsel %vm2795, %v7773, 0.0
  %7957 = vadd.xlane.f32.xlu0 %v7956
  %v7958 = vpop.xlane.xlu0 %7957
  %v7959 = vsel %vm2795, %v7775, 0.0
  %7960 = vadd.xlane.f32.xlu0 %v7959
  %v7961 = vpop.xlane.xlu0 %7960
  %v7962 = vsel %vm2795, %v7777, 0.0
  %7963 = vadd.xlane.f32.xlu0 %v7962
  %v7964 = vpop.xlane.xlu0 %7963
  %v7965 = vsel %vm2795, %v7779, 0.0
  %7966 = vadd.xlane.f32.xlu0 %v7965
  %v7967 = vpop.xlane.xlu0 %7966
  %v7968 = vsel %vm2795, %v7781, 0.0
  %7969 = vadd.xlane.f32.xlu0 %v7968
  %v7970 = vpop.xlane.xlu0 %7969
  %v7971 = vsel %vm2795, %v7783, 0.0
  %7972 = vadd.xlane.f32.xlu0 %v7971
  %v7973 = vpop.xlane.xlu0 %7972
  %v7974 = vsel %vm2795, %v7785, 0.0
  %7975 = vadd.xlane.f32.xlu0 %v7974
  %v7976 = vpop.xlane.xlu0 %7975
  %v7977 = vsel %vm2795, %v7787, 0.0
  %7978 = vadd.xlane.f32.xlu0 %v7977
  %v7979 = vpop.xlane.xlu0 %7978
  %v7980 = vrcp.pop %v7790
  %v7981 = vrcp.pop %v7793
  %v7982 = vrcp.pop %v7796
  %v7983 = vrcp.pop %v7799
  %v7984 = vrcp.pop %v7802
  %v7985 = vrcp.pop %v7805
  %v7986 = vrcp.pop %v7808
  %v7987 = vrcp.pop %v7811
  %v7988 = vrcp.pop %v7814
  %v7989 = vrcp.pop %v7817
  %v7990 = vrcp.pop %v7820
  %v7991 = vrcp.pop %v7823
  %v7992 = vrcp.pop %v7826
  %v7993 = vrcp.pop %v7829
  %v7994 = vrcp.pop %v7832
  %v7995 = vrcp.pop %v7835
  %v7996 = vrcp.pop %v7838
  %v7997 = vrcp.pop %v7841
  %v7998 = vrcp.pop %v7844
  %v7999 = vrcp.pop %v7847
  %v8000 = vrcp.pop %v7850
  %v8001 = vrcp.pop %v7853
  %v8002 = vrcp.pop %v7856
  %v8003 = vrcp.pop %v7859
  %v8004 = vrcp.pop %v7862
  %v8005 = vrcp.pop %v7865
  %v8006 = vrcp.pop %v7868
  %v8007 = vrcp.pop %v7871
  %v8008 = vrcp.pop %v7874
  %v8009 = vrcp.pop %v7877
  %v8010 = vrcp.pop %v7880
  %v8011 = vrcp.pop %v7883
  %v8012 = vrcp.pop %v7886
  %v8013 = vrcp.pop %v7889
  %v8014 = vrcp.pop %v7892
  %v8015 = vrcp.pop %v7895
  %v8016 = vrcp.pop %v7898
  %v8017 = vrcp.pop %v7901
  %v8018 = vrcp.pop %v7904
  %v8019 = vrcp.pop %v7907
  %v8020 = vrcp.pop %v7910
  %v8021 = vrcp.pop %v7913
  %v8022 = vrcp.pop %v7916
  %v8023 = vrcp.pop %v7919
  %v8024 = vrcp.pop %v7922
  %v8025 = vrcp.pop %v7925
  %v8026 = vrcp.pop %v7928
  %v8027 = vrcp.pop %v7931
  %v8028 = vrcp.pop %v7934
  %v8029 = vrcp.pop %v7937
  %v8030 = vrcp.pop %v7940
  %v8031 = vrcp.pop %v7943
  %v8032 = vrcp.pop %v7946
  %v8033 = vrcp.pop %v7949
  %v8034 = vrcp.pop %v7952
  %v8035 = vrcp.pop %v7955
  %v8036 = vrcp.pop %v7958
  %v8037 = vrcp.pop %v7961
  %v8038 = vrcp.pop %v7964
  %v8039 = vrcp.pop %v7967
  %v8040 = vrcp.pop %v7970
  %v8041 = vrcp.pop %v7973
  %v8042 = vrcp.pop %v7976
  %v8043 = vrcp.pop %v7979
  %v8044 = vmul.f32 %v7661, %v7980
  %v8045 = vmul.f32 %v7663, %v7981
  %v8046 = vmul.f32 %v7665, %v7982
  %v8047 = vmul.f32 %v7667, %v7983
  %v8048 = vmul.f32 %v7669, %v7984
  %v8049 = vmul.f32 %v7671, %v7985
  %v8050 = vmul.f32 %v7673, %v7986
  %v8051 = vmul.f32 %v7675, %v7987
  %v8052 = vmul.f32 %v7677, %v7988
  %v8053 = vmul.f32 %v7679, %v7989
  %v8054 = vmul.f32 %v7681, %v7990
  %v8055 = vmul.f32 %v7683, %v7991
  %v8056 = vmul.f32 %v7685, %v7992
  %v8057 = vmul.f32 %v7687, %v7993
  %v8058 = vmul.f32 %v7689, %v7994
  %v8059 = vmul.f32 %v7691, %v7995
  %v8060 = vmul.f32 %v7693, %v7996
  %v8061 = vmul.f32 %v7695, %v7997
  %v8062 = vmul.f32 %v7697, %v7998
  %v8063 = vmul.f32 %v7699, %v7999
  %v8064 = vmul.f32 %v7701, %v8000
  %v8065 = vmul.f32 %v7703, %v8001
  %v8066 = vmul.f32 %v7705, %v8002
  %v8067 = vmul.f32 %v7707, %v8003
  %v8068 = vmul.f32 %v7709, %v8004
  %v8069 = vmul.f32 %v7711, %v8005
  %v8070 = vmul.f32 %v7713, %v8006
  %v8071 = vmul.f32 %v7715, %v8007
  %v8072 = vmul.f32 %v7717, %v8008
  %v8073 = vmul.f32 %v7719, %v8009
  %v8074 = vmul.f32 %v7721, %v8010
  %v8075 = vmul.f32 %v7723, %v8011
  %v8076 = vmul.f32 %v7725, %v8012
  %v8077 = vmul.f32 %v7727, %v8013
  %v8078 = vmul.f32 %v7729, %v8014
  %v8079 = vmul.f32 %v7731, %v8015
  %v8080 = vmul.f32 %v7733, %v8016
  %v8081 = vmul.f32 %v7735, %v8017
  %v8082 = vmul.f32 %v7737, %v8018
  %v8083 = vmul.f32 %v7739, %v8019
  %v8084 = vmul.f32 %v7741, %v8020
  %v8085 = vmul.f32 %v7743, %v8021
  %v8086 = vmul.f32 %v7745, %v8022
  %v8087 = vmul.f32 %v7747, %v8023
  %v8088 = vmul.f32 %v7749, %v8024
  %v8089 = vmul.f32 %v7751, %v8025
  %v8090 = vmul.f32 %v7753, %v8026
  %v8091 = vmul.f32 %v7755, %v8027
  %v8092 = vmul.f32 %v7757, %v8028
  %v8093 = vmul.f32 %v7759, %v8029
  %v8094 = vmul.f32 %v7761, %v8030
  %v8095 = vmul.f32 %v7763, %v8031
  %v8096 = vmul.f32 %v7765, %v8032
  %v8097 = vmul.f32 %v7767, %v8033
  %v8098 = vmul.f32 %v7769, %v8034
  %v8099 = vmul.f32 %v7771, %v8035
  %v8100 = vmul.f32 %v7773, %v8036
  %v8101 = vmul.f32 %v7775, %v8037
  %v8102 = vmul.f32 %v7777, %v8038
  %v8103 = vmul.f32 %v7779, %v8039
  %v8104 = vmul.f32 %v7781, %v8040
  %v8105 = vmul.f32 %v7783, %v8041
  %v8106 = vmul.f32 %v7785, %v8042
  %v8107 = vmul.f32 %v7787, %v8043
  %v8108 = vpack.c.bf16 %v8045, %v8044
  %v8109 = vpack.c.bf16 %v8047, %v8046
  %v8110 = vpack.c.bf16 %v8049, %v8048
  %v8111 = vpack.c.bf16 %v8051, %v8050
  %v8112 = vpack.c.bf16 %v8053, %v8052
  %v8113 = vpack.c.bf16 %v8055, %v8054
  %v8114 = vpack.c.bf16 %v8057, %v8056
  %v8115 = vpack.c.bf16 %v8059, %v8058
  %v8116 = vpack.c.bf16 %v8061, %v8060
  %v8117 = vpack.c.bf16 %v8063, %v8062
  %v8118 = vpack.c.bf16 %v8065, %v8064
  %v8119 = vpack.c.bf16 %v8067, %v8066
  %v8120 = vpack.c.bf16 %v8069, %v8068
  %v8121 = vpack.c.bf16 %v8071, %v8070
  %v8122 = vpack.c.bf16 %v8073, %v8072
  %v8123 = vpack.c.bf16 %v8075, %v8074
  %v8124 = vpack.c.bf16 %v8077, %v8076
  %v8125 = vpack.c.bf16 %v8079, %v8078
  %v8126 = vpack.c.bf16 %v8081, %v8080
  %v8127 = vpack.c.bf16 %v8083, %v8082
  %v8128 = vpack.c.bf16 %v8085, %v8084
  %v8129 = vpack.c.bf16 %v8087, %v8086
  %v8130 = vpack.c.bf16 %v8089, %v8088
  %v8131 = vpack.c.bf16 %v8091, %v8090
  %v8132 = vpack.c.bf16 %v8093, %v8092
  %v8133 = vpack.c.bf16 %v8095, %v8094
  %v8134 = vpack.c.bf16 %v8097, %v8096
  %v8135 = vpack.c.bf16 %v8099, %v8098
  %v8136 = vpack.c.bf16 %v8101, %v8100
  %v8137 = vpack.c.bf16 %v8103, %v8102
  %v8138 = vpack.c.bf16 %v8105, %v8104
  %v8139 = vpack.c.bf16 %v8107, %v8106
  %8140 = vrot.lane.b32.xlu0 %v1954, 112
  %v8141 = vpop.permute.xlu0 %8140
  %8142 = vrot.lane.b32.xlu0 %v1955, 112
  %v8143 = vpop.permute.xlu0 %8142
  %8144 = vrot.lane.b32.xlu0 %v1956, 112
  %v8145 = vpop.permute.xlu0 %8144
  %8146 = vrot.lane.b32.xlu0 %v1957, 112
  %v8147 = vpop.permute.xlu0 %8146
  %v8153 = vsel %vm2795, %v8108, 0
  %v8156 = vsel %vm2795, %v8109, 0
  %v8159 = vsel %vm2795, %v8110, 0
  %v8162 = vsel %vm2795, %v8111, 0
  %8164 = vmatprep.subr.bf16.mxu0 0
  %8165 = vmatpush1.bf16.msra.mxu0 0
  %8166 = vmatprep.subr.bf16.mxu0 0
  %8167 = vmatpush1.bf16.msra.mxu0 0
  %8168 = vmatprep.subr.bf16.mxu0 0
  %8169 = vmatpush1.bf16.msra.mxu0 0
  %8170 = vmatprep.subr.bf16.mxu0 0
  %8171 = vmatpush1.bf16.msra.mxu0 0
  %8172 = vmatprep.subr.bf16.mxu0 0
  %8173 = vmatpush1.bf16.msra.mxu0 %v8147
  %8174 = vmatprep.subr.bf16.mxu0 0
  %8175 = vmatpush1.bf16.msra.mxu0 %v8145
  %8176 = vmatprep.subr.bf16.mxu0 0
  %8177 = vmatpush1.bf16.msra.mxu0 %v8143
  %8178 = vmatprep.subr.bf16.mxu0 0
  %8179 = vmatpush1.bf16.msra.mxu0 %v8141
  %8180 = vmatprep.subr.bf16.mxu0 0
  %8181 = vmatpush2.bf16.msra.mxu0 0
  %8182 = vmatprep.subr.bf16.mxu0 0
  %8183 = vmatpush2.bf16.msra.mxu0 0
  %8184 = vmatprep.subr.bf16.mxu0 0
  %8185 = vmatpush2.bf16.msra.mxu0 0
  %8186 = vmatprep.subr.bf16.mxu0 0
  %8187 = vmatpush2.bf16.msra.mxu0 0
  %8188 = vmatprep.subr.bf16.mxu0 0
  %8189 = vmatpush2.bf16.msra.mxu0 0
  %8190 = vmatprep.subr.bf16.mxu0 0
  %8191 = vmatpush2.bf16.msra.mxu0 0
  %8192 = vmatprep.subr.bf16.mxu0 0
  %8193 = vmatpush2.bf16.msra.mxu0 0
  %8194 = vmatprep.subr.bf16.mxu0 0
  %8195 = vmatpush2.bf16.msra.mxu0 0
  %8196 = vmatprep.mubr.bf16.mxu0 0
  %8197 = vmatmul.mubr.bf16.gmra.mxu0 %v8153
  %v8198 = vpop.f32.mrf.mxu0
  %v8199 = vadd.f32 0.0, %v8198
  %v8200 = vpop.f32.mrf.mxu0
  %v8201 = vpop.f32.mrf.mxu0
  %v8202 = vadd.f32 0.0, %v8201
  %v8203 = vpop.f32.mrf.mxu0
  %8204 = vmatprep.mubr.bf16.mxu0 0
  %8205 = vmatmul.mubr.bf16.gmra.mxu0 %v8156
  %v8206 = vpop.f32.mrf.mxu0
  %v8207 = vadd.f32 0.0, %v8206
  %v8208 = vpop.f32.mrf.mxu0
  %v8209 = vpop.f32.mrf.mxu0
  %v8210 = vadd.f32 0.0, %v8209
  %v8211 = vpop.f32.mrf.mxu0
  %8212 = vmatprep.mubr.bf16.mxu0 0
  %8213 = vmatmul.mubr.bf16.gmra.mxu0 %v8159
  %v8214 = vpop.f32.mrf.mxu0
  %v8215 = vadd.f32 0.0, %v8214
  %v8216 = vpop.f32.mrf.mxu0
  %v8217 = vpop.f32.mrf.mxu0
  %v8218 = vadd.f32 0.0, %v8217
  %v8219 = vpop.f32.mrf.mxu0
  %8220 = vmatprep.mubr.bf16.mxu0 0
  %8221 = vmatmul.mubr.bf16.gmra.mxu0 %v8162
  %v8222 = vpop.f32.mrf.mxu0
  %v8223 = vadd.f32 0.0, %v8222
  %v8224 = vpop.f32.mrf.mxu0
  %v8225 = vpop.f32.mrf.mxu0
  %v8226 = vadd.f32 0.0, %v8225
  %v8227 = vpop.f32.mrf.mxu0
  %8228 = vdwg.mxu0
  %8229 = vrot.lane.b32.xlu0 %v1958, 112
  %v8230 = vpop.permute.xlu0 %8229
  %8231 = vrot.lane.b32.xlu0 %v1959, 112
  %v8232 = vpop.permute.xlu0 %8231
  %8233 = vrot.lane.b32.xlu0 %v1960, 112
  %v8234 = vpop.permute.xlu0 %8233
  %8235 = vrot.lane.b32.xlu0 %v1961, 112
  %v8236 = vpop.permute.xlu0 %8235
  %v8242 = vsel %vm2795, %v8112, 0
  %v8245 = vsel %vm2795, %v8113, 0
  %v8248 = vsel %vm2795, %v8114, 0
  %v8251 = vsel %vm2795, %v8115, 0
  %8253 = vmatprep.subr.bf16.mxu0 0
  %8254 = vmatpush1.bf16.msra.mxu0 0
  %8255 = vmatprep.subr.bf16.mxu0 0
  %8256 = vmatpush1.bf16.msra.mxu0 0
  %8257 = vmatprep.subr.bf16.mxu0 0
  %8258 = vmatpush1.bf16.msra.mxu0 0
  %8259 = vmatprep.subr.bf16.mxu0 0
  %8260 = vmatpush1.bf16.msra.mxu0 0
  %8261 = vmatprep.subr.bf16.mxu0 0
  %8262 = vmatpush1.bf16.msra.mxu0 %v8236
  %8263 = vmatprep.subr.bf16.mxu0 0
  %8264 = vmatpush1.bf16.msra.mxu0 %v8234
  %8265 = vmatprep.subr.bf16.mxu0 0
  %8266 = vmatpush1.bf16.msra.mxu0 %v8232
  %8267 = vmatprep.subr.bf16.mxu0 0
  %8268 = vmatpush1.bf16.msra.mxu0 %v8230
  %8269 = vmatprep.subr.bf16.mxu0 0
  %8270 = vmatpush2.bf16.msra.mxu0 0
  %8271 = vmatprep.subr.bf16.mxu0 0
  %8272 = vmatpush2.bf16.msra.mxu0 0
  %8273 = vmatprep.subr.bf16.mxu0 0
  %8274 = vmatpush2.bf16.msra.mxu0 0
  %8275 = vmatprep.subr.bf16.mxu0 0
  %8276 = vmatpush2.bf16.msra.mxu0 0
  %8277 = vmatprep.subr.bf16.mxu0 0
  %8278 = vmatpush2.bf16.msra.mxu0 0
  %8279 = vmatprep.subr.bf16.mxu0 0
  %8280 = vmatpush2.bf16.msra.mxu0 0
  %8281 = vmatprep.subr.bf16.mxu0 0
  %8282 = vmatpush2.bf16.msra.mxu0 0
  %8283 = vmatprep.subr.bf16.mxu0 0
  %8284 = vmatpush2.bf16.msra.mxu0 0
  %8285 = vmatprep.mubr.bf16.mxu0 0
  %8286 = vmatmul.mubr.bf16.gmra.mxu0 %v8242
  %v8287 = vpop.f32.mrf.mxu0
  %v8288 = vadd.f32 0.0, %v8287
  %v8289 = vpop.f32.mrf.mxu0
  %v8290 = vpop.f32.mrf.mxu0
  %v8291 = vadd.f32 0.0, %v8290
  %v8292 = vpop.f32.mrf.mxu0
  %8293 = vmatprep.mubr.bf16.mxu0 0
  %8294 = vmatmul.mubr.bf16.gmra.mxu0 %v8245
  %v8295 = vpop.f32.mrf.mxu0
  %v8296 = vadd.f32 0.0, %v8295
  %v8297 = vpop.f32.mrf.mxu0
  %v8298 = vpop.f32.mrf.mxu0
  %v8299 = vadd.f32 0.0, %v8298
  %v8300 = vpop.f32.mrf.mxu0
  %8301 = vmatprep.mubr.bf16.mxu0 0
  %8302 = vmatmul.mubr.bf16.gmra.mxu0 %v8248
  %v8303 = vpop.f32.mrf.mxu0
  %v8304 = vadd.f32 0.0, %v8303
  %v8305 = vpop.f32.mrf.mxu0
  %v8306 = vpop.f32.mrf.mxu0
  %v8307 = vadd.f32 0.0, %v8306
  %v8308 = vpop.f32.mrf.mxu0
  %8309 = vmatprep.mubr.bf16.mxu0 0
  %8310 = vmatmul.mubr.bf16.gmra.mxu0 %v8251
  %v8311 = vpop.f32.mrf.mxu0
  %v8312 = vadd.f32 0.0, %v8311
  %v8313 = vpop.f32.mrf.mxu0
  %v8314 = vpop.f32.mrf.mxu0
  %v8315 = vadd.f32 0.0, %v8314
  %v8316 = vpop.f32.mrf.mxu0
  %8317 = vdwg.mxu0
  %8318 = vrot.lane.b32.xlu0 %v1962, 112
  %v8319 = vpop.permute.xlu0 %8318
  %8320 = vrot.lane.b32.xlu0 %v1963, 112
  %v8321 = vpop.permute.xlu0 %8320
  %8322 = vrot.lane.b32.xlu0 %v1964, 112
  %v8323 = vpop.permute.xlu0 %8322
  %8324 = vrot.lane.b32.xlu0 %v1965, 112
  %v8325 = vpop.permute.xlu0 %8324
  %v8331 = vsel %vm2795, %v8116, 0
  %v8334 = vsel %vm2795, %v8117, 0
  %v8337 = vsel %vm2795, %v8118, 0
  %v8340 = vsel %vm2795, %v8119, 0
  %8342 = vmatprep.subr.bf16.mxu0 0
  %8343 = vmatpush1.bf16.msra.mxu0 0
  %8344 = vmatprep.subr.bf16.mxu0 0
  %8345 = vmatpush1.bf16.msra.mxu0 0
  %8346 = vmatprep.subr.bf16.mxu0 0
  %8347 = vmatpush1.bf16.msra.mxu0 0
  %8348 = vmatprep.subr.bf16.mxu0 0
  %8349 = vmatpush1.bf16.msra.mxu0 0
  %8350 = vmatprep.subr.bf16.mxu0 0
  %8351 = vmatpush1.bf16.msra.mxu0 %v8325
  %8352 = vmatprep.subr.bf16.mxu0 0
  %8353 = vmatpush1.bf16.msra.mxu0 %v8323
  %8354 = vmatprep.subr.bf16.mxu0 0
  %8355 = vmatpush1.bf16.msra.mxu0 %v8321
  %8356 = vmatprep.subr.bf16.mxu0 0
  %8357 = vmatpush1.bf16.msra.mxu0 %v8319
  %8358 = vmatprep.subr.bf16.mxu0 0
  %8359 = vmatpush2.bf16.msra.mxu0 0
  %8360 = vmatprep.subr.bf16.mxu0 0
  %8361 = vmatpush2.bf16.msra.mxu0 0
  %8362 = vmatprep.subr.bf16.mxu0 0
  %8363 = vmatpush2.bf16.msra.mxu0 0
  %8364 = vmatprep.subr.bf16.mxu0 0
  %8365 = vmatpush2.bf16.msra.mxu0 0
  %8366 = vmatprep.subr.bf16.mxu0 0
  %8367 = vmatpush2.bf16.msra.mxu0 0
  %8368 = vmatprep.subr.bf16.mxu0 0
  %8369 = vmatpush2.bf16.msra.mxu0 0
  %8370 = vmatprep.subr.bf16.mxu0 0
  %8371 = vmatpush2.bf16.msra.mxu0 0
  %8372 = vmatprep.subr.bf16.mxu0 0
  %8373 = vmatpush2.bf16.msra.mxu0 0
  %8374 = vmatprep.mubr.bf16.mxu0 0
  %8375 = vmatmul.mubr.bf16.gmra.mxu0 %v8331
  %v8376 = vpop.f32.mrf.mxu0
  %v8377 = vadd.f32 0.0, %v8376
  %v8378 = vpop.f32.mrf.mxu0
  %v8379 = vpop.f32.mrf.mxu0
  %v8380 = vadd.f32 0.0, %v8379
  %v8381 = vpop.f32.mrf.mxu0
  %8382 = vmatprep.mubr.bf16.mxu0 0
  %8383 = vmatmul.mubr.bf16.gmra.mxu0 %v8334
  %v8384 = vpop.f32.mrf.mxu0
  %v8385 = vadd.f32 0.0, %v8384
  %v8386 = vpop.f32.mrf.mxu0
  %v8387 = vpop.f32.mrf.mxu0
  %v8388 = vadd.f32 0.0, %v8387
  %v8389 = vpop.f32.mrf.mxu0
  %8390 = vmatprep.mubr.bf16.mxu0 0
  %8391 = vmatmul.mubr.bf16.gmra.mxu0 %v8337
  %v8392 = vpop.f32.mrf.mxu0
  %v8393 = vadd.f32 0.0, %v8392
  %v8394 = vpop.f32.mrf.mxu0
  %v8395 = vpop.f32.mrf.mxu0
  %v8396 = vadd.f32 0.0, %v8395
  %v8397 = vpop.f32.mrf.mxu0
  %8398 = vmatprep.mubr.bf16.mxu0 0
  %8399 = vmatmul.mubr.bf16.gmra.mxu0 %v8340
  %v8400 = vpop.f32.mrf.mxu0
  %v8401 = vadd.f32 0.0, %v8400
  %v8402 = vpop.f32.mrf.mxu0
  %v8403 = vpop.f32.mrf.mxu0
  %v8404 = vadd.f32 0.0, %v8403
  %v8405 = vpop.f32.mrf.mxu0
  %8406 = vdwg.mxu0
  %8407 = vrot.lane.b32.xlu0 %v1966, 112
  %v8408 = vpop.permute.xlu0 %8407
  %8409 = vrot.lane.b32.xlu0 %v1967, 112
  %v8410 = vpop.permute.xlu0 %8409
  %8411 = vrot.lane.b32.xlu0 %v1968, 112
  %v8412 = vpop.permute.xlu0 %8411
  %8413 = vrot.lane.b32.xlu0 %v1969, 112
  %v8414 = vpop.permute.xlu0 %8413
  %v8420 = vsel %vm2795, %v8120, 0
  %v8423 = vsel %vm2795, %v8121, 0
  %v8426 = vsel %vm2795, %v8122, 0
  %v8429 = vsel %vm2795, %v8123, 0
  %8431 = vmatprep.subr.bf16.mxu0 0
  %8432 = vmatpush1.bf16.msra.mxu0 0
  %8433 = vmatprep.subr.bf16.mxu0 0
  %8434 = vmatpush1.bf16.msra.mxu0 0
  %8435 = vmatprep.subr.bf16.mxu0 0
  %8436 = vmatpush1.bf16.msra.mxu0 0
  %8437 = vmatprep.subr.bf16.mxu0 0
  %8438 = vmatpush1.bf16.msra.mxu0 0
  %8439 = vmatprep.subr.bf16.mxu0 0
  %8440 = vmatpush1.bf16.msra.mxu0 %v8414
  %8441 = vmatprep.subr.bf16.mxu0 0
  %8442 = vmatpush1.bf16.msra.mxu0 %v8412
  %8443 = vmatprep.subr.bf16.mxu0 0
  %8444 = vmatpush1.bf16.msra.mxu0 %v8410
  %8445 = vmatprep.subr.bf16.mxu0 0
  %8446 = vmatpush1.bf16.msra.mxu0 %v8408
  %8447 = vmatprep.subr.bf16.mxu0 0
  %8448 = vmatpush2.bf16.msra.mxu0 0
  %8449 = vmatprep.subr.bf16.mxu0 0
  %8450 = vmatpush2.bf16.msra.mxu0 0
  %8451 = vmatprep.subr.bf16.mxu0 0
  %8452 = vmatpush2.bf16.msra.mxu0 0
  %8453 = vmatprep.subr.bf16.mxu0 0
  %8454 = vmatpush2.bf16.msra.mxu0 0
  %8455 = vmatprep.subr.bf16.mxu0 0
  %8456 = vmatpush2.bf16.msra.mxu0 0
  %8457 = vmatprep.subr.bf16.mxu0 0
  %8458 = vmatpush2.bf16.msra.mxu0 0
  %8459 = vmatprep.subr.bf16.mxu0 0
  %8460 = vmatpush2.bf16.msra.mxu0 0
  %8461 = vmatprep.subr.bf16.mxu0 0
  %8462 = vmatpush2.bf16.msra.mxu0 0
  %8463 = vmatprep.mubr.bf16.mxu0 0
  %8464 = vmatmul.mubr.bf16.gmra.mxu0 %v8420
  %v8465 = vpop.f32.mrf.mxu0
  %v8466 = vadd.f32 0.0, %v8465
  %v8467 = vpop.f32.mrf.mxu0
  %v8468 = vpop.f32.mrf.mxu0
  %v8469 = vadd.f32 0.0, %v8468
  %v8470 = vpop.f32.mrf.mxu0
  %8471 = vmatprep.mubr.bf16.mxu0 0
  %8472 = vmatmul.mubr.bf16.gmra.mxu0 %v8423
  %v8473 = vpop.f32.mrf.mxu0
  %v8474 = vadd.f32 0.0, %v8473
  %v8475 = vpop.f32.mrf.mxu0
  %v8476 = vpop.f32.mrf.mxu0
  %v8477 = vadd.f32 0.0, %v8476
  %v8478 = vpop.f32.mrf.mxu0
  %8479 = vmatprep.mubr.bf16.mxu0 0
  %8480 = vmatmul.mubr.bf16.gmra.mxu0 %v8426
  %v8481 = vpop.f32.mrf.mxu0
  %v8482 = vadd.f32 0.0, %v8481
  %v8483 = vpop.f32.mrf.mxu0
  %v8484 = vpop.f32.mrf.mxu0
  %v8485 = vadd.f32 0.0, %v8484
  %v8486 = vpop.f32.mrf.mxu0
  %8487 = vmatprep.mubr.bf16.mxu0 0
  %8488 = vmatmul.mubr.bf16.gmra.mxu0 %v8429
  %v8489 = vpop.f32.mrf.mxu0
  %v8490 = vadd.f32 0.0, %v8489
  %v8491 = vpop.f32.mrf.mxu0
  %v8492 = vpop.f32.mrf.mxu0
  %v8493 = vadd.f32 0.0, %v8492
  %v8494 = vpop.f32.mrf.mxu0
  %8495 = vdwg.mxu0
  %8496 = vrot.lane.b32.xlu0 %v1970, 112
  %v8497 = vpop.permute.xlu0 %8496
  %8498 = vrot.lane.b32.xlu0 %v1971, 112
  %v8499 = vpop.permute.xlu0 %8498
  %8500 = vrot.lane.b32.xlu0 %v1972, 112
  %v8501 = vpop.permute.xlu0 %8500
  %8502 = vrot.lane.b32.xlu0 %v1973, 112
  %v8503 = vpop.permute.xlu0 %8502
  %v8509 = vsel %vm2795, %v8124, 0
  %v8512 = vsel %vm2795, %v8125, 0
  %v8515 = vsel %vm2795, %v8126, 0
  %v8518 = vsel %vm2795, %v8127, 0
  %8520 = vmatprep.subr.bf16.mxu0 0
  %8521 = vmatpush1.bf16.msra.mxu0 0
  %8522 = vmatprep.subr.bf16.mxu0 0
  %8523 = vmatpush1.bf16.msra.mxu0 0
  %8524 = vmatprep.subr.bf16.mxu0 0
  %8525 = vmatpush1.bf16.msra.mxu0 0
  %8526 = vmatprep.subr.bf16.mxu0 0
  %8527 = vmatpush1.bf16.msra.mxu0 0
  %8528 = vmatprep.subr.bf16.mxu0 0
  %8529 = vmatpush1.bf16.msra.mxu0 %v8503
  %8530 = vmatprep.subr.bf16.mxu0 0
  %8531 = vmatpush1.bf16.msra.mxu0 %v8501
  %8532 = vmatprep.subr.bf16.mxu0 0
  %8533 = vmatpush1.bf16.msra.mxu0 %v8499
  %8534 = vmatprep.subr.bf16.mxu0 0
  %8535 = vmatpush1.bf16.msra.mxu0 %v8497
  %8536 = vmatprep.subr.bf16.mxu0 0
  %8537 = vmatpush2.bf16.msra.mxu0 0
  %8538 = vmatprep.subr.bf16.mxu0 0
  %8539 = vmatpush2.bf16.msra.mxu0 0
  %8540 = vmatprep.subr.bf16.mxu0 0
  %8541 = vmatpush2.bf16.msra.mxu0 0
  %8542 = vmatprep.subr.bf16.mxu0 0
  %8543 = vmatpush2.bf16.msra.mxu0 0
  %8544 = vmatprep.subr.bf16.mxu0 0
  %8545 = vmatpush2.bf16.msra.mxu0 0
  %8546 = vmatprep.subr.bf16.mxu0 0
  %8547 = vmatpush2.bf16.msra.mxu0 0
  %8548 = vmatprep.subr.bf16.mxu0 0
  %8549 = vmatpush2.bf16.msra.mxu0 0
  %8550 = vmatprep.subr.bf16.mxu0 0
  %8551 = vmatpush2.bf16.msra.mxu0 0
  %8552 = vmatprep.mubr.bf16.mxu0 0
  %8553 = vmatmul.mubr.bf16.gmra.mxu0 %v8509
  %v8554 = vpop.f32.mrf.mxu0
  %v8555 = vadd.f32 0.0, %v8554
  %v8556 = vpop.f32.mrf.mxu0
  %v8557 = vpop.f32.mrf.mxu0
  %v8558 = vadd.f32 0.0, %v8557
  %v8559 = vpop.f32.mrf.mxu0
  %8560 = vmatprep.mubr.bf16.mxu0 0
  %8561 = vmatmul.mubr.bf16.gmra.mxu0 %v8512
  %v8562 = vpop.f32.mrf.mxu0
  %v8563 = vadd.f32 0.0, %v8562
  %v8564 = vpop.f32.mrf.mxu0
  %v8565 = vpop.f32.mrf.mxu0
  %v8566 = vadd.f32 0.0, %v8565
  %v8567 = vpop.f32.mrf.mxu0
  %8568 = vmatprep.mubr.bf16.mxu0 0
  %8569 = vmatmul.mubr.bf16.gmra.mxu0 %v8515
  %v8570 = vpop.f32.mrf.mxu0
  %v8571 = vadd.f32 0.0, %v8570
  %v8572 = vpop.f32.mrf.mxu0
  %v8573 = vpop.f32.mrf.mxu0
  %v8574 = vadd.f32 0.0, %v8573
  %v8575 = vpop.f32.mrf.mxu0
  %8576 = vmatprep.mubr.bf16.mxu0 0
  %8577 = vmatmul.mubr.bf16.gmra.mxu0 %v8518
  %v8578 = vpop.f32.mrf.mxu0
  %v8579 = vadd.f32 0.0, %v8578
  %v8580 = vpop.f32.mrf.mxu0
  %v8581 = vpop.f32.mrf.mxu0
  %v8582 = vadd.f32 0.0, %v8581
  %v8583 = vpop.f32.mrf.mxu0
  %8584 = vdwg.mxu0
  %8585 = vrot.lane.b32.xlu0 %v1974, 112
  %v8586 = vpop.permute.xlu0 %8585
  %8587 = vrot.lane.b32.xlu0 %v1975, 112
  %v8588 = vpop.permute.xlu0 %8587
  %8589 = vrot.lane.b32.xlu0 %v1976, 112
  %v8590 = vpop.permute.xlu0 %8589
  %8591 = vrot.lane.b32.xlu0 %v1977, 112
  %v8592 = vpop.permute.xlu0 %8591
  %v8598 = vsel %vm2795, %v8128, 0
  %v8601 = vsel %vm2795, %v8129, 0
  %v8604 = vsel %vm2795, %v8130, 0
  %v8607 = vsel %vm2795, %v8131, 0
  %8609 = vmatprep.subr.bf16.mxu0 0
  %8610 = vmatpush1.bf16.msra.mxu0 0
  %8611 = vmatprep.subr.bf16.mxu0 0
  %8612 = vmatpush1.bf16.msra.mxu0 0
  %8613 = vmatprep.subr.bf16.mxu0 0
  %8614 = vmatpush1.bf16.msra.mxu0 0
  %8615 = vmatprep.subr.bf16.mxu0 0
  %8616 = vmatpush1.bf16.msra.mxu0 0
  %8617 = vmatprep.subr.bf16.mxu0 0
  %8618 = vmatpush1.bf16.msra.mxu0 %v8592
  %8619 = vmatprep.subr.bf16.mxu0 0
  %8620 = vmatpush1.bf16.msra.mxu0 %v8590
  %8621 = vmatprep.subr.bf16.mxu0 0
  %8622 = vmatpush1.bf16.msra.mxu0 %v8588
  %8623 = vmatprep.subr.bf16.mxu0 0
  %8624 = vmatpush1.bf16.msra.mxu0 %v8586
  %8625 = vmatprep.subr.bf16.mxu0 0
  %8626 = vmatpush2.bf16.msra.mxu0 0
  %8627 = vmatprep.subr.bf16.mxu0 0
  %8628 = vmatpush2.bf16.msra.mxu0 0
  %8629 = vmatprep.subr.bf16.mxu0 0
  %8630 = vmatpush2.bf16.msra.mxu0 0
  %8631 = vmatprep.subr.bf16.mxu0 0
  %8632 = vmatpush2.bf16.msra.mxu0 0
  %8633 = vmatprep.subr.bf16.mxu0 0
  %8634 = vmatpush2.bf16.msra.mxu0 0
  %8635 = vmatprep.subr.bf16.mxu0 0
  %8636 = vmatpush2.bf16.msra.mxu0 0
  %8637 = vmatprep.subr.bf16.mxu0 0
  %8638 = vmatpush2.bf16.msra.mxu0 0
  %8639 = vmatprep.subr.bf16.mxu0 0
  %8640 = vmatpush2.bf16.msra.mxu0 0
  %8641 = vmatprep.mubr.bf16.mxu0 0
  %8642 = vmatmul.mubr.bf16.gmra.mxu0 %v8598
  %v8643 = vpop.f32.mrf.mxu0
  %v8644 = vadd.f32 0.0, %v8643
  %v8645 = vpop.f32.mrf.mxu0
  %v8646 = vpop.f32.mrf.mxu0
  %v8647 = vadd.f32 0.0, %v8646
  %v8648 = vpop.f32.mrf.mxu0
  %8649 = vmatprep.mubr.bf16.mxu0 0
  %8650 = vmatmul.mubr.bf16.gmra.mxu0 %v8601
  %v8651 = vpop.f32.mrf.mxu0
  %v8652 = vadd.f32 0.0, %v8651
  %v8653 = vpop.f32.mrf.mxu0
  %v8654 = vpop.f32.mrf.mxu0
  %v8655 = vadd.f32 0.0, %v8654
  %v8656 = vpop.f32.mrf.mxu0
  %8657 = vmatprep.mubr.bf16.mxu0 0
  %8658 = vmatmul.mubr.bf16.gmra.mxu0 %v8604
  %v8659 = vpop.f32.mrf.mxu0
  %v8660 = vadd.f32 0.0, %v8659
  %v8661 = vpop.f32.mrf.mxu0
  %v8662 = vpop.f32.mrf.mxu0
  %v8663 = vadd.f32 0.0, %v8662
  %v8664 = vpop.f32.mrf.mxu0
  %8665 = vmatprep.mubr.bf16.mxu0 0
  %8666 = vmatmul.mubr.bf16.gmra.mxu0 %v8607
  %v8667 = vpop.f32.mrf.mxu0
  %v8668 = vadd.f32 0.0, %v8667
  %v8669 = vpop.f32.mrf.mxu0
  %v8670 = vpop.f32.mrf.mxu0
  %v8671 = vadd.f32 0.0, %v8670
  %v8672 = vpop.f32.mrf.mxu0
  %8673 = vdwg.mxu0
  %8674 = vrot.lane.b32.xlu0 %v1978, 112
  %v8675 = vpop.permute.xlu0 %8674
  %8676 = vrot.lane.b32.xlu0 %v1979, 112
  %v8677 = vpop.permute.xlu0 %8676
  %8678 = vrot.lane.b32.xlu0 %v1980, 112
  %v8679 = vpop.permute.xlu0 %8678
  %8680 = vrot.lane.b32.xlu0 %v1981, 112
  %v8681 = vpop.permute.xlu0 %8680
  %v8687 = vsel %vm2795, %v8132, 0
  %v8690 = vsel %vm2795, %v8133, 0
  %v8693 = vsel %vm2795, %v8134, 0
  %v8696 = vsel %vm2795, %v8135, 0
  %8698 = vmatprep.subr.bf16.mxu0 0
  %8699 = vmatpush1.bf16.msra.mxu0 0
  %8700 = vmatprep.subr.bf16.mxu0 0
  %8701 = vmatpush1.bf16.msra.mxu0 0
  %8702 = vmatprep.subr.bf16.mxu0 0
  %8703 = vmatpush1.bf16.msra.mxu0 0
  %8704 = vmatprep.subr.bf16.mxu0 0
  %8705 = vmatpush1.bf16.msra.mxu0 0
  %8706 = vmatprep.subr.bf16.mxu0 0
  %8707 = vmatpush1.bf16.msra.mxu0 %v8681
  %8708 = vmatprep.subr.bf16.mxu0 0
  %8709 = vmatpush1.bf16.msra.mxu0 %v8679
  %8710 = vmatprep.subr.bf16.mxu0 0
  %8711 = vmatpush1.bf16.msra.mxu0 %v8677
  %8712 = vmatprep.subr.bf16.mxu0 0
  %8713 = vmatpush1.bf16.msra.mxu0 %v8675
  %8714 = vmatprep.subr.bf16.mxu0 0
  %8715 = vmatpush2.bf16.msra.mxu0 0
  %8716 = vmatprep.subr.bf16.mxu0 0
  %8717 = vmatpush2.bf16.msra.mxu0 0
  %8718 = vmatprep.subr.bf16.mxu0 0
  %8719 = vmatpush2.bf16.msra.mxu0 0
  %8720 = vmatprep.subr.bf16.mxu0 0
  %8721 = vmatpush2.bf16.msra.mxu0 0
  %8722 = vmatprep.subr.bf16.mxu0 0
  %8723 = vmatpush2.bf16.msra.mxu0 0
  %8724 = vmatprep.subr.bf16.mxu0 0
  %8725 = vmatpush2.bf16.msra.mxu0 0
  %8726 = vmatprep.subr.bf16.mxu0 0
  %8727 = vmatpush2.bf16.msra.mxu0 0
  %8728 = vmatprep.subr.bf16.mxu0 0
  %8729 = vmatpush2.bf16.msra.mxu0 0
  %8730 = vmatprep.mubr.bf16.mxu0 0
  %8731 = vmatmul.mubr.bf16.gmra.mxu0 %v8687
  %v8732 = vpop.f32.mrf.mxu0
  %v8733 = vadd.f32 0.0, %v8732
  %v8734 = vpop.f32.mrf.mxu0
  %v8735 = vpop.f32.mrf.mxu0
  %v8736 = vadd.f32 0.0, %v8735
  %v8737 = vpop.f32.mrf.mxu0
  %8738 = vmatprep.mubr.bf16.mxu0 0
  %8739 = vmatmul.mubr.bf16.gmra.mxu0 %v8690
  %v8740 = vpop.f32.mrf.mxu0
  %v8741 = vadd.f32 0.0, %v8740
  %v8742 = vpop.f32.mrf.mxu0
  %v8743 = vpop.f32.mrf.mxu0
  %v8744 = vadd.f32 0.0, %v8743
  %v8745 = vpop.f32.mrf.mxu0
  %8746 = vmatprep.mubr.bf16.mxu0 0
  %8747 = vmatmul.mubr.bf16.gmra.mxu0 %v8693
  %v8748 = vpop.f32.mrf.mxu0
  %v8749 = vadd.f32 0.0, %v8748
  %v8750 = vpop.f32.mrf.mxu0
  %v8751 = vpop.f32.mrf.mxu0
  %v8752 = vadd.f32 0.0, %v8751
  %v8753 = vpop.f32.mrf.mxu0
  %8754 = vmatprep.mubr.bf16.mxu0 0
  %8755 = vmatmul.mubr.bf16.gmra.mxu0 %v8696
  %v8756 = vpop.f32.mrf.mxu0
  %v8757 = vadd.f32 0.0, %v8756
  %v8758 = vpop.f32.mrf.mxu0
  %v8759 = vpop.f32.mrf.mxu0
  %v8760 = vadd.f32 0.0, %v8759
  %v8761 = vpop.f32.mrf.mxu0
  %8762 = vdwg.mxu0
  %8763 = vrot.lane.b32.xlu0 %v1982, 112
  %v8764 = vpop.permute.xlu0 %8763
  %8765 = vrot.lane.b32.xlu0 %v1983, 112
  %v8766 = vpop.permute.xlu0 %8765
  %8767 = vrot.lane.b32.xlu0 %v1984, 112
  %v8768 = vpop.permute.xlu0 %8767
  %8769 = vrot.lane.b32.xlu0 %v1985, 112
  %v8770 = vpop.permute.xlu0 %8769
  %v8776 = vsel %vm2795, %v8136, 0
  %v8779 = vsel %vm2795, %v8137, 0
  %v8782 = vsel %vm2795, %v8138, 0
  %v8785 = vsel %vm2795, %v8139, 0
  %8787 = vmatprep.subr.bf16.mxu0 0
  %8788 = vmatpush1.bf16.msra.mxu0 0
  %8789 = vmatprep.subr.bf16.mxu0 0
  %8790 = vmatpush1.bf16.msra.mxu0 0
  %8791 = vmatprep.subr.bf16.mxu0 0
  %8792 = vmatpush1.bf16.msra.mxu0 0
  %8793 = vmatprep.subr.bf16.mxu0 0
  %8794 = vmatpush1.bf16.msra.mxu0 0
  %8795 = vmatprep.subr.bf16.mxu0 0
  %8796 = vmatpush1.bf16.msra.mxu0 %v8770
  %8797 = vmatprep.subr.bf16.mxu0 0
  %8798 = vmatpush1.bf16.msra.mxu0 %v8768
  %8799 = vmatprep.subr.bf16.mxu0 0
  %8800 = vmatpush1.bf16.msra.mxu0 %v8766
  %8801 = vmatprep.subr.bf16.mxu0 0
  %8802 = vmatpush1.bf16.msra.mxu0 %v8764
  %8803 = vmatprep.subr.bf16.mxu0 0
  %8804 = vmatpush2.bf16.msra.mxu0 0
  %8805 = vmatprep.subr.bf16.mxu0 0
  %8806 = vmatpush2.bf16.msra.mxu0 0
  %8807 = vmatprep.subr.bf16.mxu0 0
  %8808 = vmatpush2.bf16.msra.mxu0 0
  %8809 = vmatprep.subr.bf16.mxu0 0
  %8810 = vmatpush2.bf16.msra.mxu0 0
  %8811 = vmatprep.subr.bf16.mxu0 0
  %8812 = vmatpush2.bf16.msra.mxu0 0
  %8813 = vmatprep.subr.bf16.mxu0 0
  %8814 = vmatpush2.bf16.msra.mxu0 0
  %8815 = vmatprep.subr.bf16.mxu0 0
  %8816 = vmatpush2.bf16.msra.mxu0 0
  %8817 = vmatprep.subr.bf16.mxu0 0
  %8818 = vmatpush2.bf16.msra.mxu0 0
  %8819 = vmatprep.mubr.bf16.mxu0 0
  %8820 = vmatmul.mubr.bf16.gmra.mxu0 %v8776
  %v8821 = vpop.f32.mrf.mxu0
  %v8822 = vadd.f32 0.0, %v8821
  %v8823 = vpop.f32.mrf.mxu0
  %v8824 = vpop.f32.mrf.mxu0
  %v8825 = vadd.f32 0.0, %v8824
  %v8826 = vpop.f32.mrf.mxu0
  %8827 = vmatprep.mubr.bf16.mxu0 0
  %8828 = vmatmul.mubr.bf16.gmra.mxu0 %v8779
  %v8829 = vpop.f32.mrf.mxu0
  %v8830 = vadd.f32 0.0, %v8829
  %v8831 = vpop.f32.mrf.mxu0
  %v8832 = vpop.f32.mrf.mxu0
  %v8833 = vadd.f32 0.0, %v8832
  %v8834 = vpop.f32.mrf.mxu0
  %8835 = vmatprep.mubr.bf16.mxu0 0
  %8836 = vmatmul.mubr.bf16.gmra.mxu0 %v8782
  %v8837 = vpop.f32.mrf.mxu0
  %v8838 = vadd.f32 0.0, %v8837
  %v8839 = vpop.f32.mrf.mxu0
  %v8840 = vpop.f32.mrf.mxu0
  %v8841 = vadd.f32 0.0, %v8840
  %v8842 = vpop.f32.mrf.mxu0
  %8843 = vmatprep.mubr.bf16.mxu0 0
  %8844 = vmatmul.mubr.bf16.gmra.mxu0 %v8785
  %v8845 = vpop.f32.mrf.mxu0
  %v8846 = vadd.f32 0.0, %v8845
  %v8847 = vpop.f32.mrf.mxu0
  %v8848 = vpop.f32.mrf.mxu0
  %v8849 = vadd.f32 0.0, %v8848
  %v8850 = vpop.f32.mrf.mxu0
  %8851 = vdwg.mxu0
  %v8852 = vpack.c.bf16 %v8202, %v8199
  %v8853 = vpack.c.bf16 %v8210, %v8207
  %v8854 = vpack.c.bf16 %v8218, %v8215
  %v8855 = vpack.c.bf16 %v8226, %v8223
  %v8856 = vpack.c.bf16 %v8291, %v8288
  %v8857 = vpack.c.bf16 %v8299, %v8296
  %v8858 = vpack.c.bf16 %v8307, %v8304
  %v8859 = vpack.c.bf16 %v8315, %v8312
  %v8860 = vpack.c.bf16 %v8380, %v8377
  %v8861 = vpack.c.bf16 %v8388, %v8385
  %v8862 = vpack.c.bf16 %v8396, %v8393
  %v8863 = vpack.c.bf16 %v8404, %v8401
  %v8864 = vpack.c.bf16 %v8469, %v8466
  %v8865 = vpack.c.bf16 %v8477, %v8474
  %v8866 = vpack.c.bf16 %v8485, %v8482
  %v8867 = vpack.c.bf16 %v8493, %v8490
  %v8868 = vpack.c.bf16 %v8558, %v8555
  %v8869 = vpack.c.bf16 %v8566, %v8563
  %v8870 = vpack.c.bf16 %v8574, %v8571
  %v8871 = vpack.c.bf16 %v8582, %v8579
  %v8872 = vpack.c.bf16 %v8647, %v8644
  %v8873 = vpack.c.bf16 %v8655, %v8652
  %v8874 = vpack.c.bf16 %v8663, %v8660
  %v8875 = vpack.c.bf16 %v8671, %v8668
  %v8876 = vpack.c.bf16 %v8736, %v8733
  %v8877 = vpack.c.bf16 %v8744, %v8741
  %v8878 = vpack.c.bf16 %v8752, %v8749
  %v8879 = vpack.c.bf16 %v8760, %v8757
  %v8880 = vpack.c.bf16 %v8825, %v8822
  %v8881 = vpack.c.bf16 %v8833, %v8830
  %v8882 = vpack.c.bf16 %v8841, %v8838
  %v8883 = vpack.c.bf16 %v8849, %v8846
  %8884 = vrot.lane.b32.xlu0 %v1290, 104
  %v8885 = vpop.permute.xlu0 %8884
  %8886 = vrot.lane.b32.xlu0 %v1291, 104
  %v8887 = vpop.permute.xlu0 %8886
  %8888 = vrot.lane.b32.xlu0 %v1292, 104
  %v8889 = vpop.permute.xlu0 %8888
  %8890 = vrot.lane.b32.xlu0 %v1293, 104
  %v8891 = vpop.permute.xlu0 %8890
  %8892 = vrot.lane.b32.xlu0 %v1922, 40
  %v8893 = vpop.permute.xlu0 %8892
  %8894 = vrot.lane.b32.xlu0 %v1923, 40
  %v8895 = vpop.permute.xlu0 %8894
  %8896 = vrot.lane.b32.xlu0 %v1924, 40
  %v8897 = vpop.permute.xlu0 %8896
  %8898 = vrot.lane.b32.xlu0 %v1925, 40
  %v8899 = vpop.permute.xlu0 %8898
  %v8901 = vsel %vm1998, %v8885, 0
  %v8904 = vsel %vm1998, %v8887, 0
  %v8907 = vsel %vm1998, %v8889, 0
  %v8910 = vsel %vm1998, %v8891, 0
  %v8913 = vsel %vm1998, %v8893, 0
  %v8916 = vsel %vm1998, %v8895, 0
  %v8919 = vsel %vm1998, %v8897, 0
  %v8922 = vsel %vm1998, %v8899, 0
  %8924 = vmatprep.subr.bf16.mxu0 0
  %8925 = vmatpush1.bf16.xpose.msra.mxu0 0
  %8926 = vmatprep.subr.bf16.mxu0 0
  %8927 = vmatpush1.bf16.xpose.msra.mxu0 0
  %8928 = vmatprep.subr.bf16.mxu0 0
  %8929 = vmatpush1.bf16.xpose.msra.mxu0 0
  %8930 = vmatprep.subr.bf16.mxu0 0
  %8931 = vmatpush1.bf16.xpose.msra.mxu0 0
  %8932 = vmatprep.subr.bf16.mxu0 0
  %8933 = vmatpush1.bf16.xpose.msra.mxu0 %v8922
  %8934 = vmatprep.subr.bf16.mxu0 0
  %8935 = vmatpush1.bf16.xpose.msra.mxu0 %v8919
  %8936 = vmatprep.subr.bf16.mxu0 0
  %8937 = vmatpush1.bf16.xpose.msra.mxu0 %v8916
  %8938 = vmatprep.subr.bf16.mxu0 0
  %8939 = vmatpush1.bf16.xpose.msra.mxu0 %v8913
  %8940 = vmatprep.subr.bf16.mxu0 0
  %8941 = vmatpush2.bf16.xpose.msra.mxu0 0
  %8942 = vmatprep.subr.bf16.mxu0 0
  %8943 = vmatpush2.bf16.xpose.msra.mxu0 0
  %8944 = vmatprep.subr.bf16.mxu0 0
  %8945 = vmatpush2.bf16.xpose.msra.mxu0 0
  %8946 = vmatprep.subr.bf16.mxu0 0
  %8947 = vmatpush2.bf16.xpose.msra.mxu0 0
  %8948 = vmatprep.subr.bf16.mxu0 0
  %8949 = vmatpush2.bf16.xpose.msra.mxu0 0
  %8950 = vmatprep.subr.bf16.mxu0 0
  %8951 = vmatpush2.bf16.xpose.msra.mxu0 0
  %8952 = vmatprep.subr.bf16.mxu0 0
  %8953 = vmatpush2.bf16.xpose.msra.mxu0 0
  %8954 = vmatprep.subr.bf16.mxu0 0
  %8955 = vmatpush2.bf16.xpose.msra.mxu0 0
  %8956 = vmatprep.mubr.bf16.mxu0 0
  %8957 = vmatmul.mubr.bf16.gmra.mxu0 %v8901
  %v8958 = vpop.f32.mrf.mxu0
  %v8959 = vadd.f32 0.0, %v8958
  %v8960 = vpop.f32.mrf.mxu0
  %v8961 = vpop.f32.mrf.mxu0
  %v8962 = vadd.f32 0.0, %v8961
  %v8963 = vpop.f32.mrf.mxu0
  %8964 = vmatprep.mubr.bf16.mxu0 0
  %8965 = vmatmul.mubr.bf16.gmra.mxu0 %v8904
  %v8966 = vpop.f32.mrf.mxu0
  %v8967 = vadd.f32 0.0, %v8966
  %v8968 = vpop.f32.mrf.mxu0
  %v8969 = vpop.f32.mrf.mxu0
  %v8970 = vadd.f32 0.0, %v8969
  %v8971 = vpop.f32.mrf.mxu0
  %8972 = vmatprep.mubr.bf16.mxu0 0
  %8973 = vmatmul.mubr.bf16.gmra.mxu0 %v8907
  %v8974 = vpop.f32.mrf.mxu0
  %v8975 = vadd.f32 0.0, %v8974
  %v8976 = vpop.f32.mrf.mxu0
  %v8977 = vpop.f32.mrf.mxu0
  %v8978 = vadd.f32 0.0, %v8977
  %v8979 = vpop.f32.mrf.mxu0
  %8980 = vmatprep.mubr.bf16.mxu0 0
  %8981 = vmatmul.mubr.bf16.gmra.mxu0 %v8910
  %v8982 = vpop.f32.mrf.mxu0
  %v8983 = vadd.f32 0.0, %v8982
  %v8984 = vpop.f32.mrf.mxu0
  %v8985 = vpop.f32.mrf.mxu0
  %v8986 = vadd.f32 0.0, %v8985
  %v8987 = vpop.f32.mrf.mxu0
  %8988 = vdwg.mxu0
  %8989 = vrot.lane.b32.xlu0 %v1294, 104
  %v8990 = vpop.permute.xlu0 %8989
  %8991 = vrot.lane.b32.xlu0 %v1295, 104
  %v8992 = vpop.permute.xlu0 %8991
  %8993 = vrot.lane.b32.xlu0 %v1296, 104
  %v8994 = vpop.permute.xlu0 %8993
  %8995 = vrot.lane.b32.xlu0 %v1297, 104
  %v8996 = vpop.permute.xlu0 %8995
  %8997 = vrot.lane.b32.xlu0 %v1926, 40
  %v8998 = vpop.permute.xlu0 %8997
  %8999 = vrot.lane.b32.xlu0 %v1927, 40
  %v9000 = vpop.permute.xlu0 %8999
  %9001 = vrot.lane.b32.xlu0 %v1928, 40
  %v9002 = vpop.permute.xlu0 %9001
  %9003 = vrot.lane.b32.xlu0 %v1929, 40
  %v9004 = vpop.permute.xlu0 %9003
  %v9006 = vsel %vm1998, %v8990, 0
  %v9009 = vsel %vm1998, %v8992, 0
  %v9012 = vsel %vm1998, %v8994, 0
  %v9015 = vsel %vm1998, %v8996, 0
  %v9018 = vsel %vm1998, %v8998, 0
  %v9021 = vsel %vm1998, %v9000, 0
  %v9024 = vsel %vm1998, %v9002, 0
  %v9027 = vsel %vm1998, %v9004, 0
  %9029 = vmatprep.subr.bf16.mxu0 0
  %9030 = vmatpush1.bf16.xpose.msra.mxu0 0
  %9031 = vmatprep.subr.bf16.mxu0 0
  %9032 = vmatpush1.bf16.xpose.msra.mxu0 0
  %9033 = vmatprep.subr.bf16.mxu0 0
  %9034 = vmatpush1.bf16.xpose.msra.mxu0 0
  %9035 = vmatprep.subr.bf16.mxu0 0
  %9036 = vmatpush1.bf16.xpose.msra.mxu0 0
  %9037 = vmatprep.subr.bf16.mxu0 0
  %9038 = vmatpush1.bf16.xpose.msra.mxu0 %v9027
  %9039 = vmatprep.subr.bf16.mxu0 0
  %9040 = vmatpush1.bf16.xpose.msra.mxu0 %v9024
  %9041 = vmatprep.subr.bf16.mxu0 0
  %9042 = vmatpush1.bf16.xpose.msra.mxu0 %v9021
  %9043 = vmatprep.subr.bf16.mxu0 0
  %9044 = vmatpush1.bf16.xpose.msra.mxu0 %v9018
  %9045 = vmatprep.subr.bf16.mxu0 0
  %9046 = vmatpush2.bf16.xpose.msra.mxu0 0
  %9047 = vmatprep.subr.bf16.mxu0 0
  %9048 = vmatpush2.bf16.xpose.msra.mxu0 0
  %9049 = vmatprep.subr.bf16.mxu0 0
  %9050 = vmatpush2.bf16.xpose.msra.mxu0 0
  %9051 = vmatprep.subr.bf16.mxu0 0
  %9052 = vmatpush2.bf16.xpose.msra.mxu0 0
  %9053 = vmatprep.subr.bf16.mxu0 0
  %9054 = vmatpush2.bf16.xpose.msra.mxu0 0
  %9055 = vmatprep.subr.bf16.mxu0 0
  %9056 = vmatpush2.bf16.xpose.msra.mxu0 0
  %9057 = vmatprep.subr.bf16.mxu0 0
  %9058 = vmatpush2.bf16.xpose.msra.mxu0 0
  %9059 = vmatprep.subr.bf16.mxu0 0
  %9060 = vmatpush2.bf16.xpose.msra.mxu0 0
  %9061 = vmatprep.mubr.bf16.mxu0 0
  %9062 = vmatmul.mubr.bf16.gmra.mxu0 %v9006
  %v9063 = vpop.f32.mrf.mxu0
  %v9064 = vadd.f32 0.0, %v9063
  %v9065 = vpop.f32.mrf.mxu0
  %v9066 = vpop.f32.mrf.mxu0
  %v9067 = vadd.f32 0.0, %v9066
  %v9068 = vpop.f32.mrf.mxu0
  %9069 = vmatprep.mubr.bf16.mxu0 0
  %9070 = vmatmul.mubr.bf16.gmra.mxu0 %v9009
  %v9071 = vpop.f32.mrf.mxu0
  %v9072 = vadd.f32 0.0, %v9071
  %v9073 = vpop.f32.mrf.mxu0
  %v9074 = vpop.f32.mrf.mxu0
  %v9075 = vadd.f32 0.0, %v9074
  %v9076 = vpop.f32.mrf.mxu0
  %9077 = vmatprep.mubr.bf16.mxu0 0
  %9078 = vmatmul.mubr.bf16.gmra.mxu0 %v9012
  %v9079 = vpop.f32.mrf.mxu0
  %v9080 = vadd.f32 0.0, %v9079
  %v9081 = vpop.f32.mrf.mxu0
  %v9082 = vpop.f32.mrf.mxu0
  %v9083 = vadd.f32 0.0, %v9082
  %v9084 = vpop.f32.mrf.mxu0
  %9085 = vmatprep.mubr.bf16.mxu0 0
  %9086 = vmatmul.mubr.bf16.gmra.mxu0 %v9015
  %v9087 = vpop.f32.mrf.mxu0
  %v9088 = vadd.f32 0.0, %v9087
  %v9089 = vpop.f32.mrf.mxu0
  %v9090 = vpop.f32.mrf.mxu0
  %v9091 = vadd.f32 0.0, %v9090
  %v9092 = vpop.f32.mrf.mxu0
  %9093 = vdwg.mxu0
  %9094 = vrot.lane.b32.xlu0 %v1298, 104
  %v9095 = vpop.permute.xlu0 %9094
  %9096 = vrot.lane.b32.xlu0 %v1299, 104
  %v9097 = vpop.permute.xlu0 %9096
  %9098 = vrot.lane.b32.xlu0 %v1300, 104
  %v9099 = vpop.permute.xlu0 %9098
  %9100 = vrot.lane.b32.xlu0 %v1301, 104
  %v9101 = vpop.permute.xlu0 %9100
  %9102 = vrot.lane.b32.xlu0 %v1930, 40
  %v9103 = vpop.permute.xlu0 %9102
  %9104 = vrot.lane.b32.xlu0 %v1931, 40
  %v9105 = vpop.permute.xlu0 %9104
  %9106 = vrot.lane.b32.xlu0 %v1932, 40
  %v9107 = vpop.permute.xlu0 %9106
  %9108 = vrot.lane.b32.xlu0 %v1933, 40
  %v9109 = vpop.permute.xlu0 %9108
  %v9111 = vsel %vm1998, %v9095, 0
  %v9114 = vsel %vm1998, %v9097, 0
  %v9117 = vsel %vm1998, %v9099, 0
  %v9120 = vsel %vm1998, %v9101, 0
  %v9123 = vsel %vm1998, %v9103, 0
  %v9126 = vsel %vm1998, %v9105, 0
  %v9129 = vsel %vm1998, %v9107, 0
  %v9132 = vsel %vm1998, %v9109, 0
  %9134 = vmatprep.subr.bf16.mxu0 0
  %9135 = vmatpush1.bf16.xpose.msra.mxu0 0
  %9136 = vmatprep.subr.bf16.mxu0 0
  %9137 = vmatpush1.bf16.xpose.msra.mxu0 0
  %9138 = vmatprep.subr.bf16.mxu0 0
  %9139 = vmatpush1.bf16.xpose.msra.mxu0 0
  %9140 = vmatprep.subr.bf16.mxu0 0
  %9141 = vmatpush1.bf16.xpose.msra.mxu0 0
  %9142 = vmatprep.subr.bf16.mxu0 0
  %9143 = vmatpush1.bf16.xpose.msra.mxu0 %v9132
  %9144 = vmatprep.subr.bf16.mxu0 0
  %9145 = vmatpush1.bf16.xpose.msra.mxu0 %v9129
  %9146 = vmatprep.subr.bf16.mxu0 0
  %9147 = vmatpush1.bf16.xpose.msra.mxu0 %v9126
  %9148 = vmatprep.subr.bf16.mxu0 0
  %9149 = vmatpush1.bf16.xpose.msra.mxu0 %v9123
  %9150 = vmatprep.subr.bf16.mxu0 0
  %9151 = vmatpush2.bf16.xpose.msra.mxu0 0
  %9152 = vmatprep.subr.bf16.mxu0 0
  %9153 = vmatpush2.bf16.xpose.msra.mxu0 0
  %9154 = vmatprep.subr.bf16.mxu0 0
  %9155 = vmatpush2.bf16.xpose.msra.mxu0 0
  %9156 = vmatprep.subr.bf16.mxu0 0
  %9157 = vmatpush2.bf16.xpose.msra.mxu0 0
  %9158 = vmatprep.subr.bf16.mxu0 0
  %9159 = vmatpush2.bf16.xpose.msra.mxu0 0
  %9160 = vmatprep.subr.bf16.mxu0 0
  %9161 = vmatpush2.bf16.xpose.msra.mxu0 0
  %9162 = vmatprep.subr.bf16.mxu0 0
  %9163 = vmatpush2.bf16.xpose.msra.mxu0 0
  %9164 = vmatprep.subr.bf16.mxu0 0
  %9165 = vmatpush2.bf16.xpose.msra.mxu0 0
  %9166 = vmatprep.mubr.bf16.mxu0 0
  %9167 = vmatmul.mubr.bf16.gmra.mxu0 %v9111
  %v9168 = vpop.f32.mrf.mxu0
  %v9169 = vadd.f32 0.0, %v9168
  %v9170 = vpop.f32.mrf.mxu0
  %v9171 = vpop.f32.mrf.mxu0
  %v9172 = vadd.f32 0.0, %v9171
  %v9173 = vpop.f32.mrf.mxu0
  %9174 = vmatprep.mubr.bf16.mxu0 0
  %9175 = vmatmul.mubr.bf16.gmra.mxu0 %v9114
  %v9176 = vpop.f32.mrf.mxu0
  %v9177 = vadd.f32 0.0, %v9176
  %v9178 = vpop.f32.mrf.mxu0
  %v9179 = vpop.f32.mrf.mxu0
  %v9180 = vadd.f32 0.0, %v9179
  %v9181 = vpop.f32.mrf.mxu0
  %9182 = vmatprep.mubr.bf16.mxu0 0
  %9183 = vmatmul.mubr.bf16.gmra.mxu0 %v9117
  %v9184 = vpop.f32.mrf.mxu0
  %v9185 = vadd.f32 0.0, %v9184
  %v9186 = vpop.f32.mrf.mxu0
  %v9187 = vpop.f32.mrf.mxu0
  %v9188 = vadd.f32 0.0, %v9187
  %v9189 = vpop.f32.mrf.mxu0
  %9190 = vmatprep.mubr.bf16.mxu0 0
  %9191 = vmatmul.mubr.bf16.gmra.mxu0 %v9120
  %v9192 = vpop.f32.mrf.mxu0
  %v9193 = vadd.f32 0.0, %v9192
  %v9194 = vpop.f32.mrf.mxu0
  %v9195 = vpop.f32.mrf.mxu0
  %v9196 = vadd.f32 0.0, %v9195
  %v9197 = vpop.f32.mrf.mxu0
  %9198 = vdwg.mxu0
  %9199 = vrot.lane.b32.xlu0 %v1302, 104
  %v9200 = vpop.permute.xlu0 %9199
  %9201 = vrot.lane.b32.xlu0 %v1303, 104
  %v9202 = vpop.permute.xlu0 %9201
  %9203 = vrot.lane.b32.xlu0 %v1304, 104
  %v9204 = vpop.permute.xlu0 %9203
  %9205 = vrot.lane.b32.xlu0 %v1305, 104
  %v9206 = vpop.permute.xlu0 %9205
  %9207 = vrot.lane.b32.xlu0 %v1934, 40
  %v9208 = vpop.permute.xlu0 %9207
  %9209 = vrot.lane.b32.xlu0 %v1935, 40
  %v9210 = vpop.permute.xlu0 %9209
  %9211 = vrot.lane.b32.xlu0 %v1936, 40
  %v9212 = vpop.permute.xlu0 %9211
  %9213 = vrot.lane.b32.xlu0 %v1937, 40
  %v9214 = vpop.permute.xlu0 %9213
  %v9216 = vsel %vm1998, %v9200, 0
  %v9219 = vsel %vm1998, %v9202, 0
  %v9222 = vsel %vm1998, %v9204, 0
  %v9225 = vsel %vm1998, %v9206, 0
  %v9228 = vsel %vm1998, %v9208, 0
  %v9231 = vsel %vm1998, %v9210, 0
  %v9234 = vsel %vm1998, %v9212, 0
  %v9237 = vsel %vm1998, %v9214, 0
  %9239 = vmatprep.subr.bf16.mxu0 0
  %9240 = vmatpush1.bf16.xpose.msra.mxu0 0
  %9241 = vmatprep.subr.bf16.mxu0 0
  %9242 = vmatpush1.bf16.xpose.msra.mxu0 0
  %9243 = vmatprep.subr.bf16.mxu0 0
  %9244 = vmatpush1.bf16.xpose.msra.mxu0 0
  %9245 = vmatprep.subr.bf16.mxu0 0
  %9246 = vmatpush1.bf16.xpose.msra.mxu0 0
  %9247 = vmatprep.subr.bf16.mxu0 0
  %9248 = vmatpush1.bf16.xpose.msra.mxu0 %v9237
  %9249 = vmatprep.subr.bf16.mxu0 0
  %9250 = vmatpush1.bf16.xpose.msra.mxu0 %v9234
  %9251 = vmatprep.subr.bf16.mxu0 0
  %9252 = vmatpush1.bf16.xpose.msra.mxu0 %v9231
  %9253 = vmatprep.subr.bf16.mxu0 0
  %9254 = vmatpush1.bf16.xpose.msra.mxu0 %v9228
  %9255 = vmatprep.subr.bf16.mxu0 0
  %9256 = vmatpush2.bf16.xpose.msra.mxu0 0
  %9257 = vmatprep.subr.bf16.mxu0 0
  %9258 = vmatpush2.bf16.xpose.msra.mxu0 0
  %9259 = vmatprep.subr.bf16.mxu0 0
  %9260 = vmatpush2.bf16.xpose.msra.mxu0 0
  %9261 = vmatprep.subr.bf16.mxu0 0
  %9262 = vmatpush2.bf16.xpose.msra.mxu0 0
  %9263 = vmatprep.subr.bf16.mxu0 0
  %9264 = vmatpush2.bf16.xpose.msra.mxu0 0
  %9265 = vmatprep.subr.bf16.mxu0 0
  %9266 = vmatpush2.bf16.xpose.msra.mxu0 0
  %9267 = vmatprep.subr.bf16.mxu0 0
  %9268 = vmatpush2.bf16.xpose.msra.mxu0 0
  %9269 = vmatprep.subr.bf16.mxu0 0
  %9270 = vmatpush2.bf16.xpose.msra.mxu0 0
  %9271 = vmatprep.mubr.bf16.mxu0 0
  %9272 = vmatmul.mubr.bf16.gmra.mxu0 %v9216
  %v9273 = vpop.f32.mrf.mxu0
  %v9274 = vadd.f32 0.0, %v9273
  %v9275 = vpop.f32.mrf.mxu0
  %v9276 = vpop.f32.mrf.mxu0
  %v9277 = vadd.f32 0.0, %v9276
  %v9278 = vpop.f32.mrf.mxu0
  %9279 = vmatprep.mubr.bf16.mxu0 0
  %9280 = vmatmul.mubr.bf16.gmra.mxu0 %v9219
  %v9281 = vpop.f32.mrf.mxu0
  %v9282 = vadd.f32 0.0, %v9281
  %v9283 = vpop.f32.mrf.mxu0
  %v9284 = vpop.f32.mrf.mxu0
  %v9285 = vadd.f32 0.0, %v9284
  %v9286 = vpop.f32.mrf.mxu0
  %9287 = vmatprep.mubr.bf16.mxu0 0
  %9288 = vmatmul.mubr.bf16.gmra.mxu0 %v9222
  %v9289 = vpop.f32.mrf.mxu0
  %v9290 = vadd.f32 0.0, %v9289
  %v9291 = vpop.f32.mrf.mxu0
  %v9292 = vpop.f32.mrf.mxu0
  %v9293 = vadd.f32 0.0, %v9292
  %v9294 = vpop.f32.mrf.mxu0
  %9295 = vmatprep.mubr.bf16.mxu0 0
  %9296 = vmatmul.mubr.bf16.gmra.mxu0 %v9225
  %v9297 = vpop.f32.mrf.mxu0
  %v9298 = vadd.f32 0.0, %v9297
  %v9299 = vpop.f32.mrf.mxu0
  %v9300 = vpop.f32.mrf.mxu0
  %v9301 = vadd.f32 0.0, %v9300
  %v9302 = vpop.f32.mrf.mxu0
  %9303 = vdwg.mxu0
  %9304 = vrot.lane.b32.xlu0 %v1306, 104
  %v9305 = vpop.permute.xlu0 %9304
  %9306 = vrot.lane.b32.xlu0 %v1307, 104
  %v9307 = vpop.permute.xlu0 %9306
  %9308 = vrot.lane.b32.xlu0 %v1308, 104
  %v9309 = vpop.permute.xlu0 %9308
  %9310 = vrot.lane.b32.xlu0 %v1309, 104
  %v9311 = vpop.permute.xlu0 %9310
  %9312 = vrot.lane.b32.xlu0 %v1938, 40
  %v9313 = vpop.permute.xlu0 %9312
  %9314 = vrot.lane.b32.xlu0 %v1939, 40
  %v9315 = vpop.permute.xlu0 %9314
  %9316 = vrot.lane.b32.xlu0 %v1940, 40
  %v9317 = vpop.permute.xlu0 %9316
  %9318 = vrot.lane.b32.xlu0 %v1941, 40
  %v9319 = vpop.permute.xlu0 %9318
  %v9321 = vsel %vm1998, %v9305, 0
  %v9324 = vsel %vm1998, %v9307, 0
  %v9327 = vsel %vm1998, %v9309, 0
  %v9330 = vsel %vm1998, %v9311, 0
  %v9333 = vsel %vm1998, %v9313, 0
  %v9336 = vsel %vm1998, %v9315, 0
  %v9339 = vsel %vm1998, %v9317, 0
  %v9342 = vsel %vm1998, %v9319, 0
  %9344 = vmatprep.subr.bf16.mxu0 0
  %9345 = vmatpush1.bf16.xpose.msra.mxu0 0
  %9346 = vmatprep.subr.bf16.mxu0 0
  %9347 = vmatpush1.bf16.xpose.msra.mxu0 0
  %9348 = vmatprep.subr.bf16.mxu0 0
  %9349 = vmatpush1.bf16.xpose.msra.mxu0 0
  %9350 = vmatprep.subr.bf16.mxu0 0
  %9351 = vmatpush1.bf16.xpose.msra.mxu0 0
  %9352 = vmatprep.subr.bf16.mxu0 0
  %9353 = vmatpush1.bf16.xpose.msra.mxu0 %v9342
  %9354 = vmatprep.subr.bf16.mxu0 0
  %9355 = vmatpush1.bf16.xpose.msra.mxu0 %v9339
  %9356 = vmatprep.subr.bf16.mxu0 0
  %9357 = vmatpush1.bf16.xpose.msra.mxu0 %v9336
  %9358 = vmatprep.subr.bf16.mxu0 0
  %9359 = vmatpush1.bf16.xpose.msra.mxu0 %v9333
  %9360 = vmatprep.subr.bf16.mxu0 0
  %9361 = vmatpush2.bf16.xpose.msra.mxu0 0
  %9362 = vmatprep.subr.bf16.mxu0 0
  %9363 = vmatpush2.bf16.xpose.msra.mxu0 0
  %9364 = vmatprep.subr.bf16.mxu0 0
  %9365 = vmatpush2.bf16.xpose.msra.mxu0 0
  %9366 = vmatprep.subr.bf16.mxu0 0
  %9367 = vmatpush2.bf16.xpose.msra.mxu0 0
  %9368 = vmatprep.subr.bf16.mxu0 0
  %9369 = vmatpush2.bf16.xpose.msra.mxu0 0
  %9370 = vmatprep.subr.bf16.mxu0 0
  %9371 = vmatpush2.bf16.xpose.msra.mxu0 0
  %9372 = vmatprep.subr.bf16.mxu0 0
  %9373 = vmatpush2.bf16.xpose.msra.mxu0 0
  %9374 = vmatprep.subr.bf16.mxu0 0
  %9375 = vmatpush2.bf16.xpose.msra.mxu0 0
  %9376 = vmatprep.mubr.bf16.mxu0 0
  %9377 = vmatmul.mubr.bf16.gmra.mxu0 %v9321
  %v9378 = vpop.f32.mrf.mxu0
  %v9379 = vadd.f32 0.0, %v9378
  %v9380 = vpop.f32.mrf.mxu0
  %v9381 = vpop.f32.mrf.mxu0
  %v9382 = vadd.f32 0.0, %v9381
  %v9383 = vpop.f32.mrf.mxu0
  %9384 = vmatprep.mubr.bf16.mxu0 0
  %9385 = vmatmul.mubr.bf16.gmra.mxu0 %v9324
  %v9386 = vpop.f32.mrf.mxu0
  %v9387 = vadd.f32 0.0, %v9386
  %v9388 = vpop.f32.mrf.mxu0
  %v9389 = vpop.f32.mrf.mxu0
  %v9390 = vadd.f32 0.0, %v9389
  %v9391 = vpop.f32.mrf.mxu0
  %9392 = vmatprep.mubr.bf16.mxu0 0
  %9393 = vmatmul.mubr.bf16.gmra.mxu0 %v9327
  %v9394 = vpop.f32.mrf.mxu0
  %v9395 = vadd.f32 0.0, %v9394
  %v9396 = vpop.f32.mrf.mxu0
  %v9397 = vpop.f32.mrf.mxu0
  %v9398 = vadd.f32 0.0, %v9397
  %v9399 = vpop.f32.mrf.mxu0
  %9400 = vmatprep.mubr.bf16.mxu0 0
  %9401 = vmatmul.mubr.bf16.gmra.mxu0 %v9330
  %v9402 = vpop.f32.mrf.mxu0
  %v9403 = vadd.f32 0.0, %v9402
  %v9404 = vpop.f32.mrf.mxu0
  %v9405 = vpop.f32.mrf.mxu0
  %v9406 = vadd.f32 0.0, %v9405
  %v9407 = vpop.f32.mrf.mxu0
  %9408 = vdwg.mxu0
  %9409 = vrot.lane.b32.xlu0 %v1310, 104
  %v9410 = vpop.permute.xlu0 %9409
  %9411 = vrot.lane.b32.xlu0 %v1311, 104
  %v9412 = vpop.permute.xlu0 %9411
  %9413 = vrot.lane.b32.xlu0 %v1312, 104
  %v9414 = vpop.permute.xlu0 %9413
  %9415 = vrot.lane.b32.xlu0 %v1313, 104
  %v9416 = vpop.permute.xlu0 %9415
  %9417 = vrot.lane.b32.xlu0 %v1942, 40
  %v9418 = vpop.permute.xlu0 %9417
  %9419 = vrot.lane.b32.xlu0 %v1943, 40
  %v9420 = vpop.permute.xlu0 %9419
  %9421 = vrot.lane.b32.xlu0 %v1944, 40
  %v9422 = vpop.permute.xlu0 %9421
  %9423 = vrot.lane.b32.xlu0 %v1945, 40
  %v9424 = vpop.permute.xlu0 %9423
  %v9426 = vsel %vm1998, %v9410, 0
  %v9429 = vsel %vm1998, %v9412, 0
  %v9432 = vsel %vm1998, %v9414, 0
  %v9435 = vsel %vm1998, %v9416, 0
  %v9438 = vsel %vm1998, %v9418, 0
  %v9441 = vsel %vm1998, %v9420, 0
  %v9444 = vsel %vm1998, %v9422, 0
  %v9447 = vsel %vm1998, %v9424, 0
  %9449 = vmatprep.subr.bf16.mxu0 0
  %9450 = vmatpush1.bf16.xpose.msra.mxu0 0
  %9451 = vmatprep.subr.bf16.mxu0 0
  %9452 = vmatpush1.bf16.xpose.msra.mxu0 0
  %9453 = vmatprep.subr.bf16.mxu0 0
  %9454 = vmatpush1.bf16.xpose.msra.mxu0 0
  %9455 = vmatprep.subr.bf16.mxu0 0
  %9456 = vmatpush1.bf16.xpose.msra.mxu0 0
  %9457 = vmatprep.subr.bf16.mxu0 0
  %9458 = vmatpush1.bf16.xpose.msra.mxu0 %v9447
  %9459 = vmatprep.subr.bf16.mxu0 0
  %9460 = vmatpush1.bf16.xpose.msra.mxu0 %v9444
  %9461 = vmatprep.subr.bf16.mxu0 0
  %9462 = vmatpush1.bf16.xpose.msra.mxu0 %v9441
  %9463 = vmatprep.subr.bf16.mxu0 0
  %9464 = vmatpush1.bf16.xpose.msra.mxu0 %v9438
  %9465 = vmatprep.subr.bf16.mxu0 0
  %9466 = vmatpush2.bf16.xpose.msra.mxu0 0
  %9467 = vmatprep.subr.bf16.mxu0 0
  %9468 = vmatpush2.bf16.xpose.msra.mxu0 0
  %9469 = vmatprep.subr.bf16.mxu0 0
  %9470 = vmatpush2.bf16.xpose.msra.mxu0 0
  %9471 = vmatprep.subr.bf16.mxu0 0
  %9472 = vmatpush2.bf16.xpose.msra.mxu0 0
  %9473 = vmatprep.subr.bf16.mxu0 0
  %9474 = vmatpush2.bf16.xpose.msra.mxu0 0
  %9475 = vmatprep.subr.bf16.mxu0 0
  %9476 = vmatpush2.bf16.xpose.msra.mxu0 0
  %9477 = vmatprep.subr.bf16.mxu0 0
  %9478 = vmatpush2.bf16.xpose.msra.mxu0 0
  %9479 = vmatprep.subr.bf16.mxu0 0
  %9480 = vmatpush2.bf16.xpose.msra.mxu0 0
  %9481 = vmatprep.mubr.bf16.mxu0 0
  %9482 = vmatmul.mubr.bf16.gmra.mxu0 %v9426
  %v9483 = vpop.f32.mrf.mxu0
  %v9484 = vadd.f32 0.0, %v9483
  %v9485 = vpop.f32.mrf.mxu0
  %v9486 = vpop.f32.mrf.mxu0
  %v9487 = vadd.f32 0.0, %v9486
  %v9488 = vpop.f32.mrf.mxu0
  %9489 = vmatprep.mubr.bf16.mxu0 0
  %9490 = vmatmul.mubr.bf16.gmra.mxu0 %v9429
  %v9491 = vpop.f32.mrf.mxu0
  %v9492 = vadd.f32 0.0, %v9491
  %v9493 = vpop.f32.mrf.mxu0
  %v9494 = vpop.f32.mrf.mxu0
  %v9495 = vadd.f32 0.0, %v9494
  %v9496 = vpop.f32.mrf.mxu0
  %9497 = vmatprep.mubr.bf16.mxu0 0
  %9498 = vmatmul.mubr.bf16.gmra.mxu0 %v9432
  %v9499 = vpop.f32.mrf.mxu0
  %v9500 = vadd.f32 0.0, %v9499
  %v9501 = vpop.f32.mrf.mxu0
  %v9502 = vpop.f32.mrf.mxu0
  %v9503 = vadd.f32 0.0, %v9502
  %v9504 = vpop.f32.mrf.mxu0
  %9505 = vmatprep.mubr.bf16.mxu0 0
  %9506 = vmatmul.mubr.bf16.gmra.mxu0 %v9435
  %v9507 = vpop.f32.mrf.mxu0
  %v9508 = vadd.f32 0.0, %v9507
  %v9509 = vpop.f32.mrf.mxu0
  %v9510 = vpop.f32.mrf.mxu0
  %v9511 = vadd.f32 0.0, %v9510
  %v9512 = vpop.f32.mrf.mxu0
  %9513 = vdwg.mxu0
  %9514 = vrot.lane.b32.xlu0 %v1314, 104
  %v9515 = vpop.permute.xlu0 %9514
  %9516 = vrot.lane.b32.xlu0 %v1315, 104
  %v9517 = vpop.permute.xlu0 %9516
  %9518 = vrot.lane.b32.xlu0 %v1316, 104
  %v9519 = vpop.permute.xlu0 %9518
  %9520 = vrot.lane.b32.xlu0 %v1317, 104
  %v9521 = vpop.permute.xlu0 %9520
  %9522 = vrot.lane.b32.xlu0 %v1946, 40
  %v9523 = vpop.permute.xlu0 %9522
  %9524 = vrot.lane.b32.xlu0 %v1947, 40
  %v9525 = vpop.permute.xlu0 %9524
  %9526 = vrot.lane.b32.xlu0 %v1948, 40
  %v9527 = vpop.permute.xlu0 %9526
  %9528 = vrot.lane.b32.xlu0 %v1949, 40
  %v9529 = vpop.permute.xlu0 %9528
  %v9531 = vsel %vm1998, %v9515, 0
  %v9534 = vsel %vm1998, %v9517, 0
  %v9537 = vsel %vm1998, %v9519, 0
  %v9540 = vsel %vm1998, %v9521, 0
  %v9543 = vsel %vm1998, %v9523, 0
  %v9546 = vsel %vm1998, %v9525, 0
  %v9549 = vsel %vm1998, %v9527, 0
  %v9552 = vsel %vm1998, %v9529, 0
  %9554 = vmatprep.subr.bf16.mxu0 0
  %9555 = vmatpush1.bf16.xpose.msra.mxu0 0
  %9556 = vmatprep.subr.bf16.mxu0 0
  %9557 = vmatpush1.bf16.xpose.msra.mxu0 0
  %9558 = vmatprep.subr.bf16.mxu0 0
  %9559 = vmatpush1.bf16.xpose.msra.mxu0 0
  %9560 = vmatprep.subr.bf16.mxu0 0
  %9561 = vmatpush1.bf16.xpose.msra.mxu0 0
  %9562 = vmatprep.subr.bf16.mxu0 0
  %9563 = vmatpush1.bf16.xpose.msra.mxu0 %v9552
  %9564 = vmatprep.subr.bf16.mxu0 0
  %9565 = vmatpush1.bf16.xpose.msra.mxu0 %v9549
  %9566 = vmatprep.subr.bf16.mxu0 0
  %9567 = vmatpush1.bf16.xpose.msra.mxu0 %v9546
  %9568 = vmatprep.subr.bf16.mxu0 0
  %9569 = vmatpush1.bf16.xpose.msra.mxu0 %v9543
  %9570 = vmatprep.subr.bf16.mxu0 0
  %9571 = vmatpush2.bf16.xpose.msra.mxu0 0
  %9572 = vmatprep.subr.bf16.mxu0 0
  %9573 = vmatpush2.bf16.xpose.msra.mxu0 0
  %9574 = vmatprep.subr.bf16.mxu0 0
  %9575 = vmatpush2.bf16.xpose.msra.mxu0 0
  %9576 = vmatprep.subr.bf16.mxu0 0
  %9577 = vmatpush2.bf16.xpose.msra.mxu0 0
  %9578 = vmatprep.subr.bf16.mxu0 0
  %9579 = vmatpush2.bf16.xpose.msra.mxu0 0
  %9580 = vmatprep.subr.bf16.mxu0 0
  %9581 = vmatpush2.bf16.xpose.msra.mxu0 0
  %9582 = vmatprep.subr.bf16.mxu0 0
  %9583 = vmatpush2.bf16.xpose.msra.mxu0 0
  %9584 = vmatprep.subr.bf16.mxu0 0
  %9585 = vmatpush2.bf16.xpose.msra.mxu0 0
  %9586 = vmatprep.mubr.bf16.mxu0 0
  %9587 = vmatmul.mubr.bf16.gmra.mxu0 %v9531
  %v9588 = vpop.f32.mrf.mxu0
  %v9589 = vadd.f32 0.0, %v9588
  %v9590 = vpop.f32.mrf.mxu0
  %v9591 = vpop.f32.mrf.mxu0
  %v9592 = vadd.f32 0.0, %v9591
  %v9593 = vpop.f32.mrf.mxu0
  %9594 = vmatprep.mubr.bf16.mxu0 0
  %9595 = vmatmul.mubr.bf16.gmra.mxu0 %v9534
  %v9596 = vpop.f32.mrf.mxu0
  %v9597 = vadd.f32 0.0, %v9596
  %v9598 = vpop.f32.mrf.mxu0
  %v9599 = vpop.f32.mrf.mxu0
  %v9600 = vadd.f32 0.0, %v9599
  %v9601 = vpop.f32.mrf.mxu0
  %9602 = vmatprep.mubr.bf16.mxu0 0
  %9603 = vmatmul.mubr.bf16.gmra.mxu0 %v9537
  %v9604 = vpop.f32.mrf.mxu0
  %v9605 = vadd.f32 0.0, %v9604
  %v9606 = vpop.f32.mrf.mxu0
  %v9607 = vpop.f32.mrf.mxu0
  %v9608 = vadd.f32 0.0, %v9607
  %v9609 = vpop.f32.mrf.mxu0
  %9610 = vmatprep.mubr.bf16.mxu0 0
  %9611 = vmatmul.mubr.bf16.gmra.mxu0 %v9540
  %v9612 = vpop.f32.mrf.mxu0
  %v9613 = vadd.f32 0.0, %v9612
  %v9614 = vpop.f32.mrf.mxu0
  %v9615 = vpop.f32.mrf.mxu0
  %v9616 = vadd.f32 0.0, %v9615
  %v9617 = vpop.f32.mrf.mxu0
  %9618 = vdwg.mxu0
  %9619 = vrot.lane.b32.xlu0 %v1318, 104
  %v9620 = vpop.permute.xlu0 %9619
  %9621 = vrot.lane.b32.xlu0 %v1319, 104
  %v9622 = vpop.permute.xlu0 %9621
  %9623 = vrot.lane.b32.xlu0 %v1320, 104
  %v9624 = vpop.permute.xlu0 %9623
  %9625 = vrot.lane.b32.xlu0 %v1321, 104
  %v9626 = vpop.permute.xlu0 %9625
  %9627 = vrot.lane.b32.xlu0 %v1950, 40
  %v9628 = vpop.permute.xlu0 %9627
  %9629 = vrot.lane.b32.xlu0 %v1951, 40
  %v9630 = vpop.permute.xlu0 %9629
  %9631 = vrot.lane.b32.xlu0 %v1952, 40
  %v9632 = vpop.permute.xlu0 %9631
  %9633 = vrot.lane.b32.xlu0 %v1953, 40
  %v9634 = vpop.permute.xlu0 %9633
  %v9636 = vsel %vm1998, %v9620, 0
  %v9639 = vsel %vm1998, %v9622, 0
  %v9642 = vsel %vm1998, %v9624, 0
  %v9645 = vsel %vm1998, %v9626, 0
  %v9648 = vsel %vm1998, %v9628, 0
  %v9651 = vsel %vm1998, %v9630, 0
  %v9654 = vsel %vm1998, %v9632, 0
  %v9657 = vsel %vm1998, %v9634, 0
  %9659 = vmatprep.subr.bf16.mxu0 0
  %9660 = vmatpush1.bf16.xpose.msra.mxu0 0
  %9661 = vmatprep.subr.bf16.mxu0 0
  %9662 = vmatpush1.bf16.xpose.msra.mxu0 0
  %9663 = vmatprep.subr.bf16.mxu0 0
  %9664 = vmatpush1.bf16.xpose.msra.mxu0 0
  %9665 = vmatprep.subr.bf16.mxu0 0
  %9666 = vmatpush1.bf16.xpose.msra.mxu0 0
  %9667 = vmatprep.subr.bf16.mxu0 0
  %9668 = vmatpush1.bf16.xpose.msra.mxu0 %v9657
  %9669 = vmatprep.subr.bf16.mxu0 0
  %9670 = vmatpush1.bf16.xpose.msra.mxu0 %v9654
  %9671 = vmatprep.subr.bf16.mxu0 0
  %9672 = vmatpush1.bf16.xpose.msra.mxu0 %v9651
  %9673 = vmatprep.subr.bf16.mxu0 0
  %9674 = vmatpush1.bf16.xpose.msra.mxu0 %v9648
  %9675 = vmatprep.subr.bf16.mxu0 0
  %9676 = vmatpush2.bf16.xpose.msra.mxu0 0
  %9677 = vmatprep.subr.bf16.mxu0 0
  %9678 = vmatpush2.bf16.xpose.msra.mxu0 0
  %9679 = vmatprep.subr.bf16.mxu0 0
  %9680 = vmatpush2.bf16.xpose.msra.mxu0 0
  %9681 = vmatprep.subr.bf16.mxu0 0
  %9682 = vmatpush2.bf16.xpose.msra.mxu0 0
  %9683 = vmatprep.subr.bf16.mxu0 0
  %9684 = vmatpush2.bf16.xpose.msra.mxu0 0
  %9685 = vmatprep.subr.bf16.mxu0 0
  %9686 = vmatpush2.bf16.xpose.msra.mxu0 0
  %9687 = vmatprep.subr.bf16.mxu0 0
  %9688 = vmatpush2.bf16.xpose.msra.mxu0 0
  %9689 = vmatprep.subr.bf16.mxu0 0
  %9690 = vmatpush2.bf16.xpose.msra.mxu0 0
  %9691 = vmatprep.mubr.bf16.mxu0 0
  %9692 = vmatmul.mubr.bf16.gmra.mxu0 %v9636
  %v9693 = vpop.f32.mrf.mxu0
  %v9694 = vadd.f32 0.0, %v9693
  %v9695 = vpop.f32.mrf.mxu0
  %v9696 = vpop.f32.mrf.mxu0
  %v9697 = vadd.f32 0.0, %v9696
  %v9698 = vpop.f32.mrf.mxu0
  %9699 = vmatprep.mubr.bf16.mxu0 0
  %9700 = vmatmul.mubr.bf16.gmra.mxu0 %v9639
  %v9701 = vpop.f32.mrf.mxu0
  %v9702 = vadd.f32 0.0, %v9701
  %v9703 = vpop.f32.mrf.mxu0
  %v9704 = vpop.f32.mrf.mxu0
  %v9705 = vadd.f32 0.0, %v9704
  %v9706 = vpop.f32.mrf.mxu0
  %9707 = vmatprep.mubr.bf16.mxu0 0
  %9708 = vmatmul.mubr.bf16.gmra.mxu0 %v9642
  %v9709 = vpop.f32.mrf.mxu0
  %v9710 = vadd.f32 0.0, %v9709
  %v9711 = vpop.f32.mrf.mxu0
  %v9712 = vpop.f32.mrf.mxu0
  %v9713 = vadd.f32 0.0, %v9712
  %v9714 = vpop.f32.mrf.mxu0
  %9715 = vmatprep.mubr.bf16.mxu0 0
  %9716 = vmatmul.mubr.bf16.gmra.mxu0 %v9645
  %v9717 = vpop.f32.mrf.mxu0
  %v9718 = vadd.f32 0.0, %v9717
  %v9719 = vpop.f32.mrf.mxu0
  %v9720 = vpop.f32.mrf.mxu0
  %v9721 = vadd.f32 0.0, %v9720
  %v9722 = vpop.f32.mrf.mxu0
  %9723 = vdwg.mxu0
  %v9724 = vsel %vm2795, %v8959, -inf
  %9725 = vmax.xlane.f32.xlu0 %v9724
  %v9726 = vpop.xlane.xlu0 %9725
  %v9727 = vsel %vm2795, %v8962, -inf
  %9728 = vmax.xlane.f32.xlu0 %v9727
  %v9729 = vpop.xlane.xlu0 %9728
  %v9730 = vsel %vm2795, %v8967, -inf
  %9731 = vmax.xlane.f32.xlu0 %v9730
  %v9732 = vpop.xlane.xlu0 %9731
  %v9733 = vsel %vm2795, %v8970, -inf
  %9734 = vmax.xlane.f32.xlu0 %v9733
  %v9735 = vpop.xlane.xlu0 %9734
  %v9736 = vsel %vm2795, %v8975, -inf
  %9737 = vmax.xlane.f32.xlu0 %v9736
  %v9738 = vpop.xlane.xlu0 %9737
  %v9739 = vsel %vm2795, %v8978, -inf
  %9740 = vmax.xlane.f32.xlu0 %v9739
  %v9741 = vpop.xlane.xlu0 %9740
  %v9742 = vsel %vm2795, %v8983, -inf
  %9743 = vmax.xlane.f32.xlu0 %v9742
  %v9744 = vpop.xlane.xlu0 %9743
  %v9745 = vsel %vm2795, %v8986, -inf
  %9746 = vmax.xlane.f32.xlu0 %v9745
  %v9747 = vpop.xlane.xlu0 %9746
  %v9748 = vsel %vm2795, %v9064, -inf
  %9749 = vmax.xlane.f32.xlu0 %v9748
  %v9750 = vpop.xlane.xlu0 %9749
  %v9751 = vsel %vm2795, %v9067, -inf
  %9752 = vmax.xlane.f32.xlu0 %v9751
  %v9753 = vpop.xlane.xlu0 %9752
  %v9754 = vsel %vm2795, %v9072, -inf
  %9755 = vmax.xlane.f32.xlu0 %v9754
  %v9756 = vpop.xlane.xlu0 %9755
  %v9757 = vsel %vm2795, %v9075, -inf
  %9758 = vmax.xlane.f32.xlu0 %v9757
  %v9759 = vpop.xlane.xlu0 %9758
  %v9760 = vsel %vm2795, %v9080, -inf
  %9761 = vmax.xlane.f32.xlu0 %v9760
  %v9762 = vpop.xlane.xlu0 %9761
  %v9763 = vsel %vm2795, %v9083, -inf
  %9764 = vmax.xlane.f32.xlu0 %v9763
  %v9765 = vpop.xlane.xlu0 %9764
  %v9766 = vsel %vm2795, %v9088, -inf
  %9767 = vmax.xlane.f32.xlu0 %v9766
  %v9768 = vpop.xlane.xlu0 %9767
  %v9769 = vsel %vm2795, %v9091, -inf
  %9770 = vmax.xlane.f32.xlu0 %v9769
  %v9771 = vpop.xlane.xlu0 %9770
  %v9772 = vsel %vm2795, %v9169, -inf
  %9773 = vmax.xlane.f32.xlu0 %v9772
  %v9774 = vpop.xlane.xlu0 %9773
  %v9775 = vsel %vm2795, %v9172, -inf
  %9776 = vmax.xlane.f32.xlu0 %v9775
  %v9777 = vpop.xlane.xlu0 %9776
  %v9778 = vsel %vm2795, %v9177, -inf
  %9779 = vmax.xlane.f32.xlu0 %v9778
  %v9780 = vpop.xlane.xlu0 %9779
  %v9781 = vsel %vm2795, %v9180, -inf
  %9782 = vmax.xlane.f32.xlu0 %v9781
  %v9783 = vpop.xlane.xlu0 %9782
  %v9784 = vsel %vm2795, %v9185, -inf
  %9785 = vmax.xlane.f32.xlu0 %v9784
  %v9786 = vpop.xlane.xlu0 %9785
  %v9787 = vsel %vm2795, %v9188, -inf
  %9788 = vmax.xlane.f32.xlu0 %v9787
  %v9789 = vpop.xlane.xlu0 %9788
  %v9790 = vsel %vm2795, %v9193, -inf
  %9791 = vmax.xlane.f32.xlu0 %v9790
  %v9792 = vpop.xlane.xlu0 %9791
  %v9793 = vsel %vm2795, %v9196, -inf
  %9794 = vmax.xlane.f32.xlu0 %v9793
  %v9795 = vpop.xlane.xlu0 %9794
  %v9796 = vsel %vm2795, %v9274, -inf
  %9797 = vmax.xlane.f32.xlu0 %v9796
  %v9798 = vpop.xlane.xlu0 %9797
  %v9799 = vsel %vm2795, %v9277, -inf
  %9800 = vmax.xlane.f32.xlu0 %v9799
  %v9801 = vpop.xlane.xlu0 %9800
  %v9802 = vsel %vm2795, %v9282, -inf
  %9803 = vmax.xlane.f32.xlu0 %v9802
  %v9804 = vpop.xlane.xlu0 %9803
  %v9805 = vsel %vm2795, %v9285, -inf
  %9806 = vmax.xlane.f32.xlu0 %v9805
  %v9807 = vpop.xlane.xlu0 %9806
  %v9808 = vsel %vm2795, %v9290, -inf
  %9809 = vmax.xlane.f32.xlu0 %v9808
  %v9810 = vpop.xlane.xlu0 %9809
  %v9811 = vsel %vm2795, %v9293, -inf
  %9812 = vmax.xlane.f32.xlu0 %v9811
  %v9813 = vpop.xlane.xlu0 %9812
  %v9814 = vsel %vm2795, %v9298, -inf
  %9815 = vmax.xlane.f32.xlu0 %v9814
  %v9816 = vpop.xlane.xlu0 %9815
  %v9817 = vsel %vm2795, %v9301, -inf
  %9818 = vmax.xlane.f32.xlu0 %v9817
  %v9819 = vpop.xlane.xlu0 %9818
  %v9820 = vsel %vm2795, %v9379, -inf
  %9821 = vmax.xlane.f32.xlu0 %v9820
  %v9822 = vpop.xlane.xlu0 %9821
  %v9823 = vsel %vm2795, %v9382, -inf
  %9824 = vmax.xlane.f32.xlu0 %v9823
  %v9825 = vpop.xlane.xlu0 %9824
  %v9826 = vsel %vm2795, %v9387, -inf
  %9827 = vmax.xlane.f32.xlu0 %v9826
  %v9828 = vpop.xlane.xlu0 %9827
  %v9829 = vsel %vm2795, %v9390, -inf
  %9830 = vmax.xlane.f32.xlu0 %v9829
  %v9831 = vpop.xlane.xlu0 %9830
  %v9832 = vsel %vm2795, %v9395, -inf
  %9833 = vmax.xlane.f32.xlu0 %v9832
  %v9834 = vpop.xlane.xlu0 %9833
  %v9835 = vsel %vm2795, %v9398, -inf
  %9836 = vmax.xlane.f32.xlu0 %v9835
  %v9837 = vpop.xlane.xlu0 %9836
  %v9838 = vsel %vm2795, %v9403, -inf
  %9839 = vmax.xlane.f32.xlu0 %v9838
  %v9840 = vpop.xlane.xlu0 %9839
  %v9841 = vsel %vm2795, %v9406, -inf
  %9842 = vmax.xlane.f32.xlu0 %v9841
  %v9843 = vpop.xlane.xlu0 %9842
  %v9844 = vsel %vm2795, %v9484, -inf
  %9845 = vmax.xlane.f32.xlu0 %v9844
  %v9846 = vpop.xlane.xlu0 %9845
  %v9847 = vsel %vm2795, %v9487, -inf
  %9848 = vmax.xlane.f32.xlu0 %v9847
  %v9849 = vpop.xlane.xlu0 %9848
  %v9850 = vsel %vm2795, %v9492, -inf
  %9851 = vmax.xlane.f32.xlu0 %v9850
  %v9852 = vpop.xlane.xlu0 %9851
  %v9853 = vsel %vm2795, %v9495, -inf
  %9854 = vmax.xlane.f32.xlu0 %v9853
  %v9855 = vpop.xlane.xlu0 %9854
  %v9856 = vsel %vm2795, %v9500, -inf
  %9857 = vmax.xlane.f32.xlu0 %v9856
  %v9858 = vpop.xlane.xlu0 %9857
  %v9859 = vsel %vm2795, %v9503, -inf
  %9860 = vmax.xlane.f32.xlu0 %v9859
  %v9861 = vpop.xlane.xlu0 %9860
  %v9862 = vsel %vm2795, %v9508, -inf
  %9863 = vmax.xlane.f32.xlu0 %v9862
  %v9864 = vpop.xlane.xlu0 %9863
  %v9865 = vsel %vm2795, %v9511, -inf
  %9866 = vmax.xlane.f32.xlu0 %v9865
  %v9867 = vpop.xlane.xlu0 %9866
  %v9868 = vsel %vm2795, %v9589, -inf
  %9869 = vmax.xlane.f32.xlu0 %v9868
  %v9870 = vpop.xlane.xlu0 %9869
  %v9871 = vsel %vm2795, %v9592, -inf
  %9872 = vmax.xlane.f32.xlu0 %v9871
  %v9873 = vpop.xlane.xlu0 %9872
  %v9874 = vsel %vm2795, %v9597, -inf
  %9875 = vmax.xlane.f32.xlu0 %v9874
  %v9876 = vpop.xlane.xlu0 %9875
  %v9877 = vsel %vm2795, %v9600, -inf
  %9878 = vmax.xlane.f32.xlu0 %v9877
  %v9879 = vpop.xlane.xlu0 %9878
  %v9880 = vsel %vm2795, %v9605, -inf
  %9881 = vmax.xlane.f32.xlu0 %v9880
  %v9882 = vpop.xlane.xlu0 %9881
  %v9883 = vsel %vm2795, %v9608, -inf
  %9884 = vmax.xlane.f32.xlu0 %v9883
  %v9885 = vpop.xlane.xlu0 %9884
  %v9886 = vsel %vm2795, %v9613, -inf
  %9887 = vmax.xlane.f32.xlu0 %v9886
  %v9888 = vpop.xlane.xlu0 %9887
  %v9889 = vsel %vm2795, %v9616, -inf
  %9890 = vmax.xlane.f32.xlu0 %v9889
  %v9891 = vpop.xlane.xlu0 %9890
  %v9892 = vsel %vm2795, %v9694, -inf
  %9893 = vmax.xlane.f32.xlu0 %v9892
  %v9894 = vpop.xlane.xlu0 %9893
  %v9895 = vsel %vm2795, %v9697, -inf
  %9896 = vmax.xlane.f32.xlu0 %v9895
  %v9897 = vpop.xlane.xlu0 %9896
  %v9898 = vsel %vm2795, %v9702, -inf
  %9899 = vmax.xlane.f32.xlu0 %v9898
  %v9900 = vpop.xlane.xlu0 %9899
  %v9901 = vsel %vm2795, %v9705, -inf
  %9902 = vmax.xlane.f32.xlu0 %v9901
  %v9903 = vpop.xlane.xlu0 %9902
  %v9904 = vsel %vm2795, %v9710, -inf
  %9905 = vmax.xlane.f32.xlu0 %v9904
  %v9906 = vpop.xlane.xlu0 %9905
  %v9907 = vsel %vm2795, %v9713, -inf
  %9908 = vmax.xlane.f32.xlu0 %v9907
  %v9909 = vpop.xlane.xlu0 %9908
  %v9910 = vsel %vm2795, %v9718, -inf
  %9911 = vmax.xlane.f32.xlu0 %v9910
  %v9912 = vpop.xlane.xlu0 %9911
  %v9913 = vsel %vm2795, %v9721, -inf
  %9914 = vmax.xlane.f32.xlu0 %v9913
  %v9915 = vpop.xlane.xlu0 %9914
  %v9916 = vsub.f32 %v8959, %v9726
  %v9917 = vsub.f32 %v8962, %v9729
  %v9918 = vsub.f32 %v8967, %v9732
  %v9919 = vsub.f32 %v8970, %v9735
  %v9920 = vsub.f32 %v8975, %v9738
  %v9921 = vsub.f32 %v8978, %v9741
  %v9922 = vsub.f32 %v8983, %v9744
  %v9923 = vsub.f32 %v8986, %v9747
  %v9924 = vsub.f32 %v9064, %v9750
  %v9925 = vsub.f32 %v9067, %v9753
  %v9926 = vsub.f32 %v9072, %v9756
  %v9927 = vsub.f32 %v9075, %v9759
  %v9928 = vsub.f32 %v9080, %v9762
  %v9929 = vsub.f32 %v9083, %v9765
  %v9930 = vsub.f32 %v9088, %v9768
  %v9931 = vsub.f32 %v9091, %v9771
  %v9932 = vsub.f32 %v9169, %v9774
  %v9933 = vsub.f32 %v9172, %v9777
  %v9934 = vsub.f32 %v9177, %v9780
  %v9935 = vsub.f32 %v9180, %v9783
  %v9936 = vsub.f32 %v9185, %v9786
  %v9937 = vsub.f32 %v9188, %v9789
  %v9938 = vsub.f32 %v9193, %v9792
  %v9939 = vsub.f32 %v9196, %v9795
  %v9940 = vsub.f32 %v9274, %v9798
  %v9941 = vsub.f32 %v9277, %v9801
  %v9942 = vsub.f32 %v9282, %v9804
  %v9943 = vsub.f32 %v9285, %v9807
  %v9944 = vsub.f32 %v9290, %v9810
  %v9945 = vsub.f32 %v9293, %v9813
  %v9946 = vsub.f32 %v9298, %v9816
  %v9947 = vsub.f32 %v9301, %v9819
  %v9948 = vsub.f32 %v9379, %v9822
  %v9949 = vsub.f32 %v9382, %v9825
  %v9950 = vsub.f32 %v9387, %v9828
  %v9951 = vsub.f32 %v9390, %v9831
  %v9952 = vsub.f32 %v9395, %v9834
  %v9953 = vsub.f32 %v9398, %v9837
  %v9954 = vsub.f32 %v9403, %v9840
  %v9955 = vsub.f32 %v9406, %v9843
  %v9956 = vsub.f32 %v9484, %v9846
  %v9957 = vsub.f32 %v9487, %v9849
  %v9958 = vsub.f32 %v9492, %v9852
  %v9959 = vsub.f32 %v9495, %v9855
  %v9960 = vsub.f32 %v9500, %v9858
  %v9961 = vsub.f32 %v9503, %v9861
  %v9962 = vsub.f32 %v9508, %v9864
  %v9963 = vsub.f32 %v9511, %v9867
  %v9964 = vsub.f32 %v9589, %v9870
  %v9965 = vsub.f32 %v9592, %v9873
  %v9966 = vsub.f32 %v9597, %v9876
  %v9967 = vsub.f32 %v9600, %v9879
  %v9968 = vsub.f32 %v9605, %v9882
  %v9969 = vsub.f32 %v9608, %v9885
  %v9970 = vsub.f32 %v9613, %v9888
  %v9971 = vsub.f32 %v9616, %v9891
  %v9972 = vsub.f32 %v9694, %v9894
  %v9973 = vsub.f32 %v9697, %v9897
  %v9974 = vsub.f32 %v9702, %v9900
  %v9975 = vsub.f32 %v9705, %v9903
  %v9976 = vsub.f32 %v9710, %v9906
  %v9977 = vsub.f32 %v9713, %v9909
  %v9978 = vsub.f32 %v9718, %v9912
  %v9979 = vsub.f32 %v9721, %v9915
  %v9980 = vmul.f32 %v9916, 1.442695
  %v9981 = vpow.pop %v9980
  %v9982 = vmul.f32 %v9917, 1.442695
  %v9983 = vpow.pop %v9982
  %v9984 = vmul.f32 %v9918, 1.442695
  %v9985 = vpow.pop %v9984
  %v9986 = vmul.f32 %v9919, 1.442695
  %v9987 = vpow.pop %v9986
  %v9988 = vmul.f32 %v9920, 1.442695
  %v9989 = vpow.pop %v9988
  %v9990 = vmul.f32 %v9921, 1.442695
  %v9991 = vpow.pop %v9990
  %v9992 = vmul.f32 %v9922, 1.442695
  %v9993 = vpow.pop %v9992
  %v9994 = vmul.f32 %v9923, 1.442695
  %v9995 = vpow.pop %v9994
  %v9996 = vmul.f32 %v9924, 1.442695
  %v9997 = vpow.pop %v9996
  %v9998 = vmul.f32 %v9925, 1.442695
  %v9999 = vpow.pop %v9998
  %v10000 = vmul.f32 %v9926, 1.442695
  %v10001 = vpow.pop %v10000
  %v10002 = vmul.f32 %v9927, 1.442695
  %v10003 = vpow.pop %v10002
  %v10004 = vmul.f32 %v9928, 1.442695
  %v10005 = vpow.pop %v10004
  %v10006 = vmul.f32 %v9929, 1.442695
  %v10007 = vpow.pop %v10006
  %v10008 = vmul.f32 %v9930, 1.442695
  %v10009 = vpow.pop %v10008
  %v10010 = vmul.f32 %v9931, 1.442695
  %v10011 = vpow.pop %v10010
  %v10012 = vmul.f32 %v9932, 1.442695
  %v10013 = vpow.pop %v10012
  %v10014 = vmul.f32 %v9933, 1.442695
  %v10015 = vpow.pop %v10014
  %v10016 = vmul.f32 %v9934, 1.442695
  %v10017 = vpow.pop %v10016
  %v10018 = vmul.f32 %v9935, 1.442695
  %v10019 = vpow.pop %v10018
  %v10020 = vmul.f32 %v9936, 1.442695
  %v10021 = vpow.pop %v10020
  %v10022 = vmul.f32 %v9937, 1.442695
  %v10023 = vpow.pop %v10022
  %v10024 = vmul.f32 %v9938, 1.442695
  %v10025 = vpow.pop %v10024
  %v10026 = vmul.f32 %v9939, 1.442695
  %v10027 = vpow.pop %v10026
  %v10028 = vmul.f32 %v9940, 1.442695
  %v10029 = vpow.pop %v10028
  %v10030 = vmul.f32 %v9941, 1.442695
  %v10031 = vpow.pop %v10030
  %v10032 = vmul.f32 %v9942, 1.442695
  %v10033 = vpow.pop %v10032
  %v10034 = vmul.f32 %v9943, 1.442695
  %v10035 = vpow.pop %v10034
  %v10036 = vmul.f32 %v9944, 1.442695
  %v10037 = vpow.pop %v10036
  %v10038 = vmul.f32 %v9945, 1.442695
  %v10039 = vpow.pop %v10038
  %v10040 = vmul.f32 %v9946, 1.442695
  %v10041 = vpow.pop %v10040
  %v10042 = vmul.f32 %v9947, 1.442695
  %v10043 = vpow.pop %v10042
  %v10044 = vmul.f32 %v9948, 1.442695
  %v10045 = vpow.pop %v10044
  %v10046 = vmul.f32 %v9949, 1.442695
  %v10047 = vpow.pop %v10046
  %v10048 = vmul.f32 %v9950, 1.442695
  %v10049 = vpow.pop %v10048
  %v10050 = vmul.f32 %v9951, 1.442695
  %v10051 = vpow.pop %v10050
  %v10052 = vmul.f32 %v9952, 1.442695
  %v10053 = vpow.pop %v10052
  %v10054 = vmul.f32 %v9953, 1.442695
  %v10055 = vpow.pop %v10054
  %v10056 = vmul.f32 %v9954, 1.442695
  %v10057 = vpow.pop %v10056
  %v10058 = vmul.f32 %v9955, 1.442695
  %v10059 = vpow.pop %v10058
  %v10060 = vmul.f32 %v9956, 1.442695
  %v10061 = vpow.pop %v10060
  %v10062 = vmul.f32 %v9957, 1.442695
  %v10063 = vpow.pop %v10062
  %v10064 = vmul.f32 %v9958, 1.442695
  %v10065 = vpow.pop %v10064
  %v10066 = vmul.f32 %v9959, 1.442695
  %v10067 = vpow.pop %v10066
  %v10068 = vmul.f32 %v9960, 1.442695
  %v10069 = vpow.pop %v10068
  %v10070 = vmul.f32 %v9961, 1.442695
  %v10071 = vpow.pop %v10070
  %v10072 = vmul.f32 %v9962, 1.442695
  %v10073 = vpow.pop %v10072
  %v10074 = vmul.f32 %v9963, 1.442695
  %v10075 = vpow.pop %v10074
  %v10076 = vmul.f32 %v9964, 1.442695
  %v10077 = vpow.pop %v10076
  %v10078 = vmul.f32 %v9965, 1.442695
  %v10079 = vpow.pop %v10078
  %v10080 = vmul.f32 %v9966, 1.442695
  %v10081 = vpow.pop %v10080
  %v10082 = vmul.f32 %v9967, 1.442695
  %v10083 = vpow.pop %v10082
  %v10084 = vmul.f32 %v9968, 1.442695
  %v10085 = vpow.pop %v10084
  %v10086 = vmul.f32 %v9969, 1.442695
  %v10087 = vpow.pop %v10086
  %v10088 = vmul.f32 %v9970, 1.442695
  %v10089 = vpow.pop %v10088
  %v10090 = vmul.f32 %v9971, 1.442695
  %v10091 = vpow.pop %v10090
  %v10092 = vmul.f32 %v9972, 1.442695
  %v10093 = vpow.pop %v10092
  %v10094 = vmul.f32 %v9973, 1.442695
  %v10095 = vpow.pop %v10094
  %v10096 = vmul.f32 %v9974, 1.442695
  %v10097 = vpow.pop %v10096
  %v10098 = vmul.f32 %v9975, 1.442695
  %v10099 = vpow.pop %v10098
  %v10100 = vmul.f32 %v9976, 1.442695
  %v10101 = vpow.pop %v10100
  %v10102 = vmul.f32 %v9977, 1.442695
  %v10103 = vpow.pop %v10102
  %v10104 = vmul.f32 %v9978, 1.442695
  %v10105 = vpow.pop %v10104
  %v10106 = vmul.f32 %v9979, 1.442695
  %v10107 = vpow.pop %v10106
  %v10108 = vsel %vm2795, %v9981, 0.0
  %10109 = vadd.xlane.f32.xlu0 %v10108
  %v10110 = vpop.xlane.xlu0 %10109
  %v10111 = vsel %vm2795, %v9983, 0.0
  %10112 = vadd.xlane.f32.xlu0 %v10111
  %v10113 = vpop.xlane.xlu0 %10112
  %v10114 = vsel %vm2795, %v9985, 0.0
  %10115 = vadd.xlane.f32.xlu0 %v10114
  %v10116 = vpop.xlane.xlu0 %10115
  %v10117 = vsel %vm2795, %v9987, 0.0
  %10118 = vadd.xlane.f32.xlu0 %v10117
  %v10119 = vpop.xlane.xlu0 %10118
  %v10120 = vsel %vm2795, %v9989, 0.0
  %10121 = vadd.xlane.f32.xlu0 %v10120
  %v10122 = vpop.xlane.xlu0 %10121
  %v10123 = vsel %vm2795, %v9991, 0.0
  %10124 = vadd.xlane.f32.xlu0 %v10123
  %v10125 = vpop.xlane.xlu0 %10124
  %v10126 = vsel %vm2795, %v9993, 0.0
  %10127 = vadd.xlane.f32.xlu0 %v10126
  %v10128 = vpop.xlane.xlu0 %10127
  %v10129 = vsel %vm2795, %v9995, 0.0
  %10130 = vadd.xlane.f32.xlu0 %v10129
  %v10131 = vpop.xlane.xlu0 %10130
  %v10132 = vsel %vm2795, %v9997, 0.0
  %10133 = vadd.xlane.f32.xlu0 %v10132
  %v10134 = vpop.xlane.xlu0 %10133
  %v10135 = vsel %vm2795, %v9999, 0.0
  %10136 = vadd.xlane.f32.xlu0 %v10135
  %v10137 = vpop.xlane.xlu0 %10136
  %v10138 = vsel %vm2795, %v10001, 0.0
  %10139 = vadd.xlane.f32.xlu0 %v10138
  %v10140 = vpop.xlane.xlu0 %10139
  %v10141 = vsel %vm2795, %v10003, 0.0
  %10142 = vadd.xlane.f32.xlu0 %v10141
  %v10143 = vpop.xlane.xlu0 %10142
  %v10144 = vsel %vm2795, %v10005, 0.0
  %10145 = vadd.xlane.f32.xlu0 %v10144
  %v10146 = vpop.xlane.xlu0 %10145
  %v10147 = vsel %vm2795, %v10007, 0.0
  %10148 = vadd.xlane.f32.xlu0 %v10147
  %v10149 = vpop.xlane.xlu0 %10148
  %v10150 = vsel %vm2795, %v10009, 0.0
  %10151 = vadd.xlane.f32.xlu0 %v10150
  %v10152 = vpop.xlane.xlu0 %10151
  %v10153 = vsel %vm2795, %v10011, 0.0
  %10154 = vadd.xlane.f32.xlu0 %v10153
  %v10155 = vpop.xlane.xlu0 %10154
  %v10156 = vsel %vm2795, %v10013, 0.0
  %10157 = vadd.xlane.f32.xlu0 %v10156
  %v10158 = vpop.xlane.xlu0 %10157
  %v10159 = vsel %vm2795, %v10015, 0.0
  %10160 = vadd.xlane.f32.xlu0 %v10159
  %v10161 = vpop.xlane.xlu0 %10160
  %v10162 = vsel %vm2795, %v10017, 0.0
  %10163 = vadd.xlane.f32.xlu0 %v10162
  %v10164 = vpop.xlane.xlu0 %10163
  %v10165 = vsel %vm2795, %v10019, 0.0
  %10166 = vadd.xlane.f32.xlu0 %v10165
  %v10167 = vpop.xlane.xlu0 %10166
  %v10168 = vsel %vm2795, %v10021, 0.0
  %10169 = vadd.xlane.f32.xlu0 %v10168
  %v10170 = vpop.xlane.xlu0 %10169
  %v10171 = vsel %vm2795, %v10023, 0.0
  %10172 = vadd.xlane.f32.xlu0 %v10171
  %v10173 = vpop.xlane.xlu0 %10172
  %v10174 = vsel %vm2795, %v10025, 0.0
  %10175 = vadd.xlane.f32.xlu0 %v10174
  %v10176 = vpop.xlane.xlu0 %10175
  %v10177 = vsel %vm2795, %v10027, 0.0
  %10178 = vadd.xlane.f32.xlu0 %v10177
  %v10179 = vpop.xlane.xlu0 %10178
  %v10180 = vsel %vm2795, %v10029, 0.0
  %10181 = vadd.xlane.f32.xlu0 %v10180
  %v10182 = vpop.xlane.xlu0 %10181
  %v10183 = vsel %vm2795, %v10031, 0.0
  %10184 = vadd.xlane.f32.xlu0 %v10183
  %v10185 = vpop.xlane.xlu0 %10184
  %v10186 = vsel %vm2795, %v10033, 0.0
  %10187 = vadd.xlane.f32.xlu0 %v10186
  %v10188 = vpop.xlane.xlu0 %10187
  %v10189 = vsel %vm2795, %v10035, 0.0
  %10190 = vadd.xlane.f32.xlu0 %v10189
  %v10191 = vpop.xlane.xlu0 %10190
  %v10192 = vsel %vm2795, %v10037, 0.0
  %10193 = vadd.xlane.f32.xlu0 %v10192
  %v10194 = vpop.xlane.xlu0 %10193
  %v10195 = vsel %vm2795, %v10039, 0.0
  %10196 = vadd.xlane.f32.xlu0 %v10195
  %v10197 = vpop.xlane.xlu0 %10196
  %v10198 = vsel %vm2795, %v10041, 0.0
  %10199 = vadd.xlane.f32.xlu0 %v10198
  %v10200 = vpop.xlane.xlu0 %10199
  %v10201 = vsel %vm2795, %v10043, 0.0
  %10202 = vadd.xlane.f32.xlu0 %v10201
  %v10203 = vpop.xlane.xlu0 %10202
  %v10204 = vsel %vm2795, %v10045, 0.0
  %10205 = vadd.xlane.f32.xlu0 %v10204
  %v10206 = vpop.xlane.xlu0 %10205
  %v10207 = vsel %vm2795, %v10047, 0.0
  %10208 = vadd.xlane.f32.xlu0 %v10207
  %v10209 = vpop.xlane.xlu0 %10208
  %v10210 = vsel %vm2795, %v10049, 0.0
  %10211 = vadd.xlane.f32.xlu0 %v10210
  %v10212 = vpop.xlane.xlu0 %10211
  %v10213 = vsel %vm2795, %v10051, 0.0
  %10214 = vadd.xlane.f32.xlu0 %v10213
  %v10215 = vpop.xlane.xlu0 %10214
  %v10216 = vsel %vm2795, %v10053, 0.0
  %10217 = vadd.xlane.f32.xlu0 %v10216
  %v10218 = vpop.xlane.xlu0 %10217
  %v10219 = vsel %vm2795, %v10055, 0.0
  %10220 = vadd.xlane.f32.xlu0 %v10219
  %v10221 = vpop.xlane.xlu0 %10220
  %v10222 = vsel %vm2795, %v10057, 0.0
  %10223 = vadd.xlane.f32.xlu0 %v10222
  %v10224 = vpop.xlane.xlu0 %10223
  %v10225 = vsel %vm2795, %v10059, 0.0
  %10226 = vadd.xlane.f32.xlu0 %v10225
  %v10227 = vpop.xlane.xlu0 %10226
  %v10228 = vsel %vm2795, %v10061, 0.0
  %10229 = vadd.xlane.f32.xlu0 %v10228
  %v10230 = vpop.xlane.xlu0 %10229
  %v10231 = vsel %vm2795, %v10063, 0.0
  %10232 = vadd.xlane.f32.xlu0 %v10231
  %v10233 = vpop.xlane.xlu0 %10232
  %v10234 = vsel %vm2795, %v10065, 0.0
  %10235 = vadd.xlane.f32.xlu0 %v10234
  %v10236 = vpop.xlane.xlu0 %10235
  %v10237 = vsel %vm2795, %v10067, 0.0
  %10238 = vadd.xlane.f32.xlu0 %v10237
  %v10239 = vpop.xlane.xlu0 %10238
  %v10240 = vsel %vm2795, %v10069, 0.0
  %10241 = vadd.xlane.f32.xlu0 %v10240
  %v10242 = vpop.xlane.xlu0 %10241
  %v10243 = vsel %vm2795, %v10071, 0.0
  %10244 = vadd.xlane.f32.xlu0 %v10243
  %v10245 = vpop.xlane.xlu0 %10244
  %v10246 = vsel %vm2795, %v10073, 0.0
  %10247 = vadd.xlane.f32.xlu0 %v10246
  %v10248 = vpop.xlane.xlu0 %10247
  %v10249 = vsel %vm2795, %v10075, 0.0
  %10250 = vadd.xlane.f32.xlu0 %v10249
  %v10251 = vpop.xlane.xlu0 %10250
  %v10252 = vsel %vm2795, %v10077, 0.0
  %10253 = vadd.xlane.f32.xlu0 %v10252
  %v10254 = vpop.xlane.xlu0 %10253
  %v10255 = vsel %vm2795, %v10079, 0.0
  %10256 = vadd.xlane.f32.xlu0 %v10255
  %v10257 = vpop.xlane.xlu0 %10256
  %v10258 = vsel %vm2795, %v10081, 0.0
  %10259 = vadd.xlane.f32.xlu0 %v10258
  %v10260 = vpop.xlane.xlu0 %10259
  %v10261 = vsel %vm2795, %v10083, 0.0
  %10262 = vadd.xlane.f32.xlu0 %v10261
  %v10263 = vpop.xlane.xlu0 %10262
  %v10264 = vsel %vm2795, %v10085, 0.0
  %10265 = vadd.xlane.f32.xlu0 %v10264
  %v10266 = vpop.xlane.xlu0 %10265
  %v10267 = vsel %vm2795, %v10087, 0.0
  %10268 = vadd.xlane.f32.xlu0 %v10267
  %v10269 = vpop.xlane.xlu0 %10268
  %v10270 = vsel %vm2795, %v10089, 0.0
  %10271 = vadd.xlane.f32.xlu0 %v10270
  %v10272 = vpop.xlane.xlu0 %10271
  %v10273 = vsel %vm2795, %v10091, 0.0
  %10274 = vadd.xlane.f32.xlu0 %v10273
  %v10275 = vpop.xlane.xlu0 %10274
  %v10276 = vsel %vm2795, %v10093, 0.0
  %10277 = vadd.xlane.f32.xlu0 %v10276
  %v10278 = vpop.xlane.xlu0 %10277
  %v10279 = vsel %vm2795, %v10095, 0.0
  %10280 = vadd.xlane.f32.xlu0 %v10279
  %v10281 = vpop.xlane.xlu0 %10280
  %v10282 = vsel %vm2795, %v10097, 0.0
  %10283 = vadd.xlane.f32.xlu0 %v10282
  %v10284 = vpop.xlane.xlu0 %10283
  %v10285 = vsel %vm2795, %v10099, 0.0
  %10286 = vadd.xlane.f32.xlu0 %v10285
  %v10287 = vpop.xlane.xlu0 %10286
  %v10288 = vsel %vm2795, %v10101, 0.0
  %10289 = vadd.xlane.f32.xlu0 %v10288
  %v10290 = vpop.xlane.xlu0 %10289
  %v10291 = vsel %vm2795, %v10103, 0.0
  %10292 = vadd.xlane.f32.xlu0 %v10291
  %v10293 = vpop.xlane.xlu0 %10292
  %v10294 = vsel %vm2795, %v10105, 0.0
  %10295 = vadd.xlane.f32.xlu0 %v10294
  %v10296 = vpop.xlane.xlu0 %10295
  %v10297 = vsel %vm2795, %v10107, 0.0
  %10298 = vadd.xlane.f32.xlu0 %v10297
  %v10299 = vpop.xlane.xlu0 %10298
  %v10300 = vrcp.pop %v10110
  %v10301 = vrcp.pop %v10113
  %v10302 = vrcp.pop %v10116
  %v10303 = vrcp.pop %v10119
  %v10304 = vrcp.pop %v10122
  %v10305 = vrcp.pop %v10125
  %v10306 = vrcp.pop %v10128
  %v10307 = vrcp.pop %v10131
  %v10308 = vrcp.pop %v10134
  %v10309 = vrcp.pop %v10137
  %v10310 = vrcp.pop %v10140
  %v10311 = vrcp.pop %v10143
  %v10312 = vrcp.pop %v10146
  %v10313 = vrcp.pop %v10149
  %v10314 = vrcp.pop %v10152
  %v10315 = vrcp.pop %v10155
  %v10316 = vrcp.pop %v10158
  %v10317 = vrcp.pop %v10161
  %v10318 = vrcp.pop %v10164
  %v10319 = vrcp.pop %v10167
  %v10320 = vrcp.pop %v10170
  %v10321 = vrcp.pop %v10173
  %v10322 = vrcp.pop %v10176
  %v10323 = vrcp.pop %v10179
  %v10324 = vrcp.pop %v10182
  %v10325 = vrcp.pop %v10185
  %v10326 = vrcp.pop %v10188
  %v10327 = vrcp.pop %v10191
  %v10328 = vrcp.pop %v10194
  %v10329 = vrcp.pop %v10197
  %v10330 = vrcp.pop %v10200
  %v10331 = vrcp.pop %v10203
  %v10332 = vrcp.pop %v10206
  %v10333 = vrcp.pop %v10209
  %v10334 = vrcp.pop %v10212
  %v10335 = vrcp.pop %v10215
  %v10336 = vrcp.pop %v10218
  %v10337 = vrcp.pop %v10221
  %v10338 = vrcp.pop %v10224
  %v10339 = vrcp.pop %v10227
  %v10340 = vrcp.pop %v10230
  %v10341 = vrcp.pop %v10233
  %v10342 = vrcp.pop %v10236
  %v10343 = vrcp.pop %v10239
  %v10344 = vrcp.pop %v10242
  %v10345 = vrcp.pop %v10245
  %v10346 = vrcp.pop %v10248
  %v10347 = vrcp.pop %v10251
  %v10348 = vrcp.pop %v10254
  %v10349 = vrcp.pop %v10257
  %v10350 = vrcp.pop %v10260
  %v10351 = vrcp.pop %v10263
  %v10352 = vrcp.pop %v10266
  %v10353 = vrcp.pop %v10269
  %v10354 = vrcp.pop %v10272
  %v10355 = vrcp.pop %v10275
  %v10356 = vrcp.pop %v10278
  %v10357 = vrcp.pop %v10281
  %v10358 = vrcp.pop %v10284
  %v10359 = vrcp.pop %v10287
  %v10360 = vrcp.pop %v10290
  %v10361 = vrcp.pop %v10293
  %v10362 = vrcp.pop %v10296
  %v10363 = vrcp.pop %v10299
  %v10364 = vmul.f32 %v9981, %v10300
  %v10365 = vmul.f32 %v9983, %v10301
  %v10366 = vmul.f32 %v9985, %v10302
  %v10367 = vmul.f32 %v9987, %v10303
  %v10368 = vmul.f32 %v9989, %v10304
  %v10369 = vmul.f32 %v9991, %v10305
  %v10370 = vmul.f32 %v9993, %v10306
  %v10371 = vmul.f32 %v9995, %v10307
  %v10372 = vmul.f32 %v9997, %v10308
  %v10373 = vmul.f32 %v9999, %v10309
  %v10374 = vmul.f32 %v10001, %v10310
  %v10375 = vmul.f32 %v10003, %v10311
  %v10376 = vmul.f32 %v10005, %v10312
  %v10377 = vmul.f32 %v10007, %v10313
  %v10378 = vmul.f32 %v10009, %v10314
  %v10379 = vmul.f32 %v10011, %v10315
  %v10380 = vmul.f32 %v10013, %v10316
  %v10381 = vmul.f32 %v10015, %v10317
  %v10382 = vmul.f32 %v10017, %v10318
  %v10383 = vmul.f32 %v10019, %v10319
  %v10384 = vmul.f32 %v10021, %v10320
  %v10385 = vmul.f32 %v10023, %v10321
  %v10386 = vmul.f32 %v10025, %v10322
  %v10387 = vmul.f32 %v10027, %v10323
  %v10388 = vmul.f32 %v10029, %v10324
  %v10389 = vmul.f32 %v10031, %v10325
  %v10390 = vmul.f32 %v10033, %v10326
  %v10391 = vmul.f32 %v10035, %v10327
  %v10392 = vmul.f32 %v10037, %v10328
  %v10393 = vmul.f32 %v10039, %v10329
  %v10394 = vmul.f32 %v10041, %v10330
  %v10395 = vmul.f32 %v10043, %v10331
  %v10396 = vmul.f32 %v10045, %v10332
  %v10397 = vmul.f32 %v10047, %v10333
  %v10398 = vmul.f32 %v10049, %v10334
  %v10399 = vmul.f32 %v10051, %v10335
  %v10400 = vmul.f32 %v10053, %v10336
  %v10401 = vmul.f32 %v10055, %v10337
  %v10402 = vmul.f32 %v10057, %v10338
  %v10403 = vmul.f32 %v10059, %v10339
  %v10404 = vmul.f32 %v10061, %v10340
  %v10405 = vmul.f32 %v10063, %v10341
  %v10406 = vmul.f32 %v10065, %v10342
  %v10407 = vmul.f32 %v10067, %v10343
  %v10408 = vmul.f32 %v10069, %v10344
  %v10409 = vmul.f32 %v10071, %v10345
  %v10410 = vmul.f32 %v10073, %v10346
  %v10411 = vmul.f32 %v10075, %v10347
  %v10412 = vmul.f32 %v10077, %v10348
  %v10413 = vmul.f32 %v10079, %v10349
  %v10414 = vmul.f32 %v10081, %v10350
  %v10415 = vmul.f32 %v10083, %v10351
  %v10416 = vmul.f32 %v10085, %v10352
  %v10417 = vmul.f32 %v10087, %v10353
  %v10418 = vmul.f32 %v10089, %v10354
  %v10419 = vmul.f32 %v10091, %v10355
  %v10420 = vmul.f32 %v10093, %v10356
  %v10421 = vmul.f32 %v10095, %v10357
  %v10422 = vmul.f32 %v10097, %v10358
  %v10423 = vmul.f32 %v10099, %v10359
  %v10424 = vmul.f32 %v10101, %v10360
  %v10425 = vmul.f32 %v10103, %v10361
  %v10426 = vmul.f32 %v10105, %v10362
  %v10427 = vmul.f32 %v10107, %v10363
  %v10428 = vpack.c.bf16 %v10365, %v10364
  %v10429 = vpack.c.bf16 %v10367, %v10366
  %v10430 = vpack.c.bf16 %v10369, %v10368
  %v10431 = vpack.c.bf16 %v10371, %v10370
  %v10432 = vpack.c.bf16 %v10373, %v10372
  %v10433 = vpack.c.bf16 %v10375, %v10374
  %v10434 = vpack.c.bf16 %v10377, %v10376
  %v10435 = vpack.c.bf16 %v10379, %v10378
  %v10436 = vpack.c.bf16 %v10381, %v10380
  %v10437 = vpack.c.bf16 %v10383, %v10382
  %v10438 = vpack.c.bf16 %v10385, %v10384
  %v10439 = vpack.c.bf16 %v10387, %v10386
  %v10440 = vpack.c.bf16 %v10389, %v10388
  %v10441 = vpack.c.bf16 %v10391, %v10390
  %v10442 = vpack.c.bf16 %v10393, %v10392
  %v10443 = vpack.c.bf16 %v10395, %v10394
  %v10444 = vpack.c.bf16 %v10397, %v10396
  %v10445 = vpack.c.bf16 %v10399, %v10398
  %v10446 = vpack.c.bf16 %v10401, %v10400
  %v10447 = vpack.c.bf16 %v10403, %v10402
  %v10448 = vpack.c.bf16 %v10405, %v10404
  %v10449 = vpack.c.bf16 %v10407, %v10406
  %v10450 = vpack.c.bf16 %v10409, %v10408
  %v10451 = vpack.c.bf16 %v10411, %v10410
  %v10452 = vpack.c.bf16 %v10413, %v10412
  %v10453 = vpack.c.bf16 %v10415, %v10414
  %v10454 = vpack.c.bf16 %v10417, %v10416
  %v10455 = vpack.c.bf16 %v10419, %v10418
  %v10456 = vpack.c.bf16 %v10421, %v10420
  %v10457 = vpack.c.bf16 %v10423, %v10422
  %v10458 = vpack.c.bf16 %v10425, %v10424
  %v10459 = vpack.c.bf16 %v10427, %v10426
  %10460 = vrot.lane.b32.xlu0 %v1954, 104
  %v10461 = vpop.permute.xlu0 %10460
  %10462 = vrot.lane.b32.xlu0 %v1955, 104
  %v10463 = vpop.permute.xlu0 %10462
  %10464 = vrot.lane.b32.xlu0 %v1956, 104
  %v10465 = vpop.permute.xlu0 %10464
  %10466 = vrot.lane.b32.xlu0 %v1957, 104
  %v10467 = vpop.permute.xlu0 %10466
  %v10473 = vsel %vm2795, %v10428, 0
  %v10476 = vsel %vm2795, %v10429, 0
  %v10479 = vsel %vm2795, %v10430, 0
  %v10482 = vsel %vm2795, %v10431, 0
  %10484 = vmatprep.subr.bf16.mxu0 0
  %10485 = vmatpush1.bf16.msra.mxu0 0
  %10486 = vmatprep.subr.bf16.mxu0 0
  %10487 = vmatpush1.bf16.msra.mxu0 0
  %10488 = vmatprep.subr.bf16.mxu0 0
  %10489 = vmatpush1.bf16.msra.mxu0 0
  %10490 = vmatprep.subr.bf16.mxu0 0
  %10491 = vmatpush1.bf16.msra.mxu0 0
  %10492 = vmatprep.subr.bf16.mxu0 0
  %10493 = vmatpush1.bf16.msra.mxu0 %v10467
  %10494 = vmatprep.subr.bf16.mxu0 0
  %10495 = vmatpush1.bf16.msra.mxu0 %v10465
  %10496 = vmatprep.subr.bf16.mxu0 0
  %10497 = vmatpush1.bf16.msra.mxu0 %v10463
  %10498 = vmatprep.subr.bf16.mxu0 0
  %10499 = vmatpush1.bf16.msra.mxu0 %v10461
  %10500 = vmatprep.subr.bf16.mxu0 0
  %10501 = vmatpush2.bf16.msra.mxu0 0
  %10502 = vmatprep.subr.bf16.mxu0 0
  %10503 = vmatpush2.bf16.msra.mxu0 0
  %10504 = vmatprep.subr.bf16.mxu0 0
  %10505 = vmatpush2.bf16.msra.mxu0 0
  %10506 = vmatprep.subr.bf16.mxu0 0
  %10507 = vmatpush2.bf16.msra.mxu0 0
  %10508 = vmatprep.subr.bf16.mxu0 0
  %10509 = vmatpush2.bf16.msra.mxu0 0
  %10510 = vmatprep.subr.bf16.mxu0 0
  %10511 = vmatpush2.bf16.msra.mxu0 0
  %10512 = vmatprep.subr.bf16.mxu0 0
  %10513 = vmatpush2.bf16.msra.mxu0 0
  %10514 = vmatprep.subr.bf16.mxu0 0
  %10515 = vmatpush2.bf16.msra.mxu0 0
  %10516 = vmatprep.mubr.bf16.mxu0 0
  %10517 = vmatmul.mubr.bf16.gmra.mxu0 %v10473
  %v10518 = vpop.f32.mrf.mxu0
  %v10519 = vadd.f32 0.0, %v10518
  %v10520 = vpop.f32.mrf.mxu0
  %v10521 = vpop.f32.mrf.mxu0
  %v10522 = vadd.f32 0.0, %v10521
  %v10523 = vpop.f32.mrf.mxu0
  %10524 = vmatprep.mubr.bf16.mxu0 0
  %10525 = vmatmul.mubr.bf16.gmra.mxu0 %v10476
  %v10526 = vpop.f32.mrf.mxu0
  %v10527 = vadd.f32 0.0, %v10526
  %v10528 = vpop.f32.mrf.mxu0
  %v10529 = vpop.f32.mrf.mxu0
  %v10530 = vadd.f32 0.0, %v10529
  %v10531 = vpop.f32.mrf.mxu0
  %10532 = vmatprep.mubr.bf16.mxu0 0
  %10533 = vmatmul.mubr.bf16.gmra.mxu0 %v10479
  %v10534 = vpop.f32.mrf.mxu0
  %v10535 = vadd.f32 0.0, %v10534
  %v10536 = vpop.f32.mrf.mxu0
  %v10537 = vpop.f32.mrf.mxu0
  %v10538 = vadd.f32 0.0, %v10537
  %v10539 = vpop.f32.mrf.mxu0
  %10540 = vmatprep.mubr.bf16.mxu0 0
  %10541 = vmatmul.mubr.bf16.gmra.mxu0 %v10482
  %v10542 = vpop.f32.mrf.mxu0
  %v10543 = vadd.f32 0.0, %v10542
  %v10544 = vpop.f32.mrf.mxu0
  %v10545 = vpop.f32.mrf.mxu0
  %v10546 = vadd.f32 0.0, %v10545
  %v10547 = vpop.f32.mrf.mxu0
  %10548 = vdwg.mxu0
  %10549 = vrot.lane.b32.xlu0 %v1958, 104
  %v10550 = vpop.permute.xlu0 %10549
  %10551 = vrot.lane.b32.xlu0 %v1959, 104
  %v10552 = vpop.permute.xlu0 %10551
  %10553 = vrot.lane.b32.xlu0 %v1960, 104
  %v10554 = vpop.permute.xlu0 %10553
  %10555 = vrot.lane.b32.xlu0 %v1961, 104
  %v10556 = vpop.permute.xlu0 %10555
  %v10562 = vsel %vm2795, %v10432, 0
  %v10565 = vsel %vm2795, %v10433, 0
  %v10568 = vsel %vm2795, %v10434, 0
  %v10571 = vsel %vm2795, %v10435, 0
  %10573 = vmatprep.subr.bf16.mxu0 0
  %10574 = vmatpush1.bf16.msra.mxu0 0
  %10575 = vmatprep.subr.bf16.mxu0 0
  %10576 = vmatpush1.bf16.msra.mxu0 0
  %10577 = vmatprep.subr.bf16.mxu0 0
  %10578 = vmatpush1.bf16.msra.mxu0 0
  %10579 = vmatprep.subr.bf16.mxu0 0
  %10580 = vmatpush1.bf16.msra.mxu0 0
  %10581 = vmatprep.subr.bf16.mxu0 0
  %10582 = vmatpush1.bf16.msra.mxu0 %v10556
  %10583 = vmatprep.subr.bf16.mxu0 0
  %10584 = vmatpush1.bf16.msra.mxu0 %v10554
  %10585 = vmatprep.subr.bf16.mxu0 0
  %10586 = vmatpush1.bf16.msra.mxu0 %v10552
  %10587 = vmatprep.subr.bf16.mxu0 0
  %10588 = vmatpush1.bf16.msra.mxu0 %v10550
  %10589 = vmatprep.subr.bf16.mxu0 0
  %10590 = vmatpush2.bf16.msra.mxu0 0
  %10591 = vmatprep.subr.bf16.mxu0 0
  %10592 = vmatpush2.bf16.msra.mxu0 0
  %10593 = vmatprep.subr.bf16.mxu0 0
  %10594 = vmatpush2.bf16.msra.mxu0 0
  %10595 = vmatprep.subr.bf16.mxu0 0
  %10596 = vmatpush2.bf16.msra.mxu0 0
  %10597 = vmatprep.subr.bf16.mxu0 0
  %10598 = vmatpush2.bf16.msra.mxu0 0
  %10599 = vmatprep.subr.bf16.mxu0 0
  %10600 = vmatpush2.bf16.msra.mxu0 0
  %10601 = vmatprep.subr.bf16.mxu0 0
  %10602 = vmatpush2.bf16.msra.mxu0 0
  %10603 = vmatprep.subr.bf16.mxu0 0
  %10604 = vmatpush2.bf16.msra.mxu0 0
  %10605 = vmatprep.mubr.bf16.mxu0 0
  %10606 = vmatmul.mubr.bf16.gmra.mxu0 %v10562
  %v10607 = vpop.f32.mrf.mxu0
  %v10608 = vadd.f32 0.0, %v10607
  %v10609 = vpop.f32.mrf.mxu0
  %v10610 = vpop.f32.mrf.mxu0
  %v10611 = vadd.f32 0.0, %v10610
  %v10612 = vpop.f32.mrf.mxu0
  %10613 = vmatprep.mubr.bf16.mxu0 0
  %10614 = vmatmul.mubr.bf16.gmra.mxu0 %v10565
  %v10615 = vpop.f32.mrf.mxu0
  %v10616 = vadd.f32 0.0, %v10615
  %v10617 = vpop.f32.mrf.mxu0
  %v10618 = vpop.f32.mrf.mxu0
  %v10619 = vadd.f32 0.0, %v10618
  %v10620 = vpop.f32.mrf.mxu0
  %10621 = vmatprep.mubr.bf16.mxu0 0
  %10622 = vmatmul.mubr.bf16.gmra.mxu0 %v10568
  %v10623 = vpop.f32.mrf.mxu0
  %v10624 = vadd.f32 0.0, %v10623
  %v10625 = vpop.f32.mrf.mxu0
  %v10626 = vpop.f32.mrf.mxu0
  %v10627 = vadd.f32 0.0, %v10626
  %v10628 = vpop.f32.mrf.mxu0
  %10629 = vmatprep.mubr.bf16.mxu0 0
  %10630 = vmatmul.mubr.bf16.gmra.mxu0 %v10571
  %v10631 = vpop.f32.mrf.mxu0
  %v10632 = vadd.f32 0.0, %v10631
  %v10633 = vpop.f32.mrf.mxu0
  %v10634 = vpop.f32.mrf.mxu0
  %v10635 = vadd.f32 0.0, %v10634
  %v10636 = vpop.f32.mrf.mxu0
  %10637 = vdwg.mxu0
  %10638 = vrot.lane.b32.xlu0 %v1962, 104
  %v10639 = vpop.permute.xlu0 %10638
  %10640 = vrot.lane.b32.xlu0 %v1963, 104
  %v10641 = vpop.permute.xlu0 %10640
  %10642 = vrot.lane.b32.xlu0 %v1964, 104
  %v10643 = vpop.permute.xlu0 %10642
  %10644 = vrot.lane.b32.xlu0 %v1965, 104
  %v10645 = vpop.permute.xlu0 %10644
  %v10651 = vsel %vm2795, %v10436, 0
  %v10654 = vsel %vm2795, %v10437, 0
  %v10657 = vsel %vm2795, %v10438, 0
  %v10660 = vsel %vm2795, %v10439, 0
  %10662 = vmatprep.subr.bf16.mxu0 0
  %10663 = vmatpush1.bf16.msra.mxu0 0
  %10664 = vmatprep.subr.bf16.mxu0 0
  %10665 = vmatpush1.bf16.msra.mxu0 0
  %10666 = vmatprep.subr.bf16.mxu0 0
  %10667 = vmatpush1.bf16.msra.mxu0 0
  %10668 = vmatprep.subr.bf16.mxu0 0
  %10669 = vmatpush1.bf16.msra.mxu0 0
  %10670 = vmatprep.subr.bf16.mxu0 0
  %10671 = vmatpush1.bf16.msra.mxu0 %v10645
  %10672 = vmatprep.subr.bf16.mxu0 0
  %10673 = vmatpush1.bf16.msra.mxu0 %v10643
  %10674 = vmatprep.subr.bf16.mxu0 0
  %10675 = vmatpush1.bf16.msra.mxu0 %v10641
  %10676 = vmatprep.subr.bf16.mxu0 0
  %10677 = vmatpush1.bf16.msra.mxu0 %v10639
  %10678 = vmatprep.subr.bf16.mxu0 0
  %10679 = vmatpush2.bf16.msra.mxu0 0
  %10680 = vmatprep.subr.bf16.mxu0 0
  %10681 = vmatpush2.bf16.msra.mxu0 0
  %10682 = vmatprep.subr.bf16.mxu0 0
  %10683 = vmatpush2.bf16.msra.mxu0 0
  %10684 = vmatprep.subr.bf16.mxu0 0
  %10685 = vmatpush2.bf16.msra.mxu0 0
  %10686 = vmatprep.subr.bf16.mxu0 0
  %10687 = vmatpush2.bf16.msra.mxu0 0
  %10688 = vmatprep.subr.bf16.mxu0 0
  %10689 = vmatpush2.bf16.msra.mxu0 0
  %10690 = vmatprep.subr.bf16.mxu0 0
  %10691 = vmatpush2.bf16.msra.mxu0 0
  %10692 = vmatprep.subr.bf16.mxu0 0
  %10693 = vmatpush2.bf16.msra.mxu0 0
  %10694 = vmatprep.mubr.bf16.mxu0 0
  %10695 = vmatmul.mubr.bf16.gmra.mxu0 %v10651
  %v10696 = vpop.f32.mrf.mxu0
  %v10697 = vadd.f32 0.0, %v10696
  %v10698 = vpop.f32.mrf.mxu0
  %v10699 = vpop.f32.mrf.mxu0
  %v10700 = vadd.f32 0.0, %v10699
  %v10701 = vpop.f32.mrf.mxu0
  %10702 = vmatprep.mubr.bf16.mxu0 0
  %10703 = vmatmul.mubr.bf16.gmra.mxu0 %v10654
  %v10704 = vpop.f32.mrf.mxu0
  %v10705 = vadd.f32 0.0, %v10704
  %v10706 = vpop.f32.mrf.mxu0
  %v10707 = vpop.f32.mrf.mxu0
  %v10708 = vadd.f32 0.0, %v10707
  %v10709 = vpop.f32.mrf.mxu0
  %10710 = vmatprep.mubr.bf16.mxu0 0
  %10711 = vmatmul.mubr.bf16.gmra.mxu0 %v10657
  %v10712 = vpop.f32.mrf.mxu0
  %v10713 = vadd.f32 0.0, %v10712
  %v10714 = vpop.f32.mrf.mxu0
  %v10715 = vpop.f32.mrf.mxu0
  %v10716 = vadd.f32 0.0, %v10715
  %v10717 = vpop.f32.mrf.mxu0
  %10718 = vmatprep.mubr.bf16.mxu0 0
  %10719 = vmatmul.mubr.bf16.gmra.mxu0 %v10660
  %v10720 = vpop.f32.mrf.mxu0
  %v10721 = vadd.f32 0.0, %v10720
  %v10722 = vpop.f32.mrf.mxu0
  %v10723 = vpop.f32.mrf.mxu0
  %v10724 = vadd.f32 0.0, %v10723
  %v10725 = vpop.f32.mrf.mxu0
  %10726 = vdwg.mxu0
  %10727 = vrot.lane.b32.xlu0 %v1966, 104
  %v10728 = vpop.permute.xlu0 %10727
  %10729 = vrot.lane.b32.xlu0 %v1967, 104
  %v10730 = vpop.permute.xlu0 %10729
  %10731 = vrot.lane.b32.xlu0 %v1968, 104
  %v10732 = vpop.permute.xlu0 %10731
  %10733 = vrot.lane.b32.xlu0 %v1969, 104
  %v10734 = vpop.permute.xlu0 %10733
  %v10740 = vsel %vm2795, %v10440, 0
  %v10743 = vsel %vm2795, %v10441, 0
  %v10746 = vsel %vm2795, %v10442, 0
  %v10749 = vsel %vm2795, %v10443, 0
  %10751 = vmatprep.subr.bf16.mxu0 0
  %10752 = vmatpush1.bf16.msra.mxu0 0
  %10753 = vmatprep.subr.bf16.mxu0 0
  %10754 = vmatpush1.bf16.msra.mxu0 0
  %10755 = vmatprep.subr.bf16.mxu0 0
  %10756 = vmatpush1.bf16.msra.mxu0 0
  %10757 = vmatprep.subr.bf16.mxu0 0
  %10758 = vmatpush1.bf16.msra.mxu0 0
  %10759 = vmatprep.subr.bf16.mxu0 0
  %10760 = vmatpush1.bf16.msra.mxu0 %v10734
  %10761 = vmatprep.subr.bf16.mxu0 0
  %10762 = vmatpush1.bf16.msra.mxu0 %v10732
  %10763 = vmatprep.subr.bf16.mxu0 0
  %10764 = vmatpush1.bf16.msra.mxu0 %v10730
  %10765 = vmatprep.subr.bf16.mxu0 0
  %10766 = vmatpush1.bf16.msra.mxu0 %v10728
  %10767 = vmatprep.subr.bf16.mxu0 0
  %10768 = vmatpush2.bf16.msra.mxu0 0
  %10769 = vmatprep.subr.bf16.mxu0 0
  %10770 = vmatpush2.bf16.msra.mxu0 0
  %10771 = vmatprep.subr.bf16.mxu0 0
  %10772 = vmatpush2.bf16.msra.mxu0 0
  %10773 = vmatprep.subr.bf16.mxu0 0
  %10774 = vmatpush2.bf16.msra.mxu0 0
  %10775 = vmatprep.subr.bf16.mxu0 0
  %10776 = vmatpush2.bf16.msra.mxu0 0
  %10777 = vmatprep.subr.bf16.mxu0 0
  %10778 = vmatpush2.bf16.msra.mxu0 0
  %10779 = vmatprep.subr.bf16.mxu0 0
  %10780 = vmatpush2.bf16.msra.mxu0 0
  %10781 = vmatprep.subr.bf16.mxu0 0
  %10782 = vmatpush2.bf16.msra.mxu0 0
  %10783 = vmatprep.mubr.bf16.mxu0 0
  %10784 = vmatmul.mubr.bf16.gmra.mxu0 %v10740
  %v10785 = vpop.f32.mrf.mxu0
  %v10786 = vadd.f32 0.0, %v10785
  %v10787 = vpop.f32.mrf.mxu0
  %v10788 = vpop.f32.mrf.mxu0
  %v10789 = vadd.f32 0.0, %v10788
  %v10790 = vpop.f32.mrf.mxu0
  %10791 = vmatprep.mubr.bf16.mxu0 0
  %10792 = vmatmul.mubr.bf16.gmra.mxu0 %v10743
  %v10793 = vpop.f32.mrf.mxu0
  %v10794 = vadd.f32 0.0, %v10793
  %v10795 = vpop.f32.mrf.mxu0
  %v10796 = vpop.f32.mrf.mxu0
  %v10797 = vadd.f32 0.0, %v10796
  %v10798 = vpop.f32.mrf.mxu0
  %10799 = vmatprep.mubr.bf16.mxu0 0
  %10800 = vmatmul.mubr.bf16.gmra.mxu0 %v10746
  %v10801 = vpop.f32.mrf.mxu0
  %v10802 = vadd.f32 0.0, %v10801
  %v10803 = vpop.f32.mrf.mxu0
  %v10804 = vpop.f32.mrf.mxu0
  %v10805 = vadd.f32 0.0, %v10804
  %v10806 = vpop.f32.mrf.mxu0
  %10807 = vmatprep.mubr.bf16.mxu0 0
  %10808 = vmatmul.mubr.bf16.gmra.mxu0 %v10749
  %v10809 = vpop.f32.mrf.mxu0
  %v10810 = vadd.f32 0.0, %v10809
  %v10811 = vpop.f32.mrf.mxu0
  %v10812 = vpop.f32.mrf.mxu0
  %v10813 = vadd.f32 0.0, %v10812
  %v10814 = vpop.f32.mrf.mxu0
  %10815 = vdwg.mxu0
  %10816 = vrot.lane.b32.xlu0 %v1970, 104
  %v10817 = vpop.permute.xlu0 %10816
  %10818 = vrot.lane.b32.xlu0 %v1971, 104
  %v10819 = vpop.permute.xlu0 %10818
  %10820 = vrot.lane.b32.xlu0 %v1972, 104
  %v10821 = vpop.permute.xlu0 %10820
  %10822 = vrot.lane.b32.xlu0 %v1973, 104
  %v10823 = vpop.permute.xlu0 %10822
  %v10829 = vsel %vm2795, %v10444, 0
  %v10832 = vsel %vm2795, %v10445, 0
  %v10835 = vsel %vm2795, %v10446, 0
  %v10838 = vsel %vm2795, %v10447, 0
  %10840 = vmatprep.subr.bf16.mxu0 0
  %10841 = vmatpush1.bf16.msra.mxu0 0
  %10842 = vmatprep.subr.bf16.mxu0 0
  %10843 = vmatpush1.bf16.msra.mxu0 0
  %10844 = vmatprep.subr.bf16.mxu0 0
  %10845 = vmatpush1.bf16.msra.mxu0 0
  %10846 = vmatprep.subr.bf16.mxu0 0
  %10847 = vmatpush1.bf16.msra.mxu0 0
  %10848 = vmatprep.subr.bf16.mxu0 0
  %10849 = vmatpush1.bf16.msra.mxu0 %v10823
  %10850 = vmatprep.subr.bf16.mxu0 0
  %10851 = vmatpush1.bf16.msra.mxu0 %v10821
  %10852 = vmatprep.subr.bf16.mxu0 0
  %10853 = vmatpush1.bf16.msra.mxu0 %v10819
  %10854 = vmatprep.subr.bf16.mxu0 0
  %10855 = vmatpush1.bf16.msra.mxu0 %v10817
  %10856 = vmatprep.subr.bf16.mxu0 0
  %10857 = vmatpush2.bf16.msra.mxu0 0
  %10858 = vmatprep.subr.bf16.mxu0 0
  %10859 = vmatpush2.bf16.msra.mxu0 0
  %10860 = vmatprep.subr.bf16.mxu0 0
  %10861 = vmatpush2.bf16.msra.mxu0 0
  %10862 = vmatprep.subr.bf16.mxu0 0
  %10863 = vmatpush2.bf16.msra.mxu0 0
  %10864 = vmatprep.subr.bf16.mxu0 0
  %10865 = vmatpush2.bf16.msra.mxu0 0
  %10866 = vmatprep.subr.bf16.mxu0 0
  %10867 = vmatpush2.bf16.msra.mxu0 0
  %10868 = vmatprep.subr.bf16.mxu0 0
  %10869 = vmatpush2.bf16.msra.mxu0 0
  %10870 = vmatprep.subr.bf16.mxu0 0
  %10871 = vmatpush2.bf16.msra.mxu0 0
  %10872 = vmatprep.mubr.bf16.mxu0 0
  %10873 = vmatmul.mubr.bf16.gmra.mxu0 %v10829
  %v10874 = vpop.f32.mrf.mxu0
  %v10875 = vadd.f32 0.0, %v10874
  %v10876 = vpop.f32.mrf.mxu0
  %v10877 = vpop.f32.mrf.mxu0
  %v10878 = vadd.f32 0.0, %v10877
  %v10879 = vpop.f32.mrf.mxu0
  %10880 = vmatprep.mubr.bf16.mxu0 0
  %10881 = vmatmul.mubr.bf16.gmra.mxu0 %v10832
  %v10882 = vpop.f32.mrf.mxu0
  %v10883 = vadd.f32 0.0, %v10882
  %v10884 = vpop.f32.mrf.mxu0
  %v10885 = vpop.f32.mrf.mxu0
  %v10886 = vadd.f32 0.0, %v10885
  %v10887 = vpop.f32.mrf.mxu0
  %10888 = vmatprep.mubr.bf16.mxu0 0
  %10889 = vmatmul.mubr.bf16.gmra.mxu0 %v10835
  %v10890 = vpop.f32.mrf.mxu0
  %v10891 = vadd.f32 0.0, %v10890
  %v10892 = vpop.f32.mrf.mxu0
  %v10893 = vpop.f32.mrf.mxu0
  %v10894 = vadd.f32 0.0, %v10893
  %v10895 = vpop.f32.mrf.mxu0
  %10896 = vmatprep.mubr.bf16.mxu0 0
  %10897 = vmatmul.mubr.bf16.gmra.mxu0 %v10838
  %v10898 = vpop.f32.mrf.mxu0
  %v10899 = vadd.f32 0.0, %v10898
  %v10900 = vpop.f32.mrf.mxu0
  %v10901 = vpop.f32.mrf.mxu0
  %v10902 = vadd.f32 0.0, %v10901
  %v10903 = vpop.f32.mrf.mxu0
  %10904 = vdwg.mxu0
  %10905 = vrot.lane.b32.xlu0 %v1974, 104
  %v10906 = vpop.permute.xlu0 %10905
  %10907 = vrot.lane.b32.xlu0 %v1975, 104
  %v10908 = vpop.permute.xlu0 %10907
  %10909 = vrot.lane.b32.xlu0 %v1976, 104
  %v10910 = vpop.permute.xlu0 %10909
  %10911 = vrot.lane.b32.xlu0 %v1977, 104
  %v10912 = vpop.permute.xlu0 %10911
  %v10918 = vsel %vm2795, %v10448, 0
  %v10921 = vsel %vm2795, %v10449, 0
  %v10924 = vsel %vm2795, %v10450, 0
  %v10927 = vsel %vm2795, %v10451, 0
  %10929 = vmatprep.subr.bf16.mxu0 0
  %10930 = vmatpush1.bf16.msra.mxu0 0
  %10931 = vmatprep.subr.bf16.mxu0 0
  %10932 = vmatpush1.bf16.msra.mxu0 0
  %10933 = vmatprep.subr.bf16.mxu0 0
  %10934 = vmatpush1.bf16.msra.mxu0 0
  %10935 = vmatprep.subr.bf16.mxu0 0
  %10936 = vmatpush1.bf16.msra.mxu0 0
  %10937 = vmatprep.subr.bf16.mxu0 0
  %10938 = vmatpush1.bf16.msra.mxu0 %v10912
  %10939 = vmatprep.subr.bf16.mxu0 0
  %10940 = vmatpush1.bf16.msra.mxu0 %v10910
  %10941 = vmatprep.subr.bf16.mxu0 0
  %10942 = vmatpush1.bf16.msra.mxu0 %v10908
  %10943 = vmatprep.subr.bf16.mxu0 0
  %10944 = vmatpush1.bf16.msra.mxu0 %v10906
  %10945 = vmatprep.subr.bf16.mxu0 0
  %10946 = vmatpush2.bf16.msra.mxu0 0
  %10947 = vmatprep.subr.bf16.mxu0 0
  %10948 = vmatpush2.bf16.msra.mxu0 0
  %10949 = vmatprep.subr.bf16.mxu0 0
  %10950 = vmatpush2.bf16.msra.mxu0 0
  %10951 = vmatprep.subr.bf16.mxu0 0
  %10952 = vmatpush2.bf16.msra.mxu0 0
  %10953 = vmatprep.subr.bf16.mxu0 0
  %10954 = vmatpush2.bf16.msra.mxu0 0
  %10955 = vmatprep.subr.bf16.mxu0 0
  %10956 = vmatpush2.bf16.msra.mxu0 0
  %10957 = vmatprep.subr.bf16.mxu0 0
  %10958 = vmatpush2.bf16.msra.mxu0 0
  %10959 = vmatprep.subr.bf16.mxu0 0
  %10960 = vmatpush2.bf16.msra.mxu0 0
  %10961 = vmatprep.mubr.bf16.mxu0 0
  %10962 = vmatmul.mubr.bf16.gmra.mxu0 %v10918
  %v10963 = vpop.f32.mrf.mxu0
  %v10964 = vadd.f32 0.0, %v10963
  %v10965 = vpop.f32.mrf.mxu0
  %v10966 = vpop.f32.mrf.mxu0
  %v10967 = vadd.f32 0.0, %v10966
  %v10968 = vpop.f32.mrf.mxu0
  %10969 = vmatprep.mubr.bf16.mxu0 0
  %10970 = vmatmul.mubr.bf16.gmra.mxu0 %v10921
  %v10971 = vpop.f32.mrf.mxu0
  %v10972 = vadd.f32 0.0, %v10971
  %v10973 = vpop.f32.mrf.mxu0
  %v10974 = vpop.f32.mrf.mxu0
  %v10975 = vadd.f32 0.0, %v10974
  %v10976 = vpop.f32.mrf.mxu0
  %10977 = vmatprep.mubr.bf16.mxu0 0
  %10978 = vmatmul.mubr.bf16.gmra.mxu0 %v10924
  %v10979 = vpop.f32.mrf.mxu0
  %v10980 = vadd.f32 0.0, %v10979
  %v10981 = vpop.f32.mrf.mxu0
  %v10982 = vpop.f32.mrf.mxu0
  %v10983 = vadd.f32 0.0, %v10982
  %v10984 = vpop.f32.mrf.mxu0
  %10985 = vmatprep.mubr.bf16.mxu0 0
  %10986 = vmatmul.mubr.bf16.gmra.mxu0 %v10927
  %v10987 = vpop.f32.mrf.mxu0
  %v10988 = vadd.f32 0.0, %v10987
  %v10989 = vpop.f32.mrf.mxu0
  %v10990 = vpop.f32.mrf.mxu0
  %v10991 = vadd.f32 0.0, %v10990
  %v10992 = vpop.f32.mrf.mxu0
  %10993 = vdwg.mxu0
  %10994 = vrot.lane.b32.xlu0 %v1978, 104
  %v10995 = vpop.permute.xlu0 %10994
  %10996 = vrot.lane.b32.xlu0 %v1979, 104
  %v10997 = vpop.permute.xlu0 %10996
  %10998 = vrot.lane.b32.xlu0 %v1980, 104
  %v10999 = vpop.permute.xlu0 %10998
  %11000 = vrot.lane.b32.xlu0 %v1981, 104
  %v11001 = vpop.permute.xlu0 %11000
  %v11007 = vsel %vm2795, %v10452, 0
  %v11010 = vsel %vm2795, %v10453, 0
  %v11013 = vsel %vm2795, %v10454, 0
  %v11016 = vsel %vm2795, %v10455, 0
  %11018 = vmatprep.subr.bf16.mxu0 0
  %11019 = vmatpush1.bf16.msra.mxu0 0
  %11020 = vmatprep.subr.bf16.mxu0 0
  %11021 = vmatpush1.bf16.msra.mxu0 0
  %11022 = vmatprep.subr.bf16.mxu0 0
  %11023 = vmatpush1.bf16.msra.mxu0 0
  %11024 = vmatprep.subr.bf16.mxu0 0
  %11025 = vmatpush1.bf16.msra.mxu0 0
  %11026 = vmatprep.subr.bf16.mxu0 0
  %11027 = vmatpush1.bf16.msra.mxu0 %v11001
  %11028 = vmatprep.subr.bf16.mxu0 0
  %11029 = vmatpush1.bf16.msra.mxu0 %v10999
  %11030 = vmatprep.subr.bf16.mxu0 0
  %11031 = vmatpush1.bf16.msra.mxu0 %v10997
  %11032 = vmatprep.subr.bf16.mxu0 0
  %11033 = vmatpush1.bf16.msra.mxu0 %v10995
  %11034 = vmatprep.subr.bf16.mxu0 0
  %11035 = vmatpush2.bf16.msra.mxu0 0
  %11036 = vmatprep.subr.bf16.mxu0 0
  %11037 = vmatpush2.bf16.msra.mxu0 0
  %11038 = vmatprep.subr.bf16.mxu0 0
  %11039 = vmatpush2.bf16.msra.mxu0 0
  %11040 = vmatprep.subr.bf16.mxu0 0
  %11041 = vmatpush2.bf16.msra.mxu0 0
  %11042 = vmatprep.subr.bf16.mxu0 0
  %11043 = vmatpush2.bf16.msra.mxu0 0
  %11044 = vmatprep.subr.bf16.mxu0 0
  %11045 = vmatpush2.bf16.msra.mxu0 0
  %11046 = vmatprep.subr.bf16.mxu0 0
  %11047 = vmatpush2.bf16.msra.mxu0 0
  %11048 = vmatprep.subr.bf16.mxu0 0
  %11049 = vmatpush2.bf16.msra.mxu0 0
  %11050 = vmatprep.mubr.bf16.mxu0 0
  %11051 = vmatmul.mubr.bf16.gmra.mxu0 %v11007
  %v11052 = vpop.f32.mrf.mxu0
  %v11053 = vadd.f32 0.0, %v11052
  %v11054 = vpop.f32.mrf.mxu0
  %v11055 = vpop.f32.mrf.mxu0
  %v11056 = vadd.f32 0.0, %v11055
  %v11057 = vpop.f32.mrf.mxu0
  %11058 = vmatprep.mubr.bf16.mxu0 0
  %11059 = vmatmul.mubr.bf16.gmra.mxu0 %v11010
  %v11060 = vpop.f32.mrf.mxu0
  %v11061 = vadd.f32 0.0, %v11060
  %v11062 = vpop.f32.mrf.mxu0
  %v11063 = vpop.f32.mrf.mxu0
  %v11064 = vadd.f32 0.0, %v11063
  %v11065 = vpop.f32.mrf.mxu0
  %11066 = vmatprep.mubr.bf16.mxu0 0
  %11067 = vmatmul.mubr.bf16.gmra.mxu0 %v11013
  %v11068 = vpop.f32.mrf.mxu0
  %v11069 = vadd.f32 0.0, %v11068
  %v11070 = vpop.f32.mrf.mxu0
  %v11071 = vpop.f32.mrf.mxu0
  %v11072 = vadd.f32 0.0, %v11071
  %v11073 = vpop.f32.mrf.mxu0
  %11074 = vmatprep.mubr.bf16.mxu0 0
  %11075 = vmatmul.mubr.bf16.gmra.mxu0 %v11016
  %v11076 = vpop.f32.mrf.mxu0
  %v11077 = vadd.f32 0.0, %v11076
  %v11078 = vpop.f32.mrf.mxu0
  %v11079 = vpop.f32.mrf.mxu0
  %v11080 = vadd.f32 0.0, %v11079
  %v11081 = vpop.f32.mrf.mxu0
  %11082 = vdwg.mxu0
  %11083 = vrot.lane.b32.xlu0 %v1982, 104
  %v11084 = vpop.permute.xlu0 %11083
  %11085 = vrot.lane.b32.xlu0 %v1983, 104
  %v11086 = vpop.permute.xlu0 %11085
  %11087 = vrot.lane.b32.xlu0 %v1984, 104
  %v11088 = vpop.permute.xlu0 %11087
  %11089 = vrot.lane.b32.xlu0 %v1985, 104
  %v11090 = vpop.permute.xlu0 %11089
  %v11096 = vsel %vm2795, %v10456, 0
  %v11099 = vsel %vm2795, %v10457, 0
  %v11102 = vsel %vm2795, %v10458, 0
  %v11105 = vsel %vm2795, %v10459, 0
  %11107 = vmatprep.subr.bf16.mxu0 0
  %11108 = vmatpush1.bf16.msra.mxu0 0
  %11109 = vmatprep.subr.bf16.mxu0 0
  %11110 = vmatpush1.bf16.msra.mxu0 0
  %11111 = vmatprep.subr.bf16.mxu0 0
  %11112 = vmatpush1.bf16.msra.mxu0 0
  %11113 = vmatprep.subr.bf16.mxu0 0
  %11114 = vmatpush1.bf16.msra.mxu0 0
  %11115 = vmatprep.subr.bf16.mxu0 0
  %11116 = vmatpush1.bf16.msra.mxu0 %v11090
  %11117 = vmatprep.subr.bf16.mxu0 0
  %11118 = vmatpush1.bf16.msra.mxu0 %v11088
  %11119 = vmatprep.subr.bf16.mxu0 0
  %11120 = vmatpush1.bf16.msra.mxu0 %v11086
  %11121 = vmatprep.subr.bf16.mxu0 0
  %11122 = vmatpush1.bf16.msra.mxu0 %v11084
  %11123 = vmatprep.subr.bf16.mxu0 0
  %11124 = vmatpush2.bf16.msra.mxu0 0
  %11125 = vmatprep.subr.bf16.mxu0 0
  %11126 = vmatpush2.bf16.msra.mxu0 0
  %11127 = vmatprep.subr.bf16.mxu0 0
  %11128 = vmatpush2.bf16.msra.mxu0 0
  %11129 = vmatprep.subr.bf16.mxu0 0
  %11130 = vmatpush2.bf16.msra.mxu0 0
  %11131 = vmatprep.subr.bf16.mxu0 0
  %11132 = vmatpush2.bf16.msra.mxu0 0
  %11133 = vmatprep.subr.bf16.mxu0 0
  %11134 = vmatpush2.bf16.msra.mxu0 0
  %11135 = vmatprep.subr.bf16.mxu0 0
  %11136 = vmatpush2.bf16.msra.mxu0 0
  %11137 = vmatprep.subr.bf16.mxu0 0
  %11138 = vmatpush2.bf16.msra.mxu0 0
  %11139 = vmatprep.mubr.bf16.mxu0 0
  %11140 = vmatmul.mubr.bf16.gmra.mxu0 %v11096
  %v11141 = vpop.f32.mrf.mxu0
  %v11142 = vadd.f32 0.0, %v11141
  %v11143 = vpop.f32.mrf.mxu0
  %v11144 = vpop.f32.mrf.mxu0
  %v11145 = vadd.f32 0.0, %v11144
  %v11146 = vpop.f32.mrf.mxu0
  %11147 = vmatprep.mubr.bf16.mxu0 0
  %11148 = vmatmul.mubr.bf16.gmra.mxu0 %v11099
  %v11149 = vpop.f32.mrf.mxu0
  %v11150 = vadd.f32 0.0, %v11149
  %v11151 = vpop.f32.mrf.mxu0
  %v11152 = vpop.f32.mrf.mxu0
  %v11153 = vadd.f32 0.0, %v11152
  %v11154 = vpop.f32.mrf.mxu0
  %11155 = vmatprep.mubr.bf16.mxu0 0
  %11156 = vmatmul.mubr.bf16.gmra.mxu0 %v11102
  %v11157 = vpop.f32.mrf.mxu0
  %v11158 = vadd.f32 0.0, %v11157
  %v11159 = vpop.f32.mrf.mxu0
  %v11160 = vpop.f32.mrf.mxu0
  %v11161 = vadd.f32 0.0, %v11160
  %v11162 = vpop.f32.mrf.mxu0
  %11163 = vmatprep.mubr.bf16.mxu0 0
  %11164 = vmatmul.mubr.bf16.gmra.mxu0 %v11105
  %v11165 = vpop.f32.mrf.mxu0
  %v11166 = vadd.f32 0.0, %v11165
  %v11167 = vpop.f32.mrf.mxu0
  %v11168 = vpop.f32.mrf.mxu0
  %v11169 = vadd.f32 0.0, %v11168
  %v11170 = vpop.f32.mrf.mxu0
  %11171 = vdwg.mxu0
  %v11172 = vpack.c.bf16 %v10522, %v10519
  %v11173 = vpack.c.bf16 %v10530, %v10527
  %v11174 = vpack.c.bf16 %v10538, %v10535
  %v11175 = vpack.c.bf16 %v10546, %v10543
  %v11176 = vpack.c.bf16 %v10611, %v10608
  %v11177 = vpack.c.bf16 %v10619, %v10616
  %v11178 = vpack.c.bf16 %v10627, %v10624
  %v11179 = vpack.c.bf16 %v10635, %v10632
  %v11180 = vpack.c.bf16 %v10700, %v10697
  %v11181 = vpack.c.bf16 %v10708, %v10705
  %v11182 = vpack.c.bf16 %v10716, %v10713
  %v11183 = vpack.c.bf16 %v10724, %v10721
  %v11184 = vpack.c.bf16 %v10789, %v10786
  %v11185 = vpack.c.bf16 %v10797, %v10794
  %v11186 = vpack.c.bf16 %v10805, %v10802
  %v11187 = vpack.c.bf16 %v10813, %v10810
  %v11188 = vpack.c.bf16 %v10878, %v10875
  %v11189 = vpack.c.bf16 %v10886, %v10883
  %v11190 = vpack.c.bf16 %v10894, %v10891
  %v11191 = vpack.c.bf16 %v10902, %v10899
  %v11192 = vpack.c.bf16 %v10967, %v10964
  %v11193 = vpack.c.bf16 %v10975, %v10972
  %v11194 = vpack.c.bf16 %v10983, %v10980
  %v11195 = vpack.c.bf16 %v10991, %v10988
  %v11196 = vpack.c.bf16 %v11056, %v11053
  %v11197 = vpack.c.bf16 %v11064, %v11061
  %v11198 = vpack.c.bf16 %v11072, %v11069
  %v11199 = vpack.c.bf16 %v11080, %v11077
  %v11200 = vpack.c.bf16 %v11145, %v11142
  %v11201 = vpack.c.bf16 %v11153, %v11150
  %v11202 = vpack.c.bf16 %v11161, %v11158
  %v11203 = vpack.c.bf16 %v11169, %v11166
  %11236 = vrot.lane.b32.xlu0 %v6532, 8
  %v11237 = vpop.permute.xlu0 %11236
  %11238 = vrot.lane.b32.xlu0 %v6533, 8
  %v11239 = vpop.permute.xlu0 %11238
  %11240 = vrot.lane.b32.xlu0 %v6534, 8
  %v11241 = vpop.permute.xlu0 %11240
  %11242 = vrot.lane.b32.xlu0 %v6535, 8
  %v11243 = vpop.permute.xlu0 %11242
  %11244 = vrot.lane.b32.xlu0 %v6536, 8
  %v11245 = vpop.permute.xlu0 %11244
  %11246 = vrot.lane.b32.xlu0 %v6537, 8
  %v11247 = vpop.permute.xlu0 %11246
  %11248 = vrot.lane.b32.xlu0 %v6538, 8
  %v11249 = vpop.permute.xlu0 %11248
  %11250 = vrot.lane.b32.xlu0 %v6539, 8
  %v11251 = vpop.permute.xlu0 %11250
  %11252 = vrot.lane.b32.xlu0 %v6540, 8
  %v11253 = vpop.permute.xlu0 %11252
  %11254 = vrot.lane.b32.xlu0 %v6541, 8
  %v11255 = vpop.permute.xlu0 %11254
  %11256 = vrot.lane.b32.xlu0 %v6542, 8
  %v11257 = vpop.permute.xlu0 %11256
  %11258 = vrot.lane.b32.xlu0 %v6543, 8
  %v11259 = vpop.permute.xlu0 %11258
  %11260 = vrot.lane.b32.xlu0 %v6544, 8
  %v11261 = vpop.permute.xlu0 %11260
  %11262 = vrot.lane.b32.xlu0 %v6545, 8
  %v11263 = vpop.permute.xlu0 %11262
  %11264 = vrot.lane.b32.xlu0 %v6546, 8
  %v11265 = vpop.permute.xlu0 %11264
  %11266 = vrot.lane.b32.xlu0 %v6547, 8
  %v11267 = vpop.permute.xlu0 %11266
  %11268 = vrot.lane.b32.xlu0 %v6548, 8
  %v11269 = vpop.permute.xlu0 %11268
  %11270 = vrot.lane.b32.xlu0 %v6549, 8
  %v11271 = vpop.permute.xlu0 %11270
  %11272 = vrot.lane.b32.xlu0 %v6550, 8
  %v11273 = vpop.permute.xlu0 %11272
  %11274 = vrot.lane.b32.xlu0 %v6551, 8
  %v11275 = vpop.permute.xlu0 %11274
  %11276 = vrot.lane.b32.xlu0 %v6552, 8
  %v11277 = vpop.permute.xlu0 %11276
  %11278 = vrot.lane.b32.xlu0 %v6553, 8
  %v11279 = vpop.permute.xlu0 %11278
  %11280 = vrot.lane.b32.xlu0 %v6554, 8
  %v11281 = vpop.permute.xlu0 %11280
  %11282 = vrot.lane.b32.xlu0 %v6555, 8
  %v11283 = vpop.permute.xlu0 %11282
  %11284 = vrot.lane.b32.xlu0 %v6556, 8
  %v11285 = vpop.permute.xlu0 %11284
  %11286 = vrot.lane.b32.xlu0 %v6557, 8
  %v11287 = vpop.permute.xlu0 %11286
  %11288 = vrot.lane.b32.xlu0 %v6558, 8
  %v11289 = vpop.permute.xlu0 %11288
  %11290 = vrot.lane.b32.xlu0 %v6559, 8
  %v11291 = vpop.permute.xlu0 %11290
  %11292 = vrot.lane.b32.xlu0 %v6560, 8
  %v11293 = vpop.permute.xlu0 %11292
  %11294 = vrot.lane.b32.xlu0 %v6561, 8
  %v11295 = vpop.permute.xlu0 %11294
  %11296 = vrot.lane.b32.xlu0 %v6562, 8
  %v11297 = vpop.permute.xlu0 %11296
  %11298 = vrot.lane.b32.xlu0 %v6563, 8
  %v11299 = vpop.permute.xlu0 %11298
  %11332 = vrot.lane.b32.xlu0 %v8852, 16
  %v11333 = vpop.permute.xlu0 %11332
  %11334 = vrot.lane.b32.xlu0 %v8853, 16
  %v11335 = vpop.permute.xlu0 %11334
  %11336 = vrot.lane.b32.xlu0 %v8854, 16
  %v11337 = vpop.permute.xlu0 %11336
  %11338 = vrot.lane.b32.xlu0 %v8855, 16
  %v11339 = vpop.permute.xlu0 %11338
  %11340 = vrot.lane.b32.xlu0 %v8856, 16
  %v11341 = vpop.permute.xlu0 %11340
  %11342 = vrot.lane.b32.xlu0 %v8857, 16
  %v11343 = vpop.permute.xlu0 %11342
  %11344 = vrot.lane.b32.xlu0 %v8858, 16
  %v11345 = vpop.permute.xlu0 %11344
  %11346 = vrot.lane.b32.xlu0 %v8859, 16
  %v11347 = vpop.permute.xlu0 %11346
  %11348 = vrot.lane.b32.xlu0 %v8860, 16
  %v11349 = vpop.permute.xlu0 %11348
  %11350 = vrot.lane.b32.xlu0 %v8861, 16
  %v11351 = vpop.permute.xlu0 %11350
  %11352 = vrot.lane.b32.xlu0 %v8862, 16
  %v11353 = vpop.permute.xlu0 %11352
  %11354 = vrot.lane.b32.xlu0 %v8863, 16
  %v11355 = vpop.permute.xlu0 %11354
  %11356 = vrot.lane.b32.xlu0 %v8864, 16
  %v11357 = vpop.permute.xlu0 %11356
  %11358 = vrot.lane.b32.xlu0 %v8865, 16
  %v11359 = vpop.permute.xlu0 %11358
  %11360 = vrot.lane.b32.xlu0 %v8866, 16
  %v11361 = vpop.permute.xlu0 %11360
  %11362 = vrot.lane.b32.xlu0 %v8867, 16
  %v11363 = vpop.permute.xlu0 %11362
  %11364 = vrot.lane.b32.xlu0 %v8868, 16
  %v11365 = vpop.permute.xlu0 %11364
  %11366 = vrot.lane.b32.xlu0 %v8869, 16
  %v11367 = vpop.permute.xlu0 %11366
  %11368 = vrot.lane.b32.xlu0 %v8870, 16
  %v11369 = vpop.permute.xlu0 %11368
  %11370 = vrot.lane.b32.xlu0 %v8871, 16
  %v11371 = vpop.permute.xlu0 %11370
  %11372 = vrot.lane.b32.xlu0 %v8872, 16
  %v11373 = vpop.permute.xlu0 %11372
  %11374 = vrot.lane.b32.xlu0 %v8873, 16
  %v11375 = vpop.permute.xlu0 %11374
  %11376 = vrot.lane.b32.xlu0 %v8874, 16
  %v11377 = vpop.permute.xlu0 %11376
  %11378 = vrot.lane.b32.xlu0 %v8875, 16
  %v11379 = vpop.permute.xlu0 %11378
  %11380 = vrot.lane.b32.xlu0 %v8876, 16
  %v11381 = vpop.permute.xlu0 %11380
  %11382 = vrot.lane.b32.xlu0 %v8877, 16
  %v11383 = vpop.permute.xlu0 %11382
  %11384 = vrot.lane.b32.xlu0 %v8878, 16
  %v11385 = vpop.permute.xlu0 %11384
  %11386 = vrot.lane.b32.xlu0 %v8879, 16
  %v11387 = vpop.permute.xlu0 %11386
  %11388 = vrot.lane.b32.xlu0 %v8880, 16
  %v11389 = vpop.permute.xlu0 %11388
  %11390 = vrot.lane.b32.xlu0 %v8881, 16
  %v11391 = vpop.permute.xlu0 %11390
  %11392 = vrot.lane.b32.xlu0 %v8882, 16
  %v11393 = vpop.permute.xlu0 %11392
  %11394 = vrot.lane.b32.xlu0 %v8883, 16
  %v11395 = vpop.permute.xlu0 %11394
  %11428 = vrot.lane.b32.xlu0 %v11172, 24
  %v11429 = vpop.permute.xlu0 %11428
  %11430 = vrot.lane.b32.xlu0 %v11173, 24
  %v11431 = vpop.permute.xlu0 %11430
  %11432 = vrot.lane.b32.xlu0 %v11174, 24
  %v11433 = vpop.permute.xlu0 %11432
  %11434 = vrot.lane.b32.xlu0 %v11175, 24
  %v11435 = vpop.permute.xlu0 %11434
  %11436 = vrot.lane.b32.xlu0 %v11176, 24
  %v11437 = vpop.permute.xlu0 %11436
  %11438 = vrot.lane.b32.xlu0 %v11177, 24
  %v11439 = vpop.permute.xlu0 %11438
  %11440 = vrot.lane.b32.xlu0 %v11178, 24
  %v11441 = vpop.permute.xlu0 %11440
  %11442 = vrot.lane.b32.xlu0 %v11179, 24
  %v11443 = vpop.permute.xlu0 %11442
  %11444 = vrot.lane.b32.xlu0 %v11180, 24
  %v11445 = vpop.permute.xlu0 %11444
  %11446 = vrot.lane.b32.xlu0 %v11181, 24
  %v11447 = vpop.permute.xlu0 %11446
  %11448 = vrot.lane.b32.xlu0 %v11182, 24
  %v11449 = vpop.permute.xlu0 %11448
  %11450 = vrot.lane.b32.xlu0 %v11183, 24
  %v11451 = vpop.permute.xlu0 %11450
  %11452 = vrot.lane.b32.xlu0 %v11184, 24
  %v11453 = vpop.permute.xlu0 %11452
  %11454 = vrot.lane.b32.xlu0 %v11185, 24
  %v11455 = vpop.permute.xlu0 %11454
  %11456 = vrot.lane.b32.xlu0 %v11186, 24
  %v11457 = vpop.permute.xlu0 %11456
  %11458 = vrot.lane.b32.xlu0 %v11187, 24
  %v11459 = vpop.permute.xlu0 %11458
  %11460 = vrot.lane.b32.xlu0 %v11188, 24
  %v11461 = vpop.permute.xlu0 %11460
  %11462 = vrot.lane.b32.xlu0 %v11189, 24
  %v11463 = vpop.permute.xlu0 %11462
  %11464 = vrot.lane.b32.xlu0 %v11190, 24
  %v11465 = vpop.permute.xlu0 %11464
  %11466 = vrot.lane.b32.xlu0 %v11191, 24
  %v11467 = vpop.permute.xlu0 %11466
  %11468 = vrot.lane.b32.xlu0 %v11192, 24
  %v11469 = vpop.permute.xlu0 %11468
  %11470 = vrot.lane.b32.xlu0 %v11193, 24
  %v11471 = vpop.permute.xlu0 %11470
  %11472 = vrot.lane.b32.xlu0 %v11194, 24
  %v11473 = vpop.permute.xlu0 %11472
  %11474 = vrot.lane.b32.xlu0 %v11195, 24
  %v11475 = vpop.permute.xlu0 %11474
  %11476 = vrot.lane.b32.xlu0 %v11196, 24
  %v11477 = vpop.permute.xlu0 %11476
  %11478 = vrot.lane.b32.xlu0 %v11197, 24
  %v11479 = vpop.permute.xlu0 %11478
  %11480 = vrot.lane.b32.xlu0 %v11198, 24
  %v11481 = vpop.permute.xlu0 %11480
  %11482 = vrot.lane.b32.xlu0 %v11199, 24
  %v11483 = vpop.permute.xlu0 %11482
  %11484 = vrot.lane.b32.xlu0 %v11200, 24
  %v11485 = vpop.permute.xlu0 %11484
  %11486 = vrot.lane.b32.xlu0 %v11201, 24
  %v11487 = vpop.permute.xlu0 %11486
  %11488 = vrot.lane.b32.xlu0 %v11202, 24
  %v11489 = vpop.permute.xlu0 %11488
  %11490 = vrot.lane.b32.xlu0 %v11203, 24
  %v11491 = vpop.permute.xlu0 %11490
  %v11494 = vsel %vm1998, %v4148, %v11237
  %v11497 = vsel %vm1998, %v4149, %v11239
  %v11500 = vsel %vm1998, %v4150, %v11241
  %v11503 = vsel %vm1998, %v4151, %v11243
  %v11506 = vsel %vm1998, %v4152, %v11245
  %v11509 = vsel %vm1998, %v4153, %v11247
  %v11512 = vsel %vm1998, %v4154, %v11249
  %v11515 = vsel %vm1998, %v4155, %v11251
  %v11518 = vsel %vm1998, %v4156, %v11253
  %v11521 = vsel %vm1998, %v4157, %v11255
  %v11524 = vsel %vm1998, %v4158, %v11257
  %v11527 = vsel %vm1998, %v4159, %v11259
  %v11530 = vsel %vm1998, %v4160, %v11261
  %v11533 = vsel %vm1998, %v4161, %v11263
  %v11536 = vsel %vm1998, %v4162, %v11265
  %v11539 = vsel %vm1998, %v4163, %v11267
  %v11542 = vsel %vm1998, %v4164, %v11269
  %v11545 = vsel %vm1998, %v4165, %v11271
  %v11548 = vsel %vm1998, %v4166, %v11273
  %v11551 = vsel %vm1998, %v4167, %v11275
  %v11554 = vsel %vm1998, %v4168, %v11277
  %v11557 = vsel %vm1998, %v4169, %v11279
  %v11560 = vsel %vm1998, %v4170, %v11281
  %v11563 = vsel %vm1998, %v4171, %v11283
  %v11566 = vsel %vm1998, %v4172, %v11285
  %v11569 = vsel %vm1998, %v4173, %v11287
  %v11572 = vsel %vm1998, %v4174, %v11289
  %v11575 = vsel %vm1998, %v4175, %v11291
  %v11578 = vsel %vm1998, %v4176, %v11293
  %v11581 = vsel %vm1998, %v4177, %v11295
  %v11584 = vsel %vm1998, %v4178, %v11297
  %v11587 = vsel %vm1998, %v4179, %v11299
  %vm11588 = vcmask 130048
  %v11590 = vsel %vm11588, %v11494, %v11333
  %v11592 = vsel %vm11588, %v11497, %v11335
  %v11594 = vsel %vm11588, %v11500, %v11337
  %v11596 = vsel %vm11588, %v11503, %v11339
  %v11598 = vsel %vm11588, %v11506, %v11341
  %v11600 = vsel %vm11588, %v11509, %v11343
  %v11602 = vsel %vm11588, %v11512, %v11345
  %v11604 = vsel %vm11588, %v11515, %v11347
  %v11606 = vsel %vm11588, %v11518, %v11349
  %v11608 = vsel %vm11588, %v11521, %v11351
  %v11610 = vsel %vm11588, %v11524, %v11353
  %v11612 = vsel %vm11588, %v11527, %v11355
  %v11614 = vsel %vm11588, %v11530, %v11357
  %v11616 = vsel %vm11588, %v11533, %v11359
  %v11618 = vsel %vm11588, %v11536, %v11361
  %v11620 = vsel %vm11588, %v11539, %v11363
  %v11622 = vsel %vm11588, %v11542, %v11365
  %v11624 = vsel %vm11588, %v11545, %v11367
  %v11626 = vsel %vm11588, %v11548, %v11369
  %v11628 = vsel %vm11588, %v11551, %v11371
  %v11630 = vsel %vm11588, %v11554, %v11373
  %v11632 = vsel %vm11588, %v11557, %v11375
  %v11634 = vsel %vm11588, %v11560, %v11377
  %v11636 = vsel %vm11588, %v11563, %v11379
  %v11638 = vsel %vm11588, %v11566, %v11381
  %v11640 = vsel %vm11588, %v11569, %v11383
  %v11642 = vsel %vm11588, %v11572, %v11385
  %v11644 = vsel %vm11588, %v11575, %v11387
  %v11646 = vsel %vm11588, %v11578, %v11389
  %v11648 = vsel %vm11588, %v11581, %v11391
  %v11650 = vsel %vm11588, %v11584, %v11393
  %v11652 = vsel %vm11588, %v11587, %v11395
  %vm11653 = vcmask 195584
  %v11655 = vsel %vm11653, %v11590, %v11429
  %v11657 = vsel %vm11653, %v11592, %v11431
  %v11659 = vsel %vm11653, %v11594, %v11433
  %v11661 = vsel %vm11653, %v11596, %v11435
  %v11663 = vsel %vm11653, %v11598, %v11437
  %v11665 = vsel %vm11653, %v11600, %v11439
  %v11667 = vsel %vm11653, %v11602, %v11441
  %v11669 = vsel %vm11653, %v11604, %v11443
  %v11671 = vsel %vm11653, %v11606, %v11445
  %v11673 = vsel %vm11653, %v11608, %v11447
  %v11675 = vsel %vm11653, %v11610, %v11449
  %v11677 = vsel %vm11653, %v11612, %v11451
  %v11679 = vsel %vm11653, %v11614, %v11453
  %v11681 = vsel %vm11653, %v11616, %v11455
  %v11683 = vsel %vm11653, %v11618, %v11457
  %v11685 = vsel %vm11653, %v11620, %v11459
  %v11687 = vsel %vm11653, %v11622, %v11461
  %v11689 = vsel %vm11653, %v11624, %v11463
  %v11691 = vsel %vm11653, %v11626, %v11465
  %v11693 = vsel %vm11653, %v11628, %v11467
  %v11695 = vsel %vm11653, %v11630, %v11469
  %v11697 = vsel %vm11653, %v11632, %v11471
  %v11699 = vsel %vm11653, %v11634, %v11473
  %v11701 = vsel %vm11653, %v11636, %v11475
  %v11703 = vsel %vm11653, %v11638, %v11477
  %v11705 = vsel %vm11653, %v11640, %v11479
  %v11707 = vsel %vm11653, %v11642, %v11481
  %v11709 = vsel %vm11653, %v11644, %v11483
  %v11711 = vsel %vm11653, %v11646, %v11485
  %v11713 = vsel %vm11653, %v11648, %v11487
  %v11715 = vsel %vm11653, %v11650, %v11489
  %v11717 = vsel %vm11653, %v11652, %v11491
  %v11718 = vlaneseq
  %v11719 = vshrl.u32 %v11718, 7
  %v11720 = vsub.s32 0, %v11719
  %v11721 = vrot.slane %v115, %v11720
  %11722 = vrot.lane.b32.xlu0 %v289, 96
  %v11723 = vpop.permute.xlu0 %11722
  %11724 = vrot.lane.b32.xlu0 %v291, 96
  %v11725 = vpop.permute.xlu0 %11724
  %v11728 = vsel %vm296, %v11655, 0
  %v11730 = vsel %vm296, %v11657, 0
  %v11732 = vsel %vm296, %v11659, 0
  %v11734 = vsel %vm296, %v11661, 0
  %v11736 = vsel %vm296, %v11663, 0
  %v11738 = vsel %vm296, %v11665, 0
  %v11740 = vsel %vm296, %v11667, 0
  %v11742 = vsel %vm296, %v11669, 0
  %v11744 = vsel %vm296, %v11671, 0
  %v11746 = vsel %vm296, %v11673, 0
  %v11748 = vsel %vm296, %v11675, 0
  %v11750 = vsel %vm296, %v11677, 0
  %v11752 = vsel %vm296, %v11679, 0
  %v11754 = vsel %vm296, %v11681, 0
  %v11756 = vsel %vm296, %v11683, 0
  %v11758 = vsel %vm296, %v11685, 0
  %v11760 = vsel %vm296, %v11687, 0
  %v11762 = vsel %vm296, %v11689, 0
  %v11764 = vsel %vm296, %v11691, 0
  %v11766 = vsel %vm296, %v11693, 0
  %v11768 = vsel %vm296, %v11695, 0
  %v11770 = vsel %vm296, %v11697, 0
  %v11772 = vsel %vm296, %v11699, 0
  %v11774 = vsel %vm296, %v11701, 0
  %v11776 = vsel %vm296, %v11703, 0
  %v11778 = vsel %vm296, %v11705, 0
  %v11780 = vsel %vm296, %v11707, 0
  %v11782 = vsel %vm296, %v11709, 0
  %v11784 = vsel %vm296, %v11711, 0
  %v11786 = vsel %vm296, %v11713, 0
  %v11788 = vsel %vm296, %v11715, 0
  %v11790 = vsel %vm296, %v11717, 0
  %11792 = vmatprep.subr.bf16.mxu0 0
  %11793 = vmatpush1.bf16.msra.mxu0 0
  %11794 = vmatprep.subr.bf16.mxu0 0
  %11795 = vmatpush1.bf16.msra.mxu0 0
  %11796 = vmatprep.subr.bf16.mxu0 0
  %11797 = vmatpush1.bf16.msra.mxu0 0
  %11798 = vmatprep.subr.bf16.mxu0 0
  %11799 = vmatpush1.bf16.msra.mxu0 0
  %11800 = vmatprep.subr.bf16.mxu0 0
  %11801 = vmatpush1.bf16.msra.mxu0 0
  %11802 = vmatprep.subr.bf16.mxu0 0
  %11803 = vmatpush1.bf16.msra.mxu0 0
  %11804 = vmatprep.subr.bf16.mxu0 0
  %11805 = vmatpush1.bf16.msra.mxu0 %v11725
  %11806 = vmatprep.subr.bf16.mxu0 0
  %11807 = vmatpush1.bf16.msra.mxu0 %v11723
  %11808 = vmatprep.subr.bf16.mxu0 0
  %11809 = vmatpush2.bf16.msra.mxu0 0
  %11810 = vmatprep.subr.bf16.mxu0 0
  %11811 = vmatpush2.bf16.msra.mxu0 0
  %11812 = vmatprep.subr.bf16.mxu0 0
  %11813 = vmatpush2.bf16.msra.mxu0 0
  %11814 = vmatprep.subr.bf16.mxu0 0
  %11815 = vmatpush2.bf16.msra.mxu0 0
  %11816 = vmatprep.subr.bf16.mxu0 0
  %11817 = vmatpush2.bf16.msra.mxu0 0
  %11818 = vmatprep.subr.bf16.mxu0 0
  %11819 = vmatpush2.bf16.msra.mxu0 0
  %11820 = vmatprep.subr.bf16.mxu0 0
  %11821 = vmatpush2.bf16.msra.mxu0 0
  %11822 = vmatprep.subr.bf16.mxu0 0
  %11823 = vmatpush2.bf16.msra.mxu0 0
  %11824 = vmatprep.mubr.bf16.mxu0 0
  %11825 = vmatmul.mubr.bf16.gmra.mxu0 %v11728
  %v11826 = vpop.f32.mrf.mxu0
  %v11827 = vadd.f32 %v11721, %v11826
  %v11828 = vpop.f32.mrf.mxu0
  %v11829 = vpop.f32.mrf.mxu0
  %v11830 = vadd.f32 %v11721, %v11829
  %v11831 = vpop.f32.mrf.mxu0
  %11832 = vmatprep.mubr.bf16.mxu0 0
  %11833 = vmatmul.mubr.bf16.gmra.mxu0 %v11730
  %v11834 = vpop.f32.mrf.mxu0
  %v11835 = vadd.f32 %v11721, %v11834
  %v11836 = vpop.f32.mrf.mxu0
  %v11837 = vpop.f32.mrf.mxu0
  %v11838 = vadd.f32 %v11721, %v11837
  %v11839 = vpop.f32.mrf.mxu0
  %11840 = vmatprep.mubr.bf16.mxu0 0
  %11841 = vmatmul.mubr.bf16.gmra.mxu0 %v11732
  %v11842 = vpop.f32.mrf.mxu0
  %v11843 = vadd.f32 %v11721, %v11842
  %v11844 = vpop.f32.mrf.mxu0
  %v11845 = vpop.f32.mrf.mxu0
  %v11846 = vadd.f32 %v11721, %v11845
  %v11847 = vpop.f32.mrf.mxu0
  %11848 = vmatprep.mubr.bf16.mxu0 0
  %11849 = vmatmul.mubr.bf16.gmra.mxu0 %v11734
  %v11850 = vpop.f32.mrf.mxu0
  %v11851 = vadd.f32 %v11721, %v11850
  %v11852 = vpop.f32.mrf.mxu0
  %v11853 = vpop.f32.mrf.mxu0
  %v11854 = vadd.f32 %v11721, %v11853
  %v11855 = vpop.f32.mrf.mxu0
  %11856 = vmatprep.mubr.bf16.mxu0 0
  %11857 = vmatmul.mubr.bf16.gmra.mxu0 %v11736
  %v11858 = vpop.f32.mrf.mxu0
  %v11859 = vadd.f32 %v11721, %v11858
  %v11860 = vpop.f32.mrf.mxu0
  %v11861 = vpop.f32.mrf.mxu0
  %v11862 = vadd.f32 %v11721, %v11861
  %v11863 = vpop.f32.mrf.mxu0
  %11864 = vmatprep.mubr.bf16.mxu0 0
  %11865 = vmatmul.mubr.bf16.gmra.mxu0 %v11738
  %v11866 = vpop.f32.mrf.mxu0
  %v11867 = vadd.f32 %v11721, %v11866
  %v11868 = vpop.f32.mrf.mxu0
  %v11869 = vpop.f32.mrf.mxu0
  %v11870 = vadd.f32 %v11721, %v11869
  %v11871 = vpop.f32.mrf.mxu0
  %11872 = vmatprep.mubr.bf16.mxu0 0
  %11873 = vmatmul.mubr.bf16.gmra.mxu0 %v11740
  %v11874 = vpop.f32.mrf.mxu0
  %v11875 = vadd.f32 %v11721, %v11874
  %v11876 = vpop.f32.mrf.mxu0
  %v11877 = vpop.f32.mrf.mxu0
  %v11878 = vadd.f32 %v11721, %v11877
  %v11879 = vpop.f32.mrf.mxu0
  %11880 = vmatprep.mubr.bf16.mxu0 0
  %11881 = vmatmul.mubr.bf16.gmra.mxu0 %v11742
  %v11882 = vpop.f32.mrf.mxu0
  %v11883 = vadd.f32 %v11721, %v11882
  %v11884 = vpop.f32.mrf.mxu0
  %v11885 = vpop.f32.mrf.mxu0
  %v11886 = vadd.f32 %v11721, %v11885
  %v11887 = vpop.f32.mrf.mxu0
  %11888 = vmatprep.mubr.bf16.mxu0 0
  %11889 = vmatmul.mubr.bf16.gmra.mxu0 %v11744
  %v11890 = vpop.f32.mrf.mxu0
  %v11891 = vadd.f32 %v11721, %v11890
  %v11892 = vpop.f32.mrf.mxu0
  %v11893 = vpop.f32.mrf.mxu0
  %v11894 = vadd.f32 %v11721, %v11893
  %v11895 = vpop.f32.mrf.mxu0
  %11896 = vmatprep.mubr.bf16.mxu0 0
  %11897 = vmatmul.mubr.bf16.gmra.mxu0 %v11746
  %v11898 = vpop.f32.mrf.mxu0
  %v11899 = vadd.f32 %v11721, %v11898
  %v11900 = vpop.f32.mrf.mxu0
  %v11901 = vpop.f32.mrf.mxu0
  %v11902 = vadd.f32 %v11721, %v11901
  %v11903 = vpop.f32.mrf.mxu0
  %11904 = vmatprep.mubr.bf16.mxu0 0
  %11905 = vmatmul.mubr.bf16.gmra.mxu0 %v11748
  %v11906 = vpop.f32.mrf.mxu0
  %v11907 = vadd.f32 %v11721, %v11906
  %v11908 = vpop.f32.mrf.mxu0
  %v11909 = vpop.f32.mrf.mxu0
  %v11910 = vadd.f32 %v11721, %v11909
  %v11911 = vpop.f32.mrf.mxu0
  %11912 = vmatprep.mubr.bf16.mxu0 0
  %11913 = vmatmul.mubr.bf16.gmra.mxu0 %v11750
  %v11914 = vpop.f32.mrf.mxu0
  %v11915 = vadd.f32 %v11721, %v11914
  %v11916 = vpop.f32.mrf.mxu0
  %v11917 = vpop.f32.mrf.mxu0
  %v11918 = vadd.f32 %v11721, %v11917
  %v11919 = vpop.f32.mrf.mxu0
  %11920 = vmatprep.mubr.bf16.mxu0 0
  %11921 = vmatmul.mubr.bf16.gmra.mxu0 %v11752
  %v11922 = vpop.f32.mrf.mxu0
  %v11923 = vadd.f32 %v11721, %v11922
  %v11924 = vpop.f32.mrf.mxu0
  %v11925 = vpop.f32.mrf.mxu0
  %v11926 = vadd.f32 %v11721, %v11925
  %v11927 = vpop.f32.mrf.mxu0
  %11928 = vmatprep.mubr.bf16.mxu0 0
  %11929 = vmatmul.mubr.bf16.gmra.mxu0 %v11754
  %v11930 = vpop.f32.mrf.mxu0
  %v11931 = vadd.f32 %v11721, %v11930
  %v11932 = vpop.f32.mrf.mxu0
  %v11933 = vpop.f32.mrf.mxu0
  %v11934 = vadd.f32 %v11721, %v11933
  %v11935 = vpop.f32.mrf.mxu0
  %11936 = vmatprep.mubr.bf16.mxu0 0
  %11937 = vmatmul.mubr.bf16.gmra.mxu0 %v11756
  %v11938 = vpop.f32.mrf.mxu0
  %v11939 = vadd.f32 %v11721, %v11938
  %v11940 = vpop.f32.mrf.mxu0
  %v11941 = vpop.f32.mrf.mxu0
  %v11942 = vadd.f32 %v11721, %v11941
  %v11943 = vpop.f32.mrf.mxu0
  %11944 = vmatprep.mubr.bf16.mxu0 0
  %11945 = vmatmul.mubr.bf16.gmra.mxu0 %v11758
  %v11946 = vpop.f32.mrf.mxu0
  %v11947 = vadd.f32 %v11721, %v11946
  %v11948 = vpop.f32.mrf.mxu0
  %v11949 = vpop.f32.mrf.mxu0
  %v11950 = vadd.f32 %v11721, %v11949
  %v11951 = vpop.f32.mrf.mxu0
  %11952 = vmatprep.mubr.bf16.mxu0 0
  %11953 = vmatmul.mubr.bf16.gmra.mxu0 %v11760
  %v11954 = vpop.f32.mrf.mxu0
  %v11955 = vadd.f32 %v11721, %v11954
  %v11956 = vpop.f32.mrf.mxu0
  %v11957 = vpop.f32.mrf.mxu0
  %v11958 = vadd.f32 %v11721, %v11957
  %v11959 = vpop.f32.mrf.mxu0
  %11960 = vmatprep.mubr.bf16.mxu0 0
  %11961 = vmatmul.mubr.bf16.gmra.mxu0 %v11762
  %v11962 = vpop.f32.mrf.mxu0
  %v11963 = vadd.f32 %v11721, %v11962
  %v11964 = vpop.f32.mrf.mxu0
  %v11965 = vpop.f32.mrf.mxu0
  %v11966 = vadd.f32 %v11721, %v11965
  %v11967 = vpop.f32.mrf.mxu0
  %11968 = vmatprep.mubr.bf16.mxu0 0
  %11969 = vmatmul.mubr.bf16.gmra.mxu0 %v11764
  %v11970 = vpop.f32.mrf.mxu0
  %v11971 = vadd.f32 %v11721, %v11970
  %v11972 = vpop.f32.mrf.mxu0
  %v11973 = vpop.f32.mrf.mxu0
  %v11974 = vadd.f32 %v11721, %v11973
  %v11975 = vpop.f32.mrf.mxu0
  %11976 = vmatprep.mubr.bf16.mxu0 0
  %11977 = vmatmul.mubr.bf16.gmra.mxu0 %v11766
  %v11978 = vpop.f32.mrf.mxu0
  %v11979 = vadd.f32 %v11721, %v11978
  %v11980 = vpop.f32.mrf.mxu0
  %v11981 = vpop.f32.mrf.mxu0
  %v11982 = vadd.f32 %v11721, %v11981
  %v11983 = vpop.f32.mrf.mxu0
  %11984 = vmatprep.mubr.bf16.mxu0 0
  %11985 = vmatmul.mubr.bf16.gmra.mxu0 %v11768
  %v11986 = vpop.f32.mrf.mxu0
  %v11987 = vadd.f32 %v11721, %v11986
  %v11988 = vpop.f32.mrf.mxu0
  %v11989 = vpop.f32.mrf.mxu0
  %v11990 = vadd.f32 %v11721, %v11989
  %v11991 = vpop.f32.mrf.mxu0
  %11992 = vmatprep.mubr.bf16.mxu0 0
  %11993 = vmatmul.mubr.bf16.gmra.mxu0 %v11770
  %v11994 = vpop.f32.mrf.mxu0
  %v11995 = vadd.f32 %v11721, %v11994
  %v11996 = vpop.f32.mrf.mxu0
  %v11997 = vpop.f32.mrf.mxu0
  %v11998 = vadd.f32 %v11721, %v11997
  %v11999 = vpop.f32.mrf.mxu0
  %12000 = vmatprep.mubr.bf16.mxu0 0
  %12001 = vmatmul.mubr.bf16.gmra.mxu0 %v11772
  %v12002 = vpop.f32.mrf.mxu0
  %v12003 = vadd.f32 %v11721, %v12002
  %v12004 = vpop.f32.mrf.mxu0
  %v12005 = vpop.f32.mrf.mxu0
  %v12006 = vadd.f32 %v11721, %v12005
  %v12007 = vpop.f32.mrf.mxu0
  %12008 = vmatprep.mubr.bf16.mxu0 0
  %12009 = vmatmul.mubr.bf16.gmra.mxu0 %v11774
  %v12010 = vpop.f32.mrf.mxu0
  %v12011 = vadd.f32 %v11721, %v12010
  %v12012 = vpop.f32.mrf.mxu0
  %v12013 = vpop.f32.mrf.mxu0
  %v12014 = vadd.f32 %v11721, %v12013
  %v12015 = vpop.f32.mrf.mxu0
  %12016 = vmatprep.mubr.bf16.mxu0 0
  %12017 = vmatmul.mubr.bf16.gmra.mxu0 %v11776
  %v12018 = vpop.f32.mrf.mxu0
  %v12019 = vadd.f32 %v11721, %v12018
  %v12020 = vpop.f32.mrf.mxu0
  %v12021 = vpop.f32.mrf.mxu0
  %v12022 = vadd.f32 %v11721, %v12021
  %v12023 = vpop.f32.mrf.mxu0
  %12024 = vmatprep.mubr.bf16.mxu0 0
  %12025 = vmatmul.mubr.bf16.gmra.mxu0 %v11778
  %v12026 = vpop.f32.mrf.mxu0
  %v12027 = vadd.f32 %v11721, %v12026
  %v12028 = vpop.f32.mrf.mxu0
  %v12029 = vpop.f32.mrf.mxu0
  %v12030 = vadd.f32 %v11721, %v12029
  %v12031 = vpop.f32.mrf.mxu0
  %12032 = vmatprep.mubr.bf16.mxu0 0
  %12033 = vmatmul.mubr.bf16.gmra.mxu0 %v11780
  %v12034 = vpop.f32.mrf.mxu0
  %v12035 = vadd.f32 %v11721, %v12034
  %v12036 = vpop.f32.mrf.mxu0
  %v12037 = vpop.f32.mrf.mxu0
  %v12038 = vadd.f32 %v11721, %v12037
  %v12039 = vpop.f32.mrf.mxu0
  %12040 = vmatprep.mubr.bf16.mxu0 0
  %12041 = vmatmul.mubr.bf16.gmra.mxu0 %v11782
  %v12042 = vpop.f32.mrf.mxu0
  %v12043 = vadd.f32 %v11721, %v12042
  %v12044 = vpop.f32.mrf.mxu0
  %v12045 = vpop.f32.mrf.mxu0
  %v12046 = vadd.f32 %v11721, %v12045
  %v12047 = vpop.f32.mrf.mxu0
  %12048 = vmatprep.mubr.bf16.mxu0 0
  %12049 = vmatmul.mubr.bf16.gmra.mxu0 %v11784
  %v12050 = vpop.f32.mrf.mxu0
  %v12051 = vadd.f32 %v11721, %v12050
  %v12052 = vpop.f32.mrf.mxu0
  %v12053 = vpop.f32.mrf.mxu0
  %v12054 = vadd.f32 %v11721, %v12053
  %v12055 = vpop.f32.mrf.mxu0
  %12056 = vmatprep.mubr.bf16.mxu0 0
  %12057 = vmatmul.mubr.bf16.gmra.mxu0 %v11786
  %v12058 = vpop.f32.mrf.mxu0
  %v12059 = vadd.f32 %v11721, %v12058
  %v12060 = vpop.f32.mrf.mxu0
  %v12061 = vpop.f32.mrf.mxu0
  %v12062 = vadd.f32 %v11721, %v12061
  %v12063 = vpop.f32.mrf.mxu0
  %12064 = vmatprep.mubr.bf16.mxu0 0
  %12065 = vmatmul.mubr.bf16.gmra.mxu0 %v11788
  %v12066 = vpop.f32.mrf.mxu0
  %v12067 = vadd.f32 %v11721, %v12066
  %v12068 = vpop.f32.mrf.mxu0
  %v12069 = vpop.f32.mrf.mxu0
  %v12070 = vadd.f32 %v11721, %v12069
  %v12071 = vpop.f32.mrf.mxu0
  %12072 = vmatprep.mubr.bf16.mxu0 0
  %12073 = vmatmul.mubr.bf16.gmra.mxu0 %v11790
  %v12074 = vpop.f32.mrf.mxu0
  %v12075 = vadd.f32 %v11721, %v12074
  %v12076 = vpop.f32.mrf.mxu0
  %v12077 = vpop.f32.mrf.mxu0
  %v12078 = vadd.f32 %v11721, %v12077
  %v12079 = vpop.f32.mrf.mxu0
  %12080 = vdwg.mxu0
  %v12081 = vpack.c.bf16 %v11830, %v11827
  %v12082 = vpack.c.bf16 %v11838, %v11835
  %v12083 = vpack.c.bf16 %v11846, %v11843
  %v12084 = vpack.c.bf16 %v11854, %v11851
  %v12085 = vpack.c.bf16 %v11862, %v11859
  %v12086 = vpack.c.bf16 %v11870, %v11867
  %v12087 = vpack.c.bf16 %v11878, %v11875
  %v12088 = vpack.c.bf16 %v11886, %v11883
  %v12089 = vpack.c.bf16 %v11894, %v11891
  %v12090 = vpack.c.bf16 %v11902, %v11899
  %v12091 = vpack.c.bf16 %v11910, %v11907
  %v12092 = vpack.c.bf16 %v11918, %v11915
  %v12093 = vpack.c.bf16 %v11926, %v11923
  %v12094 = vpack.c.bf16 %v11934, %v11931
  %v12095 = vpack.c.bf16 %v11942, %v11939
  %v12096 = vpack.c.bf16 %v11950, %v11947
  %v12097 = vpack.c.bf16 %v11958, %v11955
  %v12098 = vpack.c.bf16 %v11966, %v11963
  %v12099 = vpack.c.bf16 %v11974, %v11971
  %v12100 = vpack.c.bf16 %v11982, %v11979
  %v12101 = vpack.c.bf16 %v11990, %v11987
  %v12102 = vpack.c.bf16 %v11998, %v11995
  %v12103 = vpack.c.bf16 %v12006, %v12003
  %v12104 = vpack.c.bf16 %v12014, %v12011
  %v12105 = vpack.c.bf16 %v12022, %v12019
  %v12106 = vpack.c.bf16 %v12030, %v12027
  %v12107 = vpack.c.bf16 %v12038, %v12035
  %v12108 = vpack.c.bf16 %v12046, %v12043
  %v12109 = vpack.c.bf16 %v12054, %v12051
  %v12110 = vpack.c.bf16 %v12062, %v12059
  %v12111 = vpack.c.bf16 %v12070, %v12067
  %v12112 = vpack.c.bf16 %v12078, %v12075
  %v12145 = vunpack.c.l.b16 %v12081
  %v12146 = vunpack.c.h.b16 %v12081
  %v12147 = vunpack.c.l.b16 %v12082
  %v12148 = vunpack.c.h.b16 %v12082
  %v12149 = vunpack.c.l.b16 %v12083
  %v12150 = vunpack.c.h.b16 %v12083
  %v12151 = vunpack.c.l.b16 %v12084
  %v12152 = vunpack.c.h.b16 %v12084
  %v12153 = vunpack.c.l.b16 %v12085
  %v12154 = vunpack.c.h.b16 %v12085
  %v12155 = vunpack.c.l.b16 %v12086
  %v12156 = vunpack.c.h.b16 %v12086
  %v12157 = vunpack.c.l.b16 %v12087
  %v12158 = vunpack.c.h.b16 %v12087
  %v12159 = vunpack.c.l.b16 %v12088
  %v12160 = vunpack.c.h.b16 %v12088
  %v12161 = vunpack.c.l.b16 %v12089
  %v12162 = vunpack.c.h.b16 %v12089
  %v12163 = vunpack.c.l.b16 %v12090
  %v12164 = vunpack.c.h.b16 %v12090
  %v12165 = vunpack.c.l.b16 %v12091
  %v12166 = vunpack.c.h.b16 %v12091
  %v12167 = vunpack.c.l.b16 %v12092
  %v12168 = vunpack.c.h.b16 %v12092
  %v12169 = vunpack.c.l.b16 %v12093
  %v12170 = vunpack.c.h.b16 %v12093
  %v12171 = vunpack.c.l.b16 %v12094
  %v12172 = vunpack.c.h.b16 %v12094
  %v12173 = vunpack.c.l.b16 %v12095
  %v12174 = vunpack.c.h.b16 %v12095
  %v12175 = vunpack.c.l.b16 %v12096
  %v12176 = vunpack.c.h.b16 %v12096
  %v12177 = vunpack.c.l.b16 %v12097
  %v12178 = vunpack.c.h.b16 %v12097
  %v12179 = vunpack.c.l.b16 %v12098
  %v12180 = vunpack.c.h.b16 %v12098
  %v12181 = vunpack.c.l.b16 %v12099
  %v12182 = vunpack.c.h.b16 %v12099
  %v12183 = vunpack.c.l.b16 %v12100
  %v12184 = vunpack.c.h.b16 %v12100
  %v12185 = vunpack.c.l.b16 %v12101
  %v12186 = vunpack.c.h.b16 %v12101
  %v12187 = vunpack.c.l.b16 %v12102
  %v12188 = vunpack.c.h.b16 %v12102
  %v12189 = vunpack.c.l.b16 %v12103
  %v12190 = vunpack.c.h.b16 %v12103
  %v12191 = vunpack.c.l.b16 %v12104
  %v12192 = vunpack.c.h.b16 %v12104
  %v12193 = vunpack.c.l.b16 %v12105
  %v12194 = vunpack.c.h.b16 %v12105
  %v12195 = vunpack.c.l.b16 %v12106
  %v12196 = vunpack.c.h.b16 %v12106
  %v12197 = vunpack.c.l.b16 %v12107
  %v12198 = vunpack.c.h.b16 %v12107
  %v12199 = vunpack.c.l.b16 %v12108
  %v12200 = vunpack.c.h.b16 %v12108
  %v12201 = vunpack.c.l.b16 %v12109
  %v12202 = vunpack.c.h.b16 %v12109
  %v12203 = vunpack.c.l.b16 %v12110
  %v12204 = vunpack.c.h.b16 %v12110
  %v12205 = vunpack.c.l.b16 %v12111
  %v12206 = vunpack.c.h.b16 %v12111
  %v12207 = vunpack.c.l.b16 %v12112
  %v12208 = vunpack.c.h.b16 %v12112
  %v12209 = vpack.c.b16 %v12145, %v12145
  %v12210 = vpack.c.b16 %v12146, %v12146
  %v12211 = vpack.c.b16 %v12147, %v12147
  %v12212 = vpack.c.b16 %v12148, %v12148
  %v12213 = vpack.c.b16 %v12149, %v12149
  %v12214 = vpack.c.b16 %v12150, %v12150
  %v12215 = vpack.c.b16 %v12151, %v12151
  %v12216 = vpack.c.b16 %v12152, %v12152
  %v12217 = vpack.c.b16 %v12153, %v12153
  %v12218 = vpack.c.b16 %v12154, %v12154
  %v12219 = vpack.c.b16 %v12155, %v12155
  %v12220 = vpack.c.b16 %v12156, %v12156
  %v12221 = vpack.c.b16 %v12157, %v12157
  %v12222 = vpack.c.b16 %v12158, %v12158
  %v12223 = vpack.c.b16 %v12159, %v12159
  %v12224 = vpack.c.b16 %v12160, %v12160
  %v12225 = vpack.c.b16 %v12161, %v12161
  %v12226 = vpack.c.b16 %v12162, %v12162
  %v12227 = vpack.c.b16 %v12163, %v12163
  %v12228 = vpack.c.b16 %v12164, %v12164
  %v12229 = vpack.c.b16 %v12165, %v12165
  %v12230 = vpack.c.b16 %v12166, %v12166
  %v12231 = vpack.c.b16 %v12167, %v12167
  %v12232 = vpack.c.b16 %v12168, %v12168
  %v12233 = vpack.c.b16 %v12169, %v12169
  %v12234 = vpack.c.b16 %v12170, %v12170
  %v12235 = vpack.c.b16 %v12171, %v12171
  %v12236 = vpack.c.b16 %v12172, %v12172
  %v12237 = vpack.c.b16 %v12173, %v12173
  %v12238 = vpack.c.b16 %v12174, %v12174
  %v12239 = vpack.c.b16 %v12175, %v12175
  %v12240 = vpack.c.b16 %v12176, %v12176
  %v12241 = vpack.c.b16 %v12177, %v12177
  %v12242 = vpack.c.b16 %v12178, %v12178
  %v12243 = vpack.c.b16 %v12179, %v12179
  %v12244 = vpack.c.b16 %v12180, %v12180
  %v12245 = vpack.c.b16 %v12181, %v12181
  %v12246 = vpack.c.b16 %v12182, %v12182
  %v12247 = vpack.c.b16 %v12183, %v12183
  %v12248 = vpack.c.b16 %v12184, %v12184
  %v12249 = vpack.c.b16 %v12185, %v12185
  %v12250 = vpack.c.b16 %v12186, %v12186
  %v12251 = vpack.c.b16 %v12187, %v12187
  %v12252 = vpack.c.b16 %v12188, %v12188
  %v12253 = vpack.c.b16 %v12189, %v12189
  %v12254 = vpack.c.b16 %v12190, %v12190
  %v12255 = vpack.c.b16 %v12191, %v12191
  %v12256 = vpack.c.b16 %v12192, %v12192
  %v12257 = vpack.c.b16 %v12193, %v12193
  %v12258 = vpack.c.b16 %v12194, %v12194
  %v12259 = vpack.c.b16 %v12195, %v12195
  %v12260 = vpack.c.b16 %v12196, %v12196
  %v12261 = vpack.c.b16 %v12197, %v12197
  %v12262 = vpack.c.b16 %v12198, %v12198
  %v12263 = vpack.c.b16 %v12199, %v12199
  %v12264 = vpack.c.b16 %v12200, %v12200
  %v12265 = vpack.c.b16 %v12201, %v12201
  %v12266 = vpack.c.b16 %v12202, %v12202
  %v12267 = vpack.c.b16 %v12203, %v12203
  %v12268 = vpack.c.b16 %v12204, %v12204
  %v12269 = vpack.c.b16 %v12205, %v12205
  %v12270 = vpack.c.b16 %v12206, %v12206
  %v12271 = vpack.c.b16 %v12207, %v12207
  %v12272 = vpack.c.b16 %v12208, %v12208
  %vm12337 = vcmask 257024
  %12338 = vst.msk [vmem:[%s3] sm:$0xf] %vm12337, %v12209
  %12339 = vst.msk [vmem:[%s3 + $0x4] sm:$0xf] %vm12337, %v12210
  %12340 = vst.msk [vmem:[%s3 + $0x8] sm:$0xf] %vm12337, %v12211
  %12341 = vst.msk [vmem:[%s3 + $0xc] sm:$0xf] %vm12337, %v12212
  %12342 = vst.msk [vmem:[%s3 + $0x10] sm:$0xf] %vm12337, %v12213
  %12343 = vst.msk [vmem:[%s3 + $0x14] sm:$0xf] %vm12337, %v12214
  %12344 = vst.msk [vmem:[%s3 + $0x18] sm:$0xf] %vm12337, %v12215
  %12345 = vst.msk [vmem:[%s3 + $0x1c] sm:$0xf] %vm12337, %v12216
  %12346 = vst.msk [vmem:[%s3 + $0x20] sm:$0xf] %vm12337, %v12217
  %12347 = vst.msk [vmem:[%s3 + $0x24] sm:$0xf] %vm12337, %v12218
  %12348 = vst.msk [vmem:[%s3 + $0x28] sm:$0xf] %vm12337, %v12219
  %12349 = vst.msk [vmem:[%s3 + $0x2c] sm:$0xf] %vm12337, %v12220
  %12350 = vst.msk [vmem:[%s3 + $0x30] sm:$0xf] %vm12337, %v12221
  %12351 = vst.msk [vmem:[%s3 + $0x34] sm:$0xf] %vm12337, %v12222
  %12352 = vst.msk [vmem:[%s3 + $0x38] sm:$0xf] %vm12337, %v12223
  %12353 = vst.msk [vmem:[%s3 + $0x3c] sm:$0xf] %vm12337, %v12224
  %12354 = vst.msk [vmem:[%s3 + $0x40] sm:$0xf] %vm12337, %v12225
  %12355 = vst.msk [vmem:[%s3 + $0x44] sm:$0xf] %vm12337, %v12226
  %12356 = vst.msk [vmem:[%s3 + $0x48] sm:$0xf] %vm12337, %v12227
  %12357 = vst.msk [vmem:[%s3 + $0x4c] sm:$0xf] %vm12337, %v12228
  %12358 = vst.msk [vmem:[%s3 + $0x50] sm:$0xf] %vm12337, %v12229
  %12359 = vst.msk [vmem:[%s3 + $0x54] sm:$0xf] %vm12337, %v12230
  %12360 = vst.msk [vmem:[%s3 + $0x58] sm:$0xf] %vm12337, %v12231
  %12361 = vst.msk [vmem:[%s3 + $0x5c] sm:$0xf] %vm12337, %v12232
  %12362 = vst.msk [vmem:[%s3 + $0x60] sm:$0xf] %vm12337, %v12233
  %12363 = vst.msk [vmem:[%s3 + $0x64] sm:$0xf] %vm12337, %v12234
  %12364 = vst.msk [vmem:[%s3 + $0x68] sm:$0xf] %vm12337, %v12235
  %12365 = vst.msk [vmem:[%s3 + $0x6c] sm:$0xf] %vm12337, %v12236
  %12366 = vst.msk [vmem:[%s3 + $0x70] sm:$0xf] %vm12337, %v12237
  %12367 = vst.msk [vmem:[%s3 + $0x74] sm:$0xf] %vm12337, %v12238
  %12368 = vst.msk [vmem:[%s3 + $0x78] sm:$0xf] %vm12337, %v12239
  %12369 = vst.msk [vmem:[%s3 + $0x7c] sm:$0xf] %vm12337, %v12240
  %12370 = vst.msk [vmem:[%s3 + $0x80] sm:$0xf] %vm12337, %v12241
  %12371 = vst.msk [vmem:[%s3 + $0x84] sm:$0xf] %vm12337, %v12242
  %12372 = vst.msk [vmem:[%s3 + $0x88] sm:$0xf] %vm12337, %v12243
  %12373 = vst.msk [vmem:[%s3 + $0x8c] sm:$0xf] %vm12337, %v12244
  %12374 = vst.msk [vmem:[%s3 + $0x90] sm:$0xf] %vm12337, %v12245
  %12375 = vst.msk [vmem:[%s3 + $0x94] sm:$0xf] %vm12337, %v12246
  %12376 = vst.msk [vmem:[%s3 + $0x98] sm:$0xf] %vm12337, %v12247
  %12377 = vst.msk [vmem:[%s3 + $0x9c] sm:$0xf] %vm12337, %v12248
  %12378 = vst.msk [vmem:[%s3 + $0xa0] sm:$0xf] %vm12337, %v12249
  %12379 = vst.msk [vmem:[%s3 + $0xa4] sm:$0xf] %vm12337, %v12250
  %12380 = vst.msk [vmem:[%s3 + $0xa8] sm:$0xf] %vm12337, %v12251
  %12381 = vst.msk [vmem:[%s3 + $0xac] sm:$0xf] %vm12337, %v12252
  %12382 = vst.msk [vmem:[%s3 + $0xb0] sm:$0xf] %vm12337, %v12253
  %12383 = vst.msk [vmem:[%s3 + $0xb4] sm:$0xf] %vm12337, %v12254
  %12384 = vst.msk [vmem:[%s3 + $0xb8] sm:$0xf] %vm12337, %v12255
  %12385 = vst.msk [vmem:[%s3 + $0xbc] sm:$0xf] %vm12337, %v12256
  %12386 = vst.msk [vmem:[%s3 + $0xc0] sm:$0xf] %vm12337, %v12257
  %12387 = vst.msk [vmem:[%s3 + $0xc4] sm:$0xf] %vm12337, %v12258
  %12388 = vst.msk [vmem:[%s3 + $0xc8] sm:$0xf] %vm12337, %v12259
  %12389 = vst.msk [vmem:[%s3 + $0xcc] sm:$0xf] %vm12337, %v12260
  %12390 = vst.msk [vmem:[%s3 + $0xd0] sm:$0xf] %vm12337, %v12261
  %12391 = vst.msk [vmem:[%s3 + $0xd4] sm:$0xf] %vm12337, %v12262
  %12392 = vst.msk [vmem:[%s3 + $0xd8] sm:$0xf] %vm12337, %v12263
  %12393 = vst.msk [vmem:[%s3 + $0xdc] sm:$0xf] %vm12337, %v12264
  %12394 = vst.msk [vmem:[%s3 + $0xe0] sm:$0xf] %vm12337, %v12265
  %12395 = vst.msk [vmem:[%s3 + $0xe4] sm:$0xf] %vm12337, %v12266
  %12396 = vst.msk [vmem:[%s3 + $0xe8] sm:$0xf] %vm12337, %v12267
  %12397 = vst.msk [vmem:[%s3 + $0xec] sm:$0xf] %vm12337, %v12268
  %12398 = vst.msk [vmem:[%s3 + $0xf0] sm:$0xf] %vm12337, %v12269
  %12399 = vst.msk [vmem:[%s3 + $0xf4] sm:$0xf] %vm12337, %v12270
  %12400 = vst.msk [vmem:[%s3 + $0xf8] sm:$0xf] %vm12337, %v12271
  %12401 = vst.msk [vmem:[%s3 + $0xfc] sm:$0xf] %vm12337, %v12272
  // Predicated region
  $region14: #{tpu_custom_call.1} parent=0 // pred_check
    _
  $region15: #{tpu_custom_call.1} parent=0 // pred_check_branch
    %12403 = sbr.rel (0) target = $region17
  $region16: #{tpu_custom_call.1} parent=0 // pred_region
    _
  $region17: #{tpu_custom_call.1} parent=0 // pred_fallthru
    _
  // Predicated region
  $region18: #{tpu_custom_call.1} parent=0 // pred_check
    _
  $region19: #{tpu_custom_call.1} parent=0 // pred_check_branch
    %12405 = sbr.rel (0) target = $region21
  $region20: #{tpu_custom_call.1} parent=0 // pred_region
    _
  $region21: #{tpu_custom_call.1} parent=0 // pred_fallthru
    _

</llo_original>
